<compile_context>
chip_gen: v7x
topology: tpu7x:2x2x1
jax: 0.10.0
libtpu: 0.0.40
codegen_flags: <defaults>
</compile_context>

<pallas_src>
import functools

import jax
import jax.numpy as jnp
from jax import lax
from jax.experimental import pallas as pl
from jax.experimental.pallas import tpu as pltpu


# --------------------------- device / sizing helpers ------------------------


def _round_up(v, m):
    return ((v + m - 1) // m) * m


def _vmem_budget_bytes():
    """~75% of per-core VMEM: 96 MiB on v5e/v6e, 48 MiB on v7x / unknown."""
    cap = 64 * 1024 * 1024  # conservative fallback (v7x per-TC physical VMEM)
    try:
        cap = int(getattr(pltpu.get_tpu_info(), "vmem_capacity_bytes", cap))
    except Exception:
        pass
    return (cap * 3) // 4


def _fused_vmem_estimate(n, h):
    return (n * n * 2              # adj (bf16)
            + n * h * 2            # x (bf16)
            + 2 * h * h * 2        # W1^T, W2^T (bf16)
            + 8 * n * h * 4        # f32 intermediates (Ax, pre1, Axx, pre, out, residual) + slack
            + n * h * 4)           # normalized output


def _tiled_vmem_estimate(n, h, tm, tk, resident_k):
    return (tm * tk * 2 * 3                                    # adj tiles, Buffered(3)
            + (n * h * 2 if resident_k else tk * h * 2 * 2)    # K operand (x / y)
            + tm * h * 2 * 2                                   # x row tile (bf16)
            + h * h * 2 + h * 4 * 2                            # W^T (single buffer) + bias
            + tm * h * 4 * 2                                   # pre1
            + tm * h * 2 * 2                                   # y
            + tm * h * 4 * 2                                   # residual
            + tm * h * 4 * 2 + tm * h * 2 * 2                  # outputs
            + tm * h * 4)                                      # f32 accumulator scratch


def _pick_tiles(n, h, budget, force_stream_k):
    """Pick (tm, tk, resident_k) for padded sizes n, h (multiples of 128)."""
    resident_k = (not force_stream_k) and (n * h * 2 <= budget // 4)
    tms = [t for t in (1024, 512, 256, 128, 64, 32, 16, 8) if n % t == 0]
    if n >= 256:  # keep >= 2 row blocks so both v7x TensorCores get work
        tms = [t for t in tms if t <= n // 2] or [n]
    if resident_k:
        tks = [n]
    else:
        tks = [t for t in (512, 256, 128) if n % t == 0] or [n]
        if force_stream_k:
            tks = [t for t in tks if t <= n // 2] or tks
    for tm in tms:
        for tk in tks:
            if _tiled_vmem_estimate(n, h, tm, tk, resident_k) <= budget:
                return tm, tk, resident_k
    return tms[-1], tks[-1], resident_k


def _pad2(a, rows, cols):
    r, c = a.shape
    if r == rows and c == cols:
        return a
    return jnp.pad(a, ((0, rows - r), (0, cols - c)))


# ----------------------------- Pallas kernels ------------------------------


def _fused_kernel(adj_ref, xb_ref, w1t_ref, b1_ref, w2t_ref, b2_ref, out_ref,
                  *, num_layers, layer_decay):
    """All layers + final F.normalize with everything resident in VMEM."""
    adj = adj_ref[...]          # bf16 (N, N)
    w1t = w1t_ref[...]          # bf16 (H, H)
    w2t = w2t_ref[...]
    b1 = b1_ref[...]            # f32 (1, H)
    b2 = b2_ref[...]
    xb = xb_ref[...]            # bf16 (N, H)

    residual = None
    out = None
    for _ in range(num_layers):
        xf = xb.astype(jnp.float32)
        ax = jnp.dot(adj, xb, preferred_element_type=jnp.float32)
        pre1 = jnp.dot(ax.astype(jnp.bfloat16), w1t,
                       preferred_element_type=jnp.float32) + b1
        y = (ax * xf).astype(jnp.bfloat16)
        axx = jnp.dot(adj, y, preferred_element_type=jnp.float32)
        pre = pre1 + jnp.dot(axx.astype(jnp.bfloat16), w2t,
                             preferred_element_type=jnp.float32) + b2
        # ELU(alpha=1): clamp the exp argument so the dead branch can't overflow.
        out = jnp.where(pre > 0, pre, jnp.exp(jnp.minimum(pre, 0.0)) - 1.0)
        if residual is not None:
            out = residual + jnp.float32(layer_decay) * out
        residual = pre
        xb = out.astype(jnp.bfloat16)

    # F.normalize(out, dim=1), fused (EUP rsqrt).
    ssum = jnp.sum(out * out, axis=1, keepdims=True)
    out_ref[...] = out * lax.rsqrt(jnp.maximum(ssum, jnp.float32(1e-24)))


def _pass_a_kernel(adj_ref, xk_ref, xi_ref, w1t_ref, b1_ref,
                   pre1_ref, y_ref, acc_ref):
    """Pass A: Ax = adj @ x ; pre1 = Ax @ W1^T + b1 ; y = Ax * x (bf16)."""
    k = pl.program_id(1)

    @pl.when(k == 0)
    def _():
        acc_ref[...] = jnp.zeros_like(acc_ref)

    acc_ref[...] += jnp.dot(adj_ref[...], xk_ref[...],
                            preferred_element_type=jnp.float32)

    @pl.when(k == pl.num_programs(1) - 1)
    def _():
        ax = acc_ref[...]
        pre1_ref[...] = (
            jnp.dot(ax.astype(jnp.bfloat16), w1t_ref[...],
                    preferred_element_type=jnp.float32)
            + b1_ref[...]
        )
        # Elementwise product against the bf16 row tile (upcast in-kernel).
        y_ref[...] = (ax * xi_ref[...].astype(jnp.float32)).astype(jnp.bfloat16)


def _pass_b_kernel(adj_ref, yk_ref, pre1_ref, w2t_ref, b2_ref, *rest,
                   use_residual, is_last, layer_decay):
    """Pass B: Axx = adj @ y ; pre = pre1 + Axx @ W2^T + b2 ; out = elu(pre).

    Last layer fuses F.normalize and only emits the normalized f32 output;
    other layers emit (pre, out_bf16) for the residual chain / next layer.
    """
    idx = 0
    res_ref = None
    if use_residual:
        res_ref = rest[idx]
        idx += 1
    if is_last:
        out_ref = rest[idx]
        idx += 1
        pre_ref = outb_ref = None
    else:
        pre_ref, outb_ref = rest[idx], rest[idx + 1]
        idx += 2
    acc_ref = rest[idx]

    k = pl.program_id(1)

    @pl.when(k == 0)
    def _():
        acc_ref[...] = jnp.zeros_like(acc_ref)

    acc_ref[...] += jnp.dot(adj_ref[...], yk_ref[...],
                            preferred_element_type=jnp.float32)

    @pl.when(k == pl.num_programs(1) - 1)
    def _():
        axx = acc_ref[...]
        pre = (
            pre1_ref[...]
            + jnp.dot(axx.astype(jnp.bfloat16), w2t_ref[...],
                      preferred_element_type=jnp.float32)
            + b2_ref[...]
        )
        out = jnp.where(pre > 0, pre, jnp.exp(jnp.minimum(pre, 0.0)) - 1.0)
        if use_residual:
            out = res_ref[...] + jnp.float32(layer_decay) * out
        if is_last:
            # Fused F.normalize(dim=1): the full H row is resident in this tile.
            ssum = jnp.sum(out * out, axis=1, keepdims=True)
            out_ref[...] = out * lax.rsqrt(jnp.maximum(ssum, jnp.float32(1e-24)))
        else:
            pre_ref[...] = pre
            outb_ref[...] = out.astype(jnp.bfloat16)


# ------------------------------ JAX wrappers --------------------------------


def _fused_forward(adj_b, x_b, w1t_b, b1, w2t_b, b2, *, num_layers, layer_decay,
                   vmem_limit):
    n, h = x_b.shape
    kernel = functools.partial(_fused_kernel, num_layers=num_layers,
                               layer_decay=layer_decay)

    def full(shape):
        return pl.BlockSpec(shape, lambda i: (0, 0))

    return pl.pallas_call(
        kernel,
        grid=(1,),
        in_specs=[
            full((n, n)),     # adj (bf16)
            full((n, h)),     # x   (bf16)
            full((h, h)),     # W1^T
            full((1, h)),     # b1
            full((h, h)),     # W2^T
            full((1, h)),     # b2
        ],
        out_specs=full((n, h)),
        out_shape=jax.ShapeDtypeStruct((n, h), jnp.float32),
        compiler_params=pltpu.CompilerParams(
            dimension_semantics=("arbitrary",),
            vmem_limit_bytes=vmem_limit,
        ),
    )(adj_b, x_b, w1t_b, b1, w2t_b, b2)


def _pass_a(adj_b, x_b, w1t_b, b1, *, tm, tk, resident_k, cparams):
    n, h = x_b.shape
    grid = (n // tm, n // tk)
    kop_kwargs = {"pipeline_mode": pl.Buffered(1)} if resident_k else {}
    return pl.pallas_call(
        _pass_a_kernel,
        grid=grid,
        in_specs=[
            pl.BlockSpec((tm, tk), lambda i, k: (i, k),
                         pipeline_mode=pl.Buffered(3)),         # adj tile
            pl.BlockSpec((tk, h), lambda i, k: (k, 0), **kop_kwargs),  # x K-operand
            pl.BlockSpec((tm, h), lambda i, k: (i, 0)),          # x row tile (bf16)
            pl.BlockSpec((h, h), lambda i, k: (0, 0),
                         pipeline_mode=pl.Buffered(1)),          # W1^T (resident)
            pl.BlockSpec((1, h), lambda i, k: (0, 0),
                         pipeline_mode=pl.Buffered(1)),          # b1
        ],
        out_specs=(
            pl.BlockSpec((tm, h), lambda i, k: (i, 0)),          # pre1 (f32)
            pl.BlockSpec((tm, h), lambda i, k: (i, 0)),          # y = Ax*x (bf16)
        ),
        out_shape=(
            jax.ShapeDtypeStruct((n, h), jnp.float32),
            jax.ShapeDtypeStruct((n, h), jnp.bfloat16),
        ),
        scratch_shapes=[pltpu.VMEM((tm, h), jnp.float32)],
        compiler_params=cparams,
    )(adj_b, x_b, x_b, w1t_b, b1)


def _pass_b(adj_b, y_b, pre1, w2t_b, b2, residual, *, layer_decay, is_last,
            tm, tk, resident_k, cparams):
    n, h = pre1.shape
    grid = (n // tm, n // tk)
    use_residual = residual is not None
    kop_kwargs = {"pipeline_mode": pl.Buffered(1)} if resident_k else {}

    def row_spec():
        return pl.BlockSpec((tm, h), lambda i, k: (i, 0))

    in_specs = [
        pl.BlockSpec((tm, tk), lambda i, k: (i, k),
                     pipeline_mode=pl.Buffered(3)),              # adj tile
        pl.BlockSpec((tk, h), lambda i, k: (k, 0), **kop_kwargs),  # y K-operand
        row_spec(),                                               # pre1
        pl.BlockSpec((h, h), lambda i, k: (0, 0),
                     pipeline_mode=pl.Buffered(1)),               # W2^T (resident)
        pl.BlockSpec((1, h), lambda i, k: (0, 0),
                     pipeline_mode=pl.Buffered(1)),               # b2
    ]
    args = [adj_b, y_b, pre1, w2t_b, b2]
    if use_residual:
        in_specs.append(row_spec())
        args.append(residual)

    if is_last:
        out_specs = row_spec()
        out_shape = jax.ShapeDtypeStruct((n, h), jnp.float32)     # normalized out
    else:
        out_specs = (row_spec(), row_spec())
        out_shape = (jax.ShapeDtypeStruct((n, h), jnp.float32),   # pre (residual)
                     jax.ShapeDtypeStruct((n, h), jnp.bfloat16))  # out (next layer)

    kernel = functools.partial(_pass_b_kernel, use_residual=use_residual,
                               is_last=is_last, layer_decay=layer_decay)
    return pl.pallas_call(
        kernel,
        grid=grid,
        in_specs=in_specs,
        out_specs=out_specs,
        out_shape=out_shape,
        scratch_shapes=[pltpu.VMEM((tm, h), jnp.float32)],
        compiler_params=cparams,
    )(*args)


def _tiled_forward(adj_b, x_b, w1t_b, b1, w2t_b, b2, *, num_layers, layer_decay,
                   budget, force_stream_k):
    n, h = x_b.shape
    tm, tk, resident_k = _pick_tiles(n, h, budget, force_stream_k)
    cparams = pltpu.CompilerParams(
        dimension_semantics=("parallel", "arbitrary"),
        vmem_limit_bytes=budget,
    )

    residual = None
    out = None
    for layer in range(num_layers):
        is_last = layer == num_layers - 1
        pre1, y_b = _pass_a(adj_b, x_b, w1t_b, b1,
                            tm=tm, tk=tk, resident_k=resident_k, cparams=cparams)
        outs = _pass_b(adj_b, y_b, pre1, w2t_b, b2, residual,
                       layer_decay=layer_decay, is_last=is_last,
                       tm=tm, tk=tk, resident_k=resident_k, cparams=cparams)
        if is_last:
            out = outs                      # normalized f32 output
        else:
            residual, x_b = outs            # (pre f32, out bf16)
    return out


def residual_gcn_forward(x, adj, params, *, num_layers=2, layer_decay=0.4,
                         force_tiled=False, force_stream_k=False):
    """Pallas implementation of ResidualGraphConvolutionalNetwork.forward."""
    assert num_layers >= 1
    w1t, b1, w2t, b2 = params
    n, h = x.shape
    assert adj.shape == (n, n)

    np_ = _round_up(n, 128)
    hp = _round_up(h, 128)
    budget = _vmem_budget_bytes()

    # Zero-pad to (8,128)-friendly shapes; padding is exactly neutral because
    # padded adj rows/cols are zero and padded feature columns stay zero.
    x_p = _pad2(x.astype(jnp.float32), np_, hp)
    adj_p = _pad2(adj.astype(jnp.float32), np_, np_)
    w1t_p = _pad2(w1t.astype(jnp.float32), hp, hp)
    w2t_p = _pad2(w2t.astype(jnp.float32), hp, hp)
    b1_p = _pad2(jnp.asarray(b1, jnp.float32).reshape(1, h), 1, hp)
    b2_p = _pad2(jnp.asarray(b2, jnp.float32).reshape(1, h), 1, hp)

    # Matmul operands in bf16 (halves adj/x traffic, 2x MXU rate); f32 elsewhere.
    adj_b = adj_p.astype(jnp.bfloat16)
    x_b = x_p.astype(jnp.bfloat16)
    w1t_b = w1t_p.astype(jnp.bfloat16)
    w2t_b = w2t_p.astype(jnp.bfloat16)

    use_fused = (not force_tiled) and (
        _fused_vmem_estimate(np_, hp) <= (budget * 3) // 5)

    if use_fused:
        out = _fused_forward(adj_b, x_b, w1t_b, b1_p, w2t_b, b2_p,
                             num_layers=num_layers, layer_decay=layer_decay,
                             vmem_limit=budget)
    else:
        out = _tiled_forward(adj_b, x_b, w1t_b, b1_p, w2t_b, b2_p,
                             num_layers=num_layers, layer_decay=layer_decay,
                             budget=budget, force_stream_k=force_stream_k)
    return out[:n, :h]


# ------------------------- parameter construction ---------------------------


def make_params(hidden_units, init_weights, key):
    # init_w = randn(H, H) * init_weights, with diagonal set to 1.
    # nn.Linear computes y = x @ W^T + b, so the kernels consume W^T.
    init_w = jax.random.normal(key, (hidden_units, hidden_units),
                               dtype=jnp.float32) * init_weights
    init_w = init_w.at[jnp.diag_indices(hidden_units)].set(1.0)
    w1t = init_w.T
    w2t = init_w.T  # dense2 is initialized from the same init_w
    b1 = jnp.zeros((1, hidden_units), dtype=jnp.float32)
    b2 = jnp.zeros((1, hidden_units), dtype=jnp.float32)
    return w1t, b1, w2t, b2


# ----------------------------- pure-JAX reference ----------------------------


def reference_forward(x, adj, params, *, num_layers=2, layer_decay=0.4):
    """Emulates the kernels' bf16-operand / f32-accumulate arithmetic."""
    w1t, b1, w2t, b2 = params
    adj_b = adj.astype(jnp.bfloat16)
    w1t_b = w1t.astype(jnp.bfloat16)
    w2t_b = w2t.astype(jnp.bfloat16)

    xb = x.astype(jnp.float32).astype(jnp.bfloat16)
    residual = None
    out = None
    for _ in range(num_layers):
        xf = xb.astype(jnp.float32)
        ax = jnp.dot(adj_b, xb, preferred_element_type=jnp.float32)
        pre1 = jnp.dot(ax.astype(jnp.bfloat16), w1t_b,
                       preferred_element_type=jnp.float32) + b1
        y = (ax * xf).astype(jnp.bfloat16)
        axx = jnp.dot(adj_b, y, preferred_element_type=jnp.float32)
        pre = pre1 + jnp.dot(axx.astype(jnp.bfloat16), w2t_b,
                             preferred_element_type=jnp.float32) + b2
        out = jnp.where(pre > 0, pre, jnp.exp(jnp.minimum(pre, 0.0)) - 1.0)
        if residual is not None:
            out = residual + jnp.float32(layer_decay) * out
        residual = pre
        xb = out.astype(jnp.bfloat16)

    ssum = jnp.sum(out * out, axis=1, keepdims=True)
    return out * lax.rsqrt(jnp.maximum(ssum, jnp.float32(1e-24)))


# --------------------------------- main --------------------------------------


if __name__ == "__main__":
    H = 256           # hidden_units (lane-dense; module default is 2048)
    NUM_LAYERS = 2
    LAYER_DECAY = 0.4
    INIT_WEIGHTS = 1e-5

    key = jax.random.PRNGKey(0)
    k_x, k_adj, k_w = jax.random.split(key, 3)
    params = make_params(H, INIT_WEIGHTS, k_w)

    def run_case(n, **kwargs):
        kx = jax.random.fold_in(k_x, n)
        ka = jax.random.fold_in(k_adj, n)
        x = jax.random.normal(kx, (n, H), dtype=jnp.float32)
        # Dense, row-normalized adjacency (equivalent to the sparse mm here).
        u = jax.random.uniform(ka, (n, n), dtype=jnp.float32)
        adj = u / jnp.sum(u, axis=1, keepdims=True)

        out = residual_gcn_forward(x, adj, params, num_layers=NUM_LAYERS,
                                   layer_decay=LAYER_DECAY, **kwargs)
        out = jax.block_until_ready(out)
        ref = reference_forward(x, adj, params, num_layers=NUM_LAYERS,
                                layer_decay=LAYER_DECAY)
        assert out.shape == (n, H)
        max_err = float(jnp.max(jnp.abs(out - ref)))
        assert jnp.allclose(out, ref, atol=1e-3, rtol=1e-3), (
            f"mismatch vs reference (n={n}, {kwargs}): max abs err={max_err}")

    # 1) Fully fused single-kernel path (whole problem resident in VMEM).
    run_case(512)
    # 2) Tiled path with VMEM-resident K-operand + padding (N=500 -> 512).
    run_case(500, force_tiled=True)
    # 3) Tiled path with K-streaming accumulation (grid reduction axis > 1).
    run_case(512, force_tiled=True, force_stream_k=True)

    print("KERNEL_OK")
</pallas_src>

<mosaic_0001>
module attributes {stable_mosaic.version = 11 : i64} {
  func.func @_fused_kernel(%arg0: i32, %arg1: memref<512x512xbf16, #tpu.memory_space<vmem>>, %arg2: memref<512x256xbf16, #tpu.memory_space<vmem>>, %arg3: memref<256x256xbf16, #tpu.memory_space<vmem>>, %arg4: memref<1x256xf32, #tpu.memory_space<vmem>>, %arg5: memref<256x256xbf16, #tpu.memory_space<vmem>>, %arg6: memref<1x256xf32, #tpu.memory_space<vmem>>, %arg7: memref<512x256xf32, #tpu.memory_space<vmem>>) attributes {dimension_semantics = [#tpu.dimension_semantics<arbitrary>], iteration_bounds = array<i64: 1>, scalar_prefetch = 0 : i64, scratch_operands = 0 : i64, tpu.core_type = #tpu.core_type<tc>, window_params = [{pipeline_mode = #tpu.pipeline_mode<synchronous>, transform_indices = @transform_0, window_bounds = array<i64: 512, 512>}, {pipeline_mode = #tpu.pipeline_mode<synchronous>, transform_indices = @transform_1, window_bounds = array<i64: 512, 256>}, {pipeline_mode = #tpu.pipeline_mode<synchronous>, transform_indices = @transform_2, window_bounds = array<i64: 256, 256>}, {pipeline_mode = #tpu.pipeline_mode<synchronous>, transform_indices = @transform_3, window_bounds = array<i64: 1, 256>}, {pipeline_mode = #tpu.pipeline_mode<synchronous>, transform_indices = @transform_4, window_bounds = array<i64: 256, 256>}, {pipeline_mode = #tpu.pipeline_mode<synchronous>, transform_indices = @transform_5, window_bounds = array<i64: 1, 256>}, {pipeline_mode = #tpu.pipeline_mode<synchronous>, transform_indices = @transform_6, window_bounds = array<i64: 512, 256>}]} {
    %c0 = arith.constant 0 : index
    %c0_0 = arith.constant 0 : index
    %0 = vector.load %arg1[%c0, %c0_0] : memref<512x512xbf16, #tpu.memory_space<vmem>>, vector<512x512xbf16>
    %c0_1 = arith.constant 0 : index
    %c0_2 = arith.constant 0 : index
    %1 = vector.load %arg3[%c0_1, %c0_2] : memref<256x256xbf16, #tpu.memory_space<vmem>>, vector<256x256xbf16>
    %c0_3 = arith.constant 0 : index
    %c0_4 = arith.constant 0 : index
    %2 = vector.load %arg5[%c0_3, %c0_4] : memref<256x256xbf16, #tpu.memory_space<vmem>>, vector<256x256xbf16>
    %c0_5 = arith.constant 0 : index
    %c0_6 = arith.constant 0 : index
    %3 = vector.load %arg4[%c0_5, %c0_6] : memref<1x256xf32, #tpu.memory_space<vmem>>, vector<1x256xf32>
    %c0_7 = arith.constant 0 : index
    %c0_8 = arith.constant 0 : index
    %4 = vector.load %arg6[%c0_7, %c0_8] : memref<1x256xf32, #tpu.memory_space<vmem>>, vector<1x256xf32>
    %c0_9 = arith.constant 0 : index
    %c0_10 = arith.constant 0 : index
    %5 = vector.load %arg2[%c0_9, %c0_10] : memref<512x256xbf16, #tpu.memory_space<vmem>>, vector<512x256xbf16>
    %6 = arith.extf %5 : vector<512x256xbf16> to vector<512x256xf32>
    %cst = arith.constant dense<0.000000e+00> : vector<512x256xf32>
    %7 = tpu.matmul %0, %5, %cst {dimension_numbers = #tpu.dot_dimension_numbers<[1], [0], [0], [1], [0, 0, 1, 1], [], []>} : vector<512x512xbf16>, vector<512x256xbf16>, vector<512x256xf32> -> vector<512x256xf32>
    %8 = arith.truncf %7 : vector<512x256xf32> to vector<512x256xbf16>
    %cst_11 = arith.constant dense<0.000000e+00> : vector<512x256xf32>
    %9 = tpu.matmul %8, %1, %cst_11 {dimension_numbers = #tpu.dot_dimension_numbers<[1], [0], [0], [1], [0, 0, 1, 1], [], []>} : vector<512x256xbf16>, vector<256x256xbf16>, vector<512x256xf32> -> vector<512x256xf32>
    %10 = vector.broadcast %3 : vector<1x256xf32> to vector<512x256xf32>
    %11 = arith.addf %9, %10 : vector<512x256xf32>
    %12 = arith.mulf %7, %6 : vector<512x256xf32>
    %13 = arith.truncf %12 : vector<512x256xf32> to vector<512x256xbf16>
    %cst_12 = arith.constant dense<0.000000e+00> : vector<512x256xf32>
    %14 = tpu.matmul %0, %13, %cst_12 {dimension_numbers = #tpu.dot_dimension_numbers<[1], [0], [0], [1], [0, 0, 1, 1], [], []>} : vector<512x512xbf16>, vector<512x256xbf16>, vector<512x256xf32> -> vector<512x256xf32>
    %15 = arith.truncf %14 : vector<512x256xf32> to vector<512x256xbf16>
    %cst_13 = arith.constant dense<0.000000e+00> : vector<512x256xf32>
    %16 = tpu.matmul %15, %2, %cst_13 {dimension_numbers = #tpu.dot_dimension_numbers<[1], [0], [0], [1], [0, 0, 1, 1], [], []>} : vector<512x256xbf16>, vector<256x256xbf16>, vector<512x256xf32> -> vector<512x256xf32>
    %17 = arith.addf %11, %16 : vector<512x256xf32>
    %18 = vector.broadcast %4 : vector<1x256xf32> to vector<512x256xf32>
    %19 = arith.addf %17, %18 : vector<512x256xf32>
    %cst_14 = arith.constant 0.000000e+00 : f32
    %20 = vector.broadcast %cst_14 : f32 to vector<512x256xf32>
    %21 = arith.cmpf ogt, %19, %20 : vector<512x256xf32>
    %cst_15 = arith.constant 0.000000e+00 : f32
    %22 = vector.broadcast %cst_15 : f32 to vector<512x256xf32>
    %23 = arith.minimumf %19, %22 : vector<512x256xf32>
    %24 = math.exp %23 : vector<512x256xf32>
    %cst_16 = arith.constant 1.000000e+00 : f32
    %25 = vector.broadcast %cst_16 : f32 to vector<512x256xf32>
    %26 = arith.subf %24, %25 : vector<512x256xf32>
    %27 = arith.select %21, %19, %26 : vector<512x256xi1>, vector<512x256xf32>
    %28 = arith.truncf %27 : vector<512x256xf32> to vector<512x256xbf16>
    %29 = arith.extf %28 : vector<512x256xbf16> to vector<512x256xf32>
    %cst_17 = arith.constant dense<0.000000e+00> : vector<512x256xf32>
    %30 = tpu.matmul %0, %28, %cst_17 {dimension_numbers = #tpu.dot_dimension_numbers<[1], [0], [0], [1], [0, 0, 1, 1], [], []>} : vector<512x512xbf16>, vector<512x256xbf16>, vector<512x256xf32> -> vector<512x256xf32>
    %31 = arith.truncf %30 : vector<512x256xf32> to vector<512x256xbf16>
    %cst_18 = arith.constant dense<0.000000e+00> : vector<512x256xf32>
    %32 = tpu.matmul %31, %1, %cst_18 {dimension_numbers = #tpu.dot_dimension_numbers<[1], [0], [0], [1], [0, 0, 1, 1], [], []>} : vector<512x256xbf16>, vector<256x256xbf16>, vector<512x256xf32> -> vector<512x256xf32>
    %33 = vector.broadcast %3 : vector<1x256xf32> to vector<512x256xf32>
    %34 = arith.addf %32, %33 : vector<512x256xf32>
    %35 = arith.mulf %30, %29 : vector<512x256xf32>
    %36 = arith.truncf %35 : vector<512x256xf32> to vector<512x256xbf16>
    %cst_19 = arith.constant dense<0.000000e+00> : vector<512x256xf32>
    %37 = tpu.matmul %0, %36, %cst_19 {dimension_numbers = #tpu.dot_dimension_numbers<[1], [0], [0], [1], [0, 0, 1, 1], [], []>} : vector<512x512xbf16>, vector<512x256xbf16>, vector<512x256xf32> -> vector<512x256xf32>
    %38 = arith.truncf %37 : vector<512x256xf32> to vector<512x256xbf16>
    %cst_20 = arith.constant dense<0.000000e+00> : vector<512x256xf32>
    %39 = tpu.matmul %38, %2, %cst_20 {dimension_numbers = #tpu.dot_dimension_numbers<[1], [0], [0], [1], [0, 0, 1, 1], [], []>} : vector<512x256xbf16>, vector<256x256xbf16>, vector<512x256xf32> -> vector<512x256xf32>
    %40 = arith.addf %34, %39 : vector<512x256xf32>
    %41 = vector.broadcast %4 : vector<1x256xf32> to vector<512x256xf32>
    %42 = arith.addf %40, %41 : vector<512x256xf32>
    %cst_21 = arith.constant 0.000000e+00 : f32
    %43 = vector.broadcast %cst_21 : f32 to vector<512x256xf32>
    %44 = arith.cmpf ogt, %42, %43 : vector<512x256xf32>
    %cst_22 = arith.constant 0.000000e+00 : f32
    %45 = vector.broadcast %cst_22 : f32 to vector<512x256xf32>
    %46 = arith.minimumf %42, %45 : vector<512x256xf32>
    %47 = math.exp %46 : vector<512x256xf32>
    %cst_23 = arith.constant 1.000000e+00 : f32
    %48 = vector.broadcast %cst_23 : f32 to vector<512x256xf32>
    %49 = arith.subf %47, %48 : vector<512x256xf32>
    %50 = arith.select %44, %42, %49 : vector<512x256xi1>, vector<512x256xf32>
    %cst_24 = arith.constant 4.000000e-01 : f32
    %51 = vector.broadcast %cst_24 : f32 to vector<512x256xf32>
    %52 = arith.mulf %51, %50 : vector<512x256xf32>
    %53 = arith.addf %19, %52 : vector<512x256xf32>
    %54 = arith.mulf %53, %53 : vector<512x256xf32>
    %cst_25 = arith.constant dense<0.000000e+00> : vector<512xf32>
    %55 = vector.multi_reduction <add>, %54, %cst_25 [1] : vector<512x256xf32> to vector<512xf32>
    %56 = vector.shape_cast %55 : vector<512xf32> to vector<512x1xf32>
    %cst_26 = arith.constant 1.000000e-24 : f32
    %57 = vector.broadcast %cst_26 : f32 to vector<512x1xf32>
    %58 = arith.maximumf %56, %57 : vector<512x1xf32>
    %59 = math.rsqrt %58 : vector<512x1xf32>
    %60 = vector.broadcast %59 : vector<512x1xf32> to vector<512x256xf32>
    %61 = arith.mulf %53, %60 : vector<512x256xf32>
    %c0_27 = arith.constant 0 : index
    %c0_28 = arith.constant 0 : index
    %62 = vector.load %arg7[%c0_27, %c0_28] : memref<512x256xf32, #tpu.memory_space<vmem>>, vector<512x256xf32>
    tpu.vector_store %arg7[%c0_27, %c0_28], %61 {strides = array<i32>} : memref<512x256xf32, #tpu.memory_space<vmem>>, vector<512x256xf32>,
    return
  }
  func.func @transform_0(%arg0: i32) -> (i32, i32) {
    %c0_i32 = arith.constant 0 : i32
    %c0_i32_0 = arith.constant 0 : i32
    %c0_i32_1 = arith.constant 0 : i32
    return %c0_i32, %c0_i32_0 : i32, i32
  }
  func.func @transform_1(%arg0: i32) -> (i32, i32) {
    %c0_i32 = arith.constant 0 : i32
    %c0_i32_0 = arith.constant 0 : i32
    %c0_i32_1 = arith.constant 0 : i32
    return %c0_i32, %c0_i32_0 : i32, i32
  }
  func.func @transform_2(%arg0: i32) -> (i32, i32) {
    %c0_i32 = arith.constant 0 : i32
    %c0_i32_0 = arith.constant 0 : i32
    %c0_i32_1 = arith.constant 0 : i32
    return %c0_i32, %c0_i32_0 : i32, i32
  }
  func.func @transform_3(%arg0: i32) -> (i32, i32) {
    %c0_i32 = arith.constant 0 : i32
    %c0_i32_0 = arith.constant 0 : i32
    %c0_i32_1 = arith.constant 0 : i32
    return %c0_i32, %c0_i32_0 : i32, i32
  }
  func.func @transform_4(%arg0: i32) -> (i32, i32) {
    %c0_i32 = arith.constant 0 : i32
    %c0_i32_0 = arith.constant 0 : i32
    %c0_i32_1 = arith.constant 0 : i32
    return %c0_i32, %c0_i32_0 : i32, i32
  }
  func.func @transform_5(%arg0: i32) -> (i32, i32) {
    %c0_i32 = arith.constant 0 : i32
    %c0_i32_0 = arith.constant 0 : i32
    %c0_i32_1 = arith.constant 0 : i32
    return %c0_i32, %c0_i32_0 : i32, i32
  }
  func.func @transform_6(%arg0: i32) -> (i32, i32) {
    %c0_i32 = arith.constant 0 : i32
    %c0_i32_0 = arith.constant 0 : i32
    %c0_i32_1 = arith.constant 0 : i32
    return %c0_i32, %c0_i32_0 : i32, i32
  }
}

</mosaic_0001>

<llo_original>
// kernel: tpu_custom_call.1
$region0: #{tpu_custom_call.1}
  #allocation0 [shape = 'u32[]', space=smem, size = 0x4, offset = 0x4, fixed_abs, tag = 'smem constant byte address 0x4 - core index']
  #allocation1 [shape = 'u32[144,128]{1,0:T(1,128)}', space=vmem, size = 0x12000, scoped, tag = 'internal scratch']
  %s0 = inlined_call_operand.hbm [shape: bf16[512,512], index: 0, kind: input, shape index: {}]
  %s1 = inlined_call_operand.hbm [shape: bf16[512,256], index: 1, kind: input, shape index: {}]
  %s2 = inlined_call_operand.hbm [shape: bf16[256,256], index: 2, kind: input, shape index: {}]
  %s3 = inlined_call_operand.vmem [shape: f32[1,256], index: 3, kind: input, shape index: {}]
  %s4 = inlined_call_operand.hbm [shape: bf16[256,256], index: 4, kind: input, shape index: {}]
  %s5 = inlined_call_operand.vmem [shape: f32[1,256], index: 5, kind: input, shape index: {}]
  %s6 = inlined_call_operand.hbm [shape: f32[512,256], index: 6, kind: output, shape index: {}]
  %s7 = sld [smem:[#allocation0]]
  $region50: #{tpu_custom_call.1} parent=0
    _
  %s9 = ssub.s32 1, %s7
  %s10 = scalar_select 0, %s9, %s7
  $region1: #{tpu_custom_call.1} parent=0
    #allocation2 [shape = 'u8[524288]{0}', space=vmem, size = 0x80000, scoped, tag = 'input window, operand 0, single buffered']
    #allocation3 [shape = 's32[1]{0}', space=sflag, size = 0x4, scoped, tag = 'scoped memory for tpu_custom_call.1']
    #allocation4 [shape = 's32[1]{0}', space=sflag, size = 0x4, scoped, tag = 'scoped memory for tpu_custom_call.1']
    #allocation5 [shape = 'u8[262144]{0}', space=vmem, size = 0x40000, scoped, tag = 'input window, operand 1, single buffered']
    #allocation6 [shape = 's32[1]{0}', space=sflag, size = 0x4, scoped, tag = 'scoped memory for tpu_custom_call.1']
    #allocation7 [shape = 'u8[131072]{0}', space=vmem, size = 0x20000, scoped, tag = 'input window, operand 2, single buffered']
    #allocation8 [shape = 'u8[131072]{0}', space=vmem, size = 0x20000, scoped, tag = 'input window, operand 4, single buffered']
    #allocation9 [shape = 's32[1]{0}', space=sflag, size = 0x4, scoped, tag = 'scoped memory for tpu_custom_call.1']
    #allocation10 [shape = 'u8[524288]{0}', space=vmem, size = 0x80000, scoped, tag = 'output window, operand 0, single buffered']
    %11 = vsyncpa [#allocation3], 0
    %12 = vsyncpa [#allocation6], 0
    %13 = vsyncpa [#allocation9], 0
    %14 = vsyncpa [#allocation4], 0
    // Predicated region
    $region2: #{tpu_custom_call.1} parent=1 // pred_check
      _
    $region3: #{tpu_custom_call.1} parent=1 // pred_check_branch
      %16 = sbr.rel (0) target = $region5
    $region4: #{tpu_custom_call.1} parent=1 // pred_region
      %s18 = ssub.s32 16384, 16384
      %19 = vsyncadd [#allocation3], %s18
      %s20 = sshll.u32 [#allocation2], 4
      %s21 = int_to_ptr.vmem [resolvable:$true] %s20
      %26 = dma.hbm_to_vmem [thread:$0]  %s0, 16384, %s21, [#allocation3], 256, 256, 16
    $region5: #{tpu_custom_call.1} parent=1 // pred_fallthru
      _
    // Predicated region
    $region6: #{tpu_custom_call.1} parent=1 // pred_check
      _
    $region7: #{tpu_custom_call.1} parent=1 // pred_check_branch
      %28 = sbr.rel (0) target = $region9
    $region8: #{tpu_custom_call.1} parent=1 // pred_region
      %s30 = ssub.s32 8192, 8192
      %31 = vsyncadd [#allocation6], %s30
      %s32 = sshll.u32 [#allocation5], 4
      %s33 = int_to_ptr.vmem [resolvable:$true] %s32
      %38 = dma.hbm_to_vmem [thread:$0]  %s1, 8192, %s33, [#allocation6], 128, 128, 8
    $region9: #{tpu_custom_call.1} parent=1 // pred_fallthru
      _
    // Predicated region
    $region10: #{tpu_custom_call.1} parent=1 // pred_check
      _
    $region11: #{tpu_custom_call.1} parent=1 // pred_check_branch
      %40 = sbr.rel (0) target = $region13
    $region12: #{tpu_custom_call.1} parent=1 // pred_region
      %s42 = ssub.s32 4096, 4096
      %43 = vsyncadd [#allocation6], %s42
      %s44 = sshll.u32 [#allocation7], 4
      %s45 = int_to_ptr.vmem [resolvable:$true] %s44
      %50 = dma.hbm_to_vmem [thread:$0]  %s2, 4096, %s45, [#allocation6], 128, 128, 8
    $region13: #{tpu_custom_call.1} parent=1 // pred_fallthru
      _
    // Predicated region
    $region14: #{tpu_custom_call.1} parent=1 // pred_check
      _
    $region15: #{tpu_custom_call.1} parent=1 // pred_check_branch
      %52 = sbr.rel (0) target = $region17
    $region16: #{tpu_custom_call.1} parent=1 // pred_region
      _
    $region17: #{tpu_custom_call.1} parent=1 // pred_fallthru
      _
    // Predicated region
    $region18: #{tpu_custom_call.1} parent=1 // pred_check
      _
    $region19: #{tpu_custom_call.1} parent=1 // pred_check_branch
      %54 = sbr.rel (0) target = $region21
    $region20: #{tpu_custom_call.1} parent=1 // pred_region
      %s56 = ssub.s32 4096, 4096
      %57 = vsyncadd [#allocation9], %s56
      %s58 = sshll.u32 [#allocation8], 4
      %s59 = int_to_ptr.vmem [resolvable:$true] %s58
      %64 = dma.hbm_to_vmem [thread:$0]  %s4, 4096, %s59, [#allocation9], 128, 128, 8
    $region21: #{tpu_custom_call.1} parent=1 // pred_fallthru
      _
    // Predicated region
    $region22: #{tpu_custom_call.1} parent=1 // pred_check
      _
    $region23: #{tpu_custom_call.1} parent=1 // pred_check_branch
      %66 = sbr.rel (0) target = $region25
    $region24: #{tpu_custom_call.1} parent=1 // pred_region
      _
    $region25: #{tpu_custom_call.1} parent=1 // pred_fallthru
      _
    // Predicated region
    $region26: #{tpu_custom_call.1} parent=1 // pred_check
      _
    $region27: #{tpu_custom_call.1} parent=1 // pred_check_branch
      %68 = sbr.rel (0) target = $region29
    $region28: #{tpu_custom_call.1} parent=1 // pred_region
      %69 = dma.done [#allocation3], 16384
    $region29: #{tpu_custom_call.1} parent=1 // pred_fallthru
      _
    // Predicated region
    $region30: #{tpu_custom_call.1} parent=1 // pred_check
      _
    $region31: #{tpu_custom_call.1} parent=1 // pred_check_branch
      %71 = sbr.rel (0) target = $region33
    $region32: #{tpu_custom_call.1} parent=1 // pred_region
      %72 = dma.done [#allocation6], 8192
    $region33: #{tpu_custom_call.1} parent=1 // pred_fallthru
      _
    // Predicated region
    $region34: #{tpu_custom_call.1} parent=1 // pred_check
      _
    $region35: #{tpu_custom_call.1} parent=1 // pred_check_branch
      %74 = sbr.rel (0) target = $region37
    $region36: #{tpu_custom_call.1} parent=1 // pred_region
      %75 = dma.done [#allocation6], 4096
    $region37: #{tpu_custom_call.1} parent=1 // pred_fallthru
      _
    // Predicated region
    $region38: #{tpu_custom_call.1} parent=1 // pred_check
      _
    $region39: #{tpu_custom_call.1} parent=1 // pred_check_branch
      %77 = sbr.rel (0) target = $region41
    $region40: #{tpu_custom_call.1} parent=1 // pred_region
      %78 = dma.done [#allocation9], 4096
    $region41: #{tpu_custom_call.1} parent=1 // pred_fallthru
      _
    %v79 = vld [vmem:[#allocation2] sm:$0xff]
    %v80 = vld [vmem:[#allocation2 + $0x8] sm:$0xff]
    %v81 = vld [vmem:[#allocation2 + $0x10] sm:$0xff]
    %v82 = vld [vmem:[#allocation2 + $0x18] sm:$0xff]
    %v83 = vld [vmem:[#allocation2 + $0x20] sm:$0xff]
    %v84 = vld [vmem:[#allocation2 + $0x28] sm:$0xff]
    %v85 = vld [vmem:[#allocation2 + $0x30] sm:$0xff]
    %v86 = vld [vmem:[#allocation2 + $0x38] sm:$0xff]
    %v87 = vld [vmem:[#allocation2 + $0x40] sm:$0xff]
    %v88 = vld [vmem:[#allocation2 + $0x48] sm:$0xff]
    %v89 = vld [vmem:[#allocation2 + $0x50] sm:$0xff]
    %v90 = vld [vmem:[#allocation2 + $0x58] sm:$0xff]
    %v91 = vld [vmem:[#allocation2 + $0x60] sm:$0xff]
    %v92 = vld [vmem:[#allocation2 + $0x68] sm:$0xff]
    %v93 = vld [vmem:[#allocation2 + $0x70] sm:$0xff]
    %v94 = vld [vmem:[#allocation2 + $0x78] sm:$0xff]
    %v95 = vld [vmem:[#allocation2 + $0x80] sm:$0xff]
    %v96 = vld [vmem:[#allocation2 + $0x88] sm:$0xff]
    %v97 = vld [vmem:[#allocation2 + $0x90] sm:$0xff]
    %v98 = vld [vmem:[#allocation2 + $0x98] sm:$0xff]
    %v99 = vld [vmem:[#allocation2 + $0xa0] sm:$0xff]
    %v100 = vld [vmem:[#allocation2 + $0xa8] sm:$0xff]
    %v101 = vld [vmem:[#allocation2 + $0xb0] sm:$0xff]
    %v102 = vld [vmem:[#allocation2 + $0xb8] sm:$0xff]
    %v103 = vld [vmem:[#allocation2 + $0xc0] sm:$0xff]
    %v104 = vld [vmem:[#allocation2 + $0xc8] sm:$0xff]
    %v105 = vld [vmem:[#allocation2 + $0xd0] sm:$0xff]
    %v106 = vld [vmem:[#allocation2 + $0xd8] sm:$0xff]
    %v107 = vld [vmem:[#allocation2 + $0xe0] sm:$0xff]
    %v108 = vld [vmem:[#allocation2 + $0xe8] sm:$0xff]
    %v109 = vld [vmem:[#allocation2 + $0xf0] sm:$0xff]
    %v110 = vld [vmem:[#allocation2 + $0xf8] sm:$0xff]
    %v111 = vld [vmem:[#allocation2 + $0x100] sm:$0xff]
    %v112 = vld [vmem:[#allocation2 + $0x108] sm:$0xff]
    %v113 = vld [vmem:[#allocation2 + $0x110] sm:$0xff]
    %v114 = vld [vmem:[#allocation2 + $0x118] sm:$0xff]
    %v115 = vld [vmem:[#allocation2 + $0x120] sm:$0xff]
    %v116 = vld [vmem:[#allocation2 + $0x128] sm:$0xff]
    %v117 = vld [vmem:[#allocation2 + $0x130] sm:$0xff]
    %v118 = vld [vmem:[#allocation2 + $0x138] sm:$0xff]
    %v119 = vld [vmem:[#allocation2 + $0x140] sm:$0xff]
    %v120 = vld [vmem:[#allocation2 + $0x148] sm:$0xff]
    %v121 = vld [vmem:[#allocation2 + $0x150] sm:$0xff]
    %v122 = vld [vmem:[#allocation2 + $0x158] sm:$0xff]
    %v123 = vld [vmem:[#allocation2 + $0x160] sm:$0xff]
    %v124 = vld [vmem:[#allocation2 + $0x168] sm:$0xff]
    %v125 = vld [vmem:[#allocation2 + $0x170] sm:$0xff]
    %v126 = vld [vmem:[#allocation2 + $0x178] sm:$0xff]
    %v127 = vld [vmem:[#allocation2 + $0x180] sm:$0xff]
    %v128 = vld [vmem:[#allocation2 + $0x188] sm:$0xff]
    %v129 = vld [vmem:[#allocation2 + $0x190] sm:$0xff]
    %v130 = vld [vmem:[#allocation2 + $0x198] sm:$0xff]
    %v131 = vld [vmem:[#allocation2 + $0x1a0] sm:$0xff]
    %v132 = vld [vmem:[#allocation2 + $0x1a8] sm:$0xff]
    %v133 = vld [vmem:[#allocation2 + $0x1b0] sm:$0xff]
    %v134 = vld [vmem:[#allocation2 + $0x1b8] sm:$0xff]
    %v135 = vld [vmem:[#allocation2 + $0x1c0] sm:$0xff]
    %v136 = vld [vmem:[#allocation2 + $0x1c8] sm:$0xff]
    %v137 = vld [vmem:[#allocation2 + $0x1d0] sm:$0xff]
    %v138 = vld [vmem:[#allocation2 + $0x1d8] sm:$0xff]
    %v139 = vld [vmem:[#allocation2 + $0x1e0] sm:$0xff]
    %v140 = vld [vmem:[#allocation2 + $0x1e8] sm:$0xff]
    %v141 = vld [vmem:[#allocation2 + $0x1f0] sm:$0xff]
    %v142 = vld [vmem:[#allocation2 + $0x1f8] sm:$0xff]
    %v143 = vld [vmem:[#allocation2 + $0x200] sm:$0xff]
    %v144 = vld [vmem:[#allocation2 + $0x208] sm:$0xff]
    %v145 = vld [vmem:[#allocation2 + $0x210] sm:$0xff]
    %v146 = vld [vmem:[#allocation2 + $0x218] sm:$0xff]
    %v147 = vld [vmem:[#allocation2 + $0x220] sm:$0xff]
    %v148 = vld [vmem:[#allocation2 + $0x228] sm:$0xff]
    %v149 = vld [vmem:[#allocation2 + $0x230] sm:$0xff]
    %v150 = vld [vmem:[#allocation2 + $0x238] sm:$0xff]
    %v151 = vld [vmem:[#allocation2 + $0x240] sm:$0xff]
    %v152 = vld [vmem:[#allocation2 + $0x248] sm:$0xff]
    %v153 = vld [vmem:[#allocation2 + $0x250] sm:$0xff]
    %v154 = vld [vmem:[#allocation2 + $0x258] sm:$0xff]
    %v155 = vld [vmem:[#allocation2 + $0x260] sm:$0xff]
    %v156 = vld [vmem:[#allocation2 + $0x268] sm:$0xff]
    %v157 = vld [vmem:[#allocation2 + $0x270] sm:$0xff]
    %v158 = vld [vmem:[#allocation2 + $0x278] sm:$0xff]
    %v159 = vld [vmem:[#allocation2 + $0x280] sm:$0xff]
    %v160 = vld [vmem:[#allocation2 + $0x288] sm:$0xff]
    %v161 = vld [vmem:[#allocation2 + $0x290] sm:$0xff]
    %v162 = vld [vmem:[#allocation2 + $0x298] sm:$0xff]
    %v163 = vld [vmem:[#allocation2 + $0x2a0] sm:$0xff]
    %v164 = vld [vmem:[#allocation2 + $0x2a8] sm:$0xff]
    %v165 = vld [vmem:[#allocation2 + $0x2b0] sm:$0xff]
    %v166 = vld [vmem:[#allocation2 + $0x2b8] sm:$0xff]
    %v167 = vld [vmem:[#allocation2 + $0x2c0] sm:$0xff]
    %v168 = vld [vmem:[#allocation2 + $0x2c8] sm:$0xff]
    %v169 = vld [vmem:[#allocation2 + $0x2d0] sm:$0xff]
    %v170 = vld [vmem:[#allocation2 + $0x2d8] sm:$0xff]
    %v171 = vld [vmem:[#allocation2 + $0x2e0] sm:$0xff]
    %v172 = vld [vmem:[#allocation2 + $0x2e8] sm:$0xff]
    %v173 = vld [vmem:[#allocation2 + $0x2f0] sm:$0xff]
    %v174 = vld [vmem:[#allocation2 + $0x2f8] sm:$0xff]
    %v175 = vld [vmem:[#allocation2 + $0x300] sm:$0xff]
    %v176 = vld [vmem:[#allocation2 + $0x308] sm:$0xff]
    %v177 = vld [vmem:[#allocation2 + $0x310] sm:$0xff]
    %v178 = vld [vmem:[#allocation2 + $0x318] sm:$0xff]
    %v179 = vld [vmem:[#allocation2 + $0x320] sm:$0xff]
    %v180 = vld [vmem:[#allocation2 + $0x328] sm:$0xff]
    %v181 = vld [vmem:[#allocation2 + $0x330] sm:$0xff]
    %v182 = vld [vmem:[#allocation2 + $0x338] sm:$0xff]
    %v183 = vld [vmem:[#allocation2 + $0x340] sm:$0xff]
    %v184 = vld [vmem:[#allocation2 + $0x348] sm:$0xff]
    %v185 = vld [vmem:[#allocation2 + $0x350] sm:$0xff]
    %v186 = vld [vmem:[#allocation2 + $0x358] sm:$0xff]
    %v187 = vld [vmem:[#allocation2 + $0x360] sm:$0xff]
    %v188 = vld [vmem:[#allocation2 + $0x368] sm:$0xff]
    %v189 = vld [vmem:[#allocation2 + $0x370] sm:$0xff]
    %v190 = vld [vmem:[#allocation2 + $0x378] sm:$0xff]
    %v191 = vld [vmem:[#allocation2 + $0x380] sm:$0xff]
    %v192 = vld [vmem:[#allocation2 + $0x388] sm:$0xff]
    %v193 = vld [vmem:[#allocation2 + $0x390] sm:$0xff]
    %v194 = vld [vmem:[#allocation2 + $0x398] sm:$0xff]
    %v195 = vld [vmem:[#allocation2 + $0x3a0] sm:$0xff]
    %v196 = vld [vmem:[#allocation2 + $0x3a8] sm:$0xff]
    %v197 = vld [vmem:[#allocation2 + $0x3b0] sm:$0xff]
    %v198 = vld [vmem:[#allocation2 + $0x3b8] sm:$0xff]
    %v199 = vld [vmem:[#allocation2 + $0x3c0] sm:$0xff]
    %v200 = vld [vmem:[#allocation2 + $0x3c8] sm:$0xff]
    %v201 = vld [vmem:[#allocation2 + $0x3d0] sm:$0xff]
    %v202 = vld [vmem:[#allocation2 + $0x3d8] sm:$0xff]
    %v203 = vld [vmem:[#allocation2 + $0x3e0] sm:$0xff]
    %v204 = vld [vmem:[#allocation2 + $0x3e8] sm:$0xff]
    %v205 = vld [vmem:[#allocation2 + $0x3f0] sm:$0xff]
    %v206 = vld [vmem:[#allocation2 + $0x3f8] sm:$0xff]
    %v207 = vld [vmem:[#allocation7] sm:$0xff]
    %v208 = vld [vmem:[#allocation7 + $0x8] sm:$0xff]
    %v209 = vld [vmem:[#allocation7 + $0x10] sm:$0xff]
    %v210 = vld [vmem:[#allocation7 + $0x18] sm:$0xff]
    %v211 = vld [vmem:[#allocation7 + $0x20] sm:$0xff]
    %v212 = vld [vmem:[#allocation7 + $0x28] sm:$0xff]
    %v213 = vld [vmem:[#allocation7 + $0x30] sm:$0xff]
    %v214 = vld [vmem:[#allocation7 + $0x38] sm:$0xff]
    %v215 = vld [vmem:[#allocation7 + $0x40] sm:$0xff]
    %v216 = vld [vmem:[#allocation7 + $0x48] sm:$0xff]
    %v217 = vld [vmem:[#allocation7 + $0x50] sm:$0xff]
    %v218 = vld [vmem:[#allocation7 + $0x58] sm:$0xff]
    %v219 = vld [vmem:[#allocation7 + $0x60] sm:$0xff]
    %v220 = vld [vmem:[#allocation7 + $0x68] sm:$0xff]
    %v221 = vld [vmem:[#allocation7 + $0x70] sm:$0xff]
    %v222 = vld [vmem:[#allocation7 + $0x78] sm:$0xff]
    %v223 = vld [vmem:[#allocation7 + $0x80] sm:$0xff]
    %v224 = vld [vmem:[#allocation7 + $0x88] sm:$0xff]
    %v225 = vld [vmem:[#allocation7 + $0x90] sm:$0xff]
    %v226 = vld [vmem:[#allocation7 + $0x98] sm:$0xff]
    %v227 = vld [vmem:[#allocation7 + $0xa0] sm:$0xff]
    %v228 = vld [vmem:[#allocation7 + $0xa8] sm:$0xff]
    %v229 = vld [vmem:[#allocation7 + $0xb0] sm:$0xff]
    %v230 = vld [vmem:[#allocation7 + $0xb8] sm:$0xff]
    %v231 = vld [vmem:[#allocation7 + $0xc0] sm:$0xff]
    %v232 = vld [vmem:[#allocation7 + $0xc8] sm:$0xff]
    %v233 = vld [vmem:[#allocation7 + $0xd0] sm:$0xff]
    %v234 = vld [vmem:[#allocation7 + $0xd8] sm:$0xff]
    %v235 = vld [vmem:[#allocation7 + $0xe0] sm:$0xff]
    %v236 = vld [vmem:[#allocation7 + $0xe8] sm:$0xff]
    %v237 = vld [vmem:[#allocation7 + $0xf0] sm:$0xff]
    %v238 = vld [vmem:[#allocation7 + $0xf8] sm:$0xff]
    %v239 = vld [vmem:[#allocation8] sm:$0xff]
    %v240 = vld [vmem:[#allocation8 + $0x8] sm:$0xff]
    %v241 = vld [vmem:[#allocation8 + $0x10] sm:$0xff]
    %v242 = vld [vmem:[#allocation8 + $0x18] sm:$0xff]
    %v243 = vld [vmem:[#allocation8 + $0x20] sm:$0xff]
    %v244 = vld [vmem:[#allocation8 + $0x28] sm:$0xff]
    %v245 = vld [vmem:[#allocation8 + $0x30] sm:$0xff]
    %v246 = vld [vmem:[#allocation8 + $0x38] sm:$0xff]
    %v247 = vld [vmem:[#allocation8 + $0x40] sm:$0xff]
    %v248 = vld [vmem:[#allocation8 + $0x48] sm:$0xff]
    %v249 = vld [vmem:[#allocation8 + $0x50] sm:$0xff]
    %v250 = vld [vmem:[#allocation8 + $0x58] sm:$0xff]
    %v251 = vld [vmem:[#allocation8 + $0x60] sm:$0xff]
    %v252 = vld [vmem:[#allocation8 + $0x68] sm:$0xff]
    %v253 = vld [vmem:[#allocation8 + $0x70] sm:$0xff]
    %v254 = vld [vmem:[#allocation8 + $0x78] sm:$0xff]
    %v255 = vld [vmem:[#allocation8 + $0x80] sm:$0xff]
    %v256 = vld [vmem:[#allocation8 + $0x88] sm:$0xff]
    %v257 = vld [vmem:[#allocation8 + $0x90] sm:$0xff]
    %v258 = vld [vmem:[#allocation8 + $0x98] sm:$0xff]
    %v259 = vld [vmem:[#allocation8 + $0xa0] sm:$0xff]
    %v260 = vld [vmem:[#allocation8 + $0xa8] sm:$0xff]
    %v261 = vld [vmem:[#allocation8 + $0xb0] sm:$0xff]
    %v262 = vld [vmem:[#allocation8 + $0xb8] sm:$0xff]
    %v263 = vld [vmem:[#allocation8 + $0xc0] sm:$0xff]
    %v264 = vld [vmem:[#allocation8 + $0xc8] sm:$0xff]
    %v265 = vld [vmem:[#allocation8 + $0xd0] sm:$0xff]
    %v266 = vld [vmem:[#allocation8 + $0xd8] sm:$0xff]
    %v267 = vld [vmem:[#allocation8 + $0xe0] sm:$0xff]
    %v268 = vld [vmem:[#allocation8 + $0xe8] sm:$0xff]
    %v269 = vld [vmem:[#allocation8 + $0xf0] sm:$0xff]
    %v270 = vld [vmem:[#allocation8 + $0xf8] sm:$0xff]
    %v271 = vld [vmem:[%s3] sm:$0x3]
    %v272 = vld [vmem:[%s5] sm:$0x3]
    %v273 = vld [vmem:[#allocation5] sm:$0xff]
    %v274 = vld [vmem:[#allocation5 + $0x8] sm:$0xff]
    %v275 = vld [vmem:[#allocation5 + $0x10] sm:$0xff]
    %v276 = vld [vmem:[#allocation5 + $0x18] sm:$0xff]
    %v277 = vld [vmem:[#allocation5 + $0x20] sm:$0xff]
    %v278 = vld [vmem:[#allocation5 + $0x28] sm:$0xff]
    %v279 = vld [vmem:[#allocation5 + $0x30] sm:$0xff]
    %v280 = vld [vmem:[#allocation5 + $0x38] sm:$0xff]
    %v281 = vld [vmem:[#allocation5 + $0x40] sm:$0xff]
    %v282 = vld [vmem:[#allocation5 + $0x48] sm:$0xff]
    %v283 = vld [vmem:[#allocation5 + $0x50] sm:$0xff]
    %v284 = vld [vmem:[#allocation5 + $0x58] sm:$0xff]
    %v285 = vld [vmem:[#allocation5 + $0x60] sm:$0xff]
    %v286 = vld [vmem:[#allocation5 + $0x68] sm:$0xff]
    %v287 = vld [vmem:[#allocation5 + $0x70] sm:$0xff]
    %v288 = vld [vmem:[#allocation5 + $0x78] sm:$0xff]
    %v289 = vld [vmem:[#allocation5 + $0x80] sm:$0xff]
    %v290 = vld [vmem:[#allocation5 + $0x88] sm:$0xff]
    %v291 = vld [vmem:[#allocation5 + $0x90] sm:$0xff]
    %v292 = vld [vmem:[#allocation5 + $0x98] sm:$0xff]
    %v293 = vld [vmem:[#allocation5 + $0xa0] sm:$0xff]
    %v294 = vld [vmem:[#allocation5 + $0xa8] sm:$0xff]
    %v295 = vld [vmem:[#allocation5 + $0xb0] sm:$0xff]
    %v296 = vld [vmem:[#allocation5 + $0xb8] sm:$0xff]
    %v297 = vld [vmem:[#allocation5 + $0xc0] sm:$0xff]
    %v298 = vld [vmem:[#allocation5 + $0xc8] sm:$0xff]
    %v299 = vld [vmem:[#allocation5 + $0xd0] sm:$0xff]
    %v300 = vld [vmem:[#allocation5 + $0xd8] sm:$0xff]
    %v301 = vld [vmem:[#allocation5 + $0xe0] sm:$0xff]
    %v302 = vld [vmem:[#allocation5 + $0xe8] sm:$0xff]
    %v303 = vld [vmem:[#allocation5 + $0xf0] sm:$0xff]
    %v304 = vld [vmem:[#allocation5 + $0xf8] sm:$0xff]
    %v305 = vld [vmem:[#allocation5 + $0x100] sm:$0xff]
    %v306 = vld [vmem:[#allocation5 + $0x108] sm:$0xff]
    %v307 = vld [vmem:[#allocation5 + $0x110] sm:$0xff]
    %v308 = vld [vmem:[#allocation5 + $0x118] sm:$0xff]
    %v309 = vld [vmem:[#allocation5 + $0x120] sm:$0xff]
    %v310 = vld [vmem:[#allocation5 + $0x128] sm:$0xff]
    %v311 = vld [vmem:[#allocation5 + $0x130] sm:$0xff]
    %v312 = vld [vmem:[#allocation5 + $0x138] sm:$0xff]
    %v313 = vld [vmem:[#allocation5 + $0x140] sm:$0xff]
    %v314 = vld [vmem:[#allocation5 + $0x148] sm:$0xff]
    %v315 = vld [vmem:[#allocation5 + $0x150] sm:$0xff]
    %v316 = vld [vmem:[#allocation5 + $0x158] sm:$0xff]
    %v317 = vld [vmem:[#allocation5 + $0x160] sm:$0xff]
    %v318 = vld [vmem:[#allocation5 + $0x168] sm:$0xff]
    %v319 = vld [vmem:[#allocation5 + $0x170] sm:$0xff]
    %v320 = vld [vmem:[#allocation5 + $0x178] sm:$0xff]
    %v321 = vld [vmem:[#allocation5 + $0x180] sm:$0xff]
    %v322 = vld [vmem:[#allocation5 + $0x188] sm:$0xff]
    %v323 = vld [vmem:[#allocation5 + $0x190] sm:$0xff]
    %v324 = vld [vmem:[#allocation5 + $0x198] sm:$0xff]
    %v325 = vld [vmem:[#allocation5 + $0x1a0] sm:$0xff]
    %v326 = vld [vmem:[#allocation5 + $0x1a8] sm:$0xff]
    %v327 = vld [vmem:[#allocation5 + $0x1b0] sm:$0xff]
    %v328 = vld [vmem:[#allocation5 + $0x1b8] sm:$0xff]
    %v329 = vld [vmem:[#allocation5 + $0x1c0] sm:$0xff]
    %v330 = vld [vmem:[#allocation5 + $0x1c8] sm:$0xff]
    %v331 = vld [vmem:[#allocation5 + $0x1d0] sm:$0xff]
    %v332 = vld [vmem:[#allocation5 + $0x1d8] sm:$0xff]
    %v333 = vld [vmem:[#allocation5 + $0x1e0] sm:$0xff]
    %v334 = vld [vmem:[#allocation5 + $0x1e8] sm:$0xff]
    %v335 = vld [vmem:[#allocation5 + $0x1f0] sm:$0xff]
    %v336 = vld [vmem:[#allocation5 + $0x1f8] sm:$0xff]
    %v337 = vunpack.c.l.bf16 %v273
    %v338 = vunpack.c.h.bf16 %v273
    %v339 = vunpack.c.l.bf16 %v274
    %v340 = vunpack.c.h.bf16 %v274
    %v341 = vunpack.c.l.bf16 %v275
    %v342 = vunpack.c.h.bf16 %v275
    %v343 = vunpack.c.l.bf16 %v276
    %v344 = vunpack.c.h.bf16 %v276
    %v345 = vunpack.c.l.bf16 %v277
    %v346 = vunpack.c.h.bf16 %v277
    %v347 = vunpack.c.l.bf16 %v278
    %v348 = vunpack.c.h.bf16 %v278
    %v349 = vunpack.c.l.bf16 %v279
    %v350 = vunpack.c.h.bf16 %v279
    %v351 = vunpack.c.l.bf16 %v280
    %v352 = vunpack.c.h.bf16 %v280
    %v353 = vunpack.c.l.bf16 %v281
    %v354 = vunpack.c.h.bf16 %v281
    %v355 = vunpack.c.l.bf16 %v282
    %v356 = vunpack.c.h.bf16 %v282
    %v357 = vunpack.c.l.bf16 %v283
    %v358 = vunpack.c.h.bf16 %v283
    %v359 = vunpack.c.l.bf16 %v284
    %v360 = vunpack.c.h.bf16 %v284
    %v361 = vunpack.c.l.bf16 %v285
    %v362 = vunpack.c.h.bf16 %v285
    %v363 = vunpack.c.l.bf16 %v286
    %v364 = vunpack.c.h.bf16 %v286
    %v365 = vunpack.c.l.bf16 %v287
    %v366 = vunpack.c.h.bf16 %v287
    %v367 = vunpack.c.l.bf16 %v288
    %v368 = vunpack.c.h.bf16 %v288
    %v369 = vunpack.c.l.bf16 %v289
    %v370 = vunpack.c.h.bf16 %v289
    %v371 = vunpack.c.l.bf16 %v290
    %v372 = vunpack.c.h.bf16 %v290
    %v373 = vunpack.c.l.bf16 %v291
    %v374 = vunpack.c.h.bf16 %v291
    %v375 = vunpack.c.l.bf16 %v292
    %v376 = vunpack.c.h.bf16 %v292
    %v377 = vunpack.c.l.bf16 %v293
    %v378 = vunpack.c.h.bf16 %v293
    %v379 = vunpack.c.l.bf16 %v294
    %v380 = vunpack.c.h.bf16 %v294
    %v381 = vunpack.c.l.bf16 %v295
    %v382 = vunpack.c.h.bf16 %v295
    %v383 = vunpack.c.l.bf16 %v296
    %v384 = vunpack.c.h.bf16 %v296
    %v385 = vunpack.c.l.bf16 %v297
    %v386 = vunpack.c.h.bf16 %v297
    %v387 = vunpack.c.l.bf16 %v298
    %v388 = vunpack.c.h.bf16 %v298
    %v389 = vunpack.c.l.bf16 %v299
    %v390 = vunpack.c.h.bf16 %v299
    %v391 = vunpack.c.l.bf16 %v300
    %v392 = vunpack.c.h.bf16 %v300
    %v393 = vunpack.c.l.bf16 %v301
    %v394 = vunpack.c.h.bf16 %v301
    %v395 = vunpack.c.l.bf16 %v302
    %v396 = vunpack.c.h.bf16 %v302
    %v397 = vunpack.c.l.bf16 %v303
    %v398 = vunpack.c.h.bf16 %v303
    %v399 = vunpack.c.l.bf16 %v304
    %v400 = vunpack.c.h.bf16 %v304
    %v401 = vunpack.c.l.bf16 %v305
    %v402 = vunpack.c.h.bf16 %v305
    %v403 = vunpack.c.l.bf16 %v306
    %v404 = vunpack.c.h.bf16 %v306
    %v405 = vunpack.c.l.bf16 %v307
    %v406 = vunpack.c.h.bf16 %v307
    %v407 = vunpack.c.l.bf16 %v308
    %v408 = vunpack.c.h.bf16 %v308
    %v409 = vunpack.c.l.bf16 %v309
    %v410 = vunpack.c.h.bf16 %v309
    %v411 = vunpack.c.l.bf16 %v310
    %v412 = vunpack.c.h.bf16 %v310
    %v413 = vunpack.c.l.bf16 %v311
    %v414 = vunpack.c.h.bf16 %v311
    %v415 = vunpack.c.l.bf16 %v312
    %v416 = vunpack.c.h.bf16 %v312
    %v417 = vunpack.c.l.bf16 %v313
    %v418 = vunpack.c.h.bf16 %v313
    %v419 = vunpack.c.l.bf16 %v314
    %v420 = vunpack.c.h.bf16 %v314
    %v421 = vunpack.c.l.bf16 %v315
    %v422 = vunpack.c.h.bf16 %v315
    %v423 = vunpack.c.l.bf16 %v316
    %v424 = vunpack.c.h.bf16 %v316
    %v425 = vunpack.c.l.bf16 %v317
    %v426 = vunpack.c.h.bf16 %v317
    %v427 = vunpack.c.l.bf16 %v318
    %v428 = vunpack.c.h.bf16 %v318
    %v429 = vunpack.c.l.bf16 %v319
    %v430 = vunpack.c.h.bf16 %v319
    %v431 = vunpack.c.l.bf16 %v320
    %v432 = vunpack.c.h.bf16 %v320
    %v433 = vunpack.c.l.bf16 %v321
    %v434 = vunpack.c.h.bf16 %v321
    %v435 = vunpack.c.l.bf16 %v322
    %v436 = vunpack.c.h.bf16 %v322
    %v437 = vunpack.c.l.bf16 %v323
    %v438 = vunpack.c.h.bf16 %v323
    %v439 = vunpack.c.l.bf16 %v324
    %v440 = vunpack.c.h.bf16 %v324
    %v441 = vunpack.c.l.bf16 %v325
    %v442 = vunpack.c.h.bf16 %v325
    %v443 = vunpack.c.l.bf16 %v326
    %v444 = vunpack.c.h.bf16 %v326
    %v445 = vunpack.c.l.bf16 %v327
    %v446 = vunpack.c.h.bf16 %v327
    %v447 = vunpack.c.l.bf16 %v328
    %v448 = vunpack.c.h.bf16 %v328
    %v449 = vunpack.c.l.bf16 %v329
    %v450 = vunpack.c.h.bf16 %v329
    %v451 = vunpack.c.l.bf16 %v330
    %v452 = vunpack.c.h.bf16 %v330
    %v453 = vunpack.c.l.bf16 %v331
    %v454 = vunpack.c.h.bf16 %v331
    %v455 = vunpack.c.l.bf16 %v332
    %v456 = vunpack.c.h.bf16 %v332
    %v457 = vunpack.c.l.bf16 %v333
    %v458 = vunpack.c.h.bf16 %v333
    %v459 = vunpack.c.l.bf16 %v334
    %v460 = vunpack.c.h.bf16 %v334
    %v461 = vunpack.c.l.bf16 %v335
    %v462 = vunpack.c.h.bf16 %v335
    %v463 = vunpack.c.l.bf16 %v336
    %v464 = vunpack.c.h.bf16 %v336
    %v593 = vunpack.c.l.b16 %v79
    %v594 = vunpack.c.h.b16 %v79
    %v595 = vunpack.c.l.b16 %v80
    %v596 = vunpack.c.h.b16 %v80
    %v597 = vunpack.c.l.b16 %v81
    %v598 = vunpack.c.h.b16 %v81
    %v599 = vunpack.c.l.b16 %v82
    %v600 = vunpack.c.h.b16 %v82
    %v601 = vunpack.c.l.b16 %v83
    %v602 = vunpack.c.h.b16 %v83
    %v603 = vunpack.c.l.b16 %v84
    %v604 = vunpack.c.h.b16 %v84
    %v605 = vunpack.c.l.b16 %v85
    %v606 = vunpack.c.h.b16 %v85
    %v607 = vunpack.c.l.b16 %v86
    %v608 = vunpack.c.h.b16 %v86
    %v609 = vunpack.c.l.b16 %v87
    %v610 = vunpack.c.h.b16 %v87
    %v611 = vunpack.c.l.b16 %v88
    %v612 = vunpack.c.h.b16 %v88
    %v613 = vunpack.c.l.b16 %v89
    %v614 = vunpack.c.h.b16 %v89
    %v615 = vunpack.c.l.b16 %v90
    %v616 = vunpack.c.h.b16 %v90
    %v617 = vunpack.c.l.b16 %v91
    %v618 = vunpack.c.h.b16 %v91
    %v619 = vunpack.c.l.b16 %v92
    %v620 = vunpack.c.h.b16 %v92
    %v621 = vunpack.c.l.b16 %v93
    %v622 = vunpack.c.h.b16 %v93
    %v623 = vunpack.c.l.b16 %v94
    %v624 = vunpack.c.h.b16 %v94
    %v625 = vunpack.c.l.b16 %v95
    %v626 = vunpack.c.h.b16 %v95
    %v627 = vunpack.c.l.b16 %v96
    %v628 = vunpack.c.h.b16 %v96
    %v629 = vunpack.c.l.b16 %v97
    %v630 = vunpack.c.h.b16 %v97
    %v631 = vunpack.c.l.b16 %v98
    %v632 = vunpack.c.h.b16 %v98
    %v633 = vunpack.c.l.b16 %v99
    %v634 = vunpack.c.h.b16 %v99
    %v635 = vunpack.c.l.b16 %v100
    %v636 = vunpack.c.h.b16 %v100
    %v637 = vunpack.c.l.b16 %v101
    %v638 = vunpack.c.h.b16 %v101
    %v639 = vunpack.c.l.b16 %v102
    %v640 = vunpack.c.h.b16 %v102
    %v641 = vunpack.c.l.b16 %v103
    %v642 = vunpack.c.h.b16 %v103
    %v643 = vunpack.c.l.b16 %v104
    %v644 = vunpack.c.h.b16 %v104
    %v645 = vunpack.c.l.b16 %v105
    %v646 = vunpack.c.h.b16 %v105
    %v647 = vunpack.c.l.b16 %v106
    %v648 = vunpack.c.h.b16 %v106
    %v649 = vunpack.c.l.b16 %v107
    %v650 = vunpack.c.h.b16 %v107
    %v651 = vunpack.c.l.b16 %v108
    %v652 = vunpack.c.h.b16 %v108
    %v653 = vunpack.c.l.b16 %v109
    %v654 = vunpack.c.h.b16 %v109
    %v655 = vunpack.c.l.b16 %v110
    %v656 = vunpack.c.h.b16 %v110
    %v657 = vunpack.c.l.b16 %v111
    %v658 = vunpack.c.h.b16 %v111
    %v659 = vunpack.c.l.b16 %v112
    %v660 = vunpack.c.h.b16 %v112
    %v661 = vunpack.c.l.b16 %v113
    %v662 = vunpack.c.h.b16 %v113
    %v663 = vunpack.c.l.b16 %v114
    %v664 = vunpack.c.h.b16 %v114
    %v665 = vunpack.c.l.b16 %v115
    %v666 = vunpack.c.h.b16 %v115
    %v667 = vunpack.c.l.b16 %v116
    %v668 = vunpack.c.h.b16 %v116
    %v669 = vunpack.c.l.b16 %v117
    %v670 = vunpack.c.h.b16 %v117
    %v671 = vunpack.c.l.b16 %v118
    %v672 = vunpack.c.h.b16 %v118
    %v673 = vunpack.c.l.b16 %v119
    %v674 = vunpack.c.h.b16 %v119
    %v675 = vunpack.c.l.b16 %v120
    %v676 = vunpack.c.h.b16 %v120
    %v677 = vunpack.c.l.b16 %v121
    %v678 = vunpack.c.h.b16 %v121
    %v679 = vunpack.c.l.b16 %v122
    %v680 = vunpack.c.h.b16 %v122
    %v681 = vunpack.c.l.b16 %v123
    %v682 = vunpack.c.h.b16 %v123
    %v683 = vunpack.c.l.b16 %v124
    %v684 = vunpack.c.h.b16 %v124
    %v685 = vunpack.c.l.b16 %v125
    %v686 = vunpack.c.h.b16 %v125
    %v687 = vunpack.c.l.b16 %v126
    %v688 = vunpack.c.h.b16 %v126
    %v689 = vunpack.c.l.b16 %v127
    %v690 = vunpack.c.h.b16 %v127
    %v691 = vunpack.c.l.b16 %v128
    %v692 = vunpack.c.h.b16 %v128
    %v693 = vunpack.c.l.b16 %v129
    %v694 = vunpack.c.h.b16 %v129
    %v695 = vunpack.c.l.b16 %v130
    %v696 = vunpack.c.h.b16 %v130
    %v697 = vunpack.c.l.b16 %v131
    %v698 = vunpack.c.h.b16 %v131
    %v699 = vunpack.c.l.b16 %v132
    %v700 = vunpack.c.h.b16 %v132
    %v701 = vunpack.c.l.b16 %v133
    %v702 = vunpack.c.h.b16 %v133
    %v703 = vunpack.c.l.b16 %v134
    %v704 = vunpack.c.h.b16 %v134
    %v705 = vunpack.c.l.b16 %v135
    %v706 = vunpack.c.h.b16 %v135
    %v707 = vunpack.c.l.b16 %v136
    %v708 = vunpack.c.h.b16 %v136
    %v709 = vunpack.c.l.b16 %v137
    %v710 = vunpack.c.h.b16 %v137
    %v711 = vunpack.c.l.b16 %v138
    %v712 = vunpack.c.h.b16 %v138
    %v713 = vunpack.c.l.b16 %v139
    %v714 = vunpack.c.h.b16 %v139
    %v715 = vunpack.c.l.b16 %v140
    %v716 = vunpack.c.h.b16 %v140
    %v717 = vunpack.c.l.b16 %v141
    %v718 = vunpack.c.h.b16 %v141
    %v719 = vunpack.c.l.b16 %v142
    %v720 = vunpack.c.h.b16 %v142
    %v721 = vunpack.c.l.b16 %v143
    %v722 = vunpack.c.h.b16 %v143
    %v723 = vunpack.c.l.b16 %v144
    %v724 = vunpack.c.h.b16 %v144
    %v725 = vunpack.c.l.b16 %v145
    %v726 = vunpack.c.h.b16 %v145
    %v727 = vunpack.c.l.b16 %v146
    %v728 = vunpack.c.h.b16 %v146
    %v729 = vunpack.c.l.b16 %v147
    %v730 = vunpack.c.h.b16 %v147
    %v731 = vunpack.c.l.b16 %v148
    %v732 = vunpack.c.h.b16 %v148
    %v733 = vunpack.c.l.b16 %v149
    %v734 = vunpack.c.h.b16 %v149
    %v735 = vunpack.c.l.b16 %v150
    %v736 = vunpack.c.h.b16 %v150
    %v737 = vunpack.c.l.b16 %v151
    %v738 = vunpack.c.h.b16 %v151
    %v739 = vunpack.c.l.b16 %v152
    %v740 = vunpack.c.h.b16 %v152
    %v741 = vunpack.c.l.b16 %v153
    %v742 = vunpack.c.h.b16 %v153
    %v743 = vunpack.c.l.b16 %v154
    %v744 = vunpack.c.h.b16 %v154
    %v745 = vunpack.c.l.b16 %v155
    %v746 = vunpack.c.h.b16 %v155
    %v747 = vunpack.c.l.b16 %v156
    %v748 = vunpack.c.h.b16 %v156
    %v749 = vunpack.c.l.b16 %v157
    %v750 = vunpack.c.h.b16 %v157
    %v751 = vunpack.c.l.b16 %v158
    %v752 = vunpack.c.h.b16 %v158
    %v753 = vunpack.c.l.b16 %v159
    %v754 = vunpack.c.h.b16 %v159
    %v755 = vunpack.c.l.b16 %v160
    %v756 = vunpack.c.h.b16 %v160
    %v757 = vunpack.c.l.b16 %v161
    %v758 = vunpack.c.h.b16 %v161
    %v759 = vunpack.c.l.b16 %v162
    %v760 = vunpack.c.h.b16 %v162
    %v761 = vunpack.c.l.b16 %v163
    %v762 = vunpack.c.h.b16 %v163
    %v763 = vunpack.c.l.b16 %v164
    %v764 = vunpack.c.h.b16 %v164
    %v765 = vunpack.c.l.b16 %v165
    %v766 = vunpack.c.h.b16 %v165
    %v767 = vunpack.c.l.b16 %v166
    %v768 = vunpack.c.h.b16 %v166
    %v769 = vunpack.c.l.b16 %v167
    %v770 = vunpack.c.h.b16 %v167
    %v771 = vunpack.c.l.b16 %v168
    %v772 = vunpack.c.h.b16 %v168
    %v773 = vunpack.c.l.b16 %v169
    %v774 = vunpack.c.h.b16 %v169
    %v775 = vunpack.c.l.b16 %v170
    %v776 = vunpack.c.h.b16 %v170
    %v777 = vunpack.c.l.b16 %v171
    %v778 = vunpack.c.h.b16 %v171
    %v779 = vunpack.c.l.b16 %v172
    %v780 = vunpack.c.h.b16 %v172
    %v781 = vunpack.c.l.b16 %v173
    %v782 = vunpack.c.h.b16 %v173
    %v783 = vunpack.c.l.b16 %v174
    %v784 = vunpack.c.h.b16 %v174
    %v785 = vunpack.c.l.b16 %v175
    %v786 = vunpack.c.h.b16 %v175
    %v787 = vunpack.c.l.b16 %v176
    %v788 = vunpack.c.h.b16 %v176
    %v789 = vunpack.c.l.b16 %v177
    %v790 = vunpack.c.h.b16 %v177
    %v791 = vunpack.c.l.b16 %v178
    %v792 = vunpack.c.h.b16 %v178
    %v793 = vunpack.c.l.b16 %v179
    %v794 = vunpack.c.h.b16 %v179
    %v795 = vunpack.c.l.b16 %v180
    %v796 = vunpack.c.h.b16 %v180
    %v797 = vunpack.c.l.b16 %v181
    %v798 = vunpack.c.h.b16 %v181
    %v799 = vunpack.c.l.b16 %v182
    %v800 = vunpack.c.h.b16 %v182
    %v801 = vunpack.c.l.b16 %v183
    %v802 = vunpack.c.h.b16 %v183
    %v803 = vunpack.c.l.b16 %v184
    %v804 = vunpack.c.h.b16 %v184
    %v805 = vunpack.c.l.b16 %v185
    %v806 = vunpack.c.h.b16 %v185
    %v807 = vunpack.c.l.b16 %v186
    %v808 = vunpack.c.h.b16 %v186
    %v809 = vunpack.c.l.b16 %v187
    %v810 = vunpack.c.h.b16 %v187
    %v811 = vunpack.c.l.b16 %v188
    %v812 = vunpack.c.h.b16 %v188
    %v813 = vunpack.c.l.b16 %v189
    %v814 = vunpack.c.h.b16 %v189
    %v815 = vunpack.c.l.b16 %v190
    %v816 = vunpack.c.h.b16 %v190
    %v817 = vunpack.c.l.b16 %v191
    %v818 = vunpack.c.h.b16 %v191
    %v819 = vunpack.c.l.b16 %v192
    %v820 = vunpack.c.h.b16 %v192
    %v821 = vunpack.c.l.b16 %v193
    %v822 = vunpack.c.h.b16 %v193
    %v823 = vunpack.c.l.b16 %v194
    %v824 = vunpack.c.h.b16 %v194
    %v825 = vunpack.c.l.b16 %v195
    %v826 = vunpack.c.h.b16 %v195
    %v827 = vunpack.c.l.b16 %v196
    %v828 = vunpack.c.h.b16 %v196
    %v829 = vunpack.c.l.b16 %v197
    %v830 = vunpack.c.h.b16 %v197
    %v831 = vunpack.c.l.b16 %v198
    %v832 = vunpack.c.h.b16 %v198
    %v833 = vunpack.c.l.b16 %v199
    %v834 = vunpack.c.h.b16 %v199
    %v835 = vunpack.c.l.b16 %v200
    %v836 = vunpack.c.h.b16 %v200
    %v837 = vunpack.c.l.b16 %v201
    %v838 = vunpack.c.h.b16 %v201
    %v839 = vunpack.c.l.b16 %v202
    %v840 = vunpack.c.h.b16 %v202
    %v841 = vunpack.c.l.b16 %v203
    %v842 = vunpack.c.h.b16 %v203
    %v843 = vunpack.c.l.b16 %v204
    %v844 = vunpack.c.h.b16 %v204
    %v845 = vunpack.c.l.b16 %v205
    %v846 = vunpack.c.h.b16 %v205
    %v847 = vunpack.c.l.b16 %v206
    %v848 = vunpack.c.h.b16 %v206
    %v849 = vpack.c.b16 %v597, %v593
    %v850 = vpack.c.b16 %v598, %v594
    %v851 = vpack.c.b16 %v599, %v595
    %v852 = vpack.c.b16 %v600, %v596
    %v853 = vpack.c.b16 %v605, %v601
    %v854 = vpack.c.b16 %v606, %v602
    %v855 = vpack.c.b16 %v607, %v603
    %v856 = vpack.c.b16 %v608, %v604
    %v857 = vpack.c.b16 %v613, %v609
    %v858 = vpack.c.b16 %v614, %v610
    %v859 = vpack.c.b16 %v615, %v611
    %v860 = vpack.c.b16 %v616, %v612
    %v861 = vpack.c.b16 %v621, %v617
    %v862 = vpack.c.b16 %v622, %v618
    %v863 = vpack.c.b16 %v623, %v619
    %v864 = vpack.c.b16 %v624, %v620
    %v865 = vpack.c.b16 %v629, %v625
    %v866 = vpack.c.b16 %v630, %v626
    %v867 = vpack.c.b16 %v631, %v627
    %v868 = vpack.c.b16 %v632, %v628
    %v869 = vpack.c.b16 %v637, %v633
    %v870 = vpack.c.b16 %v638, %v634
    %v871 = vpack.c.b16 %v639, %v635
    %v872 = vpack.c.b16 %v640, %v636
    %v873 = vpack.c.b16 %v645, %v641
    %v874 = vpack.c.b16 %v646, %v642
    %v875 = vpack.c.b16 %v647, %v643
    %v876 = vpack.c.b16 %v648, %v644
    %v877 = vpack.c.b16 %v653, %v649
    %v878 = vpack.c.b16 %v654, %v650
    %v879 = vpack.c.b16 %v655, %v651
    %v880 = vpack.c.b16 %v656, %v652
    %v881 = vpack.c.b16 %v661, %v657
    %v882 = vpack.c.b16 %v662, %v658
    %v883 = vpack.c.b16 %v663, %v659
    %v884 = vpack.c.b16 %v664, %v660
    %v885 = vpack.c.b16 %v669, %v665
    %v886 = vpack.c.b16 %v670, %v666
    %v887 = vpack.c.b16 %v671, %v667
    %v888 = vpack.c.b16 %v672, %v668
    %v889 = vpack.c.b16 %v677, %v673
    %v890 = vpack.c.b16 %v678, %v674
    %v891 = vpack.c.b16 %v679, %v675
    %v892 = vpack.c.b16 %v680, %v676
    %v893 = vpack.c.b16 %v685, %v681
    %v894 = vpack.c.b16 %v686, %v682
    %v895 = vpack.c.b16 %v687, %v683
    %v896 = vpack.c.b16 %v688, %v684
    %v897 = vpack.c.b16 %v693, %v689
    %v898 = vpack.c.b16 %v694, %v690
    %v899 = vpack.c.b16 %v695, %v691
    %v900 = vpack.c.b16 %v696, %v692
    %v901 = vpack.c.b16 %v701, %v697
    %v902 = vpack.c.b16 %v702, %v698
    %v903 = vpack.c.b16 %v703, %v699
    %v904 = vpack.c.b16 %v704, %v700
    %v905 = vpack.c.b16 %v709, %v705
    %v906 = vpack.c.b16 %v710, %v706
    %v907 = vpack.c.b16 %v711, %v707
    %v908 = vpack.c.b16 %v712, %v708
    %v909 = vpack.c.b16 %v717, %v713
    %v910 = vpack.c.b16 %v718, %v714
    %v911 = vpack.c.b16 %v719, %v715
    %v912 = vpack.c.b16 %v720, %v716
    %v913 = vpack.c.b16 %v725, %v721
    %v914 = vpack.c.b16 %v726, %v722
    %v915 = vpack.c.b16 %v727, %v723
    %v916 = vpack.c.b16 %v728, %v724
    %v917 = vpack.c.b16 %v733, %v729
    %v918 = vpack.c.b16 %v734, %v730
    %v919 = vpack.c.b16 %v735, %v731
    %v920 = vpack.c.b16 %v736, %v732
    %v921 = vpack.c.b16 %v741, %v737
    %v922 = vpack.c.b16 %v742, %v738
    %v923 = vpack.c.b16 %v743, %v739
    %v924 = vpack.c.b16 %v744, %v740
    %v925 = vpack.c.b16 %v749, %v745
    %v926 = vpack.c.b16 %v750, %v746
    %v927 = vpack.c.b16 %v751, %v747
    %v928 = vpack.c.b16 %v752, %v748
    %v929 = vpack.c.b16 %v757, %v753
    %v930 = vpack.c.b16 %v758, %v754
    %v931 = vpack.c.b16 %v759, %v755
    %v932 = vpack.c.b16 %v760, %v756
    %v933 = vpack.c.b16 %v765, %v761
    %v934 = vpack.c.b16 %v766, %v762
    %v935 = vpack.c.b16 %v767, %v763
    %v936 = vpack.c.b16 %v768, %v764
    %v937 = vpack.c.b16 %v773, %v769
    %v938 = vpack.c.b16 %v774, %v770
    %v939 = vpack.c.b16 %v775, %v771
    %v940 = vpack.c.b16 %v776, %v772
    %v941 = vpack.c.b16 %v781, %v777
    %v942 = vpack.c.b16 %v782, %v778
    %v943 = vpack.c.b16 %v783, %v779
    %v944 = vpack.c.b16 %v784, %v780
    %v945 = vpack.c.b16 %v789, %v785
    %v946 = vpack.c.b16 %v790, %v786
    %v947 = vpack.c.b16 %v791, %v787
    %v948 = vpack.c.b16 %v792, %v788
    %v949 = vpack.c.b16 %v797, %v793
    %v950 = vpack.c.b16 %v798, %v794
    %v951 = vpack.c.b16 %v799, %v795
    %v952 = vpack.c.b16 %v800, %v796
    %v953 = vpack.c.b16 %v805, %v801
    %v954 = vpack.c.b16 %v806, %v802
    %v955 = vpack.c.b16 %v807, %v803
    %v956 = vpack.c.b16 %v808, %v804
    %v957 = vpack.c.b16 %v813, %v809
    %v958 = vpack.c.b16 %v814, %v810
    %v959 = vpack.c.b16 %v815, %v811
    %v960 = vpack.c.b16 %v816, %v812
    %v961 = vpack.c.b16 %v821, %v817
    %v962 = vpack.c.b16 %v822, %v818
    %v963 = vpack.c.b16 %v823, %v819
    %v964 = vpack.c.b16 %v824, %v820
    %v965 = vpack.c.b16 %v829, %v825
    %v966 = vpack.c.b16 %v830, %v826
    %v967 = vpack.c.b16 %v831, %v827
    %v968 = vpack.c.b16 %v832, %v828
    %v969 = vpack.c.b16 %v837, %v833
    %v970 = vpack.c.b16 %v838, %v834
    %v971 = vpack.c.b16 %v839, %v835
    %v972 = vpack.c.b16 %v840, %v836
    %v973 = vpack.c.b16 %v845, %v841
    %v974 = vpack.c.b16 %v846, %v842
    %v975 = vpack.c.b16 %v847, %v843
    %v976 = vpack.c.b16 %v848, %v844
    %v1169 = vunpack.c.l.b16 %v273
    %v1170 = vunpack.c.h.b16 %v273
    %v1171 = vunpack.c.l.b16 %v274
    %v1172 = vunpack.c.h.b16 %v274
    %v1173 = vunpack.c.l.b16 %v275
    %v1174 = vunpack.c.h.b16 %v275
    %v1175 = vunpack.c.l.b16 %v276
    %v1176 = vunpack.c.h.b16 %v276
    %v1177 = vunpack.c.l.b16 %v277
    %v1178 = vunpack.c.h.b16 %v277
    %v1179 = vunpack.c.l.b16 %v278
    %v1180 = vunpack.c.h.b16 %v278
    %v1181 = vunpack.c.l.b16 %v279
    %v1182 = vunpack.c.h.b16 %v279
    %v1183 = vunpack.c.l.b16 %v280
    %v1184 = vunpack.c.h.b16 %v280
    %v1185 = vunpack.c.l.b16 %v281
    %v1186 = vunpack.c.h.b16 %v281
    %v1187 = vunpack.c.l.b16 %v282
    %v1188 = vunpack.c.h.b16 %v282
    %v1189 = vunpack.c.l.b16 %v283
    %v1190 = vunpack.c.h.b16 %v283
    %v1191 = vunpack.c.l.b16 %v284
    %v1192 = vunpack.c.h.b16 %v284
    %v1193 = vunpack.c.l.b16 %v285
    %v1194 = vunpack.c.h.b16 %v285
    %v1195 = vunpack.c.l.b16 %v286
    %v1196 = vunpack.c.h.b16 %v286
    %v1197 = vunpack.c.l.b16 %v287
    %v1198 = vunpack.c.h.b16 %v287
    %v1199 = vunpack.c.l.b16 %v288
    %v1200 = vunpack.c.h.b16 %v288
    %v1201 = vunpack.c.l.b16 %v289
    %v1202 = vunpack.c.h.b16 %v289
    %v1203 = vunpack.c.l.b16 %v290
    %v1204 = vunpack.c.h.b16 %v290
    %v1205 = vunpack.c.l.b16 %v291
    %v1206 = vunpack.c.h.b16 %v291
    %v1207 = vunpack.c.l.b16 %v292
    %v1208 = vunpack.c.h.b16 %v292
    %v1209 = vunpack.c.l.b16 %v293
    %v1210 = vunpack.c.h.b16 %v293
    %v1211 = vunpack.c.l.b16 %v294
    %v1212 = vunpack.c.h.b16 %v294
    %v1213 = vunpack.c.l.b16 %v295
    %v1214 = vunpack.c.h.b16 %v295
    %v1215 = vunpack.c.l.b16 %v296
    %v1216 = vunpack.c.h.b16 %v296
    %v1217 = vunpack.c.l.b16 %v297
    %v1218 = vunpack.c.h.b16 %v297
    %v1219 = vunpack.c.l.b16 %v298
    %v1220 = vunpack.c.h.b16 %v298
    %v1221 = vunpack.c.l.b16 %v299
    %v1222 = vunpack.c.h.b16 %v299
    %v1223 = vunpack.c.l.b16 %v300
    %v1224 = vunpack.c.h.b16 %v300
    %v1225 = vunpack.c.l.b16 %v301
    %v1226 = vunpack.c.h.b16 %v301
    %v1227 = vunpack.c.l.b16 %v302
    %v1228 = vunpack.c.h.b16 %v302
    %v1229 = vunpack.c.l.b16 %v303
    %v1230 = vunpack.c.h.b16 %v303
    %v1231 = vunpack.c.l.b16 %v304
    %v1232 = vunpack.c.h.b16 %v304
    %v1233 = vunpack.c.l.b16 %v305
    %v1234 = vunpack.c.h.b16 %v305
    %v1235 = vunpack.c.l.b16 %v306
    %v1236 = vunpack.c.h.b16 %v306
    %v1237 = vunpack.c.l.b16 %v307
    %v1238 = vunpack.c.h.b16 %v307
    %v1239 = vunpack.c.l.b16 %v308
    %v1240 = vunpack.c.h.b16 %v308
    %v1241 = vunpack.c.l.b16 %v309
    %v1242 = vunpack.c.h.b16 %v309
    %v1243 = vunpack.c.l.b16 %v310
    %v1244 = vunpack.c.h.b16 %v310
    %v1245 = vunpack.c.l.b16 %v311
    %v1246 = vunpack.c.h.b16 %v311
    %v1247 = vunpack.c.l.b16 %v312
    %v1248 = vunpack.c.h.b16 %v312
    %v1249 = vunpack.c.l.b16 %v313
    %v1250 = vunpack.c.h.b16 %v313
    %v1251 = vunpack.c.l.b16 %v314
    %v1252 = vunpack.c.h.b16 %v314
    %v1253 = vunpack.c.l.b16 %v315
    %v1254 = vunpack.c.h.b16 %v315
    %v1255 = vunpack.c.l.b16 %v316
    %v1256 = vunpack.c.h.b16 %v316
    %v1257 = vunpack.c.l.b16 %v317
    %v1258 = vunpack.c.h.b16 %v317
    %v1259 = vunpack.c.l.b16 %v318
    %v1260 = vunpack.c.h.b16 %v318
    %v1261 = vunpack.c.l.b16 %v319
    %v1262 = vunpack.c.h.b16 %v319
    %v1263 = vunpack.c.l.b16 %v320
    %v1264 = vunpack.c.h.b16 %v320
    %v1265 = vunpack.c.l.b16 %v321
    %v1266 = vunpack.c.h.b16 %v321
    %v1267 = vunpack.c.l.b16 %v322
    %v1268 = vunpack.c.h.b16 %v322
    %v1269 = vunpack.c.l.b16 %v323
    %v1270 = vunpack.c.h.b16 %v323
    %v1271 = vunpack.c.l.b16 %v324
    %v1272 = vunpack.c.h.b16 %v324
    %v1273 = vunpack.c.l.b16 %v325
    %v1274 = vunpack.c.h.b16 %v325
    %v1275 = vunpack.c.l.b16 %v326
    %v1276 = vunpack.c.h.b16 %v326
    %v1277 = vunpack.c.l.b16 %v327
    %v1278 = vunpack.c.h.b16 %v327
    %v1279 = vunpack.c.l.b16 %v328
    %v1280 = vunpack.c.h.b16 %v328
    %v1281 = vunpack.c.l.b16 %v329
    %v1282 = vunpack.c.h.b16 %v329
    %v1283 = vunpack.c.l.b16 %v330
    %v1284 = vunpack.c.h.b16 %v330
    %v1285 = vunpack.c.l.b16 %v331
    %v1286 = vunpack.c.h.b16 %v331
    %v1287 = vunpack.c.l.b16 %v332
    %v1288 = vunpack.c.h.b16 %v332
    %v1289 = vunpack.c.l.b16 %v333
    %v1290 = vunpack.c.h.b16 %v333
    %v1291 = vunpack.c.l.b16 %v334
    %v1292 = vunpack.c.h.b16 %v334
    %v1293 = vunpack.c.l.b16 %v335
    %v1294 = vunpack.c.h.b16 %v335
    %v1295 = vunpack.c.l.b16 %v336
    %v1296 = vunpack.c.h.b16 %v336
    %v1297 = vpack.c.b16 %v1171, %v1169
    %v1298 = vpack.c.b16 %v1172, %v1170
    %v1299 = vpack.c.b16 %v1175, %v1173
    %v1300 = vpack.c.b16 %v1176, %v1174
    %v1301 = vpack.c.b16 %v1179, %v1177
    %v1302 = vpack.c.b16 %v1180, %v1178
    %v1303 = vpack.c.b16 %v1183, %v1181
    %v1304 = vpack.c.b16 %v1184, %v1182
    %v1305 = vpack.c.b16 %v1187, %v1185
    %v1306 = vpack.c.b16 %v1188, %v1186
    %v1307 = vpack.c.b16 %v1191, %v1189
    %v1308 = vpack.c.b16 %v1192, %v1190
    %v1309 = vpack.c.b16 %v1195, %v1193
    %v1310 = vpack.c.b16 %v1196, %v1194
    %v1311 = vpack.c.b16 %v1199, %v1197
    %v1312 = vpack.c.b16 %v1200, %v1198
    %v1313 = vpack.c.b16 %v1203, %v1201
    %v1314 = vpack.c.b16 %v1204, %v1202
    %v1315 = vpack.c.b16 %v1207, %v1205
    %v1316 = vpack.c.b16 %v1208, %v1206
    %v1317 = vpack.c.b16 %v1211, %v1209
    %v1318 = vpack.c.b16 %v1212, %v1210
    %v1319 = vpack.c.b16 %v1215, %v1213
    %v1320 = vpack.c.b16 %v1216, %v1214
    %v1321 = vpack.c.b16 %v1219, %v1217
    %v1322 = vpack.c.b16 %v1220, %v1218
    %v1323 = vpack.c.b16 %v1223, %v1221
    %v1324 = vpack.c.b16 %v1224, %v1222
    %v1325 = vpack.c.b16 %v1227, %v1225
    %v1326 = vpack.c.b16 %v1228, %v1226
    %v1327 = vpack.c.b16 %v1231, %v1229
    %v1328 = vpack.c.b16 %v1232, %v1230
    %v1329 = vpack.c.b16 %v1235, %v1233
    %v1330 = vpack.c.b16 %v1236, %v1234
    %v1331 = vpack.c.b16 %v1239, %v1237
    %v1332 = vpack.c.b16 %v1240, %v1238
    %v1333 = vpack.c.b16 %v1243, %v1241
    %v1334 = vpack.c.b16 %v1244, %v1242
    %v1335 = vpack.c.b16 %v1247, %v1245
    %v1336 = vpack.c.b16 %v1248, %v1246
    %v1337 = vpack.c.b16 %v1251, %v1249
    %v1338 = vpack.c.b16 %v1252, %v1250
    %v1339 = vpack.c.b16 %v1255, %v1253
    %v1340 = vpack.c.b16 %v1256, %v1254
    %v1341 = vpack.c.b16 %v1259, %v1257
    %v1342 = vpack.c.b16 %v1260, %v1258
    %v1343 = vpack.c.b16 %v1263, %v1261
    %v1344 = vpack.c.b16 %v1264, %v1262
    %v1345 = vpack.c.b16 %v1267, %v1265
    %v1346 = vpack.c.b16 %v1268, %v1266
    %v1347 = vpack.c.b16 %v1271, %v1269
    %v1348 = vpack.c.b16 %v1272, %v1270
    %v1349 = vpack.c.b16 %v1275, %v1273
    %v1350 = vpack.c.b16 %v1276, %v1274
    %v1351 = vpack.c.b16 %v1279, %v1277
    %v1352 = vpack.c.b16 %v1280, %v1278
    %v1353 = vpack.c.b16 %v1283, %v1281
    %v1354 = vpack.c.b16 %v1284, %v1282
    %v1355 = vpack.c.b16 %v1287, %v1285
    %v1356 = vpack.c.b16 %v1288, %v1286
    %v1357 = vpack.c.b16 %v1291, %v1289
    %v1358 = vpack.c.b16 %v1292, %v1290
    %v1359 = vpack.c.b16 %v1295, %v1293
    %v1360 = vpack.c.b16 %v1296, %v1294
    %1425 = vmatprep.subr.bf16.mxu0 %v1298
    %1426 = vmatpush1.bf16.msra.mxu0 %v1297
    %1427 = vmatprep.subr.bf16.mxu0 %v1300
    %1428 = vmatpush1.bf16.msra.mxu0 %v1299
    %1429 = vmatprep.subr.bf16.mxu0 %v1302
    %1430 = vmatpush1.bf16.msra.mxu0 %v1301
    %1431 = vmatprep.subr.bf16.mxu0 %v1304
    %1432 = vmatpush1.bf16.msra.mxu0 %v1303
    %1433 = vmatprep.subr.bf16.mxu0 %v1306
    %1434 = vmatpush1.bf16.msra.mxu0 %v1305
    %1435 = vmatprep.subr.bf16.mxu0 %v1308
    %1436 = vmatpush1.bf16.msra.mxu0 %v1307
    %1437 = vmatprep.subr.bf16.mxu0 %v1310
    %1438 = vmatpush1.bf16.msra.mxu0 %v1309
    %1439 = vmatprep.subr.bf16.mxu0 %v1312
    %1440 = vmatpush1.bf16.msra.mxu0 %v1311
    %1441 = vmatprep.subr.bf16.mxu0 %v1314
    %1442 = vmatpush1.bf16.msra.mxu0 %v1313
    %1443 = vmatprep.subr.bf16.mxu0 %v1316
    %1444 = vmatpush1.bf16.msra.mxu0 %v1315
    %1445 = vmatprep.subr.bf16.mxu0 %v1318
    %1446 = vmatpush1.bf16.msra.mxu0 %v1317
    %1447 = vmatprep.subr.bf16.mxu0 %v1320
    %1448 = vmatpush1.bf16.msra.mxu0 %v1319
    %1449 = vmatprep.subr.bf16.mxu0 %v1322
    %1450 = vmatpush1.bf16.msra.mxu0 %v1321
    %1451 = vmatprep.subr.bf16.mxu0 %v1324
    %1452 = vmatpush1.bf16.msra.mxu0 %v1323
    %1453 = vmatprep.subr.bf16.mxu0 %v1326
    %1454 = vmatpush1.bf16.msra.mxu0 %v1325
    %1455 = vmatprep.subr.bf16.mxu0 %v1328
    %1456 = vmatpush1.bf16.msra.mxu0 %v1327
    %1457 = vmatprep.mubr.bf16.mxu0 %v850
    %1458 = vmatmul.mubr.bf16.gmra.mrb[0].mxu0 %v849
    %v1459 = vpop.f32.mrb[0].mxu0
    %v1460 = vadd.f32 0.0, %v1459
    %v1461 = vpop.f32.mrb[0].mxu0
    %v1462 = vadd.f32 0.0, %v1461
    %v1463 = vpop.f32.mrb[0].mxu0
    %v1464 = vadd.f32 0.0, %v1463
    %v1465 = vpop.f32.mrb[0].mxu0
    %v1466 = vadd.f32 0.0, %v1465
    %1467 = vmatprep.mubr.bf16.mxu0 %v854
    %1468 = vmatmul.mubr.bf16.gmra.mrb[0].mxu0 %v853
    %v1469 = vpop.f32.mrb[0].mxu0
    %v1470 = vadd.f32 0.0, %v1469
    %v1471 = vpop.f32.mrb[0].mxu0
    %v1472 = vadd.f32 0.0, %v1471
    %v1473 = vpop.f32.mrb[0].mxu0
    %v1474 = vadd.f32 0.0, %v1473
    %v1475 = vpop.f32.mrb[0].mxu0
    %v1476 = vadd.f32 0.0, %v1475
    %1477 = vmatprep.mubr.bf16.mxu0 %v858
    %1478 = vmatmul.mubr.bf16.gmra.mrb[0].mxu0 %v857
    %v1479 = vpop.f32.mrb[0].mxu0
    %v1480 = vadd.f32 0.0, %v1479
    %v1481 = vpop.f32.mrb[0].mxu0
    %v1482 = vadd.f32 0.0, %v1481
    %v1483 = vpop.f32.mrb[0].mxu0
    %v1484 = vadd.f32 0.0, %v1483
    %v1485 = vpop.f32.mrb[0].mxu0
    %v1486 = vadd.f32 0.0, %v1485
    %1487 = vmatprep.mubr.bf16.mxu0 %v862
    %1488 = vmatmul.mubr.bf16.gmra.mrb[0].mxu0 %v861
    %v1489 = vpop.f32.mrb[0].mxu0
    %v1490 = vadd.f32 0.0, %v1489
    %v1491 = vpop.f32.mrb[0].mxu0
    %v1492 = vadd.f32 0.0, %v1491
    %v1493 = vpop.f32.mrb[0].mxu0
    %v1494 = vadd.f32 0.0, %v1493
    %v1495 = vpop.f32.mrb[0].mxu0
    %v1496 = vadd.f32 0.0, %v1495
    %1497 = vmatprep.mubr.bf16.mxu0 %v866
    %1498 = vmatmul.mubr.bf16.gmra.mrb[0].mxu0 %v865
    %v1499 = vpop.f32.mrb[0].mxu0
    %v1500 = vadd.f32 0.0, %v1499
    %v1501 = vpop.f32.mrb[0].mxu0
    %v1502 = vadd.f32 0.0, %v1501
    %v1503 = vpop.f32.mrb[0].mxu0
    %v1504 = vadd.f32 0.0, %v1503
    %v1505 = vpop.f32.mrb[0].mxu0
    %v1506 = vadd.f32 0.0, %v1505
    %1507 = vmatprep.mubr.bf16.mxu0 %v870
    %1508 = vmatmul.mubr.bf16.gmra.mrb[0].mxu0 %v869
    %v1509 = vpop.f32.mrb[0].mxu0
    %v1510 = vadd.f32 0.0, %v1509
    %v1511 = vpop.f32.mrb[0].mxu0
    %v1512 = vadd.f32 0.0, %v1511
    %v1513 = vpop.f32.mrb[0].mxu0
    %v1514 = vadd.f32 0.0, %v1513
    %v1515 = vpop.f32.mrb[0].mxu0
    %v1516 = vadd.f32 0.0, %v1515
    %1517 = vmatprep.mubr.bf16.mxu0 %v874
    %1518 = vmatmul.mubr.bf16.gmra.mrb[0].mxu0 %v873
    %v1519 = vpop.f32.mrb[0].mxu0
    %v1520 = vadd.f32 0.0, %v1519
    %v1521 = vpop.f32.mrb[0].mxu0
    %v1522 = vadd.f32 0.0, %v1521
    %v1523 = vpop.f32.mrb[0].mxu0
    %v1524 = vadd.f32 0.0, %v1523
    %v1525 = vpop.f32.mrb[0].mxu0
    %v1526 = vadd.f32 0.0, %v1525
    %1527 = vmatprep.mubr.bf16.mxu0 %v878
    %1528 = vmatmul.mubr.bf16.gmra.mrb[0].mxu0 %v877
    %v1529 = vpop.f32.mrb[0].mxu0
    %v1530 = vadd.f32 0.0, %v1529
    %v1531 = vpop.f32.mrb[0].mxu0
    %v1532 = vadd.f32 0.0, %v1531
    %v1533 = vpop.f32.mrb[0].mxu0
    %v1534 = vadd.f32 0.0, %v1533
    %v1535 = vpop.f32.mrb[0].mxu0
    %v1536 = vadd.f32 0.0, %v1535
    %1537 = vmatprep.mubr.bf16.mxu0 %v882
    %1538 = vmatmul.mubr.bf16.gmra.mrb[0].mxu0 %v881
    %v1539 = vpop.f32.mrb[0].mxu0
    %v1540 = vadd.f32 0.0, %v1539
    %v1541 = vpop.f32.mrb[0].mxu0
    %v1542 = vadd.f32 0.0, %v1541
    %v1543 = vpop.f32.mrb[0].mxu0
    %v1544 = vadd.f32 0.0, %v1543
    %v1545 = vpop.f32.mrb[0].mxu0
    %v1546 = vadd.f32 0.0, %v1545
    %1547 = vmatprep.mubr.bf16.mxu0 %v886
    %1548 = vmatmul.mubr.bf16.gmra.mrb[0].mxu0 %v885
    %v1549 = vpop.f32.mrb[0].mxu0
    %v1550 = vadd.f32 0.0, %v1549
    %v1551 = vpop.f32.mrb[0].mxu0
    %v1552 = vadd.f32 0.0, %v1551
    %v1553 = vpop.f32.mrb[0].mxu0
    %v1554 = vadd.f32 0.0, %v1553
    %v1555 = vpop.f32.mrb[0].mxu0
    %v1556 = vadd.f32 0.0, %v1555
    %1557 = vmatprep.mubr.bf16.mxu0 %v890
    %1558 = vmatmul.mubr.bf16.gmra.mrb[0].mxu0 %v889
    %v1559 = vpop.f32.mrb[0].mxu0
    %v1560 = vadd.f32 0.0, %v1559
    %v1561 = vpop.f32.mrb[0].mxu0
    %v1562 = vadd.f32 0.0, %v1561
    %v1563 = vpop.f32.mrb[0].mxu0
    %v1564 = vadd.f32 0.0, %v1563
    %v1565 = vpop.f32.mrb[0].mxu0
    %v1566 = vadd.f32 0.0, %v1565
    %1567 = vmatprep.mubr.bf16.mxu0 %v894
    %1568 = vmatmul.mubr.bf16.gmra.mrb[0].mxu0 %v893
    %v1569 = vpop.f32.mrb[0].mxu0
    %v1570 = vadd.f32 0.0, %v1569
    %v1571 = vpop.f32.mrb[0].mxu0
    %v1572 = vadd.f32 0.0, %v1571
    %v1573 = vpop.f32.mrb[0].mxu0
    %v1574 = vadd.f32 0.0, %v1573
    %v1575 = vpop.f32.mrb[0].mxu0
    %v1576 = vadd.f32 0.0, %v1575
    %1577 = vmatprep.mubr.bf16.mxu0 %v898
    %1578 = vmatmul.mubr.bf16.gmra.mrb[0].mxu0 %v897
    %v1579 = vpop.f32.mrb[0].mxu0
    %v1580 = vadd.f32 0.0, %v1579
    %v1581 = vpop.f32.mrb[0].mxu0
    %v1582 = vadd.f32 0.0, %v1581
    %v1583 = vpop.f32.mrb[0].mxu0
    %v1584 = vadd.f32 0.0, %v1583
    %v1585 = vpop.f32.mrb[0].mxu0
    %v1586 = vadd.f32 0.0, %v1585
    %1587 = vmatprep.mubr.bf16.mxu0 %v902
    %1588 = vmatmul.mubr.bf16.gmra.mrb[0].mxu0 %v901
    %v1589 = vpop.f32.mrb[0].mxu0
    %v1590 = vadd.f32 0.0, %v1589
    %v1591 = vpop.f32.mrb[0].mxu0
    %v1592 = vadd.f32 0.0, %v1591
    %v1593 = vpop.f32.mrb[0].mxu0
    %v1594 = vadd.f32 0.0, %v1593
    %v1595 = vpop.f32.mrb[0].mxu0
    %v1596 = vadd.f32 0.0, %v1595
    %1597 = vmatprep.mubr.bf16.mxu0 %v906
    %1598 = vmatmul.mubr.bf16.gmra.mrb[0].mxu0 %v905
    %v1599 = vpop.f32.mrb[0].mxu0
    %v1600 = vadd.f32 0.0, %v1599
    %v1601 = vpop.f32.mrb[0].mxu0
    %v1602 = vadd.f32 0.0, %v1601
    %v1603 = vpop.f32.mrb[0].mxu0
    %v1604 = vadd.f32 0.0, %v1603
    %v1605 = vpop.f32.mrb[0].mxu0
    %v1606 = vadd.f32 0.0, %v1605
    %1607 = vmatprep.mubr.bf16.mxu0 %v910
    %1608 = vmatmul.mubr.bf16.gmra.mrb[0].mxu0 %v909
    %v1609 = vpop.f32.mrb[0].mxu0
    %v1610 = vadd.f32 0.0, %v1609
    %v1611 = vpop.f32.mrb[0].mxu0
    %v1612 = vadd.f32 0.0, %v1611
    %v1613 = vpop.f32.mrb[0].mxu0
    %v1614 = vadd.f32 0.0, %v1613
    %v1615 = vpop.f32.mrb[0].mxu0
    %v1616 = vadd.f32 0.0, %v1615
    %1617 = vmatprep.mubr.bf16.mxu0 %v914
    %1618 = vmatmul.mubr.bf16.gmra.mrb[0].mxu0 %v913
    %v1619 = vpop.f32.mrb[0].mxu0
    %v1620 = vadd.f32 0.0, %v1619
    %v1621 = vpop.f32.mrb[0].mxu0
    %v1622 = vadd.f32 0.0, %v1621
    %v1623 = vpop.f32.mrb[0].mxu0
    %v1624 = vadd.f32 0.0, %v1623
    %v1625 = vpop.f32.mrb[0].mxu0
    %v1626 = vadd.f32 0.0, %v1625
    %1627 = vmatprep.mubr.bf16.mxu0 %v918
    %1628 = vmatmul.mubr.bf16.gmra.mrb[0].mxu0 %v917
    %v1629 = vpop.f32.mrb[0].mxu0
    %v1630 = vadd.f32 0.0, %v1629
    %v1631 = vpop.f32.mrb[0].mxu0
    %v1632 = vadd.f32 0.0, %v1631
    %v1633 = vpop.f32.mrb[0].mxu0
    %v1634 = vadd.f32 0.0, %v1633
    %v1635 = vpop.f32.mrb[0].mxu0
    %v1636 = vadd.f32 0.0, %v1635
    %1637 = vmatprep.mubr.bf16.mxu0 %v922
    %1638 = vmatmul.mubr.bf16.gmra.mrb[0].mxu0 %v921
    %v1639 = vpop.f32.mrb[0].mxu0
    %v1640 = vadd.f32 0.0, %v1639
    %v1641 = vpop.f32.mrb[0].mxu0
    %v1642 = vadd.f32 0.0, %v1641
    %v1643 = vpop.f32.mrb[0].mxu0
    %v1644 = vadd.f32 0.0, %v1643
    %v1645 = vpop.f32.mrb[0].mxu0
    %v1646 = vadd.f32 0.0, %v1645
    %1647 = vmatprep.mubr.bf16.mxu0 %v926
    %1648 = vmatmul.mubr.bf16.gmra.mrb[0].mxu0 %v925
    %v1649 = vpop.f32.mrb[0].mxu0
    %v1650 = vadd.f32 0.0, %v1649
    %v1651 = vpop.f32.mrb[0].mxu0
    %v1652 = vadd.f32 0.0, %v1651
    %v1653 = vpop.f32.mrb[0].mxu0
    %v1654 = vadd.f32 0.0, %v1653
    %v1655 = vpop.f32.mrb[0].mxu0
    %v1656 = vadd.f32 0.0, %v1655
    %1657 = vmatprep.mubr.bf16.mxu0 %v930
    %1658 = vmatmul.mubr.bf16.gmra.mrb[0].mxu0 %v929
    %v1659 = vpop.f32.mrb[0].mxu0
    %v1660 = vadd.f32 0.0, %v1659
    %v1661 = vpop.f32.mrb[0].mxu0
    %v1662 = vadd.f32 0.0, %v1661
    %v1663 = vpop.f32.mrb[0].mxu0
    %v1664 = vadd.f32 0.0, %v1663
    %v1665 = vpop.f32.mrb[0].mxu0
    %v1666 = vadd.f32 0.0, %v1665
    %1667 = vmatprep.mubr.bf16.mxu0 %v934
    %1668 = vmatmul.mubr.bf16.gmra.mrb[0].mxu0 %v933
    %v1669 = vpop.f32.mrb[0].mxu0
    %v1670 = vadd.f32 0.0, %v1669
    %v1671 = vpop.f32.mrb[0].mxu0
    %v1672 = vadd.f32 0.0, %v1671
    %v1673 = vpop.f32.mrb[0].mxu0
    %v1674 = vadd.f32 0.0, %v1673
    %v1675 = vpop.f32.mrb[0].mxu0
    %v1676 = vadd.f32 0.0, %v1675
    %1677 = vmatprep.mubr.bf16.mxu0 %v938
    %1678 = vmatmul.mubr.bf16.gmra.mrb[0].mxu0 %v937
    %v1679 = vpop.f32.mrb[0].mxu0
    %v1680 = vadd.f32 0.0, %v1679
    %v1681 = vpop.f32.mrb[0].mxu0
    %v1682 = vadd.f32 0.0, %v1681
    %v1683 = vpop.f32.mrb[0].mxu0
    %v1684 = vadd.f32 0.0, %v1683
    %v1685 = vpop.f32.mrb[0].mxu0
    %v1686 = vadd.f32 0.0, %v1685
    %1687 = vmatprep.mubr.bf16.mxu0 %v942
    %1688 = vmatmul.mubr.bf16.gmra.mrb[0].mxu0 %v941
    %v1689 = vpop.f32.mrb[0].mxu0
    %v1690 = vadd.f32 0.0, %v1689
    %v1691 = vpop.f32.mrb[0].mxu0
    %v1692 = vadd.f32 0.0, %v1691
    %v1693 = vpop.f32.mrb[0].mxu0
    %v1694 = vadd.f32 0.0, %v1693
    %v1695 = vpop.f32.mrb[0].mxu0
    %v1696 = vadd.f32 0.0, %v1695
    %1697 = vmatprep.mubr.bf16.mxu0 %v946
    %1698 = vmatmul.mubr.bf16.gmra.mrb[0].mxu0 %v945
    %v1699 = vpop.f32.mrb[0].mxu0
    %v1700 = vadd.f32 0.0, %v1699
    %v1701 = vpop.f32.mrb[0].mxu0
    %v1702 = vadd.f32 0.0, %v1701
    %v1703 = vpop.f32.mrb[0].mxu0
    %v1704 = vadd.f32 0.0, %v1703
    %v1705 = vpop.f32.mrb[0].mxu0
    %v1706 = vadd.f32 0.0, %v1705
    %1707 = vmatprep.mubr.bf16.mxu0 %v950
    %1708 = vmatmul.mubr.bf16.gmra.mrb[0].mxu0 %v949
    %v1709 = vpop.f32.mrb[0].mxu0
    %v1710 = vadd.f32 0.0, %v1709
    %v1711 = vpop.f32.mrb[0].mxu0
    %v1712 = vadd.f32 0.0, %v1711
    %v1713 = vpop.f32.mrb[0].mxu0
    %v1714 = vadd.f32 0.0, %v1713
    %v1715 = vpop.f32.mrb[0].mxu0
    %v1716 = vadd.f32 0.0, %v1715
    %1717 = vmatprep.mubr.bf16.mxu0 %v954
    %1718 = vmatmul.mubr.bf16.gmra.mrb[0].mxu0 %v953
    %v1719 = vpop.f32.mrb[0].mxu0
    %v1720 = vadd.f32 0.0, %v1719
    %v1721 = vpop.f32.mrb[0].mxu0
    %v1722 = vadd.f32 0.0, %v1721
    %v1723 = vpop.f32.mrb[0].mxu0
    %v1724 = vadd.f32 0.0, %v1723
    %v1725 = vpop.f32.mrb[0].mxu0
    %v1726 = vadd.f32 0.0, %v1725
    %1727 = vmatprep.mubr.bf16.mxu0 %v958
    %1728 = vmatmul.mubr.bf16.gmra.mrb[0].mxu0 %v957
    %v1729 = vpop.f32.mrb[0].mxu0
    %v1730 = vadd.f32 0.0, %v1729
    %v1731 = vpop.f32.mrb[0].mxu0
    %v1732 = vadd.f32 0.0, %v1731
    %v1733 = vpop.f32.mrb[0].mxu0
    %v1734 = vadd.f32 0.0, %v1733
    %v1735 = vpop.f32.mrb[0].mxu0
    %v1736 = vadd.f32 0.0, %v1735
    %1737 = vmatprep.mubr.bf16.mxu0 %v962
    %1738 = vmatmul.mubr.bf16.gmra.mrb[0].mxu0 %v961
    %v1739 = vpop.f32.mrb[0].mxu0
    %v1740 = vadd.f32 0.0, %v1739
    %v1741 = vpop.f32.mrb[0].mxu0
    %v1742 = vadd.f32 0.0, %v1741
    %v1743 = vpop.f32.mrb[0].mxu0
    %v1744 = vadd.f32 0.0, %v1743
    %v1745 = vpop.f32.mrb[0].mxu0
    %v1746 = vadd.f32 0.0, %v1745
    %1747 = vmatprep.mubr.bf16.mxu0 %v966
    %1748 = vmatmul.mubr.bf16.gmra.mrb[0].mxu0 %v965
    %v1749 = vpop.f32.mrb[0].mxu0
    %v1750 = vadd.f32 0.0, %v1749
    %v1751 = vpop.f32.mrb[0].mxu0
    %v1752 = vadd.f32 0.0, %v1751
    %v1753 = vpop.f32.mrb[0].mxu0
    %v1754 = vadd.f32 0.0, %v1753
    %v1755 = vpop.f32.mrb[0].mxu0
    %v1756 = vadd.f32 0.0, %v1755
    %1757 = vmatprep.mubr.bf16.mxu0 %v970
    %1758 = vmatmul.mubr.bf16.gmra.mrb[0].mxu0 %v969
    %v1759 = vpop.f32.mrb[0].mxu0
    %v1760 = vadd.f32 0.0, %v1759
    %v1761 = vpop.f32.mrb[0].mxu0
    %v1762 = vadd.f32 0.0, %v1761
    %v1763 = vpop.f32.mrb[0].mxu0
    %v1764 = vadd.f32 0.0, %v1763
    %v1765 = vpop.f32.mrb[0].mxu0
    %v1766 = vadd.f32 0.0, %v1765
    %1767 = vmatprep.mubr.bf16.mxu0 %v974
    %1768 = vmatmul.mubr.bf16.gmra.mrb[0].mxu0 %v973
    %v1769 = vpop.f32.mrb[0].mxu0
    %v1770 = vadd.f32 0.0, %v1769
    %v1771 = vpop.f32.mrb[0].mxu0
    %v1772 = vadd.f32 0.0, %v1771
    %v1773 = vpop.f32.mrb[0].mxu0
    %v1774 = vadd.f32 0.0, %v1773
    %v1775 = vpop.f32.mrb[0].mxu0
    %v1776 = vadd.f32 0.0, %v1775
    %1777 = vdwg.mxu0
    %1778 = vmatprep.subr.bf16.mxu0 %v1330
    %1779 = vmatpush1.bf16.msra.mxu0 %v1329
    %1780 = vmatprep.subr.bf16.mxu0 %v1332
    %1781 = vmatpush1.bf16.msra.mxu0 %v1331
    %1782 = vmatprep.subr.bf16.mxu0 %v1334
    %1783 = vmatpush1.bf16.msra.mxu0 %v1333
    %1784 = vmatprep.subr.bf16.mxu0 %v1336
    %1785 = vmatpush1.bf16.msra.mxu0 %v1335
    %1786 = vmatprep.subr.bf16.mxu0 %v1338
    %1787 = vmatpush1.bf16.msra.mxu0 %v1337
    %1788 = vmatprep.subr.bf16.mxu0 %v1340
    %1789 = vmatpush1.bf16.msra.mxu0 %v1339
    %1790 = vmatprep.subr.bf16.mxu0 %v1342
    %1791 = vmatpush1.bf16.msra.mxu0 %v1341
    %1792 = vmatprep.subr.bf16.mxu0 %v1344
    %1793 = vmatpush1.bf16.msra.mxu0 %v1343
    %1794 = vmatprep.subr.bf16.mxu0 %v1346
    %1795 = vmatpush1.bf16.msra.mxu0 %v1345
    %1796 = vmatprep.subr.bf16.mxu0 %v1348
    %1797 = vmatpush1.bf16.msra.mxu0 %v1347
    %1798 = vmatprep.subr.bf16.mxu0 %v1350
    %1799 = vmatpush1.bf16.msra.mxu0 %v1349
    %1800 = vmatprep.subr.bf16.mxu0 %v1352
    %1801 = vmatpush1.bf16.msra.mxu0 %v1351
    %1802 = vmatprep.subr.bf16.mxu0 %v1354
    %1803 = vmatpush1.bf16.msra.mxu0 %v1353
    %1804 = vmatprep.subr.bf16.mxu0 %v1356
    %1805 = vmatpush1.bf16.msra.mxu0 %v1355
    %1806 = vmatprep.subr.bf16.mxu0 %v1358
    %1807 = vmatpush1.bf16.msra.mxu0 %v1357
    %1808 = vmatprep.subr.bf16.mxu0 %v1360
    %1809 = vmatpush1.bf16.msra.mxu0 %v1359
    %1810 = vmatprep.mubr.bf16.mxu0 %v852
    %1811 = vmatmul.mubr.bf16.gmra.mrb[0].mxu0 %v851
    %v1812 = vpop.f32.mrb[0].mxu0
    %v1813 = vadd.f32 %v1460, %v1812
    %v1814 = vpop.f32.mrb[0].mxu0
    %v1815 = vadd.f32 %v1462, %v1814
    %v1816 = vpop.f32.mrb[0].mxu0
    %v1817 = vadd.f32 %v1464, %v1816
    %v1818 = vpop.f32.mrb[0].mxu0
    %v1819 = vadd.f32 %v1466, %v1818
    %1820 = vmatprep.mubr.bf16.mxu0 %v856
    %1821 = vmatmul.mubr.bf16.gmra.mrb[0].mxu0 %v855
    %v1822 = vpop.f32.mrb[0].mxu0
    %v1823 = vadd.f32 %v1470, %v1822
    %v1824 = vpop.f32.mrb[0].mxu0
    %v1825 = vadd.f32 %v1472, %v1824
    %v1826 = vpop.f32.mrb[0].mxu0
    %v1827 = vadd.f32 %v1474, %v1826
    %v1828 = vpop.f32.mrb[0].mxu0
    %v1829 = vadd.f32 %v1476, %v1828
    %1830 = vmatprep.mubr.bf16.mxu0 %v860
    %1831 = vmatmul.mubr.bf16.gmra.mrb[0].mxu0 %v859
    %v1832 = vpop.f32.mrb[0].mxu0
    %v1833 = vadd.f32 %v1480, %v1832
    %v1834 = vpop.f32.mrb[0].mxu0
    %v1835 = vadd.f32 %v1482, %v1834
    %v1836 = vpop.f32.mrb[0].mxu0
    %v1837 = vadd.f32 %v1484, %v1836
    %v1838 = vpop.f32.mrb[0].mxu0
    %v1839 = vadd.f32 %v1486, %v1838
    %1840 = vmatprep.mubr.bf16.mxu0 %v864
    %1841 = vmatmul.mubr.bf16.gmra.mrb[0].mxu0 %v863
    %v1842 = vpop.f32.mrb[0].mxu0
    %v1843 = vadd.f32 %v1490, %v1842
    %v1844 = vpop.f32.mrb[0].mxu0
    %v1845 = vadd.f32 %v1492, %v1844
    %v1846 = vpop.f32.mrb[0].mxu0
    %v1847 = vadd.f32 %v1494, %v1846
    %v1848 = vpop.f32.mrb[0].mxu0
    %v1849 = vadd.f32 %v1496, %v1848
    %1850 = vmatprep.mubr.bf16.mxu0 %v868
    %1851 = vmatmul.mubr.bf16.gmra.mrb[0].mxu0 %v867
    %v1852 = vpop.f32.mrb[0].mxu0
    %v1853 = vadd.f32 %v1500, %v1852
    %v1854 = vpop.f32.mrb[0].mxu0
    %v1855 = vadd.f32 %v1502, %v1854
    %v1856 = vpop.f32.mrb[0].mxu0
    %v1857 = vadd.f32 %v1504, %v1856
    %v1858 = vpop.f32.mrb[0].mxu0
    %v1859 = vadd.f32 %v1506, %v1858
    %1860 = vmatprep.mubr.bf16.mxu0 %v872
    %1861 = vmatmul.mubr.bf16.gmra.mrb[0].mxu0 %v871
    %v1862 = vpop.f32.mrb[0].mxu0
    %v1863 = vadd.f32 %v1510, %v1862
    %v1864 = vpop.f32.mrb[0].mxu0
    %v1865 = vadd.f32 %v1512, %v1864
    %v1866 = vpop.f32.mrb[0].mxu0
    %v1867 = vadd.f32 %v1514, %v1866
    %v1868 = vpop.f32.mrb[0].mxu0
    %v1869 = vadd.f32 %v1516, %v1868
    %1870 = vmatprep.mubr.bf16.mxu0 %v876
    %1871 = vmatmul.mubr.bf16.gmra.mrb[0].mxu0 %v875
    %v1872 = vpop.f32.mrb[0].mxu0
    %v1873 = vadd.f32 %v1520, %v1872
    %v1874 = vpop.f32.mrb[0].mxu0
    %v1875 = vadd.f32 %v1522, %v1874
    %v1876 = vpop.f32.mrb[0].mxu0
    %v1877 = vadd.f32 %v1524, %v1876
    %v1878 = vpop.f32.mrb[0].mxu0
    %v1879 = vadd.f32 %v1526, %v1878
    %1880 = vmatprep.mubr.bf16.mxu0 %v880
    %1881 = vmatmul.mubr.bf16.gmra.mrb[0].mxu0 %v879
    %v1882 = vpop.f32.mrb[0].mxu0
    %v1883 = vadd.f32 %v1530, %v1882
    %v1884 = vpop.f32.mrb[0].mxu0
    %v1885 = vadd.f32 %v1532, %v1884
    %v1886 = vpop.f32.mrb[0].mxu0
    %v1887 = vadd.f32 %v1534, %v1886
    %v1888 = vpop.f32.mrb[0].mxu0
    %v1889 = vadd.f32 %v1536, %v1888
    %1890 = vmatprep.mubr.bf16.mxu0 %v884
    %1891 = vmatmul.mubr.bf16.gmra.mrb[0].mxu0 %v883
    %v1892 = vpop.f32.mrb[0].mxu0
    %v1893 = vadd.f32 %v1540, %v1892
    %v1894 = vpop.f32.mrb[0].mxu0
    %v1895 = vadd.f32 %v1542, %v1894
    %v1896 = vpop.f32.mrb[0].mxu0
    %v1897 = vadd.f32 %v1544, %v1896
    %v1898 = vpop.f32.mrb[0].mxu0
    %v1899 = vadd.f32 %v1546, %v1898
    %1900 = vmatprep.mubr.bf16.mxu0 %v888
    %1901 = vmatmul.mubr.bf16.gmra.mrb[0].mxu0 %v887
    %v1902 = vpop.f32.mrb[0].mxu0
    %v1903 = vadd.f32 %v1550, %v1902
    %v1904 = vpop.f32.mrb[0].mxu0
    %v1905 = vadd.f32 %v1552, %v1904
    %v1906 = vpop.f32.mrb[0].mxu0
    %v1907 = vadd.f32 %v1554, %v1906
    %v1908 = vpop.f32.mrb[0].mxu0
    %v1909 = vadd.f32 %v1556, %v1908
    %1910 = vmatprep.mubr.bf16.mxu0 %v892
    %1911 = vmatmul.mubr.bf16.gmra.mrb[0].mxu0 %v891
    %v1912 = vpop.f32.mrb[0].mxu0
    %v1913 = vadd.f32 %v1560, %v1912
    %v1914 = vpop.f32.mrb[0].mxu0
    %v1915 = vadd.f32 %v1562, %v1914
    %v1916 = vpop.f32.mrb[0].mxu0
    %v1917 = vadd.f32 %v1564, %v1916
    %v1918 = vpop.f32.mrb[0].mxu0
    %v1919 = vadd.f32 %v1566, %v1918
    %1920 = vmatprep.mubr.bf16.mxu0 %v896
    %1921 = vmatmul.mubr.bf16.gmra.mrb[0].mxu0 %v895
    %v1922 = vpop.f32.mrb[0].mxu0
    %v1923 = vadd.f32 %v1570, %v1922
    %v1924 = vpop.f32.mrb[0].mxu0
    %v1925 = vadd.f32 %v1572, %v1924
    %v1926 = vpop.f32.mrb[0].mxu0
    %v1927 = vadd.f32 %v1574, %v1926
    %v1928 = vpop.f32.mrb[0].mxu0
    %v1929 = vadd.f32 %v1576, %v1928
    %1930 = vmatprep.mubr.bf16.mxu0 %v900
    %1931 = vmatmul.mubr.bf16.gmra.mrb[0].mxu0 %v899
    %v1932 = vpop.f32.mrb[0].mxu0
    %v1933 = vadd.f32 %v1580, %v1932
    %v1934 = vpop.f32.mrb[0].mxu0
    %v1935 = vadd.f32 %v1582, %v1934
    %v1936 = vpop.f32.mrb[0].mxu0
    %v1937 = vadd.f32 %v1584, %v1936
    %v1938 = vpop.f32.mrb[0].mxu0
    %v1939 = vadd.f32 %v1586, %v1938
    %1940 = vmatprep.mubr.bf16.mxu0 %v904
    %1941 = vmatmul.mubr.bf16.gmra.mrb[0].mxu0 %v903
    %v1942 = vpop.f32.mrb[0].mxu0
    %v1943 = vadd.f32 %v1590, %v1942
    %v1944 = vpop.f32.mrb[0].mxu0
    %v1945 = vadd.f32 %v1592, %v1944
    %v1946 = vpop.f32.mrb[0].mxu0
    %v1947 = vadd.f32 %v1594, %v1946
    %v1948 = vpop.f32.mrb[0].mxu0
    %v1949 = vadd.f32 %v1596, %v1948
    %1950 = vmatprep.mubr.bf16.mxu0 %v908
    %1951 = vmatmul.mubr.bf16.gmra.mrb[0].mxu0 %v907
    %v1952 = vpop.f32.mrb[0].mxu0
    %v1953 = vadd.f32 %v1600, %v1952
    %v1954 = vpop.f32.mrb[0].mxu0
    %v1955 = vadd.f32 %v1602, %v1954
    %v1956 = vpop.f32.mrb[0].mxu0
    %v1957 = vadd.f32 %v1604, %v1956
    %v1958 = vpop.f32.mrb[0].mxu0
    %v1959 = vadd.f32 %v1606, %v1958
    %1960 = vmatprep.mubr.bf16.mxu0 %v912
    %1961 = vmatmul.mubr.bf16.gmra.mrb[0].mxu0 %v911
    %v1962 = vpop.f32.mrb[0].mxu0
    %v1963 = vadd.f32 %v1610, %v1962
    %v1964 = vpop.f32.mrb[0].mxu0
    %v1965 = vadd.f32 %v1612, %v1964
    %v1966 = vpop.f32.mrb[0].mxu0
    %v1967 = vadd.f32 %v1614, %v1966
    %v1968 = vpop.f32.mrb[0].mxu0
    %v1969 = vadd.f32 %v1616, %v1968
    %1970 = vmatprep.mubr.bf16.mxu0 %v916
    %1971 = vmatmul.mubr.bf16.gmra.mrb[0].mxu0 %v915
    %v1972 = vpop.f32.mrb[0].mxu0
    %v1973 = vadd.f32 %v1620, %v1972
    %v1974 = vpop.f32.mrb[0].mxu0
    %v1975 = vadd.f32 %v1622, %v1974
    %v1976 = vpop.f32.mrb[0].mxu0
    %v1977 = vadd.f32 %v1624, %v1976
    %v1978 = vpop.f32.mrb[0].mxu0
    %v1979 = vadd.f32 %v1626, %v1978
    %1980 = vmatprep.mubr.bf16.mxu0 %v920
    %1981 = vmatmul.mubr.bf16.gmra.mrb[0].mxu0 %v919
    %v1982 = vpop.f32.mrb[0].mxu0
    %v1983 = vadd.f32 %v1630, %v1982
    %v1984 = vpop.f32.mrb[0].mxu0
    %v1985 = vadd.f32 %v1632, %v1984
    %v1986 = vpop.f32.mrb[0].mxu0
    %v1987 = vadd.f32 %v1634, %v1986
    %v1988 = vpop.f32.mrb[0].mxu0
    %v1989 = vadd.f32 %v1636, %v1988
    %1990 = vmatprep.mubr.bf16.mxu0 %v924
    %1991 = vmatmul.mubr.bf16.gmra.mrb[0].mxu0 %v923
    %v1992 = vpop.f32.mrb[0].mxu0
    %v1993 = vadd.f32 %v1640, %v1992
    %v1994 = vpop.f32.mrb[0].mxu0
    %v1995 = vadd.f32 %v1642, %v1994
    %v1996 = vpop.f32.mrb[0].mxu0
    %v1997 = vadd.f32 %v1644, %v1996
    %v1998 = vpop.f32.mrb[0].mxu0
    %v1999 = vadd.f32 %v1646, %v1998
    %2000 = vmatprep.mubr.bf16.mxu0 %v928
    %2001 = vmatmul.mubr.bf16.gmra.mrb[0].mxu0 %v927
    %v2002 = vpop.f32.mrb[0].mxu0
    %v2003 = vadd.f32 %v1650, %v2002
    %v2004 = vpop.f32.mrb[0].mxu0
    %v2005 = vadd.f32 %v1652, %v2004
    %v2006 = vpop.f32.mrb[0].mxu0
    %v2007 = vadd.f32 %v1654, %v2006
    %v2008 = vpop.f32.mrb[0].mxu0
    %v2009 = vadd.f32 %v1656, %v2008
    %2010 = vmatprep.mubr.bf16.mxu0 %v932
    %2011 = vmatmul.mubr.bf16.gmra.mrb[0].mxu0 %v931
    %v2012 = vpop.f32.mrb[0].mxu0
    %v2013 = vadd.f32 %v1660, %v2012
    %v2014 = vpop.f32.mrb[0].mxu0
    %v2015 = vadd.f32 %v1662, %v2014
    %v2016 = vpop.f32.mrb[0].mxu0
    %v2017 = vadd.f32 %v1664, %v2016
    %v2018 = vpop.f32.mrb[0].mxu0
    %v2019 = vadd.f32 %v1666, %v2018
    %2020 = vmatprep.mubr.bf16.mxu0 %v936
    %2021 = vmatmul.mubr.bf16.gmra.mrb[0].mxu0 %v935
    %v2022 = vpop.f32.mrb[0].mxu0
    %v2023 = vadd.f32 %v1670, %v2022
    %v2024 = vpop.f32.mrb[0].mxu0
    %v2025 = vadd.f32 %v1672, %v2024
    %v2026 = vpop.f32.mrb[0].mxu0
    %v2027 = vadd.f32 %v1674, %v2026
    %v2028 = vpop.f32.mrb[0].mxu0
    %v2029 = vadd.f32 %v1676, %v2028
    %2030 = vmatprep.mubr.bf16.mxu0 %v940
    %2031 = vmatmul.mubr.bf16.gmra.mrb[0].mxu0 %v939
    %v2032 = vpop.f32.mrb[0].mxu0
    %v2033 = vadd.f32 %v1680, %v2032
    %v2034 = vpop.f32.mrb[0].mxu0
    %v2035 = vadd.f32 %v1682, %v2034
    %v2036 = vpop.f32.mrb[0].mxu0
    %v2037 = vadd.f32 %v1684, %v2036
    %v2038 = vpop.f32.mrb[0].mxu0
    %v2039 = vadd.f32 %v1686, %v2038
    %2040 = vmatprep.mubr.bf16.mxu0 %v944
    %2041 = vmatmul.mubr.bf16.gmra.mrb[0].mxu0 %v943
    %v2042 = vpop.f32.mrb[0].mxu0
    %v2043 = vadd.f32 %v1690, %v2042
    %v2044 = vpop.f32.mrb[0].mxu0
    %v2045 = vadd.f32 %v1692, %v2044
    %v2046 = vpop.f32.mrb[0].mxu0
    %v2047 = vadd.f32 %v1694, %v2046
    %v2048 = vpop.f32.mrb[0].mxu0
    %v2049 = vadd.f32 %v1696, %v2048
    %2050 = vmatprep.mubr.bf16.mxu0 %v948
    %2051 = vmatmul.mubr.bf16.gmra.mrb[0].mxu0 %v947
    %v2052 = vpop.f32.mrb[0].mxu0
    %v2053 = vadd.f32 %v1700, %v2052
    %v2054 = vpop.f32.mrb[0].mxu0
    %v2055 = vadd.f32 %v1702, %v2054
    %v2056 = vpop.f32.mrb[0].mxu0
    %v2057 = vadd.f32 %v1704, %v2056
    %v2058 = vpop.f32.mrb[0].mxu0
    %v2059 = vadd.f32 %v1706, %v2058
    %2060 = vmatprep.mubr.bf16.mxu0 %v952
    %2061 = vmatmul.mubr.bf16.gmra.mrb[0].mxu0 %v951
    %v2062 = vpop.f32.mrb[0].mxu0
    %v2063 = vadd.f32 %v1710, %v2062
    %v2064 = vpop.f32.mrb[0].mxu0
    %v2065 = vadd.f32 %v1712, %v2064
    %v2066 = vpop.f32.mrb[0].mxu0
    %v2067 = vadd.f32 %v1714, %v2066
    %v2068 = vpop.f32.mrb[0].mxu0
    %v2069 = vadd.f32 %v1716, %v2068
    %2070 = vmatprep.mubr.bf16.mxu0 %v956
    %2071 = vmatmul.mubr.bf16.gmra.mrb[0].mxu0 %v955
    %v2072 = vpop.f32.mrb[0].mxu0
    %v2073 = vadd.f32 %v1720, %v2072
    %v2074 = vpop.f32.mrb[0].mxu0
    %v2075 = vadd.f32 %v1722, %v2074
    %v2076 = vpop.f32.mrb[0].mxu0
    %v2077 = vadd.f32 %v1724, %v2076
    %v2078 = vpop.f32.mrb[0].mxu0
    %v2079 = vadd.f32 %v1726, %v2078
    %2080 = vmatprep.mubr.bf16.mxu0 %v960
    %2081 = vmatmul.mubr.bf16.gmra.mrb[0].mxu0 %v959
    %v2082 = vpop.f32.mrb[0].mxu0
    %v2083 = vadd.f32 %v1730, %v2082
    %v2084 = vpop.f32.mrb[0].mxu0
    %v2085 = vadd.f32 %v1732, %v2084
    %v2086 = vpop.f32.mrb[0].mxu0
    %v2087 = vadd.f32 %v1734, %v2086
    %v2088 = vpop.f32.mrb[0].mxu0
    %v2089 = vadd.f32 %v1736, %v2088
    %2090 = vmatprep.mubr.bf16.mxu0 %v964
    %2091 = vmatmul.mubr.bf16.gmra.mrb[0].mxu0 %v963
    %v2092 = vpop.f32.mrb[0].mxu0
    %v2093 = vadd.f32 %v1740, %v2092
    %v2094 = vpop.f32.mrb[0].mxu0
    %v2095 = vadd.f32 %v1742, %v2094
    %v2096 = vpop.f32.mrb[0].mxu0
    %v2097 = vadd.f32 %v1744, %v2096
    %v2098 = vpop.f32.mrb[0].mxu0
    %v2099 = vadd.f32 %v1746, %v2098
    %2100 = vmatprep.mubr.bf16.mxu0 %v968
    %2101 = vmatmul.mubr.bf16.gmra.mrb[0].mxu0 %v967
    %v2102 = vpop.f32.mrb[0].mxu0
    %v2103 = vadd.f32 %v1750, %v2102
    %v2104 = vpop.f32.mrb[0].mxu0
    %v2105 = vadd.f32 %v1752, %v2104
    %v2106 = vpop.f32.mrb[0].mxu0
    %v2107 = vadd.f32 %v1754, %v2106
    %v2108 = vpop.f32.mrb[0].mxu0
    %v2109 = vadd.f32 %v1756, %v2108
    %2110 = vmatprep.mubr.bf16.mxu0 %v972
    %2111 = vmatmul.mubr.bf16.gmra.mrb[0].mxu0 %v971
    %v2112 = vpop.f32.mrb[0].mxu0
    %v2113 = vadd.f32 %v1760, %v2112
    %v2114 = vpop.f32.mrb[0].mxu0
    %v2115 = vadd.f32 %v1762, %v2114
    %v2116 = vpop.f32.mrb[0].mxu0
    %v2117 = vadd.f32 %v1764, %v2116
    %v2118 = vpop.f32.mrb[0].mxu0
    %v2119 = vadd.f32 %v1766, %v2118
    %2120 = vmatprep.mubr.bf16.mxu0 %v976
    %2121 = vmatmul.mubr.bf16.gmra.mrb[0].mxu0 %v975
    %v2122 = vpop.f32.mrb[0].mxu0
    %v2123 = vadd.f32 %v1770, %v2122
    %v2124 = vpop.f32.mrb[0].mxu0
    %v2125 = vadd.f32 %v1772, %v2124
    %v2126 = vpop.f32.mrb[0].mxu0
    %v2127 = vadd.f32 %v1774, %v2126
    %v2128 = vpop.f32.mrb[0].mxu0
    %v2129 = vadd.f32 %v1776, %v2128
    %2130 = vdwg.mxu0
    %v2131 = vpack.c.bf16 %v1817, %v1813
    %v2132 = vpack.c.bf16 %v1819, %v1815
    %v2133 = vpack.c.bf16 %v1827, %v1823
    %v2134 = vpack.c.bf16 %v1829, %v1825
    %v2135 = vpack.c.bf16 %v1837, %v1833
    %v2136 = vpack.c.bf16 %v1839, %v1835
    %v2137 = vpack.c.bf16 %v1847, %v1843
    %v2138 = vpack.c.bf16 %v1849, %v1845
    %v2139 = vpack.c.bf16 %v1857, %v1853
    %v2140 = vpack.c.bf16 %v1859, %v1855
    %v2141 = vpack.c.bf16 %v1867, %v1863
    %v2142 = vpack.c.bf16 %v1869, %v1865
    %v2143 = vpack.c.bf16 %v1877, %v1873
    %v2144 = vpack.c.bf16 %v1879, %v1875
    %v2145 = vpack.c.bf16 %v1887, %v1883
    %v2146 = vpack.c.bf16 %v1889, %v1885
    %v2147 = vpack.c.bf16 %v1897, %v1893
    %v2148 = vpack.c.bf16 %v1899, %v1895
    %v2149 = vpack.c.bf16 %v1907, %v1903
    %v2150 = vpack.c.bf16 %v1909, %v1905
    %v2151 = vpack.c.bf16 %v1917, %v1913
    %v2152 = vpack.c.bf16 %v1919, %v1915
    %v2153 = vpack.c.bf16 %v1927, %v1923
    %v2154 = vpack.c.bf16 %v1929, %v1925
    %v2155 = vpack.c.bf16 %v1937, %v1933
    %v2156 = vpack.c.bf16 %v1939, %v1935
    %v2157 = vpack.c.bf16 %v1947, %v1943
    %v2158 = vpack.c.bf16 %v1949, %v1945
    %v2159 = vpack.c.bf16 %v1957, %v1953
    %v2160 = vpack.c.bf16 %v1959, %v1955
    %v2161 = vpack.c.bf16 %v1967, %v1963
    %v2162 = vpack.c.bf16 %v1969, %v1965
    %v2163 = vpack.c.bf16 %v1977, %v1973
    %v2164 = vpack.c.bf16 %v1979, %v1975
    %v2165 = vpack.c.bf16 %v1987, %v1983
    %v2166 = vpack.c.bf16 %v1989, %v1985
    %v2167 = vpack.c.bf16 %v1997, %v1993
    %v2168 = vpack.c.bf16 %v1999, %v1995
    %v2169 = vpack.c.bf16 %v2007, %v2003
    %v2170 = vpack.c.bf16 %v2009, %v2005
    %v2171 = vpack.c.bf16 %v2017, %v2013
    %v2172 = vpack.c.bf16 %v2019, %v2015
    %v2173 = vpack.c.bf16 %v2027, %v2023
    %v2174 = vpack.c.bf16 %v2029, %v2025
    %v2175 = vpack.c.bf16 %v2037, %v2033
    %v2176 = vpack.c.bf16 %v2039, %v2035
    %v2177 = vpack.c.bf16 %v2047, %v2043
    %v2178 = vpack.c.bf16 %v2049, %v2045
    %v2179 = vpack.c.bf16 %v2057, %v2053
    %v2180 = vpack.c.bf16 %v2059, %v2055
    %v2181 = vpack.c.bf16 %v2067, %v2063
    %v2182 = vpack.c.bf16 %v2069, %v2065
    %v2183 = vpack.c.bf16 %v2077, %v2073
    %v2184 = vpack.c.bf16 %v2079, %v2075
    %v2185 = vpack.c.bf16 %v2087, %v2083
    %v2186 = vpack.c.bf16 %v2089, %v2085
    %v2187 = vpack.c.bf16 %v2097, %v2093
    %v2188 = vpack.c.bf16 %v2099, %v2095
    %v2189 = vpack.c.bf16 %v2107, %v2103
    %v2190 = vpack.c.bf16 %v2109, %v2105
    %v2191 = vpack.c.bf16 %v2117, %v2113
    %v2192 = vpack.c.bf16 %v2119, %v2115
    %v2193 = vpack.c.bf16 %v2127, %v2123
    %v2194 = vpack.c.bf16 %v2129, %v2125
    %v2196 = vlaneseq
    %v2197 = vshrl.u32 %v2196, 7
    %v2198 = vsub.s32 0, %v2197
    %v2199 = vrot.slane %v271, %v2198
    %v2200 = vlaneseq
    %v2201 = vshrl.u32 %v2200, 7
    %v2202 = vsub.s32 1, %v2201
    %v2203 = vrot.slane %v271, %v2202
    %v2238 = vunpack.c.l.b16 %v207
    %v2239 = vunpack.c.h.b16 %v207
    %v2240 = vunpack.c.l.b16 %v208
    %v2241 = vunpack.c.h.b16 %v208
    %v2242 = vunpack.c.l.b16 %v209
    %v2243 = vunpack.c.h.b16 %v209
    %v2244 = vunpack.c.l.b16 %v210
    %v2245 = vunpack.c.h.b16 %v210
    %v2246 = vunpack.c.l.b16 %v211
    %v2247 = vunpack.c.h.b16 %v211
    %v2248 = vunpack.c.l.b16 %v212
    %v2249 = vunpack.c.h.b16 %v212
    %v2250 = vunpack.c.l.b16 %v213
    %v2251 = vunpack.c.h.b16 %v213
    %v2252 = vunpack.c.l.b16 %v214
    %v2253 = vunpack.c.h.b16 %v214
    %v2254 = vunpack.c.l.b16 %v215
    %v2255 = vunpack.c.h.b16 %v215
    %v2256 = vunpack.c.l.b16 %v216
    %v2257 = vunpack.c.h.b16 %v216
    %v2258 = vunpack.c.l.b16 %v217
    %v2259 = vunpack.c.h.b16 %v217
    %v2260 = vunpack.c.l.b16 %v218
    %v2261 = vunpack.c.h.b16 %v218
    %v2262 = vunpack.c.l.b16 %v219
    %v2263 = vunpack.c.h.b16 %v219
    %v2264 = vunpack.c.l.b16 %v220
    %v2265 = vunpack.c.h.b16 %v220
    %v2266 = vunpack.c.l.b16 %v221
    %v2267 = vunpack.c.h.b16 %v221
    %v2268 = vunpack.c.l.b16 %v222
    %v2269 = vunpack.c.h.b16 %v222
    %v2270 = vunpack.c.l.b16 %v223
    %v2271 = vunpack.c.h.b16 %v223
    %v2272 = vunpack.c.l.b16 %v224
    %v2273 = vunpack.c.h.b16 %v224
    %v2274 = vunpack.c.l.b16 %v225
    %v2275 = vunpack.c.h.b16 %v225
    %v2276 = vunpack.c.l.b16 %v226
    %v2277 = vunpack.c.h.b16 %v226
    %v2278 = vunpack.c.l.b16 %v227
    %v2279 = vunpack.c.h.b16 %v227
    %v2280 = vunpack.c.l.b16 %v228
    %v2281 = vunpack.c.h.b16 %v228
    %v2282 = vunpack.c.l.b16 %v229
    %v2283 = vunpack.c.h.b16 %v229
    %v2284 = vunpack.c.l.b16 %v230
    %v2285 = vunpack.c.h.b16 %v230
    %v2286 = vunpack.c.l.b16 %v231
    %v2287 = vunpack.c.h.b16 %v231
    %v2288 = vunpack.c.l.b16 %v232
    %v2289 = vunpack.c.h.b16 %v232
    %v2290 = vunpack.c.l.b16 %v233
    %v2291 = vunpack.c.h.b16 %v233
    %v2292 = vunpack.c.l.b16 %v234
    %v2293 = vunpack.c.h.b16 %v234
    %v2294 = vunpack.c.l.b16 %v235
    %v2295 = vunpack.c.h.b16 %v235
    %v2296 = vunpack.c.l.b16 %v236
    %v2297 = vunpack.c.h.b16 %v236
    %v2298 = vunpack.c.l.b16 %v237
    %v2299 = vunpack.c.h.b16 %v237
    %v2300 = vunpack.c.l.b16 %v238
    %v2301 = vunpack.c.h.b16 %v238
    %v2302 = vpack.c.b16 %v2240, %v2238
    %v2303 = vpack.c.b16 %v2241, %v2239
    %v2304 = vpack.c.b16 %v2244, %v2242
    %v2305 = vpack.c.b16 %v2245, %v2243
    %v2306 = vpack.c.b16 %v2248, %v2246
    %v2307 = vpack.c.b16 %v2249, %v2247
    %v2308 = vpack.c.b16 %v2252, %v2250
    %v2309 = vpack.c.b16 %v2253, %v2251
    %v2310 = vpack.c.b16 %v2256, %v2254
    %v2311 = vpack.c.b16 %v2257, %v2255
    %v2312 = vpack.c.b16 %v2260, %v2258
    %v2313 = vpack.c.b16 %v2261, %v2259
    %v2314 = vpack.c.b16 %v2264, %v2262
    %v2315 = vpack.c.b16 %v2265, %v2263
    %v2316 = vpack.c.b16 %v2268, %v2266
    %v2317 = vpack.c.b16 %v2269, %v2267
    %v2318 = vpack.c.b16 %v2272, %v2270
    %v2319 = vpack.c.b16 %v2273, %v2271
    %v2320 = vpack.c.b16 %v2276, %v2274
    %v2321 = vpack.c.b16 %v2277, %v2275
    %v2322 = vpack.c.b16 %v2280, %v2278
    %v2323 = vpack.c.b16 %v2281, %v2279
    %v2324 = vpack.c.b16 %v2284, %v2282
    %v2325 = vpack.c.b16 %v2285, %v2283
    %v2326 = vpack.c.b16 %v2288, %v2286
    %v2327 = vpack.c.b16 %v2289, %v2287
    %v2328 = vpack.c.b16 %v2292, %v2290
    %v2329 = vpack.c.b16 %v2293, %v2291
    %v2330 = vpack.c.b16 %v2296, %v2294
    %v2331 = vpack.c.b16 %v2297, %v2295
    %v2332 = vpack.c.b16 %v2300, %v2298
    %v2333 = vpack.c.b16 %v2301, %v2299
    %2366 = vmatprep.subr.bf16.mxu0 %v2303
    %2367 = vmatpush1.bf16.msra.mxu0 %v2302
    %2368 = vmatprep.subr.bf16.mxu0 %v2305
    %2369 = vmatpush1.bf16.msra.mxu0 %v2304
    %2370 = vmatprep.subr.bf16.mxu0 %v2307
    %2371 = vmatpush1.bf16.msra.mxu0 %v2306
    %2372 = vmatprep.subr.bf16.mxu0 %v2309
    %2373 = vmatpush1.bf16.msra.mxu0 %v2308
    %2374 = vmatprep.subr.bf16.mxu0 %v2311
    %2375 = vmatpush1.bf16.msra.mxu0 %v2310
    %2376 = vmatprep.subr.bf16.mxu0 %v2313
    %2377 = vmatpush1.bf16.msra.mxu0 %v2312
    %2378 = vmatprep.subr.bf16.mxu0 %v2315
    %2379 = vmatpush1.bf16.msra.mxu0 %v2314
    %2380 = vmatprep.subr.bf16.mxu0 %v2317
    %2381 = vmatpush1.bf16.msra.mxu0 %v2316
    %2382 = vmatprep.subr.bf16.mxu0 %v2319
    %2383 = vmatpush1.bf16.msra.mxu0 %v2318
    %2384 = vmatprep.subr.bf16.mxu0 %v2321
    %2385 = vmatpush1.bf16.msra.mxu0 %v2320
    %2386 = vmatprep.subr.bf16.mxu0 %v2323
    %2387 = vmatpush1.bf16.msra.mxu0 %v2322
    %2388 = vmatprep.subr.bf16.mxu0 %v2325
    %2389 = vmatpush1.bf16.msra.mxu0 %v2324
    %2390 = vmatprep.subr.bf16.mxu0 %v2327
    %2391 = vmatpush1.bf16.msra.mxu0 %v2326
    %2392 = vmatprep.subr.bf16.mxu0 %v2329
    %2393 = vmatpush1.bf16.msra.mxu0 %v2328
    %2394 = vmatprep.subr.bf16.mxu0 %v2331
    %2395 = vmatpush1.bf16.msra.mxu0 %v2330
    %2396 = vmatprep.subr.bf16.mxu0 %v2333
    %2397 = vmatpush1.bf16.msra.mxu0 %v2332
    %2398 = vmatprep.mubr.bf16.mxu0 %v2132
    %2399 = vmatmul.mubr.bf16.gmra.mrb[0].mxu0 %v2131
    %v2400 = vpop.f32.mrb[0].mxu0
    %v2401 = vadd.f32 %v2199, %v2400
    %v2402 = vpop.f32.mrb[0].mxu0
    %v2403 = vadd.f32 %v2203, %v2402
    %v2404 = vpop.f32.mrb[0].mxu0
    %v2405 = vadd.f32 %v2199, %v2404
    %v2406 = vpop.f32.mrb[0].mxu0
    %v2407 = vadd.f32 %v2203, %v2406
    %2408 = vmatprep.mubr.bf16.mxu0 %v2134
    %2409 = vmatmul.mubr.bf16.gmra.mrb[0].mxu0 %v2133
    %v2410 = vpop.f32.mrb[0].mxu0
    %v2411 = vadd.f32 %v2199, %v2410
    %v2412 = vpop.f32.mrb[0].mxu0
    %v2413 = vadd.f32 %v2203, %v2412
    %v2414 = vpop.f32.mrb[0].mxu0
    %v2415 = vadd.f32 %v2199, %v2414
    %v2416 = vpop.f32.mrb[0].mxu0
    %v2417 = vadd.f32 %v2203, %v2416
    %2418 = vmatprep.mubr.bf16.mxu0 %v2136
    %2419 = vmatmul.mubr.bf16.gmra.mrb[0].mxu0 %v2135
    %v2420 = vpop.f32.mrb[0].mxu0
    %v2421 = vadd.f32 %v2199, %v2420
    %v2422 = vpop.f32.mrb[0].mxu0
    %v2423 = vadd.f32 %v2203, %v2422
    %v2424 = vpop.f32.mrb[0].mxu0
    %v2425 = vadd.f32 %v2199, %v2424
    %v2426 = vpop.f32.mrb[0].mxu0
    %v2427 = vadd.f32 %v2203, %v2426
    %2428 = vmatprep.mubr.bf16.mxu0 %v2138
    %2429 = vmatmul.mubr.bf16.gmra.mrb[0].mxu0 %v2137
    %v2430 = vpop.f32.mrb[0].mxu0
    %v2431 = vadd.f32 %v2199, %v2430
    %v2432 = vpop.f32.mrb[0].mxu0
    %v2433 = vadd.f32 %v2203, %v2432
    %v2434 = vpop.f32.mrb[0].mxu0
    %v2435 = vadd.f32 %v2199, %v2434
    %v2436 = vpop.f32.mrb[0].mxu0
    %v2437 = vadd.f32 %v2203, %v2436
    %2438 = vmatprep.mubr.bf16.mxu0 %v2140
    %2439 = vmatmul.mubr.bf16.gmra.mrb[0].mxu0 %v2139
    %v2440 = vpop.f32.mrb[0].mxu0
    %v2441 = vadd.f32 %v2199, %v2440
    %v2442 = vpop.f32.mrb[0].mxu0
    %v2443 = vadd.f32 %v2203, %v2442
    %v2444 = vpop.f32.mrb[0].mxu0
    %v2445 = vadd.f32 %v2199, %v2444
    %v2446 = vpop.f32.mrb[0].mxu0
    %v2447 = vadd.f32 %v2203, %v2446
    %2448 = vmatprep.mubr.bf16.mxu0 %v2142
    %2449 = vmatmul.mubr.bf16.gmra.mrb[0].mxu0 %v2141
    %v2450 = vpop.f32.mrb[0].mxu0
    %v2451 = vadd.f32 %v2199, %v2450
    %v2452 = vpop.f32.mrb[0].mxu0
    %v2453 = vadd.f32 %v2203, %v2452
    %v2454 = vpop.f32.mrb[0].mxu0
    %v2455 = vadd.f32 %v2199, %v2454
    %v2456 = vpop.f32.mrb[0].mxu0
    %v2457 = vadd.f32 %v2203, %v2456
    %2458 = vmatprep.mubr.bf16.mxu0 %v2144
    %2459 = vmatmul.mubr.bf16.gmra.mrb[0].mxu0 %v2143
    %v2460 = vpop.f32.mrb[0].mxu0
    %v2461 = vadd.f32 %v2199, %v2460
    %v2462 = vpop.f32.mrb[0].mxu0
    %v2463 = vadd.f32 %v2203, %v2462
    %v2464 = vpop.f32.mrb[0].mxu0
    %v2465 = vadd.f32 %v2199, %v2464
    %v2466 = vpop.f32.mrb[0].mxu0
    %v2467 = vadd.f32 %v2203, %v2466
    %2468 = vmatprep.mubr.bf16.mxu0 %v2146
    %2469 = vmatmul.mubr.bf16.gmra.mrb[0].mxu0 %v2145
    %v2470 = vpop.f32.mrb[0].mxu0
    %v2471 = vadd.f32 %v2199, %v2470
    %v2472 = vpop.f32.mrb[0].mxu0
    %v2473 = vadd.f32 %v2203, %v2472
    %v2474 = vpop.f32.mrb[0].mxu0
    %v2475 = vadd.f32 %v2199, %v2474
    %v2476 = vpop.f32.mrb[0].mxu0
    %v2477 = vadd.f32 %v2203, %v2476
    %2478 = vmatprep.mubr.bf16.mxu0 %v2148
    %2479 = vmatmul.mubr.bf16.gmra.mrb[0].mxu0 %v2147
    %v2480 = vpop.f32.mrb[0].mxu0
    %v2481 = vadd.f32 %v2199, %v2480
    %v2482 = vpop.f32.mrb[0].mxu0
    %v2483 = vadd.f32 %v2203, %v2482
    %v2484 = vpop.f32.mrb[0].mxu0
    %v2485 = vadd.f32 %v2199, %v2484
    %v2486 = vpop.f32.mrb[0].mxu0
    %v2487 = vadd.f32 %v2203, %v2486
    %2488 = vmatprep.mubr.bf16.mxu0 %v2150
    %2489 = vmatmul.mubr.bf16.gmra.mrb[0].mxu0 %v2149
    %v2490 = vpop.f32.mrb[0].mxu0
    %v2491 = vadd.f32 %v2199, %v2490
    %v2492 = vpop.f32.mrb[0].mxu0
    %v2493 = vadd.f32 %v2203, %v2492
    %v2494 = vpop.f32.mrb[0].mxu0
    %v2495 = vadd.f32 %v2199, %v2494
    %v2496 = vpop.f32.mrb[0].mxu0
    %v2497 = vadd.f32 %v2203, %v2496
    %2498 = vmatprep.mubr.bf16.mxu0 %v2152
    %2499 = vmatmul.mubr.bf16.gmra.mrb[0].mxu0 %v2151
    %v2500 = vpop.f32.mrb[0].mxu0
    %v2501 = vadd.f32 %v2199, %v2500
    %v2502 = vpop.f32.mrb[0].mxu0
    %v2503 = vadd.f32 %v2203, %v2502
    %v2504 = vpop.f32.mrb[0].mxu0
    %v2505 = vadd.f32 %v2199, %v2504
    %v2506 = vpop.f32.mrb[0].mxu0
    %v2507 = vadd.f32 %v2203, %v2506
    %2508 = vmatprep.mubr.bf16.mxu0 %v2154
    %2509 = vmatmul.mubr.bf16.gmra.mrb[0].mxu0 %v2153
    %v2510 = vpop.f32.mrb[0].mxu0
    %v2511 = vadd.f32 %v2199, %v2510
    %v2512 = vpop.f32.mrb[0].mxu0
    %v2513 = vadd.f32 %v2203, %v2512
    %v2514 = vpop.f32.mrb[0].mxu0
    %v2515 = vadd.f32 %v2199, %v2514
    %v2516 = vpop.f32.mrb[0].mxu0
    %v2517 = vadd.f32 %v2203, %v2516
    %2518 = vmatprep.mubr.bf16.mxu0 %v2156
    %2519 = vmatmul.mubr.bf16.gmra.mrb[0].mxu0 %v2155
    %v2520 = vpop.f32.mrb[0].mxu0
    %v2521 = vadd.f32 %v2199, %v2520
    %v2522 = vpop.f32.mrb[0].mxu0
    %v2523 = vadd.f32 %v2203, %v2522
    %v2524 = vpop.f32.mrb[0].mxu0
    %v2525 = vadd.f32 %v2199, %v2524
    %v2526 = vpop.f32.mrb[0].mxu0
    %v2527 = vadd.f32 %v2203, %v2526
    %2528 = vmatprep.mubr.bf16.mxu0 %v2158
    %2529 = vmatmul.mubr.bf16.gmra.mrb[0].mxu0 %v2157
    %v2530 = vpop.f32.mrb[0].mxu0
    %v2531 = vadd.f32 %v2199, %v2530
    %v2532 = vpop.f32.mrb[0].mxu0
    %v2533 = vadd.f32 %v2203, %v2532
    %v2534 = vpop.f32.mrb[0].mxu0
    %v2535 = vadd.f32 %v2199, %v2534
    %v2536 = vpop.f32.mrb[0].mxu0
    %v2537 = vadd.f32 %v2203, %v2536
    %2538 = vmatprep.mubr.bf16.mxu0 %v2160
    %2539 = vmatmul.mubr.bf16.gmra.mrb[0].mxu0 %v2159
    %v2540 = vpop.f32.mrb[0].mxu0
    %v2541 = vadd.f32 %v2199, %v2540
    %v2542 = vpop.f32.mrb[0].mxu0
    %v2543 = vadd.f32 %v2203, %v2542
    %v2544 = vpop.f32.mrb[0].mxu0
    %v2545 = vadd.f32 %v2199, %v2544
    %v2546 = vpop.f32.mrb[0].mxu0
    %v2547 = vadd.f32 %v2203, %v2546
    %2548 = vmatprep.mubr.bf16.mxu0 %v2162
    %2549 = vmatmul.mubr.bf16.gmra.mrb[0].mxu0 %v2161
    %v2550 = vpop.f32.mrb[0].mxu0
    %v2551 = vadd.f32 %v2199, %v2550
    %v2552 = vpop.f32.mrb[0].mxu0
    %v2553 = vadd.f32 %v2203, %v2552
    %v2554 = vpop.f32.mrb[0].mxu0
    %v2555 = vadd.f32 %v2199, %v2554
    %v2556 = vpop.f32.mrb[0].mxu0
    %v2557 = vadd.f32 %v2203, %v2556
    %2558 = vmatprep.mubr.bf16.mxu0 %v2164
    %2559 = vmatmul.mubr.bf16.gmra.mrb[0].mxu0 %v2163
    %v2560 = vpop.f32.mrb[0].mxu0
    %v2561 = vadd.f32 %v2199, %v2560
    %v2562 = vpop.f32.mrb[0].mxu0
    %v2563 = vadd.f32 %v2203, %v2562
    %v2564 = vpop.f32.mrb[0].mxu0
    %v2565 = vadd.f32 %v2199, %v2564
    %v2566 = vpop.f32.mrb[0].mxu0
    %v2567 = vadd.f32 %v2203, %v2566
    %2568 = vmatprep.mubr.bf16.mxu0 %v2166
    %2569 = vmatmul.mubr.bf16.gmra.mrb[0].mxu0 %v2165
    %v2570 = vpop.f32.mrb[0].mxu0
    %v2571 = vadd.f32 %v2199, %v2570
    %v2572 = vpop.f32.mrb[0].mxu0
    %v2573 = vadd.f32 %v2203, %v2572
    %v2574 = vpop.f32.mrb[0].mxu0
    %v2575 = vadd.f32 %v2199, %v2574
    %v2576 = vpop.f32.mrb[0].mxu0
    %v2577 = vadd.f32 %v2203, %v2576
    %2578 = vmatprep.mubr.bf16.mxu0 %v2168
    %2579 = vmatmul.mubr.bf16.gmra.mrb[0].mxu0 %v2167
    %v2580 = vpop.f32.mrb[0].mxu0
    %v2581 = vadd.f32 %v2199, %v2580
    %v2582 = vpop.f32.mrb[0].mxu0
    %v2583 = vadd.f32 %v2203, %v2582
    %v2584 = vpop.f32.mrb[0].mxu0
    %v2585 = vadd.f32 %v2199, %v2584
    %v2586 = vpop.f32.mrb[0].mxu0
    %v2587 = vadd.f32 %v2203, %v2586
    %2588 = vmatprep.mubr.bf16.mxu0 %v2170
    %2589 = vmatmul.mubr.bf16.gmra.mrb[0].mxu0 %v2169
    %v2590 = vpop.f32.mrb[0].mxu0
    %v2591 = vadd.f32 %v2199, %v2590
    %v2592 = vpop.f32.mrb[0].mxu0
    %v2593 = vadd.f32 %v2203, %v2592
    %v2594 = vpop.f32.mrb[0].mxu0
    %v2595 = vadd.f32 %v2199, %v2594
    %v2596 = vpop.f32.mrb[0].mxu0
    %v2597 = vadd.f32 %v2203, %v2596
    %2598 = vmatprep.mubr.bf16.mxu0 %v2172
    %2599 = vmatmul.mubr.bf16.gmra.mrb[0].mxu0 %v2171
    %v2600 = vpop.f32.mrb[0].mxu0
    %v2601 = vadd.f32 %v2199, %v2600
    %v2602 = vpop.f32.mrb[0].mxu0
    %v2603 = vadd.f32 %v2203, %v2602
    %v2604 = vpop.f32.mrb[0].mxu0
    %v2605 = vadd.f32 %v2199, %v2604
    %v2606 = vpop.f32.mrb[0].mxu0
    %v2607 = vadd.f32 %v2203, %v2606
    %2608 = vmatprep.mubr.bf16.mxu0 %v2174
    %2609 = vmatmul.mubr.bf16.gmra.mrb[0].mxu0 %v2173
    %v2610 = vpop.f32.mrb[0].mxu0
    %v2611 = vadd.f32 %v2199, %v2610
    %v2612 = vpop.f32.mrb[0].mxu0
    %v2613 = vadd.f32 %v2203, %v2612
    %v2614 = vpop.f32.mrb[0].mxu0
    %v2615 = vadd.f32 %v2199, %v2614
    %v2616 = vpop.f32.mrb[0].mxu0
    %v2617 = vadd.f32 %v2203, %v2616
    %2618 = vmatprep.mubr.bf16.mxu0 %v2176
    %2619 = vmatmul.mubr.bf16.gmra.mrb[0].mxu0 %v2175
    %v2620 = vpop.f32.mrb[0].mxu0
    %v2621 = vadd.f32 %v2199, %v2620
    %v2622 = vpop.f32.mrb[0].mxu0
    %v2623 = vadd.f32 %v2203, %v2622
    %v2624 = vpop.f32.mrb[0].mxu0
    %v2625 = vadd.f32 %v2199, %v2624
    %v2626 = vpop.f32.mrb[0].mxu0
    %v2627 = vadd.f32 %v2203, %v2626
    %2628 = vmatprep.mubr.bf16.mxu0 %v2178
    %2629 = vmatmul.mubr.bf16.gmra.mrb[0].mxu0 %v2177
    %v2630 = vpop.f32.mrb[0].mxu0
    %v2631 = vadd.f32 %v2199, %v2630
    %v2632 = vpop.f32.mrb[0].mxu0
    %v2633 = vadd.f32 %v2203, %v2632
    %v2634 = vpop.f32.mrb[0].mxu0
    %v2635 = vadd.f32 %v2199, %v2634
    %v2636 = vpop.f32.mrb[0].mxu0
    %v2637 = vadd.f32 %v2203, %v2636
    %2638 = vmatprep.mubr.bf16.mxu0 %v2180
    %2639 = vmatmul.mubr.bf16.gmra.mrb[0].mxu0 %v2179
    %v2640 = vpop.f32.mrb[0].mxu0
    %v2641 = vadd.f32 %v2199, %v2640
    %v2642 = vpop.f32.mrb[0].mxu0
    %v2643 = vadd.f32 %v2203, %v2642
    %v2644 = vpop.f32.mrb[0].mxu0
    %v2645 = vadd.f32 %v2199, %v2644
    %v2646 = vpop.f32.mrb[0].mxu0
    %v2647 = vadd.f32 %v2203, %v2646
    %2648 = vmatprep.mubr.bf16.mxu0 %v2182
    %2649 = vmatmul.mubr.bf16.gmra.mrb[0].mxu0 %v2181
    %v2650 = vpop.f32.mrb[0].mxu0
    %v2651 = vadd.f32 %v2199, %v2650
    %v2652 = vpop.f32.mrb[0].mxu0
    %v2653 = vadd.f32 %v2203, %v2652
    %v2654 = vpop.f32.mrb[0].mxu0
    %v2655 = vadd.f32 %v2199, %v2654
    %v2656 = vpop.f32.mrb[0].mxu0
    %v2657 = vadd.f32 %v2203, %v2656
    %2658 = vmatprep.mubr.bf16.mxu0 %v2184
    %2659 = vmatmul.mubr.bf16.gmra.mrb[0].mxu0 %v2183
    %v2660 = vpop.f32.mrb[0].mxu0
    %v2661 = vadd.f32 %v2199, %v2660
    %v2662 = vpop.f32.mrb[0].mxu0
    %v2663 = vadd.f32 %v2203, %v2662
    %v2664 = vpop.f32.mrb[0].mxu0
    %v2665 = vadd.f32 %v2199, %v2664
    %v2666 = vpop.f32.mrb[0].mxu0
    %v2667 = vadd.f32 %v2203, %v2666
    %2668 = vmatprep.mubr.bf16.mxu0 %v2186
    %2669 = vmatmul.mubr.bf16.gmra.mrb[0].mxu0 %v2185
    %v2670 = vpop.f32.mrb[0].mxu0
    %v2671 = vadd.f32 %v2199, %v2670
    %v2672 = vpop.f32.mrb[0].mxu0
    %v2673 = vadd.f32 %v2203, %v2672
    %v2674 = vpop.f32.mrb[0].mxu0
    %v2675 = vadd.f32 %v2199, %v2674
    %v2676 = vpop.f32.mrb[0].mxu0
    %v2677 = vadd.f32 %v2203, %v2676
    %2678 = vmatprep.mubr.bf16.mxu0 %v2188
    %2679 = vmatmul.mubr.bf16.gmra.mrb[0].mxu0 %v2187
    %v2680 = vpop.f32.mrb[0].mxu0
    %v2681 = vadd.f32 %v2199, %v2680
    %v2682 = vpop.f32.mrb[0].mxu0
    %v2683 = vadd.f32 %v2203, %v2682
    %v2684 = vpop.f32.mrb[0].mxu0
    %v2685 = vadd.f32 %v2199, %v2684
    %v2686 = vpop.f32.mrb[0].mxu0
    %v2687 = vadd.f32 %v2203, %v2686
    %2688 = vmatprep.mubr.bf16.mxu0 %v2190
    %2689 = vmatmul.mubr.bf16.gmra.mrb[0].mxu0 %v2189
    %v2690 = vpop.f32.mrb[0].mxu0
    %v2691 = vadd.f32 %v2199, %v2690
    %v2692 = vpop.f32.mrb[0].mxu0
    %v2693 = vadd.f32 %v2203, %v2692
    %v2694 = vpop.f32.mrb[0].mxu0
    %v2695 = vadd.f32 %v2199, %v2694
    %v2696 = vpop.f32.mrb[0].mxu0
    %v2697 = vadd.f32 %v2203, %v2696
    %2698 = vmatprep.mubr.bf16.mxu0 %v2192
    %2699 = vmatmul.mubr.bf16.gmra.mrb[0].mxu0 %v2191
    %v2700 = vpop.f32.mrb[0].mxu0
    %v2701 = vadd.f32 %v2199, %v2700
    %v2702 = vpop.f32.mrb[0].mxu0
    %v2703 = vadd.f32 %v2203, %v2702
    %v2704 = vpop.f32.mrb[0].mxu0
    %v2705 = vadd.f32 %v2199, %v2704
    %v2706 = vpop.f32.mrb[0].mxu0
    %v2707 = vadd.f32 %v2203, %v2706
    %2708 = vmatprep.mubr.bf16.mxu0 %v2194
    %2709 = vmatmul.mubr.bf16.gmra.mrb[0].mxu0 %v2193
    %v2710 = vpop.f32.mrb[0].mxu0
    %v2711 = vadd.f32 %v2199, %v2710
    %v2712 = vpop.f32.mrb[0].mxu0
    %v2713 = vadd.f32 %v2203, %v2712
    %v2714 = vpop.f32.mrb[0].mxu0
    %v2715 = vadd.f32 %v2199, %v2714
    %v2716 = vpop.f32.mrb[0].mxu0
    %v2717 = vadd.f32 %v2203, %v2716
    %2718 = vdwg.mxu0
    %v2719 = vmul.f32 %v1813, %v337
    %v2720 = vmul.f32 %v1815, %v338
    %v2721 = vmul.f32 %v1817, %v339
    %v2722 = vmul.f32 %v1819, %v340
    %v2723 = vmul.f32 %v1823, %v341
    %v2724 = vmul.f32 %v1825, %v342
    %v2725 = vmul.f32 %v1827, %v343
    %v2726 = vmul.f32 %v1829, %v344
    %v2727 = vmul.f32 %v1833, %v345
    %v2728 = vmul.f32 %v1835, %v346
    %v2729 = vmul.f32 %v1837, %v347
    %v2730 = vmul.f32 %v1839, %v348
    %v2731 = vmul.f32 %v1843, %v349
    %v2732 = vmul.f32 %v1845, %v350
    %v2733 = vmul.f32 %v1847, %v351
    %v2734 = vmul.f32 %v1849, %v352
    %v2735 = vmul.f32 %v1853, %v353
    %v2736 = vmul.f32 %v1855, %v354
    %v2737 = vmul.f32 %v1857, %v355
    %v2738 = vmul.f32 %v1859, %v356
    %v2739 = vmul.f32 %v1863, %v357
    %v2740 = vmul.f32 %v1865, %v358
    %v2741 = vmul.f32 %v1867, %v359
    %v2742 = vmul.f32 %v1869, %v360
    %v2743 = vmul.f32 %v1873, %v361
    %v2744 = vmul.f32 %v1875, %v362
    %v2745 = vmul.f32 %v1877, %v363
    %v2746 = vmul.f32 %v1879, %v364
    %v2747 = vmul.f32 %v1883, %v365
    %v2748 = vmul.f32 %v1885, %v366
    %v2749 = vmul.f32 %v1887, %v367
    %v2750 = vmul.f32 %v1889, %v368
    %v2751 = vmul.f32 %v1893, %v369
    %v2752 = vmul.f32 %v1895, %v370
    %v2753 = vmul.f32 %v1897, %v371
    %v2754 = vmul.f32 %v1899, %v372
    %v2755 = vmul.f32 %v1903, %v373
    %v2756 = vmul.f32 %v1905, %v374
    %v2757 = vmul.f32 %v1907, %v375
    %v2758 = vmul.f32 %v1909, %v376
    %v2759 = vmul.f32 %v1913, %v377
    %v2760 = vmul.f32 %v1915, %v378
    %v2761 = vmul.f32 %v1917, %v379
    %v2762 = vmul.f32 %v1919, %v380
    %v2763 = vmul.f32 %v1923, %v381
    %v2764 = vmul.f32 %v1925, %v382
    %v2765 = vmul.f32 %v1927, %v383
    %v2766 = vmul.f32 %v1929, %v384
    %v2767 = vmul.f32 %v1933, %v385
    %v2768 = vmul.f32 %v1935, %v386
    %v2769 = vmul.f32 %v1937, %v387
    %v2770 = vmul.f32 %v1939, %v388
    %v2771 = vmul.f32 %v1943, %v389
    %v2772 = vmul.f32 %v1945, %v390
    %v2773 = vmul.f32 %v1947, %v391
    %v2774 = vmul.f32 %v1949, %v392
    %v2775 = vmul.f32 %v1953, %v393
    %v2776 = vmul.f32 %v1955, %v394
    %v2777 = vmul.f32 %v1957, %v395
    %v2778 = vmul.f32 %v1959, %v396
    %v2779 = vmul.f32 %v1963, %v397
    %v2780 = vmul.f32 %v1965, %v398
    %v2781 = vmul.f32 %v1967, %v399
    %v2782 = vmul.f32 %v1969, %v400
    %v2783 = vmul.f32 %v1973, %v401
    %v2784 = vmul.f32 %v1975, %v402
    %v2785 = vmul.f32 %v1977, %v403
    %v2786 = vmul.f32 %v1979, %v404
    %v2787 = vmul.f32 %v1983, %v405
    %v2788 = vmul.f32 %v1985, %v406
    %v2789 = vmul.f32 %v1987, %v407
    %v2790 = vmul.f32 %v1989, %v408
    %v2791 = vmul.f32 %v1993, %v409
    %v2792 = vmul.f32 %v1995, %v410
    %v2793 = vmul.f32 %v1997, %v411
    %v2794 = vmul.f32 %v1999, %v412
    %v2795 = vmul.f32 %v2003, %v413
    %v2796 = vmul.f32 %v2005, %v414
    %v2797 = vmul.f32 %v2007, %v415
    %v2798 = vmul.f32 %v2009, %v416
    %v2799 = vmul.f32 %v2013, %v417
    %v2800 = vmul.f32 %v2015, %v418
    %v2801 = vmul.f32 %v2017, %v419
    %v2802 = vmul.f32 %v2019, %v420
    %v2803 = vmul.f32 %v2023, %v421
    %v2804 = vmul.f32 %v2025, %v422
    %v2805 = vmul.f32 %v2027, %v423
    %v2806 = vmul.f32 %v2029, %v424
    %v2807 = vmul.f32 %v2033, %v425
    %v2808 = vmul.f32 %v2035, %v426
    %v2809 = vmul.f32 %v2037, %v427
    %v2810 = vmul.f32 %v2039, %v428
    %v2811 = vmul.f32 %v2043, %v429
    %v2812 = vmul.f32 %v2045, %v430
    %v2813 = vmul.f32 %v2047, %v431
    %v2814 = vmul.f32 %v2049, %v432
    %v2815 = vmul.f32 %v2053, %v433
    %v2816 = vmul.f32 %v2055, %v434
    %v2817 = vmul.f32 %v2057, %v435
    %v2818 = vmul.f32 %v2059, %v436
    %v2819 = vmul.f32 %v2063, %v437
    %v2820 = vmul.f32 %v2065, %v438
    %v2821 = vmul.f32 %v2067, %v439
    %v2822 = vmul.f32 %v2069, %v440
    %v2823 = vmul.f32 %v2073, %v441
    %v2824 = vmul.f32 %v2075, %v442
    %v2825 = vmul.f32 %v2077, %v443
    %v2826 = vmul.f32 %v2079, %v444
    %v2827 = vmul.f32 %v2083, %v445
    %v2828 = vmul.f32 %v2085, %v446
    %v2829 = vmul.f32 %v2087, %v447
    %v2830 = vmul.f32 %v2089, %v448
    %v2831 = vmul.f32 %v2093, %v449
    %v2832 = vmul.f32 %v2095, %v450
    %v2833 = vmul.f32 %v2097, %v451
    %v2834 = vmul.f32 %v2099, %v452
    %v2835 = vmul.f32 %v2103, %v453
    %v2836 = vmul.f32 %v2105, %v454
    %v2837 = vmul.f32 %v2107, %v455
    %v2838 = vmul.f32 %v2109, %v456
    %v2839 = vmul.f32 %v2113, %v457
    %v2840 = vmul.f32 %v2115, %v458
    %v2841 = vmul.f32 %v2117, %v459
    %v2842 = vmul.f32 %v2119, %v460
    %v2843 = vmul.f32 %v2123, %v461
    %v2844 = vmul.f32 %v2125, %v462
    %v2845 = vmul.f32 %v2127, %v463
    %v2846 = vmul.f32 %v2129, %v464
    %v2847 = vpack.c.bf16 %v2721, %v2719
    %v2848 = vpack.c.bf16 %v2722, %v2720
    %v2849 = vpack.c.bf16 %v2725, %v2723
    %v2850 = vpack.c.bf16 %v2726, %v2724
    %v2851 = vpack.c.bf16 %v2729, %v2727
    %v2852 = vpack.c.bf16 %v2730, %v2728
    %v2853 = vpack.c.bf16 %v2733, %v2731
    %v2854 = vpack.c.bf16 %v2734, %v2732
    %v2855 = vpack.c.bf16 %v2737, %v2735
    %v2856 = vpack.c.bf16 %v2738, %v2736
    %v2857 = vpack.c.bf16 %v2741, %v2739
    %v2858 = vpack.c.bf16 %v2742, %v2740
    %v2859 = vpack.c.bf16 %v2745, %v2743
    %v2860 = vpack.c.bf16 %v2746, %v2744
    %v2861 = vpack.c.bf16 %v2749, %v2747
    %v2862 = vpack.c.bf16 %v2750, %v2748
    %v2863 = vpack.c.bf16 %v2753, %v2751
    %v2864 = vpack.c.bf16 %v2754, %v2752
    %v2865 = vpack.c.bf16 %v2757, %v2755
    %v2866 = vpack.c.bf16 %v2758, %v2756
    %v2867 = vpack.c.bf16 %v2761, %v2759
    %v2868 = vpack.c.bf16 %v2762, %v2760
    %v2869 = vpack.c.bf16 %v2765, %v2763
    %v2870 = vpack.c.bf16 %v2766, %v2764
    %v2871 = vpack.c.bf16 %v2769, %v2767
    %v2872 = vpack.c.bf16 %v2770, %v2768
    %v2873 = vpack.c.bf16 %v2773, %v2771
    %v2874 = vpack.c.bf16 %v2774, %v2772
    %v2875 = vpack.c.bf16 %v2777, %v2775
    %v2876 = vpack.c.bf16 %v2778, %v2776
    %v2877 = vpack.c.bf16 %v2781, %v2779
    %v2878 = vpack.c.bf16 %v2782, %v2780
    %v2879 = vpack.c.bf16 %v2785, %v2783
    %v2880 = vpack.c.bf16 %v2786, %v2784
    %v2881 = vpack.c.bf16 %v2789, %v2787
    %v2882 = vpack.c.bf16 %v2790, %v2788
    %v2883 = vpack.c.bf16 %v2793, %v2791
    %v2884 = vpack.c.bf16 %v2794, %v2792
    %v2885 = vpack.c.bf16 %v2797, %v2795
    %v2886 = vpack.c.bf16 %v2798, %v2796
    %v2887 = vpack.c.bf16 %v2801, %v2799
    %v2888 = vpack.c.bf16 %v2802, %v2800
    %v2889 = vpack.c.bf16 %v2805, %v2803
    %v2890 = vpack.c.bf16 %v2806, %v2804
    %v2891 = vpack.c.bf16 %v2809, %v2807
    %v2892 = vpack.c.bf16 %v2810, %v2808
    %v2893 = vpack.c.bf16 %v2813, %v2811
    %v2894 = vpack.c.bf16 %v2814, %v2812
    %v2895 = vpack.c.bf16 %v2817, %v2815
    %v2896 = vpack.c.bf16 %v2818, %v2816
    %v2897 = vpack.c.bf16 %v2821, %v2819
    %v2898 = vpack.c.bf16 %v2822, %v2820
    %v2899 = vpack.c.bf16 %v2825, %v2823
    %v2900 = vpack.c.bf16 %v2826, %v2824
    %v2901 = vpack.c.bf16 %v2829, %v2827
    %v2902 = vpack.c.bf16 %v2830, %v2828
    %v2903 = vpack.c.bf16 %v2833, %v2831
    %v2904 = vpack.c.bf16 %v2834, %v2832
    %v2905 = vpack.c.bf16 %v2837, %v2835
    %v2906 = vpack.c.bf16 %v2838, %v2836
    %v2907 = vpack.c.bf16 %v2841, %v2839
    %v2908 = vpack.c.bf16 %v2842, %v2840
    %v2909 = vpack.c.bf16 %v2845, %v2843
    %v2910 = vpack.c.bf16 %v2846, %v2844
    %2911 = vmatprep.subr.bf16.mxu0 %v2848
    %2912 = vmatpush1.bf16.msra.mxu0 %v2847
    %2913 = vmatprep.subr.bf16.mxu0 %v2850
    %2914 = vmatpush1.bf16.msra.mxu0 %v2849
    %2915 = vmatprep.subr.bf16.mxu0 %v2852
    %2916 = vmatpush1.bf16.msra.mxu0 %v2851
    %2917 = vmatprep.subr.bf16.mxu0 %v2854
    %2918 = vmatpush1.bf16.msra.mxu0 %v2853
    %2919 = vmatprep.subr.bf16.mxu0 %v2856
    %2920 = vmatpush1.bf16.msra.mxu0 %v2855
    %2921 = vmatprep.subr.bf16.mxu0 %v2858
    %2922 = vmatpush1.bf16.msra.mxu0 %v2857
    %2923 = vmatprep.subr.bf16.mxu0 %v2860
    %2924 = vmatpush1.bf16.msra.mxu0 %v2859
    %2925 = vmatprep.subr.bf16.mxu0 %v2862
    %2926 = vmatpush1.bf16.msra.mxu0 %v2861
    %2927 = vmatprep.subr.bf16.mxu0 %v2864
    %2928 = vmatpush1.bf16.msra.mxu0 %v2863
    %2929 = vmatprep.subr.bf16.mxu0 %v2866
    %2930 = vmatpush1.bf16.msra.mxu0 %v2865
    %2931 = vmatprep.subr.bf16.mxu0 %v2868
    %2932 = vmatpush1.bf16.msra.mxu0 %v2867
    %2933 = vmatprep.subr.bf16.mxu0 %v2870
    %2934 = vmatpush1.bf16.msra.mxu0 %v2869
    %2935 = vmatprep.subr.bf16.mxu0 %v2872
    %2936 = vmatpush1.bf16.msra.mxu0 %v2871
    %2937 = vmatprep.subr.bf16.mxu0 %v2874
    %2938 = vmatpush1.bf16.msra.mxu0 %v2873
    %2939 = vmatprep.subr.bf16.mxu0 %v2876
    %2940 = vmatpush1.bf16.msra.mxu0 %v2875
    %2941 = vmatprep.subr.bf16.mxu0 %v2878
    %2942 = vmatpush1.bf16.msra.mxu0 %v2877
    %2943 = vmatprep.mubr.bf16.mxu0 %v850
    %2944 = vmatmul.mubr.bf16.gmra.mrb[0].mxu0 %v849
    %v2945 = vpop.f32.mrb[0].mxu0
    %v2946 = vadd.f32 0.0, %v2945
    %v2947 = vpop.f32.mrb[0].mxu0
    %v2948 = vadd.f32 0.0, %v2947
    %v2949 = vpop.f32.mrb[0].mxu0
    %v2950 = vadd.f32 0.0, %v2949
    %v2951 = vpop.f32.mrb[0].mxu0
    %v2952 = vadd.f32 0.0, %v2951
    %2953 = vmatprep.mubr.bf16.mxu0 %v854
    %2954 = vmatmul.mubr.bf16.gmra.mrb[0].mxu0 %v853
    %v2955 = vpop.f32.mrb[0].mxu0
    %v2956 = vadd.f32 0.0, %v2955
    %v2957 = vpop.f32.mrb[0].mxu0
    %v2958 = vadd.f32 0.0, %v2957
    %v2959 = vpop.f32.mrb[0].mxu0
    %v2960 = vadd.f32 0.0, %v2959
    %v2961 = vpop.f32.mrb[0].mxu0
    %v2962 = vadd.f32 0.0, %v2961
    %2963 = vmatprep.mubr.bf16.mxu0 %v858
    %2964 = vmatmul.mubr.bf16.gmra.mrb[0].mxu0 %v857
    %v2965 = vpop.f32.mrb[0].mxu0
    %v2966 = vadd.f32 0.0, %v2965
    %v2967 = vpop.f32.mrb[0].mxu0
    %v2968 = vadd.f32 0.0, %v2967
    %v2969 = vpop.f32.mrb[0].mxu0
    %v2970 = vadd.f32 0.0, %v2969
    %v2971 = vpop.f32.mrb[0].mxu0
    %v2972 = vadd.f32 0.0, %v2971
    %2973 = vmatprep.mubr.bf16.mxu0 %v862
    %2974 = vmatmul.mubr.bf16.gmra.mrb[0].mxu0 %v861
    %v2975 = vpop.f32.mrb[0].mxu0
    %v2976 = vadd.f32 0.0, %v2975
    %v2977 = vpop.f32.mrb[0].mxu0
    %v2978 = vadd.f32 0.0, %v2977
    %v2979 = vpop.f32.mrb[0].mxu0
    %v2980 = vadd.f32 0.0, %v2979
    %v2981 = vpop.f32.mrb[0].mxu0
    %v2982 = vadd.f32 0.0, %v2981
    %2983 = vmatprep.mubr.bf16.mxu0 %v866
    %2984 = vmatmul.mubr.bf16.gmra.mrb[0].mxu0 %v865
    %v2985 = vpop.f32.mrb[0].mxu0
    %v2986 = vadd.f32 0.0, %v2985
    %v2987 = vpop.f32.mrb[0].mxu0
    %v2988 = vadd.f32 0.0, %v2987
    %v2989 = vpop.f32.mrb[0].mxu0
    %v2990 = vadd.f32 0.0, %v2989
    %v2991 = vpop.f32.mrb[0].mxu0
    %v2992 = vadd.f32 0.0, %v2991
    %2993 = vmatprep.mubr.bf16.mxu0 %v870
    %2994 = vmatmul.mubr.bf16.gmra.mrb[0].mxu0 %v869
    %v2995 = vpop.f32.mrb[0].mxu0
    %v2996 = vadd.f32 0.0, %v2995
    %v2997 = vpop.f32.mrb[0].mxu0
    %v2998 = vadd.f32 0.0, %v2997
    %v2999 = vpop.f32.mrb[0].mxu0
    %v3000 = vadd.f32 0.0, %v2999
    %v3001 = vpop.f32.mrb[0].mxu0
    %v3002 = vadd.f32 0.0, %v3001
    %3003 = vmatprep.mubr.bf16.mxu0 %v874
    %3004 = vmatmul.mubr.bf16.gmra.mrb[0].mxu0 %v873
    %v3005 = vpop.f32.mrb[0].mxu0
    %v3006 = vadd.f32 0.0, %v3005
    %v3007 = vpop.f32.mrb[0].mxu0
    %v3008 = vadd.f32 0.0, %v3007
    %v3009 = vpop.f32.mrb[0].mxu0
    %v3010 = vadd.f32 0.0, %v3009
    %v3011 = vpop.f32.mrb[0].mxu0
    %v3012 = vadd.f32 0.0, %v3011
    %3013 = vmatprep.mubr.bf16.mxu0 %v878
    %3014 = vmatmul.mubr.bf16.gmra.mrb[0].mxu0 %v877
    %v3015 = vpop.f32.mrb[0].mxu0
    %v3016 = vadd.f32 0.0, %v3015
    %v3017 = vpop.f32.mrb[0].mxu0
    %v3018 = vadd.f32 0.0, %v3017
    %v3019 = vpop.f32.mrb[0].mxu0
    %v3020 = vadd.f32 0.0, %v3019
    %v3021 = vpop.f32.mrb[0].mxu0
    %v3022 = vadd.f32 0.0, %v3021
    %3023 = vmatprep.mubr.bf16.mxu0 %v882
    %3024 = vmatmul.mubr.bf16.gmra.mrb[0].mxu0 %v881
    %v3025 = vpop.f32.mrb[0].mxu0
    %v3026 = vadd.f32 0.0, %v3025
    %v3027 = vpop.f32.mrb[0].mxu0
    %v3028 = vadd.f32 0.0, %v3027
    %v3029 = vpop.f32.mrb[0].mxu0
    %v3030 = vadd.f32 0.0, %v3029
    %v3031 = vpop.f32.mrb[0].mxu0
    %v3032 = vadd.f32 0.0, %v3031
    %3033 = vmatprep.mubr.bf16.mxu0 %v886
    %3034 = vmatmul.mubr.bf16.gmra.mrb[0].mxu0 %v885
    %v3035 = vpop.f32.mrb[0].mxu0
    %v3036 = vadd.f32 0.0, %v3035
    %v3037 = vpop.f32.mrb[0].mxu0
    %v3038 = vadd.f32 0.0, %v3037
    %v3039 = vpop.f32.mrb[0].mxu0
    %v3040 = vadd.f32 0.0, %v3039
    %v3041 = vpop.f32.mrb[0].mxu0
    %v3042 = vadd.f32 0.0, %v3041
    %3043 = vmatprep.mubr.bf16.mxu0 %v890
    %3044 = vmatmul.mubr.bf16.gmra.mrb[0].mxu0 %v889
    %v3045 = vpop.f32.mrb[0].mxu0
    %v3046 = vadd.f32 0.0, %v3045
    %v3047 = vpop.f32.mrb[0].mxu0
    %v3048 = vadd.f32 0.0, %v3047
    %v3049 = vpop.f32.mrb[0].mxu0
    %v3050 = vadd.f32 0.0, %v3049
    %v3051 = vpop.f32.mrb[0].mxu0
    %v3052 = vadd.f32 0.0, %v3051
    %3053 = vmatprep.mubr.bf16.mxu0 %v894
    %3054 = vmatmul.mubr.bf16.gmra.mrb[0].mxu0 %v893
    %v3055 = vpop.f32.mrb[0].mxu0
    %v3056 = vadd.f32 0.0, %v3055
    %v3057 = vpop.f32.mrb[0].mxu0
    %v3058 = vadd.f32 0.0, %v3057
    %v3059 = vpop.f32.mrb[0].mxu0
    %v3060 = vadd.f32 0.0, %v3059
    %v3061 = vpop.f32.mrb[0].mxu0
    %v3062 = vadd.f32 0.0, %v3061
    %3063 = vmatprep.mubr.bf16.mxu0 %v898
    %3064 = vmatmul.mubr.bf16.gmra.mrb[0].mxu0 %v897
    %v3065 = vpop.f32.mrb[0].mxu0
    %v3066 = vadd.f32 0.0, %v3065
    %v3067 = vpop.f32.mrb[0].mxu0
    %v3068 = vadd.f32 0.0, %v3067
    %v3069 = vpop.f32.mrb[0].mxu0
    %v3070 = vadd.f32 0.0, %v3069
    %v3071 = vpop.f32.mrb[0].mxu0
    %v3072 = vadd.f32 0.0, %v3071
    %3073 = vmatprep.mubr.bf16.mxu0 %v902
    %3074 = vmatmul.mubr.bf16.gmra.mrb[0].mxu0 %v901
    %v3075 = vpop.f32.mrb[0].mxu0
    %v3076 = vadd.f32 0.0, %v3075
    %v3077 = vpop.f32.mrb[0].mxu0
    %v3078 = vadd.f32 0.0, %v3077
    %v3079 = vpop.f32.mrb[0].mxu0
    %v3080 = vadd.f32 0.0, %v3079
    %v3081 = vpop.f32.mrb[0].mxu0
    %v3082 = vadd.f32 0.0, %v3081
    %3083 = vmatprep.mubr.bf16.mxu0 %v906
    %3084 = vmatmul.mubr.bf16.gmra.mrb[0].mxu0 %v905
    %v3085 = vpop.f32.mrb[0].mxu0
    %v3086 = vadd.f32 0.0, %v3085
    %v3087 = vpop.f32.mrb[0].mxu0
    %v3088 = vadd.f32 0.0, %v3087
    %v3089 = vpop.f32.mrb[0].mxu0
    %v3090 = vadd.f32 0.0, %v3089
    %v3091 = vpop.f32.mrb[0].mxu0
    %v3092 = vadd.f32 0.0, %v3091
    %3093 = vmatprep.mubr.bf16.mxu0 %v910
    %3094 = vmatmul.mubr.bf16.gmra.mrb[0].mxu0 %v909
    %v3095 = vpop.f32.mrb[0].mxu0
    %v3096 = vadd.f32 0.0, %v3095
    %v3097 = vpop.f32.mrb[0].mxu0
    %v3098 = vadd.f32 0.0, %v3097
    %v3099 = vpop.f32.mrb[0].mxu0
    %v3100 = vadd.f32 0.0, %v3099
    %v3101 = vpop.f32.mrb[0].mxu0
    %v3102 = vadd.f32 0.0, %v3101
    %3103 = vmatprep.mubr.bf16.mxu0 %v914
    %3104 = vmatmul.mubr.bf16.gmra.mrb[0].mxu0 %v913
    %v3105 = vpop.f32.mrb[0].mxu0
    %v3106 = vadd.f32 0.0, %v3105
    %v3107 = vpop.f32.mrb[0].mxu0
    %v3108 = vadd.f32 0.0, %v3107
    %v3109 = vpop.f32.mrb[0].mxu0
    %v3110 = vadd.f32 0.0, %v3109
    %v3111 = vpop.f32.mrb[0].mxu0
    %v3112 = vadd.f32 0.0, %v3111
    %3113 = vmatprep.mubr.bf16.mxu0 %v918
    %3114 = vmatmul.mubr.bf16.gmra.mrb[0].mxu0 %v917
    %v3115 = vpop.f32.mrb[0].mxu0
    %v3116 = vadd.f32 0.0, %v3115
    %v3117 = vpop.f32.mrb[0].mxu0
    %v3118 = vadd.f32 0.0, %v3117
    %v3119 = vpop.f32.mrb[0].mxu0
    %v3120 = vadd.f32 0.0, %v3119
    %v3121 = vpop.f32.mrb[0].mxu0
    %v3122 = vadd.f32 0.0, %v3121
    %3123 = vmatprep.mubr.bf16.mxu0 %v922
    %3124 = vmatmul.mubr.bf16.gmra.mrb[0].mxu0 %v921
    %v3125 = vpop.f32.mrb[0].mxu0
    %v3126 = vadd.f32 0.0, %v3125
    %v3127 = vpop.f32.mrb[0].mxu0
    %v3128 = vadd.f32 0.0, %v3127
    %v3129 = vpop.f32.mrb[0].mxu0
    %v3130 = vadd.f32 0.0, %v3129
    %v3131 = vpop.f32.mrb[0].mxu0
    %v3132 = vadd.f32 0.0, %v3131
    %3133 = vmatprep.mubr.bf16.mxu0 %v926
    %3134 = vmatmul.mubr.bf16.gmra.mrb[0].mxu0 %v925
    %v3135 = vpop.f32.mrb[0].mxu0
    %v3136 = vadd.f32 0.0, %v3135
    %v3137 = vpop.f32.mrb[0].mxu0
    %v3138 = vadd.f32 0.0, %v3137
    %v3139 = vpop.f32.mrb[0].mxu0
    %v3140 = vadd.f32 0.0, %v3139
    %v3141 = vpop.f32.mrb[0].mxu0
    %v3142 = vadd.f32 0.0, %v3141
    %3143 = vmatprep.mubr.bf16.mxu0 %v930
    %3144 = vmatmul.mubr.bf16.gmra.mrb[0].mxu0 %v929
    %v3145 = vpop.f32.mrb[0].mxu0
    %v3146 = vadd.f32 0.0, %v3145
    %v3147 = vpop.f32.mrb[0].mxu0
    %v3148 = vadd.f32 0.0, %v3147
    %v3149 = vpop.f32.mrb[0].mxu0
    %v3150 = vadd.f32 0.0, %v3149
    %v3151 = vpop.f32.mrb[0].mxu0
    %v3152 = vadd.f32 0.0, %v3151
    %3153 = vmatprep.mubr.bf16.mxu0 %v934
    %3154 = vmatmul.mubr.bf16.gmra.mrb[0].mxu0 %v933
    %v3155 = vpop.f32.mrb[0].mxu0
    %v3156 = vadd.f32 0.0, %v3155
    %v3157 = vpop.f32.mrb[0].mxu0
    %v3158 = vadd.f32 0.0, %v3157
    %v3159 = vpop.f32.mrb[0].mxu0
    %v3160 = vadd.f32 0.0, %v3159
    %v3161 = vpop.f32.mrb[0].mxu0
    %v3162 = vadd.f32 0.0, %v3161
    %3163 = vmatprep.mubr.bf16.mxu0 %v938
    %3164 = vmatmul.mubr.bf16.gmra.mrb[0].mxu0 %v937
    %v3165 = vpop.f32.mrb[0].mxu0
    %v3166 = vadd.f32 0.0, %v3165
    %v3167 = vpop.f32.mrb[0].mxu0
    %v3168 = vadd.f32 0.0, %v3167
    %v3169 = vpop.f32.mrb[0].mxu0
    %v3170 = vadd.f32 0.0, %v3169
    %v3171 = vpop.f32.mrb[0].mxu0
    %v3172 = vadd.f32 0.0, %v3171
    %3173 = vmatprep.mubr.bf16.mxu0 %v942
    %3174 = vmatmul.mubr.bf16.gmra.mrb[0].mxu0 %v941
    %v3175 = vpop.f32.mrb[0].mxu0
    %v3176 = vadd.f32 0.0, %v3175
    %v3177 = vpop.f32.mrb[0].mxu0
    %v3178 = vadd.f32 0.0, %v3177
    %v3179 = vpop.f32.mrb[0].mxu0
    %v3180 = vadd.f32 0.0, %v3179
    %v3181 = vpop.f32.mrb[0].mxu0
    %v3182 = vadd.f32 0.0, %v3181
    %3183 = vmatprep.mubr.bf16.mxu0 %v946
    %3184 = vmatmul.mubr.bf16.gmra.mrb[0].mxu0 %v945
    %v3185 = vpop.f32.mrb[0].mxu0
    %v3186 = vadd.f32 0.0, %v3185
    %v3187 = vpop.f32.mrb[0].mxu0
    %v3188 = vadd.f32 0.0, %v3187
    %v3189 = vpop.f32.mrb[0].mxu0
    %v3190 = vadd.f32 0.0, %v3189
    %v3191 = vpop.f32.mrb[0].mxu0
    %v3192 = vadd.f32 0.0, %v3191
    %3193 = vmatprep.mubr.bf16.mxu0 %v950
    %3194 = vmatmul.mubr.bf16.gmra.mrb[0].mxu0 %v949
    %v3195 = vpop.f32.mrb[0].mxu0
    %v3196 = vadd.f32 0.0, %v3195
    %v3197 = vpop.f32.mrb[0].mxu0
    %v3198 = vadd.f32 0.0, %v3197
    %v3199 = vpop.f32.mrb[0].mxu0
    %v3200 = vadd.f32 0.0, %v3199
    %v3201 = vpop.f32.mrb[0].mxu0
    %v3202 = vadd.f32 0.0, %v3201
    %3203 = vmatprep.mubr.bf16.mxu0 %v954
    %3204 = vmatmul.mubr.bf16.gmra.mrb[0].mxu0 %v953
    %v3205 = vpop.f32.mrb[0].mxu0
    %v3206 = vadd.f32 0.0, %v3205
    %v3207 = vpop.f32.mrb[0].mxu0
    %v3208 = vadd.f32 0.0, %v3207
    %v3209 = vpop.f32.mrb[0].mxu0
    %v3210 = vadd.f32 0.0, %v3209
    %v3211 = vpop.f32.mrb[0].mxu0
    %v3212 = vadd.f32 0.0, %v3211
    %3213 = vmatprep.mubr.bf16.mxu0 %v958
    %3214 = vmatmul.mubr.bf16.gmra.mrb[0].mxu0 %v957
    %v3215 = vpop.f32.mrb[0].mxu0
    %v3216 = vadd.f32 0.0, %v3215
    %v3217 = vpop.f32.mrb[0].mxu0
    %v3218 = vadd.f32 0.0, %v3217
    %v3219 = vpop.f32.mrb[0].mxu0
    %v3220 = vadd.f32 0.0, %v3219
    %v3221 = vpop.f32.mrb[0].mxu0
    %v3222 = vadd.f32 0.0, %v3221
    %3223 = vmatprep.mubr.bf16.mxu0 %v962
    %3224 = vmatmul.mubr.bf16.gmra.mrb[0].mxu0 %v961
    %v3225 = vpop.f32.mrb[0].mxu0
    %v3226 = vadd.f32 0.0, %v3225
    %v3227 = vpop.f32.mrb[0].mxu0
    %v3228 = vadd.f32 0.0, %v3227
    %v3229 = vpop.f32.mrb[0].mxu0
    %v3230 = vadd.f32 0.0, %v3229
    %v3231 = vpop.f32.mrb[0].mxu0
    %v3232 = vadd.f32 0.0, %v3231
    %3233 = vmatprep.mubr.bf16.mxu0 %v966
    %3234 = vmatmul.mubr.bf16.gmra.mrb[0].mxu0 %v965
    %v3235 = vpop.f32.mrb[0].mxu0
    %v3236 = vadd.f32 0.0, %v3235
    %v3237 = vpop.f32.mrb[0].mxu0
    %v3238 = vadd.f32 0.0, %v3237
    %v3239 = vpop.f32.mrb[0].mxu0
    %v3240 = vadd.f32 0.0, %v3239
    %v3241 = vpop.f32.mrb[0].mxu0
    %v3242 = vadd.f32 0.0, %v3241
    %3243 = vmatprep.mubr.bf16.mxu0 %v970
    %3244 = vmatmul.mubr.bf16.gmra.mrb[0].mxu0 %v969
    %v3245 = vpop.f32.mrb[0].mxu0
    %v3246 = vadd.f32 0.0, %v3245
    %v3247 = vpop.f32.mrb[0].mxu0
    %v3248 = vadd.f32 0.0, %v3247
    %v3249 = vpop.f32.mrb[0].mxu0
    %v3250 = vadd.f32 0.0, %v3249
    %v3251 = vpop.f32.mrb[0].mxu0
    %v3252 = vadd.f32 0.0, %v3251
    %3253 = vmatprep.mubr.bf16.mxu0 %v974
    %3254 = vmatmul.mubr.bf16.gmra.mrb[0].mxu0 %v973
    %v3255 = vpop.f32.mrb[0].mxu0
    %v3256 = vadd.f32 0.0, %v3255
    %v3257 = vpop.f32.mrb[0].mxu0
    %v3258 = vadd.f32 0.0, %v3257
    %v3259 = vpop.f32.mrb[0].mxu0
    %v3260 = vadd.f32 0.0, %v3259
    %v3261 = vpop.f32.mrb[0].mxu0
    %v3262 = vadd.f32 0.0, %v3261
    %3263 = vdwg.mxu0
    %3264 = vmatprep.subr.bf16.mxu0 %v2880
    %3265 = vmatpush1.bf16.msra.mxu0 %v2879
    %3266 = vmatprep.subr.bf16.mxu0 %v2882
    %3267 = vmatpush1.bf16.msra.mxu0 %v2881
    %3268 = vmatprep.subr.bf16.mxu0 %v2884
    %3269 = vmatpush1.bf16.msra.mxu0 %v2883
    %3270 = vmatprep.subr.bf16.mxu0 %v2886
    %3271 = vmatpush1.bf16.msra.mxu0 %v2885
    %3272 = vmatprep.subr.bf16.mxu0 %v2888
    %3273 = vmatpush1.bf16.msra.mxu0 %v2887
    %3274 = vmatprep.subr.bf16.mxu0 %v2890
    %3275 = vmatpush1.bf16.msra.mxu0 %v2889
    %3276 = vmatprep.subr.bf16.mxu0 %v2892
    %3277 = vmatpush1.bf16.msra.mxu0 %v2891
    %3278 = vmatprep.subr.bf16.mxu0 %v2894
    %3279 = vmatpush1.bf16.msra.mxu0 %v2893
    %3280 = vmatprep.subr.bf16.mxu0 %v2896
    %3281 = vmatpush1.bf16.msra.mxu0 %v2895
    %3282 = vmatprep.subr.bf16.mxu0 %v2898
    %3283 = vmatpush1.bf16.msra.mxu0 %v2897
    %3284 = vmatprep.subr.bf16.mxu0 %v2900
    %3285 = vmatpush1.bf16.msra.mxu0 %v2899
    %3286 = vmatprep.subr.bf16.mxu0 %v2902
    %3287 = vmatpush1.bf16.msra.mxu0 %v2901
    %3288 = vmatprep.subr.bf16.mxu0 %v2904
    %3289 = vmatpush1.bf16.msra.mxu0 %v2903
    %3290 = vmatprep.subr.bf16.mxu0 %v2906
    %3291 = vmatpush1.bf16.msra.mxu0 %v2905
    %3292 = vmatprep.subr.bf16.mxu0 %v2908
    %3293 = vmatpush1.bf16.msra.mxu0 %v2907
    %3294 = vmatprep.subr.bf16.mxu0 %v2910
    %3295 = vmatpush1.bf16.msra.mxu0 %v2909
    %3296 = vmatprep.mubr.bf16.mxu0 %v852
    %3297 = vmatmul.mubr.bf16.gmra.mrb[0].mxu0 %v851
    %v3298 = vpop.f32.mrb[0].mxu0
    %v3299 = vadd.f32 %v2946, %v3298
    %v3300 = vpop.f32.mrb[0].mxu0
    %v3301 = vadd.f32 %v2948, %v3300
    %v3302 = vpop.f32.mrb[0].mxu0
    %v3303 = vadd.f32 %v2950, %v3302
    %v3304 = vpop.f32.mrb[0].mxu0
    %v3305 = vadd.f32 %v2952, %v3304
    %3306 = vmatprep.mubr.bf16.mxu0 %v856
    %3307 = vmatmul.mubr.bf16.gmra.mrb[0].mxu0 %v855
    %v3308 = vpop.f32.mrb[0].mxu0
    %v3309 = vadd.f32 %v2956, %v3308
    %v3310 = vpop.f32.mrb[0].mxu0
    %v3311 = vadd.f32 %v2958, %v3310
    %v3312 = vpop.f32.mrb[0].mxu0
    %v3313 = vadd.f32 %v2960, %v3312
    %v3314 = vpop.f32.mrb[0].mxu0
    %v3315 = vadd.f32 %v2962, %v3314
    %3316 = vmatprep.mubr.bf16.mxu0 %v860
    %3317 = vmatmul.mubr.bf16.gmra.mrb[0].mxu0 %v859
    %v3318 = vpop.f32.mrb[0].mxu0
    %v3319 = vadd.f32 %v2966, %v3318
    %v3320 = vpop.f32.mrb[0].mxu0
    %v3321 = vadd.f32 %v2968, %v3320
    %v3322 = vpop.f32.mrb[0].mxu0
    %v3323 = vadd.f32 %v2970, %v3322
    %v3324 = vpop.f32.mrb[0].mxu0
    %v3325 = vadd.f32 %v2972, %v3324
    %3326 = vmatprep.mubr.bf16.mxu0 %v864
    %3327 = vmatmul.mubr.bf16.gmra.mrb[0].mxu0 %v863
    %v3328 = vpop.f32.mrb[0].mxu0
    %v3329 = vadd.f32 %v2976, %v3328
    %v3330 = vpop.f32.mrb[0].mxu0
    %v3331 = vadd.f32 %v2978, %v3330
    %v3332 = vpop.f32.mrb[0].mxu0
    %v3333 = vadd.f32 %v2980, %v3332
    %v3334 = vpop.f32.mrb[0].mxu0
    %v3335 = vadd.f32 %v2982, %v3334
    %3336 = vmatprep.mubr.bf16.mxu0 %v868
    %3337 = vmatmul.mubr.bf16.gmra.mrb[0].mxu0 %v867
    %v3338 = vpop.f32.mrb[0].mxu0
    %v3339 = vadd.f32 %v2986, %v3338
    %v3340 = vpop.f32.mrb[0].mxu0
    %v3341 = vadd.f32 %v2988, %v3340
    %v3342 = vpop.f32.mrb[0].mxu0
    %v3343 = vadd.f32 %v2990, %v3342
    %v3344 = vpop.f32.mrb[0].mxu0
    %v3345 = vadd.f32 %v2992, %v3344
    %3346 = vmatprep.mubr.bf16.mxu0 %v872
    %3347 = vmatmul.mubr.bf16.gmra.mrb[0].mxu0 %v871
    %v3348 = vpop.f32.mrb[0].mxu0
    %v3349 = vadd.f32 %v2996, %v3348
    %v3350 = vpop.f32.mrb[0].mxu0
    %v3351 = vadd.f32 %v2998, %v3350
    %v3352 = vpop.f32.mrb[0].mxu0
    %v3353 = vadd.f32 %v3000, %v3352
    %v3354 = vpop.f32.mrb[0].mxu0
    %v3355 = vadd.f32 %v3002, %v3354
    %3356 = vmatprep.mubr.bf16.mxu0 %v876
    %3357 = vmatmul.mubr.bf16.gmra.mrb[0].mxu0 %v875
    %v3358 = vpop.f32.mrb[0].mxu0
    %v3359 = vadd.f32 %v3006, %v3358
    %v3360 = vpop.f32.mrb[0].mxu0
    %v3361 = vadd.f32 %v3008, %v3360
    %v3362 = vpop.f32.mrb[0].mxu0
    %v3363 = vadd.f32 %v3010, %v3362
    %v3364 = vpop.f32.mrb[0].mxu0
    %v3365 = vadd.f32 %v3012, %v3364
    %3366 = vmatprep.mubr.bf16.mxu0 %v880
    %3367 = vmatmul.mubr.bf16.gmra.mrb[0].mxu0 %v879
    %v3368 = vpop.f32.mrb[0].mxu0
    %v3369 = vadd.f32 %v3016, %v3368
    %v3370 = vpop.f32.mrb[0].mxu0
    %v3371 = vadd.f32 %v3018, %v3370
    %v3372 = vpop.f32.mrb[0].mxu0
    %v3373 = vadd.f32 %v3020, %v3372
    %v3374 = vpop.f32.mrb[0].mxu0
    %v3375 = vadd.f32 %v3022, %v3374
    %3376 = vmatprep.mubr.bf16.mxu0 %v884
    %3377 = vmatmul.mubr.bf16.gmra.mrb[0].mxu0 %v883
    %v3378 = vpop.f32.mrb[0].mxu0
    %v3379 = vadd.f32 %v3026, %v3378
    %v3380 = vpop.f32.mrb[0].mxu0
    %v3381 = vadd.f32 %v3028, %v3380
    %v3382 = vpop.f32.mrb[0].mxu0
    %v3383 = vadd.f32 %v3030, %v3382
    %v3384 = vpop.f32.mrb[0].mxu0
    %v3385 = vadd.f32 %v3032, %v3384
    %3386 = vmatprep.mubr.bf16.mxu0 %v888
    %3387 = vmatmul.mubr.bf16.gmra.mrb[0].mxu0 %v887
    %v3388 = vpop.f32.mrb[0].mxu0
    %v3389 = vadd.f32 %v3036, %v3388
    %v3390 = vpop.f32.mrb[0].mxu0
    %v3391 = vadd.f32 %v3038, %v3390
    %v3392 = vpop.f32.mrb[0].mxu0
    %v3393 = vadd.f32 %v3040, %v3392
    %v3394 = vpop.f32.mrb[0].mxu0
    %v3395 = vadd.f32 %v3042, %v3394
    %3396 = vmatprep.mubr.bf16.mxu0 %v892
    %3397 = vmatmul.mubr.bf16.gmra.mrb[0].mxu0 %v891
    %v3398 = vpop.f32.mrb[0].mxu0
    %v3399 = vadd.f32 %v3046, %v3398
    %v3400 = vpop.f32.mrb[0].mxu0
    %v3401 = vadd.f32 %v3048, %v3400
    %v3402 = vpop.f32.mrb[0].mxu0
    %v3403 = vadd.f32 %v3050, %v3402
    %v3404 = vpop.f32.mrb[0].mxu0
    %v3405 = vadd.f32 %v3052, %v3404
    %3406 = vmatprep.mubr.bf16.mxu0 %v896
    %3407 = vmatmul.mubr.bf16.gmra.mrb[0].mxu0 %v895
    %v3408 = vpop.f32.mrb[0].mxu0
    %v3409 = vadd.f32 %v3056, %v3408
    %v3410 = vpop.f32.mrb[0].mxu0
    %v3411 = vadd.f32 %v3058, %v3410
    %v3412 = vpop.f32.mrb[0].mxu0
    %v3413 = vadd.f32 %v3060, %v3412
    %v3414 = vpop.f32.mrb[0].mxu0
    %v3415 = vadd.f32 %v3062, %v3414
    %3416 = vmatprep.mubr.bf16.mxu0 %v900
    %3417 = vmatmul.mubr.bf16.gmra.mrb[0].mxu0 %v899
    %v3418 = vpop.f32.mrb[0].mxu0
    %v3419 = vadd.f32 %v3066, %v3418
    %v3420 = vpop.f32.mrb[0].mxu0
    %v3421 = vadd.f32 %v3068, %v3420
    %v3422 = vpop.f32.mrb[0].mxu0
    %v3423 = vadd.f32 %v3070, %v3422
    %v3424 = vpop.f32.mrb[0].mxu0
    %v3425 = vadd.f32 %v3072, %v3424
    %3426 = vmatprep.mubr.bf16.mxu0 %v904
    %3427 = vmatmul.mubr.bf16.gmra.mrb[0].mxu0 %v903
    %v3428 = vpop.f32.mrb[0].mxu0
    %v3429 = vadd.f32 %v3076, %v3428
    %v3430 = vpop.f32.mrb[0].mxu0
    %v3431 = vadd.f32 %v3078, %v3430
    %v3432 = vpop.f32.mrb[0].mxu0
    %v3433 = vadd.f32 %v3080, %v3432
    %v3434 = vpop.f32.mrb[0].mxu0
    %v3435 = vadd.f32 %v3082, %v3434
    %3436 = vmatprep.mubr.bf16.mxu0 %v908
    %3437 = vmatmul.mubr.bf16.gmra.mrb[0].mxu0 %v907
    %v3438 = vpop.f32.mrb[0].mxu0
    %v3439 = vadd.f32 %v3086, %v3438
    %v3440 = vpop.f32.mrb[0].mxu0
    %v3441 = vadd.f32 %v3088, %v3440
    %v3442 = vpop.f32.mrb[0].mxu0
    %v3443 = vadd.f32 %v3090, %v3442
    %v3444 = vpop.f32.mrb[0].mxu0
    %v3445 = vadd.f32 %v3092, %v3444
    %3446 = vmatprep.mubr.bf16.mxu0 %v912
    %3447 = vmatmul.mubr.bf16.gmra.mrb[0].mxu0 %v911
    %v3448 = vpop.f32.mrb[0].mxu0
    %v3449 = vadd.f32 %v3096, %v3448
    %v3450 = vpop.f32.mrb[0].mxu0
    %v3451 = vadd.f32 %v3098, %v3450
    %v3452 = vpop.f32.mrb[0].mxu0
    %v3453 = vadd.f32 %v3100, %v3452
    %v3454 = vpop.f32.mrb[0].mxu0
    %v3455 = vadd.f32 %v3102, %v3454
    %3456 = vmatprep.mubr.bf16.mxu0 %v916
    %3457 = vmatmul.mubr.bf16.gmra.mrb[0].mxu0 %v915
    %v3458 = vpop.f32.mrb[0].mxu0
    %v3459 = vadd.f32 %v3106, %v3458
    %v3460 = vpop.f32.mrb[0].mxu0
    %v3461 = vadd.f32 %v3108, %v3460
    %v3462 = vpop.f32.mrb[0].mxu0
    %v3463 = vadd.f32 %v3110, %v3462
    %v3464 = vpop.f32.mrb[0].mxu0
    %v3465 = vadd.f32 %v3112, %v3464
    %3466 = vmatprep.mubr.bf16.mxu0 %v920
    %3467 = vmatmul.mubr.bf16.gmra.mrb[0].mxu0 %v919
    %v3468 = vpop.f32.mrb[0].mxu0
    %v3469 = vadd.f32 %v3116, %v3468
    %v3470 = vpop.f32.mrb[0].mxu0
    %v3471 = vadd.f32 %v3118, %v3470
    %v3472 = vpop.f32.mrb[0].mxu0
    %v3473 = vadd.f32 %v3120, %v3472
    %v3474 = vpop.f32.mrb[0].mxu0
    %v3475 = vadd.f32 %v3122, %v3474
    %3476 = vmatprep.mubr.bf16.mxu0 %v924
    %3477 = vmatmul.mubr.bf16.gmra.mrb[0].mxu0 %v923
    %v3478 = vpop.f32.mrb[0].mxu0
    %v3479 = vadd.f32 %v3126, %v3478
    %v3480 = vpop.f32.mrb[0].mxu0
    %v3481 = vadd.f32 %v3128, %v3480
    %v3482 = vpop.f32.mrb[0].mxu0
    %v3483 = vadd.f32 %v3130, %v3482
    %v3484 = vpop.f32.mrb[0].mxu0
    %v3485 = vadd.f32 %v3132, %v3484
    %3486 = vmatprep.mubr.bf16.mxu0 %v928
    %3487 = vmatmul.mubr.bf16.gmra.mrb[0].mxu0 %v927
    %v3488 = vpop.f32.mrb[0].mxu0
    %v3489 = vadd.f32 %v3136, %v3488
    %v3490 = vpop.f32.mrb[0].mxu0
    %v3491 = vadd.f32 %v3138, %v3490
    %v3492 = vpop.f32.mrb[0].mxu0
    %v3493 = vadd.f32 %v3140, %v3492
    %v3494 = vpop.f32.mrb[0].mxu0
    %v3495 = vadd.f32 %v3142, %v3494
    %3496 = vmatprep.mubr.bf16.mxu0 %v932
    %3497 = vmatmul.mubr.bf16.gmra.mrb[0].mxu0 %v931
    %v3498 = vpop.f32.mrb[0].mxu0
    %v3499 = vadd.f32 %v3146, %v3498
    %v3500 = vpop.f32.mrb[0].mxu0
    %v3501 = vadd.f32 %v3148, %v3500
    %v3502 = vpop.f32.mrb[0].mxu0
    %v3503 = vadd.f32 %v3150, %v3502
    %v3504 = vpop.f32.mrb[0].mxu0
    %v3505 = vadd.f32 %v3152, %v3504
    %3506 = vmatprep.mubr.bf16.mxu0 %v936
    %3507 = vmatmul.mubr.bf16.gmra.mrb[0].mxu0 %v935
    %v3508 = vpop.f32.mrb[0].mxu0
    %v3509 = vadd.f32 %v3156, %v3508
    %v3510 = vpop.f32.mrb[0].mxu0
    %v3511 = vadd.f32 %v3158, %v3510
    %v3512 = vpop.f32.mrb[0].mxu0
    %v3513 = vadd.f32 %v3160, %v3512
    %v3514 = vpop.f32.mrb[0].mxu0
    %v3515 = vadd.f32 %v3162, %v3514
    %3516 = vmatprep.mubr.bf16.mxu0 %v940
    %3517 = vmatmul.mubr.bf16.gmra.mrb[0].mxu0 %v939
    %v3518 = vpop.f32.mrb[0].mxu0
    %v3519 = vadd.f32 %v3166, %v3518
    %v3520 = vpop.f32.mrb[0].mxu0
    %v3521 = vadd.f32 %v3168, %v3520
    %v3522 = vpop.f32.mrb[0].mxu0
    %v3523 = vadd.f32 %v3170, %v3522
    %v3524 = vpop.f32.mrb[0].mxu0
    %v3525 = vadd.f32 %v3172, %v3524
    %3526 = vmatprep.mubr.bf16.mxu0 %v944
    %3527 = vmatmul.mubr.bf16.gmra.mrb[0].mxu0 %v943
    %v3528 = vpop.f32.mrb[0].mxu0
    %v3529 = vadd.f32 %v3176, %v3528
    %v3530 = vpop.f32.mrb[0].mxu0
    %v3531 = vadd.f32 %v3178, %v3530
    %v3532 = vpop.f32.mrb[0].mxu0
    %v3533 = vadd.f32 %v3180, %v3532
    %v3534 = vpop.f32.mrb[0].mxu0
    %v3535 = vadd.f32 %v3182, %v3534
    %3536 = vmatprep.mubr.bf16.mxu0 %v948
    %3537 = vmatmul.mubr.bf16.gmra.mrb[0].mxu0 %v947
    %v3538 = vpop.f32.mrb[0].mxu0
    %v3539 = vadd.f32 %v3186, %v3538
    %v3540 = vpop.f32.mrb[0].mxu0
    %v3541 = vadd.f32 %v3188, %v3540
    %v3542 = vpop.f32.mrb[0].mxu0
    %v3543 = vadd.f32 %v3190, %v3542
    %v3544 = vpop.f32.mrb[0].mxu0
    %v3545 = vadd.f32 %v3192, %v3544
    %3546 = vmatprep.mubr.bf16.mxu0 %v952
    %3547 = vmatmul.mubr.bf16.gmra.mrb[0].mxu0 %v951
    %v3548 = vpop.f32.mrb[0].mxu0
    %v3549 = vadd.f32 %v3196, %v3548
    %v3550 = vpop.f32.mrb[0].mxu0
    %v3551 = vadd.f32 %v3198, %v3550
    %v3552 = vpop.f32.mrb[0].mxu0
    %v3553 = vadd.f32 %v3200, %v3552
    %v3554 = vpop.f32.mrb[0].mxu0
    %v3555 = vadd.f32 %v3202, %v3554
    %3556 = vmatprep.mubr.bf16.mxu0 %v956
    %3557 = vmatmul.mubr.bf16.gmra.mrb[0].mxu0 %v955
    %v3558 = vpop.f32.mrb[0].mxu0
    %v3559 = vadd.f32 %v3206, %v3558
    %v3560 = vpop.f32.mrb[0].mxu0
    %v3561 = vadd.f32 %v3208, %v3560
    %v3562 = vpop.f32.mrb[0].mxu0
    %v3563 = vadd.f32 %v3210, %v3562
    %v3564 = vpop.f32.mrb[0].mxu0
    %v3565 = vadd.f32 %v3212, %v3564
    %3566 = vmatprep.mubr.bf16.mxu0 %v960
    %3567 = vmatmul.mubr.bf16.gmra.mrb[0].mxu0 %v959
    %v3568 = vpop.f32.mrb[0].mxu0
    %v3569 = vadd.f32 %v3216, %v3568
    %v3570 = vpop.f32.mrb[0].mxu0
    %v3571 = vadd.f32 %v3218, %v3570
    %v3572 = vpop.f32.mrb[0].mxu0
    %v3573 = vadd.f32 %v3220, %v3572
    %v3574 = vpop.f32.mrb[0].mxu0
    %v3575 = vadd.f32 %v3222, %v3574
    %3576 = vmatprep.mubr.bf16.mxu0 %v964
    %3577 = vmatmul.mubr.bf16.gmra.mrb[0].mxu0 %v963
    %v3578 = vpop.f32.mrb[0].mxu0
    %v3579 = vadd.f32 %v3226, %v3578
    %v3580 = vpop.f32.mrb[0].mxu0
    %v3581 = vadd.f32 %v3228, %v3580
    %v3582 = vpop.f32.mrb[0].mxu0
    %v3583 = vadd.f32 %v3230, %v3582
    %v3584 = vpop.f32.mrb[0].mxu0
    %v3585 = vadd.f32 %v3232, %v3584
    %3586 = vmatprep.mubr.bf16.mxu0 %v968
    %3587 = vmatmul.mubr.bf16.gmra.mrb[0].mxu0 %v967
    %v3588 = vpop.f32.mrb[0].mxu0
    %v3589 = vadd.f32 %v3236, %v3588
    %v3590 = vpop.f32.mrb[0].mxu0
    %v3591 = vadd.f32 %v3238, %v3590
    %v3592 = vpop.f32.mrb[0].mxu0
    %v3593 = vadd.f32 %v3240, %v3592
    %v3594 = vpop.f32.mrb[0].mxu0
    %v3595 = vadd.f32 %v3242, %v3594
    %3596 = vmatprep.mubr.bf16.mxu0 %v972
    %3597 = vmatmul.mubr.bf16.gmra.mrb[0].mxu0 %v971
    %v3598 = vpop.f32.mrb[0].mxu0
    %v3599 = vadd.f32 %v3246, %v3598
    %v3600 = vpop.f32.mrb[0].mxu0
    %v3601 = vadd.f32 %v3248, %v3600
    %v3602 = vpop.f32.mrb[0].mxu0
    %v3603 = vadd.f32 %v3250, %v3602
    %v3604 = vpop.f32.mrb[0].mxu0
    %v3605 = vadd.f32 %v3252, %v3604
    %3606 = vmatprep.mubr.bf16.mxu0 %v976
    %3607 = vmatmul.mubr.bf16.gmra.mrb[0].mxu0 %v975
    %v3608 = vpop.f32.mrb[0].mxu0
    %v3609 = vadd.f32 %v3256, %v3608
    %v3610 = vpop.f32.mrb[0].mxu0
    %v3611 = vadd.f32 %v3258, %v3610
    %v3612 = vpop.f32.mrb[0].mxu0
    %v3613 = vadd.f32 %v3260, %v3612
    %v3614 = vpop.f32.mrb[0].mxu0
    %v3615 = vadd.f32 %v3262, %v3614
    %3616 = vdwg.mxu0
    %v3617 = vpack.c.bf16 %v3303, %v3299
    %v3618 = vpack.c.bf16 %v3305, %v3301
    %v3619 = vpack.c.bf16 %v3313, %v3309
    %v3620 = vpack.c.bf16 %v3315, %v3311
    %v3621 = vpack.c.bf16 %v3323, %v3319
    %v3622 = vpack.c.bf16 %v3325, %v3321
    %v3623 = vpack.c.bf16 %v3333, %v3329
    %v3624 = vpack.c.bf16 %v3335, %v3331
    %v3625 = vpack.c.bf16 %v3343, %v3339
    %v3626 = vpack.c.bf16 %v3345, %v3341
    %v3627 = vpack.c.bf16 %v3353, %v3349
    %v3628 = vpack.c.bf16 %v3355, %v3351
    %v3629 = vpack.c.bf16 %v3363, %v3359
    %v3630 = vpack.c.bf16 %v3365, %v3361
    %v3631 = vpack.c.bf16 %v3373, %v3369
    %v3632 = vpack.c.bf16 %v3375, %v3371
    %v3633 = vpack.c.bf16 %v3383, %v3379
    %v3634 = vpack.c.bf16 %v3385, %v3381
    %v3635 = vpack.c.bf16 %v3393, %v3389
    %v3636 = vpack.c.bf16 %v3395, %v3391
    %v3637 = vpack.c.bf16 %v3403, %v3399
    %v3638 = vpack.c.bf16 %v3405, %v3401
    %v3639 = vpack.c.bf16 %v3413, %v3409
    %v3640 = vpack.c.bf16 %v3415, %v3411
    %v3641 = vpack.c.bf16 %v3423, %v3419
    %v3642 = vpack.c.bf16 %v3425, %v3421
    %v3643 = vpack.c.bf16 %v3433, %v3429
    %v3644 = vpack.c.bf16 %v3435, %v3431
    %v3645 = vpack.c.bf16 %v3443, %v3439
    %v3646 = vpack.c.bf16 %v3445, %v3441
    %v3647 = vpack.c.bf16 %v3453, %v3449
    %v3648 = vpack.c.bf16 %v3455, %v3451
    %v3649 = vpack.c.bf16 %v3463, %v3459
    %v3650 = vpack.c.bf16 %v3465, %v3461
    %v3651 = vpack.c.bf16 %v3473, %v3469
    %v3652 = vpack.c.bf16 %v3475, %v3471
    %v3653 = vpack.c.bf16 %v3483, %v3479
    %v3654 = vpack.c.bf16 %v3485, %v3481
    %v3655 = vpack.c.bf16 %v3493, %v3489
    %v3656 = vpack.c.bf16 %v3495, %v3491
    %v3657 = vpack.c.bf16 %v3503, %v3499
    %v3658 = vpack.c.bf16 %v3505, %v3501
    %v3659 = vpack.c.bf16 %v3513, %v3509
    %v3660 = vpack.c.bf16 %v3515, %v3511
    %v3661 = vpack.c.bf16 %v3523, %v3519
    %v3662 = vpack.c.bf16 %v3525, %v3521
    %v3663 = vpack.c.bf16 %v3533, %v3529
    %v3664 = vpack.c.bf16 %v3535, %v3531
    %v3665 = vpack.c.bf16 %v3543, %v3539
    %v3666 = vpack.c.bf16 %v3545, %v3541
    %v3667 = vpack.c.bf16 %v3553, %v3549
    %v3668 = vpack.c.bf16 %v3555, %v3551
    %v3669 = vpack.c.bf16 %v3563, %v3559
    %v3670 = vpack.c.bf16 %v3565, %v3561
    %v3671 = vpack.c.bf16 %v3573, %v3569
    %v3672 = vpack.c.bf16 %v3575, %v3571
    %v3673 = vpack.c.bf16 %v3583, %v3579
    %v3674 = vpack.c.bf16 %v3585, %v3581
    %v3675 = vpack.c.bf16 %v3593, %v3589
    %v3676 = vpack.c.bf16 %v3595, %v3591
    %v3677 = vpack.c.bf16 %v3603, %v3599
    %v3678 = vpack.c.bf16 %v3605, %v3601
    %v3679 = vpack.c.bf16 %v3613, %v3609
    %v3680 = vpack.c.bf16 %v3615, %v3611
    %v3713 = vunpack.c.l.b16 %v239
    %v3714 = vunpack.c.h.b16 %v239
    %v3715 = vunpack.c.l.b16 %v240
    %v3716 = vunpack.c.h.b16 %v240
    %v3717 = vunpack.c.l.b16 %v241
    %v3718 = vunpack.c.h.b16 %v241
    %v3719 = vunpack.c.l.b16 %v242
    %v3720 = vunpack.c.h.b16 %v242
    %v3721 = vunpack.c.l.b16 %v243
    %v3722 = vunpack.c.h.b16 %v243
    %v3723 = vunpack.c.l.b16 %v244
    %v3724 = vunpack.c.h.b16 %v244
    %v3725 = vunpack.c.l.b16 %v245
    %v3726 = vunpack.c.h.b16 %v245
    %v3727 = vunpack.c.l.b16 %v246
    %v3728 = vunpack.c.h.b16 %v246
    %v3729 = vunpack.c.l.b16 %v247
    %v3730 = vunpack.c.h.b16 %v247
    %v3731 = vunpack.c.l.b16 %v248
    %v3732 = vunpack.c.h.b16 %v248
    %v3733 = vunpack.c.l.b16 %v249
    %v3734 = vunpack.c.h.b16 %v249
    %v3735 = vunpack.c.l.b16 %v250
    %v3736 = vunpack.c.h.b16 %v250
    %v3737 = vunpack.c.l.b16 %v251
    %v3738 = vunpack.c.h.b16 %v251
    %v3739 = vunpack.c.l.b16 %v252
    %v3740 = vunpack.c.h.b16 %v252
    %v3741 = vunpack.c.l.b16 %v253
    %v3742 = vunpack.c.h.b16 %v253
    %v3743 = vunpack.c.l.b16 %v254
    %v3744 = vunpack.c.h.b16 %v254
    %v3745 = vunpack.c.l.b16 %v255
    %v3746 = vunpack.c.h.b16 %v255
    %v3747 = vunpack.c.l.b16 %v256
    %v3748 = vunpack.c.h.b16 %v256
    %v3749 = vunpack.c.l.b16 %v257
    %v3750 = vunpack.c.h.b16 %v257
    %v3751 = vunpack.c.l.b16 %v258
    %v3752 = vunpack.c.h.b16 %v258
    %v3753 = vunpack.c.l.b16 %v259
    %v3754 = vunpack.c.h.b16 %v259
    %v3755 = vunpack.c.l.b16 %v260
    %v3756 = vunpack.c.h.b16 %v260
    %v3757 = vunpack.c.l.b16 %v261
    %v3758 = vunpack.c.h.b16 %v261
    %v3759 = vunpack.c.l.b16 %v262
    %v3760 = vunpack.c.h.b16 %v262
    %v3761 = vunpack.c.l.b16 %v263
    %v3762 = vunpack.c.h.b16 %v263
    %v3763 = vunpack.c.l.b16 %v264
    %v3764 = vunpack.c.h.b16 %v264
    %v3765 = vunpack.c.l.b16 %v265
    %v3766 = vunpack.c.h.b16 %v265
    %v3767 = vunpack.c.l.b16 %v266
    %v3768 = vunpack.c.h.b16 %v266
    %v3769 = vunpack.c.l.b16 %v267
    %v3770 = vunpack.c.h.b16 %v267
    %v3771 = vunpack.c.l.b16 %v268
    %v3772 = vunpack.c.h.b16 %v268
    %v3773 = vunpack.c.l.b16 %v269
    %v3774 = vunpack.c.h.b16 %v269
    %v3775 = vunpack.c.l.b16 %v270
    %v3776 = vunpack.c.h.b16 %v270
    %v3777 = vpack.c.b16 %v3715, %v3713
    %v3778 = vpack.c.b16 %v3716, %v3714
    %v3779 = vpack.c.b16 %v3719, %v3717
    %v3780 = vpack.c.b16 %v3720, %v3718
    %v3781 = vpack.c.b16 %v3723, %v3721
    %v3782 = vpack.c.b16 %v3724, %v3722
    %v3783 = vpack.c.b16 %v3727, %v3725
    %v3784 = vpack.c.b16 %v3728, %v3726
    %v3785 = vpack.c.b16 %v3731, %v3729
    %v3786 = vpack.c.b16 %v3732, %v3730
    %v3787 = vpack.c.b16 %v3735, %v3733
    %v3788 = vpack.c.b16 %v3736, %v3734
    %v3789 = vpack.c.b16 %v3739, %v3737
    %v3790 = vpack.c.b16 %v3740, %v3738
    %v3791 = vpack.c.b16 %v3743, %v3741
    %v3792 = vpack.c.b16 %v3744, %v3742
    %v3793 = vpack.c.b16 %v3747, %v3745
    %v3794 = vpack.c.b16 %v3748, %v3746
    %v3795 = vpack.c.b16 %v3751, %v3749
    %v3796 = vpack.c.b16 %v3752, %v3750
    %v3797 = vpack.c.b16 %v3755, %v3753
    %v3798 = vpack.c.b16 %v3756, %v3754
    %v3799 = vpack.c.b16 %v3759, %v3757
    %v3800 = vpack.c.b16 %v3760, %v3758
    %v3801 = vpack.c.b16 %v3763, %v3761
    %v3802 = vpack.c.b16 %v3764, %v3762
    %v3803 = vpack.c.b16 %v3767, %v3765
    %v3804 = vpack.c.b16 %v3768, %v3766
    %v3805 = vpack.c.b16 %v3771, %v3769
    %v3806 = vpack.c.b16 %v3772, %v3770
    %v3807 = vpack.c.b16 %v3775, %v3773
    %v3808 = vpack.c.b16 %v3776, %v3774
    %3841 = vmatprep.subr.bf16.mxu0 %v3778
    %3842 = vmatpush1.bf16.msra.mxu0 %v3777
    %3843 = vmatprep.subr.bf16.mxu0 %v3780
    %3844 = vmatpush1.bf16.msra.mxu0 %v3779
    %3845 = vmatprep.subr.bf16.mxu0 %v3782
    %3846 = vmatpush1.bf16.msra.mxu0 %v3781
    %3847 = vmatprep.subr.bf16.mxu0 %v3784
    %3848 = vmatpush1.bf16.msra.mxu0 %v3783
    %3849 = vmatprep.subr.bf16.mxu0 %v3786
    %3850 = vmatpush1.bf16.msra.mxu0 %v3785
    %3851 = vmatprep.subr.bf16.mxu0 %v3788
    %3852 = vmatpush1.bf16.msra.mxu0 %v3787
    %3853 = vmatprep.subr.bf16.mxu0 %v3790
    %3854 = vmatpush1.bf16.msra.mxu0 %v3789
    %3855 = vmatprep.subr.bf16.mxu0 %v3792
    %3856 = vmatpush1.bf16.msra.mxu0 %v3791
    %3857 = vmatprep.subr.bf16.mxu0 %v3794
    %3858 = vmatpush1.bf16.msra.mxu0 %v3793
    %3859 = vmatprep.subr.bf16.mxu0 %v3796
    %3860 = vmatpush1.bf16.msra.mxu0 %v3795
    %3861 = vmatprep.subr.bf16.mxu0 %v3798
    %3862 = vmatpush1.bf16.msra.mxu0 %v3797
    %3863 = vmatprep.subr.bf16.mxu0 %v3800
    %3864 = vmatpush1.bf16.msra.mxu0 %v3799
    %3865 = vmatprep.subr.bf16.mxu0 %v3802
    %3866 = vmatpush1.bf16.msra.mxu0 %v3801
    %3867 = vmatprep.subr.bf16.mxu0 %v3804
    %3868 = vmatpush1.bf16.msra.mxu0 %v3803
    %3869 = vmatprep.subr.bf16.mxu0 %v3806
    %3870 = vmatpush1.bf16.msra.mxu0 %v3805
    %3871 = vmatprep.subr.bf16.mxu0 %v3808
    %3872 = vmatpush1.bf16.msra.mxu0 %v3807
    %3873 = vmatprep.mubr.bf16.mxu0 %v3618
    %3874 = vmatmul.mubr.bf16.gmra.mrb[0].mxu0 %v3617
    %v3875 = vpop.f32.mrb[0].mxu0
    %v3876 = vadd.f32 0.0, %v3875
    %v3877 = vpop.f32.mrb[0].mxu0
    %v3878 = vadd.f32 0.0, %v3877
    %v3879 = vpop.f32.mrb[0].mxu0
    %v3880 = vadd.f32 0.0, %v3879
    %v3881 = vpop.f32.mrb[0].mxu0
    %v3882 = vadd.f32 0.0, %v3881
    %3883 = vmatprep.mubr.bf16.mxu0 %v3620
    %3884 = vmatmul.mubr.bf16.gmra.mrb[0].mxu0 %v3619
    %v3885 = vpop.f32.mrb[0].mxu0
    %v3886 = vadd.f32 0.0, %v3885
    %v3887 = vpop.f32.mrb[0].mxu0
    %v3888 = vadd.f32 0.0, %v3887
    %v3889 = vpop.f32.mrb[0].mxu0
    %v3890 = vadd.f32 0.0, %v3889
    %v3891 = vpop.f32.mrb[0].mxu0
    %v3892 = vadd.f32 0.0, %v3891
    %3893 = vmatprep.mubr.bf16.mxu0 %v3622
    %3894 = vmatmul.mubr.bf16.gmra.mrb[0].mxu0 %v3621
    %v3895 = vpop.f32.mrb[0].mxu0
    %v3896 = vadd.f32 0.0, %v3895
    %v3897 = vpop.f32.mrb[0].mxu0
    %v3898 = vadd.f32 0.0, %v3897
    %v3899 = vpop.f32.mrb[0].mxu0
    %v3900 = vadd.f32 0.0, %v3899
    %v3901 = vpop.f32.mrb[0].mxu0
    %v3902 = vadd.f32 0.0, %v3901
    %3903 = vmatprep.mubr.bf16.mxu0 %v3624
    %3904 = vmatmul.mubr.bf16.gmra.mrb[0].mxu0 %v3623
    %v3905 = vpop.f32.mrb[0].mxu0
    %v3906 = vadd.f32 0.0, %v3905
    %v3907 = vpop.f32.mrb[0].mxu0
    %v3908 = vadd.f32 0.0, %v3907
    %v3909 = vpop.f32.mrb[0].mxu0
    %v3910 = vadd.f32 0.0, %v3909
    %v3911 = vpop.f32.mrb[0].mxu0
    %v3912 = vadd.f32 0.0, %v3911
    %3913 = vmatprep.mubr.bf16.mxu0 %v3626
    %3914 = vmatmul.mubr.bf16.gmra.mrb[0].mxu0 %v3625
    %v3915 = vpop.f32.mrb[0].mxu0
    %v3916 = vadd.f32 0.0, %v3915
    %v3917 = vpop.f32.mrb[0].mxu0
    %v3918 = vadd.f32 0.0, %v3917
    %v3919 = vpop.f32.mrb[0].mxu0
    %v3920 = vadd.f32 0.0, %v3919
    %v3921 = vpop.f32.mrb[0].mxu0
    %v3922 = vadd.f32 0.0, %v3921
    %3923 = vmatprep.mubr.bf16.mxu0 %v3628
    %3924 = vmatmul.mubr.bf16.gmra.mrb[0].mxu0 %v3627
    %v3925 = vpop.f32.mrb[0].mxu0
    %v3926 = vadd.f32 0.0, %v3925
    %v3927 = vpop.f32.mrb[0].mxu0
    %v3928 = vadd.f32 0.0, %v3927
    %v3929 = vpop.f32.mrb[0].mxu0
    %v3930 = vadd.f32 0.0, %v3929
    %v3931 = vpop.f32.mrb[0].mxu0
    %v3932 = vadd.f32 0.0, %v3931
    %3933 = vmatprep.mubr.bf16.mxu0 %v3630
    %3934 = vmatmul.mubr.bf16.gmra.mrb[0].mxu0 %v3629
    %v3935 = vpop.f32.mrb[0].mxu0
    %v3936 = vadd.f32 0.0, %v3935
    %v3937 = vpop.f32.mrb[0].mxu0
    %v3938 = vadd.f32 0.0, %v3937
    %v3939 = vpop.f32.mrb[0].mxu0
    %v3940 = vadd.f32 0.0, %v3939
    %v3941 = vpop.f32.mrb[0].mxu0
    %v3942 = vadd.f32 0.0, %v3941
    %3943 = vmatprep.mubr.bf16.mxu0 %v3632
    %3944 = vmatmul.mubr.bf16.gmra.mrb[0].mxu0 %v3631
    %v3945 = vpop.f32.mrb[0].mxu0
    %v3946 = vadd.f32 0.0, %v3945
    %v3947 = vpop.f32.mrb[0].mxu0
    %v3948 = vadd.f32 0.0, %v3947
    %v3949 = vpop.f32.mrb[0].mxu0
    %v3950 = vadd.f32 0.0, %v3949
    %v3951 = vpop.f32.mrb[0].mxu0
    %v3952 = vadd.f32 0.0, %v3951
    %3953 = vmatprep.mubr.bf16.mxu0 %v3634
    %3954 = vmatmul.mubr.bf16.gmra.mrb[0].mxu0 %v3633
    %v3955 = vpop.f32.mrb[0].mxu0
    %v3956 = vadd.f32 0.0, %v3955
    %v3957 = vpop.f32.mrb[0].mxu0
    %v3958 = vadd.f32 0.0, %v3957
    %v3959 = vpop.f32.mrb[0].mxu0
    %v3960 = vadd.f32 0.0, %v3959
    %v3961 = vpop.f32.mrb[0].mxu0
    %v3962 = vadd.f32 0.0, %v3961
    %3963 = vmatprep.mubr.bf16.mxu0 %v3636
    %3964 = vmatmul.mubr.bf16.gmra.mrb[0].mxu0 %v3635
    %v3965 = vpop.f32.mrb[0].mxu0
    %v3966 = vadd.f32 0.0, %v3965
    %v3967 = vpop.f32.mrb[0].mxu0
    %v3968 = vadd.f32 0.0, %v3967
    %v3969 = vpop.f32.mrb[0].mxu0
    %v3970 = vadd.f32 0.0, %v3969
    %v3971 = vpop.f32.mrb[0].mxu0
    %v3972 = vadd.f32 0.0, %v3971
    %3973 = vmatprep.mubr.bf16.mxu0 %v3638
    %3974 = vmatmul.mubr.bf16.gmra.mrb[0].mxu0 %v3637
    %v3975 = vpop.f32.mrb[0].mxu0
    %v3976 = vadd.f32 0.0, %v3975
    %v3977 = vpop.f32.mrb[0].mxu0
    %v3978 = vadd.f32 0.0, %v3977
    %v3979 = vpop.f32.mrb[0].mxu0
    %v3980 = vadd.f32 0.0, %v3979
    %v3981 = vpop.f32.mrb[0].mxu0
    %v3982 = vadd.f32 0.0, %v3981
    %3983 = vmatprep.mubr.bf16.mxu0 %v3640
    %3984 = vmatmul.mubr.bf16.gmra.mrb[0].mxu0 %v3639
    %v3985 = vpop.f32.mrb[0].mxu0
    %v3986 = vadd.f32 0.0, %v3985
    %v3987 = vpop.f32.mrb[0].mxu0
    %v3988 = vadd.f32 0.0, %v3987
    %v3989 = vpop.f32.mrb[0].mxu0
    %v3990 = vadd.f32 0.0, %v3989
    %v3991 = vpop.f32.mrb[0].mxu0
    %v3992 = vadd.f32 0.0, %v3991
    %3993 = vmatprep.mubr.bf16.mxu0 %v3642
    %3994 = vmatmul.mubr.bf16.gmra.mrb[0].mxu0 %v3641
    %v3995 = vpop.f32.mrb[0].mxu0
    %v3996 = vadd.f32 0.0, %v3995
    %v3997 = vpop.f32.mrb[0].mxu0
    %v3998 = vadd.f32 0.0, %v3997
    %v3999 = vpop.f32.mrb[0].mxu0
    %v4000 = vadd.f32 0.0, %v3999
    %v4001 = vpop.f32.mrb[0].mxu0
    %v4002 = vadd.f32 0.0, %v4001
    %4003 = vmatprep.mubr.bf16.mxu0 %v3644
    %4004 = vmatmul.mubr.bf16.gmra.mrb[0].mxu0 %v3643
    %v4005 = vpop.f32.mrb[0].mxu0
    %v4006 = vadd.f32 0.0, %v4005
    %v4007 = vpop.f32.mrb[0].mxu0
    %v4008 = vadd.f32 0.0, %v4007
    %v4009 = vpop.f32.mrb[0].mxu0
    %v4010 = vadd.f32 0.0, %v4009
    %v4011 = vpop.f32.mrb[0].mxu0
    %v4012 = vadd.f32 0.0, %v4011
    %4013 = vmatprep.mubr.bf16.mxu0 %v3646
    %4014 = vmatmul.mubr.bf16.gmra.mrb[0].mxu0 %v3645
    %v4015 = vpop.f32.mrb[0].mxu0
    %v4016 = vadd.f32 0.0, %v4015
    %v4017 = vpop.f32.mrb[0].mxu0
    %v4018 = vadd.f32 0.0, %v4017
    %v4019 = vpop.f32.mrb[0].mxu0
    %v4020 = vadd.f32 0.0, %v4019
    %v4021 = vpop.f32.mrb[0].mxu0
    %v4022 = vadd.f32 0.0, %v4021
    %4023 = vmatprep.mubr.bf16.mxu0 %v3648
    %4024 = vmatmul.mubr.bf16.gmra.mrb[0].mxu0 %v3647
    %v4025 = vpop.f32.mrb[0].mxu0
    %v4026 = vadd.f32 0.0, %v4025
    %v4027 = vpop.f32.mrb[0].mxu0
    %v4028 = vadd.f32 0.0, %v4027
    %v4029 = vpop.f32.mrb[0].mxu0
    %v4030 = vadd.f32 0.0, %v4029
    %v4031 = vpop.f32.mrb[0].mxu0
    %v4032 = vadd.f32 0.0, %v4031
    %4033 = vmatprep.mubr.bf16.mxu0 %v3650
    %4034 = vmatmul.mubr.bf16.gmra.mrb[0].mxu0 %v3649
    %v4035 = vpop.f32.mrb[0].mxu0
    %v4036 = vadd.f32 0.0, %v4035
    %v4037 = vpop.f32.mrb[0].mxu0
    %v4038 = vadd.f32 0.0, %v4037
    %v4039 = vpop.f32.mrb[0].mxu0
    %v4040 = vadd.f32 0.0, %v4039
    %v4041 = vpop.f32.mrb[0].mxu0
    %v4042 = vadd.f32 0.0, %v4041
    %4043 = vmatprep.mubr.bf16.mxu0 %v3652
    %4044 = vmatmul.mubr.bf16.gmra.mrb[0].mxu0 %v3651
    %v4045 = vpop.f32.mrb[0].mxu0
    %v4046 = vadd.f32 0.0, %v4045
    %v4047 = vpop.f32.mrb[0].mxu0
    %v4048 = vadd.f32 0.0, %v4047
    %v4049 = vpop.f32.mrb[0].mxu0
    %v4050 = vadd.f32 0.0, %v4049
    %v4051 = vpop.f32.mrb[0].mxu0
    %v4052 = vadd.f32 0.0, %v4051
    %4053 = vmatprep.mubr.bf16.mxu0 %v3654
    %4054 = vmatmul.mubr.bf16.gmra.mrb[0].mxu0 %v3653
    %v4055 = vpop.f32.mrb[0].mxu0
    %v4056 = vadd.f32 0.0, %v4055
    %v4057 = vpop.f32.mrb[0].mxu0
    %v4058 = vadd.f32 0.0, %v4057
    %v4059 = vpop.f32.mrb[0].mxu0
    %v4060 = vadd.f32 0.0, %v4059
    %v4061 = vpop.f32.mrb[0].mxu0
    %v4062 = vadd.f32 0.0, %v4061
    %4063 = vmatprep.mubr.bf16.mxu0 %v3656
    %4064 = vmatmul.mubr.bf16.gmra.mrb[0].mxu0 %v3655
    %v4065 = vpop.f32.mrb[0].mxu0
    %v4066 = vadd.f32 0.0, %v4065
    %v4067 = vpop.f32.mrb[0].mxu0
    %v4068 = vadd.f32 0.0, %v4067
    %v4069 = vpop.f32.mrb[0].mxu0
    %v4070 = vadd.f32 0.0, %v4069
    %v4071 = vpop.f32.mrb[0].mxu0
    %v4072 = vadd.f32 0.0, %v4071
    %4073 = vmatprep.mubr.bf16.mxu0 %v3658
    %4074 = vmatmul.mubr.bf16.gmra.mrb[0].mxu0 %v3657
    %v4075 = vpop.f32.mrb[0].mxu0
    %v4076 = vadd.f32 0.0, %v4075
    %v4077 = vpop.f32.mrb[0].mxu0
    %v4078 = vadd.f32 0.0, %v4077
    %v4079 = vpop.f32.mrb[0].mxu0
    %v4080 = vadd.f32 0.0, %v4079
    %v4081 = vpop.f32.mrb[0].mxu0
    %v4082 = vadd.f32 0.0, %v4081
    %4083 = vmatprep.mubr.bf16.mxu0 %v3660
    %4084 = vmatmul.mubr.bf16.gmra.mrb[0].mxu0 %v3659
    %v4085 = vpop.f32.mrb[0].mxu0
    %v4086 = vadd.f32 0.0, %v4085
    %v4087 = vpop.f32.mrb[0].mxu0
    %v4088 = vadd.f32 0.0, %v4087
    %v4089 = vpop.f32.mrb[0].mxu0
    %v4090 = vadd.f32 0.0, %v4089
    %v4091 = vpop.f32.mrb[0].mxu0
    %v4092 = vadd.f32 0.0, %v4091
    %4093 = vmatprep.mubr.bf16.mxu0 %v3662
    %4094 = vmatmul.mubr.bf16.gmra.mrb[0].mxu0 %v3661
    %v4095 = vpop.f32.mrb[0].mxu0
    %v4096 = vadd.f32 0.0, %v4095
    %v4097 = vpop.f32.mrb[0].mxu0
    %v4098 = vadd.f32 0.0, %v4097
    %v4099 = vpop.f32.mrb[0].mxu0
    %v4100 = vadd.f32 0.0, %v4099
    %v4101 = vpop.f32.mrb[0].mxu0
    %v4102 = vadd.f32 0.0, %v4101
    %4103 = vmatprep.mubr.bf16.mxu0 %v3664
    %4104 = vmatmul.mubr.bf16.gmra.mrb[0].mxu0 %v3663
    %v4105 = vpop.f32.mrb[0].mxu0
    %v4106 = vadd.f32 0.0, %v4105
    %v4107 = vpop.f32.mrb[0].mxu0
    %v4108 = vadd.f32 0.0, %v4107
    %v4109 = vpop.f32.mrb[0].mxu0
    %v4110 = vadd.f32 0.0, %v4109
    %v4111 = vpop.f32.mrb[0].mxu0
    %v4112 = vadd.f32 0.0, %v4111
    %4113 = vmatprep.mubr.bf16.mxu0 %v3666
    %4114 = vmatmul.mubr.bf16.gmra.mrb[0].mxu0 %v3665
    %v4115 = vpop.f32.mrb[0].mxu0
    %v4116 = vadd.f32 0.0, %v4115
    %v4117 = vpop.f32.mrb[0].mxu0
    %v4118 = vadd.f32 0.0, %v4117
    %v4119 = vpop.f32.mrb[0].mxu0
    %v4120 = vadd.f32 0.0, %v4119
    %v4121 = vpop.f32.mrb[0].mxu0
    %v4122 = vadd.f32 0.0, %v4121
    %4123 = vmatprep.mubr.bf16.mxu0 %v3668
    %4124 = vmatmul.mubr.bf16.gmra.mrb[0].mxu0 %v3667
    %v4125 = vpop.f32.mrb[0].mxu0
    %v4126 = vadd.f32 0.0, %v4125
    %v4127 = vpop.f32.mrb[0].mxu0
    %v4128 = vadd.f32 0.0, %v4127
    %v4129 = vpop.f32.mrb[0].mxu0
    %v4130 = vadd.f32 0.0, %v4129
    %v4131 = vpop.f32.mrb[0].mxu0
    %v4132 = vadd.f32 0.0, %v4131
    %4133 = vmatprep.mubr.bf16.mxu0 %v3670
    %4134 = vmatmul.mubr.bf16.gmra.mrb[0].mxu0 %v3669
    %v4135 = vpop.f32.mrb[0].mxu0
    %v4136 = vadd.f32 0.0, %v4135
    %v4137 = vpop.f32.mrb[0].mxu0
    %v4138 = vadd.f32 0.0, %v4137
    %v4139 = vpop.f32.mrb[0].mxu0
    %v4140 = vadd.f32 0.0, %v4139
    %v4141 = vpop.f32.mrb[0].mxu0
    %v4142 = vadd.f32 0.0, %v4141
    %4143 = vmatprep.mubr.bf16.mxu0 %v3672
    %4144 = vmatmul.mubr.bf16.gmra.mrb[0].mxu0 %v3671
    %v4145 = vpop.f32.mrb[0].mxu0
    %v4146 = vadd.f32 0.0, %v4145
    %v4147 = vpop.f32.mrb[0].mxu0
    %v4148 = vadd.f32 0.0, %v4147
    %v4149 = vpop.f32.mrb[0].mxu0
    %v4150 = vadd.f32 0.0, %v4149
    %v4151 = vpop.f32.mrb[0].mxu0
    %v4152 = vadd.f32 0.0, %v4151
    %4153 = vmatprep.mubr.bf16.mxu0 %v3674
    %4154 = vmatmul.mubr.bf16.gmra.mrb[0].mxu0 %v3673
    %v4155 = vpop.f32.mrb[0].mxu0
    %v4156 = vadd.f32 0.0, %v4155
    %v4157 = vpop.f32.mrb[0].mxu0
    %v4158 = vadd.f32 0.0, %v4157
    %v4159 = vpop.f32.mrb[0].mxu0
    %v4160 = vadd.f32 0.0, %v4159
    %v4161 = vpop.f32.mrb[0].mxu0
    %v4162 = vadd.f32 0.0, %v4161
    %4163 = vmatprep.mubr.bf16.mxu0 %v3676
    %4164 = vmatmul.mubr.bf16.gmra.mrb[0].mxu0 %v3675
    %v4165 = vpop.f32.mrb[0].mxu0
    %v4166 = vadd.f32 0.0, %v4165
    %v4167 = vpop.f32.mrb[0].mxu0
    %v4168 = vadd.f32 0.0, %v4167
    %v4169 = vpop.f32.mrb[0].mxu0
    %v4170 = vadd.f32 0.0, %v4169
    %v4171 = vpop.f32.mrb[0].mxu0
    %v4172 = vadd.f32 0.0, %v4171
    %4173 = vmatprep.mubr.bf16.mxu0 %v3678
    %4174 = vmatmul.mubr.bf16.gmra.mrb[0].mxu0 %v3677
    %v4175 = vpop.f32.mrb[0].mxu0
    %v4176 = vadd.f32 0.0, %v4175
    %v4177 = vpop.f32.mrb[0].mxu0
    %v4178 = vadd.f32 0.0, %v4177
    %v4179 = vpop.f32.mrb[0].mxu0
    %v4180 = vadd.f32 0.0, %v4179
    %v4181 = vpop.f32.mrb[0].mxu0
    %v4182 = vadd.f32 0.0, %v4181
    %4183 = vmatprep.mubr.bf16.mxu0 %v3680
    %4184 = vmatmul.mubr.bf16.gmra.mrb[0].mxu0 %v3679
    %v4185 = vpop.f32.mrb[0].mxu0
    %v4186 = vadd.f32 0.0, %v4185
    %v4187 = vpop.f32.mrb[0].mxu0
    %v4188 = vadd.f32 0.0, %v4187
    %v4189 = vpop.f32.mrb[0].mxu0
    %v4190 = vadd.f32 0.0, %v4189
    %v4191 = vpop.f32.mrb[0].mxu0
    %v4192 = vadd.f32 0.0, %v4191
    %4193 = vdwg.mxu0
    %v4194 = vadd.f32 %v2401, %v3876
    %v4195 = vadd.f32 %v2403, %v3878
    %v4196 = vadd.f32 %v2405, %v3880
    %v4197 = vadd.f32 %v2407, %v3882
    %v4198 = vadd.f32 %v2411, %v3886
    %v4199 = vadd.f32 %v2413, %v3888
    %v4200 = vadd.f32 %v2415, %v3890
    %v4201 = vadd.f32 %v2417, %v3892
    %v4202 = vadd.f32 %v2421, %v3896
    %v4203 = vadd.f32 %v2423, %v3898
    %v4204 = vadd.f32 %v2425, %v3900
    %v4205 = vadd.f32 %v2427, %v3902
    %v4206 = vadd.f32 %v2431, %v3906
    %v4207 = vadd.f32 %v2433, %v3908
    %v4208 = vadd.f32 %v2435, %v3910
    %v4209 = vadd.f32 %v2437, %v3912
    %v4210 = vadd.f32 %v2441, %v3916
    %v4211 = vadd.f32 %v2443, %v3918
    %v4212 = vadd.f32 %v2445, %v3920
    %v4213 = vadd.f32 %v2447, %v3922
    %v4214 = vadd.f32 %v2451, %v3926
    %v4215 = vadd.f32 %v2453, %v3928
    %v4216 = vadd.f32 %v2455, %v3930
    %v4217 = vadd.f32 %v2457, %v3932
    %v4218 = vadd.f32 %v2461, %v3936
    %v4219 = vadd.f32 %v2463, %v3938
    %v4220 = vadd.f32 %v2465, %v3940
    %v4221 = vadd.f32 %v2467, %v3942
    %v4222 = vadd.f32 %v2471, %v3946
    %v4223 = vadd.f32 %v2473, %v3948
    %v4224 = vadd.f32 %v2475, %v3950
    %v4225 = vadd.f32 %v2477, %v3952
    %v4226 = vadd.f32 %v2481, %v3956
    %v4227 = vadd.f32 %v2483, %v3958
    %v4228 = vadd.f32 %v2485, %v3960
    %v4229 = vadd.f32 %v2487, %v3962
    %v4230 = vadd.f32 %v2491, %v3966
    %v4231 = vadd.f32 %v2493, %v3968
    %v4232 = vadd.f32 %v2495, %v3970
    %v4233 = vadd.f32 %v2497, %v3972
    %v4234 = vadd.f32 %v2501, %v3976
    %v4235 = vadd.f32 %v2503, %v3978
    %v4236 = vadd.f32 %v2505, %v3980
    %v4237 = vadd.f32 %v2507, %v3982
    %v4238 = vadd.f32 %v2511, %v3986
    %v4239 = vadd.f32 %v2513, %v3988
    %v4240 = vadd.f32 %v2515, %v3990
    %v4241 = vadd.f32 %v2517, %v3992
    %v4242 = vadd.f32 %v2521, %v3996
    %v4243 = vadd.f32 %v2523, %v3998
    %v4244 = vadd.f32 %v2525, %v4000
    %v4245 = vadd.f32 %v2527, %v4002
    %v4246 = vadd.f32 %v2531, %v4006
    %v4247 = vadd.f32 %v2533, %v4008
    %v4248 = vadd.f32 %v2535, %v4010
    %v4249 = vadd.f32 %v2537, %v4012
    %v4250 = vadd.f32 %v2541, %v4016
    %v4251 = vadd.f32 %v2543, %v4018
    %v4252 = vadd.f32 %v2545, %v4020
    %v4253 = vadd.f32 %v2547, %v4022
    %v4254 = vadd.f32 %v2551, %v4026
    %v4255 = vadd.f32 %v2553, %v4028
    %v4256 = vadd.f32 %v2555, %v4030
    %v4257 = vadd.f32 %v2557, %v4032
    %v4258 = vadd.f32 %v2561, %v4036
    %v4259 = vadd.f32 %v2563, %v4038
    %v4260 = vadd.f32 %v2565, %v4040
    %v4261 = vadd.f32 %v2567, %v4042
    %v4262 = vadd.f32 %v2571, %v4046
    %v4263 = vadd.f32 %v2573, %v4048
    %v4264 = vadd.f32 %v2575, %v4050
    %v4265 = vadd.f32 %v2577, %v4052
    %v4266 = vadd.f32 %v2581, %v4056
    %v4267 = vadd.f32 %v2583, %v4058
    %v4268 = vadd.f32 %v2585, %v4060
    %v4269 = vadd.f32 %v2587, %v4062
    %v4270 = vadd.f32 %v2591, %v4066
    %v4271 = vadd.f32 %v2593, %v4068
    %v4272 = vadd.f32 %v2595, %v4070
    %v4273 = vadd.f32 %v2597, %v4072
    %v4274 = vadd.f32 %v2601, %v4076
    %v4275 = vadd.f32 %v2603, %v4078
    %v4276 = vadd.f32 %v2605, %v4080
    %v4277 = vadd.f32 %v2607, %v4082
    %v4278 = vadd.f32 %v2611, %v4086
    %v4279 = vadd.f32 %v2613, %v4088
    %v4280 = vadd.f32 %v2615, %v4090
    %v4281 = vadd.f32 %v2617, %v4092
    %v4282 = vadd.f32 %v2621, %v4096
    %v4283 = vadd.f32 %v2623, %v4098
    %v4284 = vadd.f32 %v2625, %v4100
    %v4285 = vadd.f32 %v2627, %v4102
    %v4286 = vadd.f32 %v2631, %v4106
    %v4287 = vadd.f32 %v2633, %v4108
    %v4288 = vadd.f32 %v2635, %v4110
    %v4289 = vadd.f32 %v2637, %v4112
    %v4290 = vadd.f32 %v2641, %v4116
    %v4291 = vadd.f32 %v2643, %v4118
    %v4292 = vadd.f32 %v2645, %v4120
    %v4293 = vadd.f32 %v2647, %v4122
    %v4294 = vadd.f32 %v2651, %v4126
    %v4295 = vadd.f32 %v2653, %v4128
    %v4296 = vadd.f32 %v2655, %v4130
    %v4297 = vadd.f32 %v2657, %v4132
    %v4298 = vadd.f32 %v2661, %v4136
    %v4299 = vadd.f32 %v2663, %v4138
    %v4300 = vadd.f32 %v2665, %v4140
    %v4301 = vadd.f32 %v2667, %v4142
    %v4302 = vadd.f32 %v2671, %v4146
    %v4303 = vadd.f32 %v2673, %v4148
    %v4304 = vadd.f32 %v2675, %v4150
    %v4305 = vadd.f32 %v2677, %v4152
    %v4306 = vadd.f32 %v2681, %v4156
    %v4307 = vadd.f32 %v2683, %v4158
    %v4308 = vadd.f32 %v2685, %v4160
    %v4309 = vadd.f32 %v2687, %v4162
    %v4310 = vadd.f32 %v2691, %v4166
    %v4311 = vadd.f32 %v2693, %v4168
    %v4312 = vadd.f32 %v2695, %v4170
    %v4313 = vadd.f32 %v2697, %v4172
    %v4314 = vadd.f32 %v2701, %v4176
    %v4315 = vadd.f32 %v2703, %v4178
    %v4316 = vadd.f32 %v2705, %v4180
    %v4317 = vadd.f32 %v2707, %v4182
    %v4318 = vadd.f32 %v2711, %v4186
    %v4319 = vadd.f32 %v2713, %v4188
    %v4320 = vadd.f32 %v2715, %v4190
    %v4321 = vadd.f32 %v2717, %v4192
    %v4323 = vlaneseq
    %v4324 = vshrl.u32 %v4323, 7
    %v4325 = vsub.s32 0, %v4324
    %v4326 = vrot.slane %v272, %v4325
    %v4327 = vlaneseq
    %v4328 = vshrl.u32 %v4327, 7
    %v4329 = vsub.s32 1, %v4328
    %v4330 = vrot.slane %v272, %v4329
    %v4333 = vadd.f32 %v4194, %v4326
    %v4334 = vadd.f32 %v4195, %v4330
    %v4335 = vadd.f32 %v4196, %v4326
    %v4336 = vadd.f32 %v4197, %v4330
    %v4337 = vadd.f32 %v4198, %v4326
    %v4338 = vadd.f32 %v4199, %v4330
    %v4339 = vadd.f32 %v4200, %v4326
    %v4340 = vadd.f32 %v4201, %v4330
    %v4341 = vadd.f32 %v4202, %v4326
    %v4342 = vadd.f32 %v4203, %v4330
    %v4343 = vadd.f32 %v4204, %v4326
    %v4344 = vadd.f32 %v4205, %v4330
    %v4345 = vadd.f32 %v4206, %v4326
    %v4346 = vadd.f32 %v4207, %v4330
    %v4347 = vadd.f32 %v4208, %v4326
    %v4348 = vadd.f32 %v4209, %v4330
    %v4349 = vadd.f32 %v4210, %v4326
    %v4350 = vadd.f32 %v4211, %v4330
    %v4351 = vadd.f32 %v4212, %v4326
    %v4352 = vadd.f32 %v4213, %v4330
    %v4353 = vadd.f32 %v4214, %v4326
    %v4354 = vadd.f32 %v4215, %v4330
    %v4355 = vadd.f32 %v4216, %v4326
    %v4356 = vadd.f32 %v4217, %v4330
    %v4357 = vadd.f32 %v4218, %v4326
    %v4358 = vadd.f32 %v4219, %v4330
    %v4359 = vadd.f32 %v4220, %v4326
    %v4360 = vadd.f32 %v4221, %v4330
    %v4361 = vadd.f32 %v4222, %v4326
    %v4362 = vadd.f32 %v4223, %v4330
    %v4363 = vadd.f32 %v4224, %v4326
    %v4364 = vadd.f32 %v4225, %v4330
    %v4365 = vadd.f32 %v4226, %v4326
    %v4366 = vadd.f32 %v4227, %v4330
    %v4367 = vadd.f32 %v4228, %v4326
    %v4368 = vadd.f32 %v4229, %v4330
    %v4369 = vadd.f32 %v4230, %v4326
    %v4370 = vadd.f32 %v4231, %v4330
    %v4371 = vadd.f32 %v4232, %v4326
    %v4372 = vadd.f32 %v4233, %v4330
    %v4373 = vadd.f32 %v4234, %v4326
    %v4374 = vadd.f32 %v4235, %v4330
    %v4375 = vadd.f32 %v4236, %v4326
    %v4376 = vadd.f32 %v4237, %v4330
    %v4377 = vadd.f32 %v4238, %v4326
    %v4378 = vadd.f32 %v4239, %v4330
    %v4379 = vadd.f32 %v4240, %v4326
    %v4380 = vadd.f32 %v4241, %v4330
    %v4381 = vadd.f32 %v4242, %v4326
    %v4382 = vadd.f32 %v4243, %v4330
    %v4383 = vadd.f32 %v4244, %v4326
    %v4384 = vadd.f32 %v4245, %v4330
    %v4385 = vadd.f32 %v4246, %v4326
    %v4386 = vadd.f32 %v4247, %v4330
    %v4387 = vadd.f32 %v4248, %v4326
    %v4388 = vadd.f32 %v4249, %v4330
    %v4389 = vadd.f32 %v4250, %v4326
    %v4390 = vadd.f32 %v4251, %v4330
    %v4391 = vadd.f32 %v4252, %v4326
    %v4392 = vadd.f32 %v4253, %v4330
    %v4393 = vadd.f32 %v4254, %v4326
    %v4394 = vadd.f32 %v4255, %v4330
    %v4395 = vadd.f32 %v4256, %v4326
    %v4396 = vadd.f32 %v4257, %v4330
    %v4397 = vadd.f32 %v4258, %v4326
    %v4398 = vadd.f32 %v4259, %v4330
    %v4399 = vadd.f32 %v4260, %v4326
    %v4400 = vadd.f32 %v4261, %v4330
    %v4401 = vadd.f32 %v4262, %v4326
    %v4402 = vadd.f32 %v4263, %v4330
    %v4403 = vadd.f32 %v4264, %v4326
    %v4404 = vadd.f32 %v4265, %v4330
    %v4405 = vadd.f32 %v4266, %v4326
    %v4406 = vadd.f32 %v4267, %v4330
    %v4407 = vadd.f32 %v4268, %v4326
    %v4408 = vadd.f32 %v4269, %v4330
    %v4409 = vadd.f32 %v4270, %v4326
    %v4410 = vadd.f32 %v4271, %v4330
    %v4411 = vadd.f32 %v4272, %v4326
    %v4412 = vadd.f32 %v4273, %v4330
    %v4413 = vadd.f32 %v4274, %v4326
    %v4414 = vadd.f32 %v4275, %v4330
    %v4415 = vadd.f32 %v4276, %v4326
    %v4416 = vadd.f32 %v4277, %v4330
    %v4417 = vadd.f32 %v4278, %v4326
    %v4418 = vadd.f32 %v4279, %v4330
    %v4419 = vadd.f32 %v4280, %v4326
    %v4420 = vadd.f32 %v4281, %v4330
    %v4421 = vadd.f32 %v4282, %v4326
    %v4422 = vadd.f32 %v4283, %v4330
    %v4423 = vadd.f32 %v4284, %v4326
    %v4424 = vadd.f32 %v4285, %v4330
    %v4425 = vadd.f32 %v4286, %v4326
    %v4426 = vadd.f32 %v4287, %v4330
    %v4427 = vadd.f32 %v4288, %v4326
    %v4428 = vadd.f32 %v4289, %v4330
    %v4429 = vadd.f32 %v4290, %v4326
    %v4430 = vadd.f32 %v4291, %v4330
    %v4431 = vadd.f32 %v4292, %v4326
    %v4432 = vadd.f32 %v4293, %v4330
    %v4433 = vadd.f32 %v4294, %v4326
    %v4434 = vadd.f32 %v4295, %v4330
    %v4435 = vadd.f32 %v4296, %v4326
    %v4436 = vadd.f32 %v4297, %v4330
    %v4437 = vadd.f32 %v4298, %v4326
    %v4438 = vadd.f32 %v4299, %v4330
    %v4439 = vadd.f32 %v4300, %v4326
    %v4440 = vadd.f32 %v4301, %v4330
    %v4441 = vadd.f32 %v4302, %v4326
    %v4442 = vadd.f32 %v4303, %v4330
    %v4443 = vadd.f32 %v4304, %v4326
    %v4444 = vadd.f32 %v4305, %v4330
    %v4445 = vadd.f32 %v4306, %v4326
    %v4446 = vadd.f32 %v4307, %v4330
    %v4447 = vadd.f32 %v4308, %v4326
    %v4448 = vadd.f32 %v4309, %v4330
    %v4449 = vadd.f32 %v4310, %v4326
    %v4450 = vadd.f32 %v4311, %v4330
    %v4451 = vadd.f32 %v4312, %v4326
    %v4452 = vadd.f32 %v4313, %v4330
    %v4453 = vadd.f32 %v4314, %v4326
    %v4454 = vadd.f32 %v4315, %v4330
    %v4455 = vadd.f32 %v4316, %v4326
    %v4456 = vadd.f32 %v4317, %v4330
    %v4457 = vadd.f32 %v4318, %v4326
    %v4458 = vadd.f32 %v4319, %v4330
    %v4459 = vadd.f32 %v4320, %v4326
    %v4460 = vadd.f32 %v4321, %v4330
    %vm4461 = vcmp.gt.f32.partialorder %v4333, 0.0
    %vm4462 = vcmp.gt.f32.partialorder %v4334, 0.0
    %vm4463 = vcmp.gt.f32.partialorder %v4335, 0.0
    %vm4464 = vcmp.gt.f32.partialorder %v4336, 0.0
    %vm4465 = vcmp.gt.f32.partialorder %v4337, 0.0
    %vm4466 = vcmp.gt.f32.partialorder %v4338, 0.0
    %vm4467 = vcmp.gt.f32.partialorder %v4339, 0.0
    %vm4468 = vcmp.gt.f32.partialorder %v4340, 0.0
    %vm4469 = vcmp.gt.f32.partialorder %v4341, 0.0
    %vm4470 = vcmp.gt.f32.partialorder %v4342, 0.0
    %vm4471 = vcmp.gt.f32.partialorder %v4343, 0.0
    %vm4472 = vcmp.gt.f32.partialorder %v4344, 0.0
    %vm4473 = vcmp.gt.f32.partialorder %v4345, 0.0
    %vm4474 = vcmp.gt.f32.partialorder %v4346, 0.0
    %vm4475 = vcmp.gt.f32.partialorder %v4347, 0.0
    %vm4476 = vcmp.gt.f32.partialorder %v4348, 0.0
    %vm4477 = vcmp.gt.f32.partialorder %v4349, 0.0
    %vm4478 = vcmp.gt.f32.partialorder %v4350, 0.0
    %vm4479 = vcmp.gt.f32.partialorder %v4351, 0.0
    %vm4480 = vcmp.gt.f32.partialorder %v4352, 0.0
    %vm4481 = vcmp.gt.f32.partialorder %v4353, 0.0
    %vm4482 = vcmp.gt.f32.partialorder %v4354, 0.0
    %vm4483 = vcmp.gt.f32.partialorder %v4355, 0.0
    %vm4484 = vcmp.gt.f32.partialorder %v4356, 0.0
    %vm4485 = vcmp.gt.f32.partialorder %v4357, 0.0
    %vm4486 = vcmp.gt.f32.partialorder %v4358, 0.0
    %vm4487 = vcmp.gt.f32.partialorder %v4359, 0.0
    %vm4488 = vcmp.gt.f32.partialorder %v4360, 0.0
    %vm4489 = vcmp.gt.f32.partialorder %v4361, 0.0
    %vm4490 = vcmp.gt.f32.partialorder %v4362, 0.0
    %vm4491 = vcmp.gt.f32.partialorder %v4363, 0.0
    %vm4492 = vcmp.gt.f32.partialorder %v4364, 0.0
    %vm4493 = vcmp.gt.f32.partialorder %v4365, 0.0
    %vm4494 = vcmp.gt.f32.partialorder %v4366, 0.0
    %vm4495 = vcmp.gt.f32.partialorder %v4367, 0.0
    %vm4496 = vcmp.gt.f32.partialorder %v4368, 0.0
    %vm4497 = vcmp.gt.f32.partialorder %v4369, 0.0
    %vm4498 = vcmp.gt.f32.partialorder %v4370, 0.0
    %vm4499 = vcmp.gt.f32.partialorder %v4371, 0.0
    %vm4500 = vcmp.gt.f32.partialorder %v4372, 0.0
    %vm4501 = vcmp.gt.f32.partialorder %v4373, 0.0
    %vm4502 = vcmp.gt.f32.partialorder %v4374, 0.0
    %vm4503 = vcmp.gt.f32.partialorder %v4375, 0.0
    %vm4504 = vcmp.gt.f32.partialorder %v4376, 0.0
    %vm4505 = vcmp.gt.f32.partialorder %v4377, 0.0
    %vm4506 = vcmp.gt.f32.partialorder %v4378, 0.0
    %vm4507 = vcmp.gt.f32.partialorder %v4379, 0.0
    %vm4508 = vcmp.gt.f32.partialorder %v4380, 0.0
    %vm4509 = vcmp.gt.f32.partialorder %v4381, 0.0
    %vm4510 = vcmp.gt.f32.partialorder %v4382, 0.0
    %vm4511 = vcmp.gt.f32.partialorder %v4383, 0.0
    %vm4512 = vcmp.gt.f32.partialorder %v4384, 0.0
    %vm4513 = vcmp.gt.f32.partialorder %v4385, 0.0
    %vm4514 = vcmp.gt.f32.partialorder %v4386, 0.0
    %vm4515 = vcmp.gt.f32.partialorder %v4387, 0.0
    %vm4516 = vcmp.gt.f32.partialorder %v4388, 0.0
    %vm4517 = vcmp.gt.f32.partialorder %v4389, 0.0
    %vm4518 = vcmp.gt.f32.partialorder %v4390, 0.0
    %vm4519 = vcmp.gt.f32.partialorder %v4391, 0.0
    %vm4520 = vcmp.gt.f32.partialorder %v4392, 0.0
    %vm4521 = vcmp.gt.f32.partialorder %v4393, 0.0
    %vm4522 = vcmp.gt.f32.partialorder %v4394, 0.0
    %vm4523 = vcmp.gt.f32.partialorder %v4395, 0.0
    %vm4524 = vcmp.gt.f32.partialorder %v4396, 0.0
    %vm4525 = vcmp.gt.f32.partialorder %v4397, 0.0
    %vm4526 = vcmp.gt.f32.partialorder %v4398, 0.0
    %vm4527 = vcmp.gt.f32.partialorder %v4399, 0.0
    %vm4528 = vcmp.gt.f32.partialorder %v4400, 0.0
    %vm4529 = vcmp.gt.f32.partialorder %v4401, 0.0
    %vm4530 = vcmp.gt.f32.partialorder %v4402, 0.0
    %vm4531 = vcmp.gt.f32.partialorder %v4403, 0.0
    %vm4532 = vcmp.gt.f32.partialorder %v4404, 0.0
    %vm4533 = vcmp.gt.f32.partialorder %v4405, 0.0
    %vm4534 = vcmp.gt.f32.partialorder %v4406, 0.0
    %vm4535 = vcmp.gt.f32.partialorder %v4407, 0.0
    %vm4536 = vcmp.gt.f32.partialorder %v4408, 0.0
    %vm4537 = vcmp.gt.f32.partialorder %v4409, 0.0
    %vm4538 = vcmp.gt.f32.partialorder %v4410, 0.0
    %vm4539 = vcmp.gt.f32.partialorder %v4411, 0.0
    %vm4540 = vcmp.gt.f32.partialorder %v4412, 0.0
    %vm4541 = vcmp.gt.f32.partialorder %v4413, 0.0
    %vm4542 = vcmp.gt.f32.partialorder %v4414, 0.0
    %vm4543 = vcmp.gt.f32.partialorder %v4415, 0.0
    %vm4544 = vcmp.gt.f32.partialorder %v4416, 0.0
    %vm4545 = vcmp.gt.f32.partialorder %v4417, 0.0
    %vm4546 = vcmp.gt.f32.partialorder %v4418, 0.0
    %vm4547 = vcmp.gt.f32.partialorder %v4419, 0.0
    %vm4548 = vcmp.gt.f32.partialorder %v4420, 0.0
    %vm4549 = vcmp.gt.f32.partialorder %v4421, 0.0
    %vm4550 = vcmp.gt.f32.partialorder %v4422, 0.0
    %vm4551 = vcmp.gt.f32.partialorder %v4423, 0.0
    %vm4552 = vcmp.gt.f32.partialorder %v4424, 0.0
    %vm4553 = vcmp.gt.f32.partialorder %v4425, 0.0
    %vm4554 = vcmp.gt.f32.partialorder %v4426, 0.0
    %vm4555 = vcmp.gt.f32.partialorder %v4427, 0.0
    %vm4556 = vcmp.gt.f32.partialorder %v4428, 0.0
    %vm4557 = vcmp.gt.f32.partialorder %v4429, 0.0
    %vm4558 = vcmp.gt.f32.partialorder %v4430, 0.0
    %vm4559 = vcmp.gt.f32.partialorder %v4431, 0.0
    %vm4560 = vcmp.gt.f32.partialorder %v4432, 0.0
    %vm4561 = vcmp.gt.f32.partialorder %v4433, 0.0
    %vm4562 = vcmp.gt.f32.partialorder %v4434, 0.0
    %vm4563 = vcmp.gt.f32.partialorder %v4435, 0.0
    %vm4564 = vcmp.gt.f32.partialorder %v4436, 0.0
    %vm4565 = vcmp.gt.f32.partialorder %v4437, 0.0
    %vm4566 = vcmp.gt.f32.partialorder %v4438, 0.0
    %vm4567 = vcmp.gt.f32.partialorder %v4439, 0.0
    %vm4568 = vcmp.gt.f32.partialorder %v4440, 0.0
    %vm4569 = vcmp.gt.f32.partialorder %v4441, 0.0
    %vm4570 = vcmp.gt.f32.partialorder %v4442, 0.0
    %vm4571 = vcmp.gt.f32.partialorder %v4443, 0.0
    %vm4572 = vcmp.gt.f32.partialorder %v4444, 0.0
    %vm4573 = vcmp.gt.f32.partialorder %v4445, 0.0
    %vm4574 = vcmp.gt.f32.partialorder %v4446, 0.0
    %vm4575 = vcmp.gt.f32.partialorder %v4447, 0.0
    %vm4576 = vcmp.gt.f32.partialorder %v4448, 0.0
    %vm4577 = vcmp.gt.f32.partialorder %v4449, 0.0
    %vm4578 = vcmp.gt.f32.partialorder %v4450, 0.0
    %vm4579 = vcmp.gt.f32.partialorder %v4451, 0.0
    %vm4580 = vcmp.gt.f32.partialorder %v4452, 0.0
    %vm4581 = vcmp.gt.f32.partialorder %v4453, 0.0
    %vm4582 = vcmp.gt.f32.partialorder %v4454, 0.0
    %vm4583 = vcmp.gt.f32.partialorder %v4455, 0.0
    %vm4584 = vcmp.gt.f32.partialorder %v4456, 0.0
    %vm4585 = vcmp.gt.f32.partialorder %v4457, 0.0
    %vm4586 = vcmp.gt.f32.partialorder %v4458, 0.0
    %vm4587 = vcmp.gt.f32.partialorder %v4459, 0.0
    %vm4588 = vcmp.gt.f32.partialorder %v4460, 0.0
    %v4589 = vmin.f32 %v4333, 0.0
    %v4590 = vmin.f32 %v4334, 0.0
    %v4591 = vmin.f32 %v4335, 0.0
    %v4592 = vmin.f32 %v4336, 0.0
    %v4593 = vmin.f32 %v4337, 0.0
    %v4594 = vmin.f32 %v4338, 0.0
    %v4595 = vmin.f32 %v4339, 0.0
    %v4596 = vmin.f32 %v4340, 0.0
    %v4597 = vmin.f32 %v4341, 0.0
    %v4598 = vmin.f32 %v4342, 0.0
    %v4599 = vmin.f32 %v4343, 0.0
    %v4600 = vmin.f32 %v4344, 0.0
    %v4601 = vmin.f32 %v4345, 0.0
    %v4602 = vmin.f32 %v4346, 0.0
    %v4603 = vmin.f32 %v4347, 0.0
    %v4604 = vmin.f32 %v4348, 0.0
    %v4605 = vmin.f32 %v4349, 0.0
    %v4606 = vmin.f32 %v4350, 0.0
    %v4607 = vmin.f32 %v4351, 0.0
    %v4608 = vmin.f32 %v4352, 0.0
    %v4609 = vmin.f32 %v4353, 0.0
    %v4610 = vmin.f32 %v4354, 0.0
    %v4611 = vmin.f32 %v4355, 0.0
    %v4612 = vmin.f32 %v4356, 0.0
    %v4613 = vmin.f32 %v4357, 0.0
    %v4614 = vmin.f32 %v4358, 0.0
    %v4615 = vmin.f32 %v4359, 0.0
    %v4616 = vmin.f32 %v4360, 0.0
    %v4617 = vmin.f32 %v4361, 0.0
    %v4618 = vmin.f32 %v4362, 0.0
    %v4619 = vmin.f32 %v4363, 0.0
    %v4620 = vmin.f32 %v4364, 0.0
    %v4621 = vmin.f32 %v4365, 0.0
    %v4622 = vmin.f32 %v4366, 0.0
    %v4623 = vmin.f32 %v4367, 0.0
    %v4624 = vmin.f32 %v4368, 0.0
    %v4625 = vmin.f32 %v4369, 0.0
    %v4626 = vmin.f32 %v4370, 0.0
    %v4627 = vmin.f32 %v4371, 0.0
    %v4628 = vmin.f32 %v4372, 0.0
    %v4629 = vmin.f32 %v4373, 0.0
    %v4630 = vmin.f32 %v4374, 0.0
    %v4631 = vmin.f32 %v4375, 0.0
    %v4632 = vmin.f32 %v4376, 0.0
    %v4633 = vmin.f32 %v4377, 0.0
    %v4634 = vmin.f32 %v4378, 0.0
    %v4635 = vmin.f32 %v4379, 0.0
    %v4636 = vmin.f32 %v4380, 0.0
    %v4637 = vmin.f32 %v4381, 0.0
    %v4638 = vmin.f32 %v4382, 0.0
    %v4639 = vmin.f32 %v4383, 0.0
    %v4640 = vmin.f32 %v4384, 0.0
    %v4641 = vmin.f32 %v4385, 0.0
    %v4642 = vmin.f32 %v4386, 0.0
    %v4643 = vmin.f32 %v4387, 0.0
    %v4644 = vmin.f32 %v4388, 0.0
    %v4645 = vmin.f32 %v4389, 0.0
    %v4646 = vmin.f32 %v4390, 0.0
    %v4647 = vmin.f32 %v4391, 0.0
    %v4648 = vmin.f32 %v4392, 0.0
    %v4649 = vmin.f32 %v4393, 0.0
    %v4650 = vmin.f32 %v4394, 0.0
    %v4651 = vmin.f32 %v4395, 0.0
    %v4652 = vmin.f32 %v4396, 0.0
    %v4653 = vmin.f32 %v4397, 0.0
    %v4654 = vmin.f32 %v4398, 0.0
    %v4655 = vmin.f32 %v4399, 0.0
    %v4656 = vmin.f32 %v4400, 0.0
    %v4657 = vmin.f32 %v4401, 0.0
    %v4658 = vmin.f32 %v4402, 0.0
    %v4659 = vmin.f32 %v4403, 0.0
    %v4660 = vmin.f32 %v4404, 0.0
    %v4661 = vmin.f32 %v4405, 0.0
    %v4662 = vmin.f32 %v4406, 0.0
    %v4663 = vmin.f32 %v4407, 0.0
    %v4664 = vmin.f32 %v4408, 0.0
    %v4665 = vmin.f32 %v4409, 0.0
    %v4666 = vmin.f32 %v4410, 0.0
    %v4667 = vmin.f32 %v4411, 0.0
    %v4668 = vmin.f32 %v4412, 0.0
    %v4669 = vmin.f32 %v4413, 0.0
    %v4670 = vmin.f32 %v4414, 0.0
    %v4671 = vmin.f32 %v4415, 0.0
    %v4672 = vmin.f32 %v4416, 0.0
    %v4673 = vmin.f32 %v4417, 0.0
    %v4674 = vmin.f32 %v4418, 0.0
    %v4675 = vmin.f32 %v4419, 0.0
    %v4676 = vmin.f32 %v4420, 0.0
    %v4677 = vmin.f32 %v4421, 0.0
    %v4678 = vmin.f32 %v4422, 0.0
    %v4679 = vmin.f32 %v4423, 0.0
    %v4680 = vmin.f32 %v4424, 0.0
    %v4681 = vmin.f32 %v4425, 0.0
    %v4682 = vmin.f32 %v4426, 0.0
    %v4683 = vmin.f32 %v4427, 0.0
    %v4684 = vmin.f32 %v4428, 0.0
    %v4685 = vmin.f32 %v4429, 0.0
    %v4686 = vmin.f32 %v4430, 0.0
    %v4687 = vmin.f32 %v4431, 0.0
    %v4688 = vmin.f32 %v4432, 0.0
    %v4689 = vmin.f32 %v4433, 0.0
    %v4690 = vmin.f32 %v4434, 0.0
    %v4691 = vmin.f32 %v4435, 0.0
    %v4692 = vmin.f32 %v4436, 0.0
    %v4693 = vmin.f32 %v4437, 0.0
    %v4694 = vmin.f32 %v4438, 0.0
    %v4695 = vmin.f32 %v4439, 0.0
    %v4696 = vmin.f32 %v4440, 0.0
    %v4697 = vmin.f32 %v4441, 0.0
    %v4698 = vmin.f32 %v4442, 0.0
    %v4699 = vmin.f32 %v4443, 0.0
    %v4700 = vmin.f32 %v4444, 0.0
    %v4701 = vmin.f32 %v4445, 0.0
    %v4702 = vmin.f32 %v4446, 0.0
    %v4703 = vmin.f32 %v4447, 0.0
    %v4704 = vmin.f32 %v4448, 0.0
    %v4705 = vmin.f32 %v4449, 0.0
    %v4706 = vmin.f32 %v4450, 0.0
    %v4707 = vmin.f32 %v4451, 0.0
    %v4708 = vmin.f32 %v4452, 0.0
    %v4709 = vmin.f32 %v4453, 0.0
    %v4710 = vmin.f32 %v4454, 0.0
    %v4711 = vmin.f32 %v4455, 0.0
    %v4712 = vmin.f32 %v4456, 0.0
    %v4713 = vmin.f32 %v4457, 0.0
    %v4714 = vmin.f32 %v4458, 0.0
    %v4715 = vmin.f32 %v4459, 0.0
    %v4716 = vmin.f32 %v4460, 0.0
    %v4717 = vmul.f32 %v4589, 1.442695
    %v4718 = vpow.pop %v4717
    %v4719 = vmul.f32 %v4590, 1.442695
    %v4720 = vpow.pop %v4719
    %v4721 = vmul.f32 %v4591, 1.442695
    %v4722 = vpow.pop %v4721
    %v4723 = vmul.f32 %v4592, 1.442695
    %v4724 = vpow.pop %v4723
    %v4725 = vmul.f32 %v4593, 1.442695
    %v4726 = vpow.pop %v4725
    %v4727 = vmul.f32 %v4594, 1.442695
    %v4728 = vpow.pop %v4727
    %v4729 = vmul.f32 %v4595, 1.442695
    %v4730 = vpow.pop %v4729
    %v4731 = vmul.f32 %v4596, 1.442695
    %v4732 = vpow.pop %v4731
    %v4733 = vmul.f32 %v4597, 1.442695
    %v4734 = vpow.pop %v4733
    %v4735 = vmul.f32 %v4598, 1.442695
    %v4736 = vpow.pop %v4735
    %v4737 = vmul.f32 %v4599, 1.442695
    %v4738 = vpow.pop %v4737
    %v4739 = vmul.f32 %v4600, 1.442695
    %v4740 = vpow.pop %v4739
    %v4741 = vmul.f32 %v4601, 1.442695
    %v4742 = vpow.pop %v4741
    %v4743 = vmul.f32 %v4602, 1.442695
    %v4744 = vpow.pop %v4743
    %v4745 = vmul.f32 %v4603, 1.442695
    %v4746 = vpow.pop %v4745
    %v4747 = vmul.f32 %v4604, 1.442695
    %v4748 = vpow.pop %v4747
    %v4749 = vmul.f32 %v4605, 1.442695
    %v4750 = vpow.pop %v4749
    %v4751 = vmul.f32 %v4606, 1.442695
    %v4752 = vpow.pop %v4751
    %v4753 = vmul.f32 %v4607, 1.442695
    %v4754 = vpow.pop %v4753
    %v4755 = vmul.f32 %v4608, 1.442695
    %v4756 = vpow.pop %v4755
    %v4757 = vmul.f32 %v4609, 1.442695
    %v4758 = vpow.pop %v4757
    %v4759 = vmul.f32 %v4610, 1.442695
    %v4760 = vpow.pop %v4759
    %v4761 = vmul.f32 %v4611, 1.442695
    %v4762 = vpow.pop %v4761
    %v4763 = vmul.f32 %v4612, 1.442695
    %v4764 = vpow.pop %v4763
    %v4765 = vmul.f32 %v4613, 1.442695
    %v4766 = vpow.pop %v4765
    %v4767 = vmul.f32 %v4614, 1.442695
    %v4768 = vpow.pop %v4767
    %v4769 = vmul.f32 %v4615, 1.442695
    %v4770 = vpow.pop %v4769
    %v4771 = vmul.f32 %v4616, 1.442695
    %v4772 = vpow.pop %v4771
    %v4773 = vmul.f32 %v4617, 1.442695
    %v4774 = vpow.pop %v4773
    %v4775 = vmul.f32 %v4618, 1.442695
    %v4776 = vpow.pop %v4775
    %v4777 = vmul.f32 %v4619, 1.442695
    %v4778 = vpow.pop %v4777
    %v4779 = vmul.f32 %v4620, 1.442695
    %v4780 = vpow.pop %v4779
    %v4781 = vmul.f32 %v4621, 1.442695
    %v4782 = vpow.pop %v4781
    %v4783 = vmul.f32 %v4622, 1.442695
    %v4784 = vpow.pop %v4783
    %v4785 = vmul.f32 %v4623, 1.442695
    %v4786 = vpow.pop %v4785
    %v4787 = vmul.f32 %v4624, 1.442695
    %v4788 = vpow.pop %v4787
    %v4789 = vmul.f32 %v4625, 1.442695
    %v4790 = vpow.pop %v4789
    %v4791 = vmul.f32 %v4626, 1.442695
    %v4792 = vpow.pop %v4791
    %v4793 = vmul.f32 %v4627, 1.442695
    %v4794 = vpow.pop %v4793
    %v4795 = vmul.f32 %v4628, 1.442695
    %v4796 = vpow.pop %v4795
    %v4797 = vmul.f32 %v4629, 1.442695
    %v4798 = vpow.pop %v4797
    %v4799 = vmul.f32 %v4630, 1.442695
    %v4800 = vpow.pop %v4799
    %v4801 = vmul.f32 %v4631, 1.442695
    %v4802 = vpow.pop %v4801
    %v4803 = vmul.f32 %v4632, 1.442695
    %v4804 = vpow.pop %v4803
    %v4805 = vmul.f32 %v4633, 1.442695
    %v4806 = vpow.pop %v4805
    %v4807 = vmul.f32 %v4634, 1.442695
    %v4808 = vpow.pop %v4807
    %v4809 = vmul.f32 %v4635, 1.442695
    %v4810 = vpow.pop %v4809
    %v4811 = vmul.f32 %v4636, 1.442695
    %v4812 = vpow.pop %v4811
    %v4813 = vmul.f32 %v4637, 1.442695
    %v4814 = vpow.pop %v4813
    %v4815 = vmul.f32 %v4638, 1.442695
    %v4816 = vpow.pop %v4815
    %v4817 = vmul.f32 %v4639, 1.442695
    %v4818 = vpow.pop %v4817
    %v4819 = vmul.f32 %v4640, 1.442695
    %v4820 = vpow.pop %v4819
    %v4821 = vmul.f32 %v4641, 1.442695
    %v4822 = vpow.pop %v4821
    %v4823 = vmul.f32 %v4642, 1.442695
    %v4824 = vpow.pop %v4823
    %v4825 = vmul.f32 %v4643, 1.442695
    %v4826 = vpow.pop %v4825
    %v4827 = vmul.f32 %v4644, 1.442695
    %v4828 = vpow.pop %v4827
    %v4829 = vmul.f32 %v4645, 1.442695
    %v4830 = vpow.pop %v4829
    %v4831 = vmul.f32 %v4646, 1.442695
    %v4832 = vpow.pop %v4831
    %v4833 = vmul.f32 %v4647, 1.442695
    %v4834 = vpow.pop %v4833
    %v4835 = vmul.f32 %v4648, 1.442695
    %v4836 = vpow.pop %v4835
    %v4837 = vmul.f32 %v4649, 1.442695
    %v4838 = vpow.pop %v4837
    %v4839 = vmul.f32 %v4650, 1.442695
    %v4840 = vpow.pop %v4839
    %v4841 = vmul.f32 %v4651, 1.442695
    %v4842 = vpow.pop %v4841
    %v4843 = vmul.f32 %v4652, 1.442695
    %v4844 = vpow.pop %v4843
    %v4845 = vmul.f32 %v4653, 1.442695
    %v4846 = vpow.pop %v4845
    %v4847 = vmul.f32 %v4654, 1.442695
    %v4848 = vpow.pop %v4847
    %v4849 = vmul.f32 %v4655, 1.442695
    %v4850 = vpow.pop %v4849
    %v4851 = vmul.f32 %v4656, 1.442695
    %v4852 = vpow.pop %v4851
    %v4853 = vmul.f32 %v4657, 1.442695
    %v4854 = vpow.pop %v4853
    %v4855 = vmul.f32 %v4658, 1.442695
    %v4856 = vpow.pop %v4855
    %v4857 = vmul.f32 %v4659, 1.442695
    %v4858 = vpow.pop %v4857
    %v4859 = vmul.f32 %v4660, 1.442695
    %v4860 = vpow.pop %v4859
    %v4861 = vmul.f32 %v4661, 1.442695
    %v4862 = vpow.pop %v4861
    %v4863 = vmul.f32 %v4662, 1.442695
    %v4864 = vpow.pop %v4863
    %v4865 = vmul.f32 %v4663, 1.442695
    %v4866 = vpow.pop %v4865
    %v4867 = vmul.f32 %v4664, 1.442695
    %v4868 = vpow.pop %v4867
    %v4869 = vmul.f32 %v4665, 1.442695
    %v4870 = vpow.pop %v4869
    %v4871 = vmul.f32 %v4666, 1.442695
    %v4872 = vpow.pop %v4871
    %v4873 = vmul.f32 %v4667, 1.442695
    %v4874 = vpow.pop %v4873
    %v4875 = vmul.f32 %v4668, 1.442695
    %v4876 = vpow.pop %v4875
    %v4877 = vmul.f32 %v4669, 1.442695
    %v4878 = vpow.pop %v4877
    %v4879 = vmul.f32 %v4670, 1.442695
    %v4880 = vpow.pop %v4879
    %v4881 = vmul.f32 %v4671, 1.442695
    %v4882 = vpow.pop %v4881
    %v4883 = vmul.f32 %v4672, 1.442695
    %v4884 = vpow.pop %v4883
    %v4885 = vmul.f32 %v4673, 1.442695
    %v4886 = vpow.pop %v4885
    %v4887 = vmul.f32 %v4674, 1.442695
    %v4888 = vpow.pop %v4887
    %v4889 = vmul.f32 %v4675, 1.442695
    %v4890 = vpow.pop %v4889
    %v4891 = vmul.f32 %v4676, 1.442695
    %v4892 = vpow.pop %v4891
    %v4893 = vmul.f32 %v4677, 1.442695
    %v4894 = vpow.pop %v4893
    %v4895 = vmul.f32 %v4678, 1.442695
    %v4896 = vpow.pop %v4895
    %v4897 = vmul.f32 %v4679, 1.442695
    %v4898 = vpow.pop %v4897
    %v4899 = vmul.f32 %v4680, 1.442695
    %v4900 = vpow.pop %v4899
    %v4901 = vmul.f32 %v4681, 1.442695
    %v4902 = vpow.pop %v4901
    %v4903 = vmul.f32 %v4682, 1.442695
    %v4904 = vpow.pop %v4903
    %v4905 = vmul.f32 %v4683, 1.442695
    %v4906 = vpow.pop %v4905
    %v4907 = vmul.f32 %v4684, 1.442695
    %v4908 = vpow.pop %v4907
    %v4909 = vmul.f32 %v4685, 1.442695
    %v4910 = vpow.pop %v4909
    %v4911 = vmul.f32 %v4686, 1.442695
    %v4912 = vpow.pop %v4911
    %v4913 = vmul.f32 %v4687, 1.442695
    %v4914 = vpow.pop %v4913
    %v4915 = vmul.f32 %v4688, 1.442695
    %v4916 = vpow.pop %v4915
    %v4917 = vmul.f32 %v4689, 1.442695
    %v4918 = vpow.pop %v4917
    %v4919 = vmul.f32 %v4690, 1.442695
    %v4920 = vpow.pop %v4919
    %v4921 = vmul.f32 %v4691, 1.442695
    %v4922 = vpow.pop %v4921
    %v4923 = vmul.f32 %v4692, 1.442695
    %v4924 = vpow.pop %v4923
    %v4925 = vmul.f32 %v4693, 1.442695
    %v4926 = vpow.pop %v4925
    %v4927 = vmul.f32 %v4694, 1.442695
    %v4928 = vpow.pop %v4927
    %v4929 = vmul.f32 %v4695, 1.442695
    %v4930 = vpow.pop %v4929
    %v4931 = vmul.f32 %v4696, 1.442695
    %v4932 = vpow.pop %v4931
    %v4933 = vmul.f32 %v4697, 1.442695
    %v4934 = vpow.pop %v4933
    %v4935 = vmul.f32 %v4698, 1.442695
    %v4936 = vpow.pop %v4935
    %v4937 = vmul.f32 %v4699, 1.442695
    %v4938 = vpow.pop %v4937
    %v4939 = vmul.f32 %v4700, 1.442695
    %v4940 = vpow.pop %v4939
    %v4941 = vmul.f32 %v4701, 1.442695
    %v4942 = vpow.pop %v4941
    %v4943 = vmul.f32 %v4702, 1.442695
    %v4944 = vpow.pop %v4943
    %v4945 = vmul.f32 %v4703, 1.442695
    %v4946 = vpow.pop %v4945
    %v4947 = vmul.f32 %v4704, 1.442695
    %v4948 = vpow.pop %v4947
    %v4949 = vmul.f32 %v4705, 1.442695
    %v4950 = vpow.pop %v4949
    %v4951 = vmul.f32 %v4706, 1.442695
    %v4952 = vpow.pop %v4951
    %v4953 = vmul.f32 %v4707, 1.442695
    %v4954 = vpow.pop %v4953
    %v4955 = vmul.f32 %v4708, 1.442695
    %v4956 = vpow.pop %v4955
    %v4957 = vmul.f32 %v4709, 1.442695
    %v4958 = vpow.pop %v4957
    %v4959 = vmul.f32 %v4710, 1.442695
    %v4960 = vpow.pop %v4959
    %v4961 = vmul.f32 %v4711, 1.442695
    %v4962 = vpow.pop %v4961
    %v4963 = vmul.f32 %v4712, 1.442695
    %v4964 = vpow.pop %v4963
    %v4965 = vmul.f32 %v4713, 1.442695
    %v4966 = vpow.pop %v4965
    %v4967 = vmul.f32 %v4714, 1.442695
    %v4968 = vpow.pop %v4967
    %v4969 = vmul.f32 %v4715, 1.442695
    %v4970 = vpow.pop %v4969
    %v4971 = vmul.f32 %v4716, 1.442695
    %v4972 = vpow.pop %v4971
    %v4973 = vsub.f32 %v4718, 1.0
    %v4974 = vsub.f32 %v4720, 1.0
    %v4975 = vsub.f32 %v4722, 1.0
    %v4976 = vsub.f32 %v4724, 1.0
    %v4977 = vsub.f32 %v4726, 1.0
    %v4978 = vsub.f32 %v4728, 1.0
    %v4979 = vsub.f32 %v4730, 1.0
    %v4980 = vsub.f32 %v4732, 1.0
    %v4981 = vsub.f32 %v4734, 1.0
    %v4982 = vsub.f32 %v4736, 1.0
    %v4983 = vsub.f32 %v4738, 1.0
    %v4984 = vsub.f32 %v4740, 1.0
    %v4985 = vsub.f32 %v4742, 1.0
    %v4986 = vsub.f32 %v4744, 1.0
    %v4987 = vsub.f32 %v4746, 1.0
    %v4988 = vsub.f32 %v4748, 1.0
    %v4989 = vsub.f32 %v4750, 1.0
    %v4990 = vsub.f32 %v4752, 1.0
    %v4991 = vsub.f32 %v4754, 1.0
    %v4992 = vsub.f32 %v4756, 1.0
    %v4993 = vsub.f32 %v4758, 1.0
    %v4994 = vsub.f32 %v4760, 1.0
    %v4995 = vsub.f32 %v4762, 1.0
    %v4996 = vsub.f32 %v4764, 1.0
    %v4997 = vsub.f32 %v4766, 1.0
    %v4998 = vsub.f32 %v4768, 1.0
    %v4999 = vsub.f32 %v4770, 1.0
    %v5000 = vsub.f32 %v4772, 1.0
    %v5001 = vsub.f32 %v4774, 1.0
    %v5002 = vsub.f32 %v4776, 1.0
    %v5003 = vsub.f32 %v4778, 1.0
    %v5004 = vsub.f32 %v4780, 1.0
    %v5005 = vsub.f32 %v4782, 1.0
    %v5006 = vsub.f32 %v4784, 1.0
    %v5007 = vsub.f32 %v4786, 1.0
    %v5008 = vsub.f32 %v4788, 1.0
    %v5009 = vsub.f32 %v4790, 1.0
    %v5010 = vsub.f32 %v4792, 1.0
    %v5011 = vsub.f32 %v4794, 1.0
    %v5012 = vsub.f32 %v4796, 1.0
    %v5013 = vsub.f32 %v4798, 1.0
    %v5014 = vsub.f32 %v4800, 1.0
    %v5015 = vsub.f32 %v4802, 1.0
    %v5016 = vsub.f32 %v4804, 1.0
    %v5017 = vsub.f32 %v4806, 1.0
    %v5018 = vsub.f32 %v4808, 1.0
    %v5019 = vsub.f32 %v4810, 1.0
    %v5020 = vsub.f32 %v4812, 1.0
    %v5021 = vsub.f32 %v4814, 1.0
    %v5022 = vsub.f32 %v4816, 1.0
    %v5023 = vsub.f32 %v4818, 1.0
    %v5024 = vsub.f32 %v4820, 1.0
    %v5025 = vsub.f32 %v4822, 1.0
    %v5026 = vsub.f32 %v4824, 1.0
    %v5027 = vsub.f32 %v4826, 1.0
    %v5028 = vsub.f32 %v4828, 1.0
    %v5029 = vsub.f32 %v4830, 1.0
    %v5030 = vsub.f32 %v4832, 1.0
    %v5031 = vsub.f32 %v4834, 1.0
    %v5032 = vsub.f32 %v4836, 1.0
    %v5033 = vsub.f32 %v4838, 1.0
    %v5034 = vsub.f32 %v4840, 1.0
    %v5035 = vsub.f32 %v4842, 1.0
    %v5036 = vsub.f32 %v4844, 1.0
    %v5037 = vsub.f32 %v4846, 1.0
    %v5038 = vsub.f32 %v4848, 1.0
    %v5039 = vsub.f32 %v4850, 1.0
    %v5040 = vsub.f32 %v4852, 1.0
    %v5041 = vsub.f32 %v4854, 1.0
    %v5042 = vsub.f32 %v4856, 1.0
    %v5043 = vsub.f32 %v4858, 1.0
    %v5044 = vsub.f32 %v4860, 1.0
    %v5045 = vsub.f32 %v4862, 1.0
    %v5046 = vsub.f32 %v4864, 1.0
    %v5047 = vsub.f32 %v4866, 1.0
    %v5048 = vsub.f32 %v4868, 1.0
    %v5049 = vsub.f32 %v4870, 1.0
    %v5050 = vsub.f32 %v4872, 1.0
    %v5051 = vsub.f32 %v4874, 1.0
    %v5052 = vsub.f32 %v4876, 1.0
    %v5053 = vsub.f32 %v4878, 1.0
    %v5054 = vsub.f32 %v4880, 1.0
    %v5055 = vsub.f32 %v4882, 1.0
    %v5056 = vsub.f32 %v4884, 1.0
    %v5057 = vsub.f32 %v4886, 1.0
    %v5058 = vsub.f32 %v4888, 1.0
    %v5059 = vsub.f32 %v4890, 1.0
    %v5060 = vsub.f32 %v4892, 1.0
    %v5061 = vsub.f32 %v4894, 1.0
    %v5062 = vsub.f32 %v4896, 1.0
    %v5063 = vsub.f32 %v4898, 1.0
    %v5064 = vsub.f32 %v4900, 1.0
    %v5065 = vsub.f32 %v4902, 1.0
    %v5066 = vsub.f32 %v4904, 1.0
    %v5067 = vsub.f32 %v4906, 1.0
    %v5068 = vsub.f32 %v4908, 1.0
    %v5069 = vsub.f32 %v4910, 1.0
    %v5070 = vsub.f32 %v4912, 1.0
    %v5071 = vsub.f32 %v4914, 1.0
    %v5072 = vsub.f32 %v4916, 1.0
    %v5073 = vsub.f32 %v4918, 1.0
    %v5074 = vsub.f32 %v4920, 1.0
    %v5075 = vsub.f32 %v4922, 1.0
    %v5076 = vsub.f32 %v4924, 1.0
    %v5077 = vsub.f32 %v4926, 1.0
    %v5078 = vsub.f32 %v4928, 1.0
    %v5079 = vsub.f32 %v4930, 1.0
    %v5080 = vsub.f32 %v4932, 1.0
    %v5081 = vsub.f32 %v4934, 1.0
    %v5082 = vsub.f32 %v4936, 1.0
    %v5083 = vsub.f32 %v4938, 1.0
    %v5084 = vsub.f32 %v4940, 1.0
    %v5085 = vsub.f32 %v4942, 1.0
    %v5086 = vsub.f32 %v4944, 1.0
    %v5087 = vsub.f32 %v4946, 1.0
    %v5088 = vsub.f32 %v4948, 1.0
    %v5089 = vsub.f32 %v4950, 1.0
    %v5090 = vsub.f32 %v4952, 1.0
    %v5091 = vsub.f32 %v4954, 1.0
    %v5092 = vsub.f32 %v4956, 1.0
    %v5093 = vsub.f32 %v4958, 1.0
    %v5094 = vsub.f32 %v4960, 1.0
    %v5095 = vsub.f32 %v4962, 1.0
    %v5096 = vsub.f32 %v4964, 1.0
    %v5097 = vsub.f32 %v4966, 1.0
    %v5098 = vsub.f32 %v4968, 1.0
    %v5099 = vsub.f32 %v4970, 1.0
    %v5100 = vsub.f32 %v4972, 1.0
    %v5101 = vsel %vm4461, %v4333, %v4973
    %v5102 = vsel %vm4462, %v4334, %v4974
    %v5103 = vsel %vm4463, %v4335, %v4975
    %v5104 = vsel %vm4464, %v4336, %v4976
    %v5105 = vsel %vm4465, %v4337, %v4977
    %v5106 = vsel %vm4466, %v4338, %v4978
    %v5107 = vsel %vm4467, %v4339, %v4979
    %v5108 = vsel %vm4468, %v4340, %v4980
    %v5109 = vsel %vm4469, %v4341, %v4981
    %v5110 = vsel %vm4470, %v4342, %v4982
    %v5111 = vsel %vm4471, %v4343, %v4983
    %v5112 = vsel %vm4472, %v4344, %v4984
    %v5113 = vsel %vm4473, %v4345, %v4985
    %v5114 = vsel %vm4474, %v4346, %v4986
    %v5115 = vsel %vm4475, %v4347, %v4987
    %v5116 = vsel %vm4476, %v4348, %v4988
    %v5117 = vsel %vm4477, %v4349, %v4989
    %v5118 = vsel %vm4478, %v4350, %v4990
    %v5119 = vsel %vm4479, %v4351, %v4991
    %v5120 = vsel %vm4480, %v4352, %v4992
    %v5121 = vsel %vm4481, %v4353, %v4993
    %v5122 = vsel %vm4482, %v4354, %v4994
    %v5123 = vsel %vm4483, %v4355, %v4995
    %v5124 = vsel %vm4484, %v4356, %v4996
    %v5125 = vsel %vm4485, %v4357, %v4997
    %v5126 = vsel %vm4486, %v4358, %v4998
    %v5127 = vsel %vm4487, %v4359, %v4999
    %v5128 = vsel %vm4488, %v4360, %v5000
    %v5129 = vsel %vm4489, %v4361, %v5001
    %v5130 = vsel %vm4490, %v4362, %v5002
    %v5131 = vsel %vm4491, %v4363, %v5003
    %v5132 = vsel %vm4492, %v4364, %v5004
    %v5133 = vsel %vm4493, %v4365, %v5005
    %v5134 = vsel %vm4494, %v4366, %v5006
    %v5135 = vsel %vm4495, %v4367, %v5007
    %v5136 = vsel %vm4496, %v4368, %v5008
    %v5137 = vsel %vm4497, %v4369, %v5009
    %v5138 = vsel %vm4498, %v4370, %v5010
    %v5139 = vsel %vm4499, %v4371, %v5011
    %v5140 = vsel %vm4500, %v4372, %v5012
    %v5141 = vsel %vm4501, %v4373, %v5013
    %v5142 = vsel %vm4502, %v4374, %v5014
    %v5143 = vsel %vm4503, %v4375, %v5015
    %v5144 = vsel %vm4504, %v4376, %v5016
    %v5145 = vsel %vm4505, %v4377, %v5017
    %v5146 = vsel %vm4506, %v4378, %v5018
    %v5147 = vsel %vm4507, %v4379, %v5019
    %v5148 = vsel %vm4508, %v4380, %v5020
    %v5149 = vsel %vm4509, %v4381, %v5021
    %v5150 = vsel %vm4510, %v4382, %v5022
    %v5151 = vsel %vm4511, %v4383, %v5023
    %v5152 = vsel %vm4512, %v4384, %v5024
    %v5153 = vsel %vm4513, %v4385, %v5025
    %v5154 = vsel %vm4514, %v4386, %v5026
    %v5155 = vsel %vm4515, %v4387, %v5027
    %v5156 = vsel %vm4516, %v4388, %v5028
    %v5157 = vsel %vm4517, %v4389, %v5029
    %v5158 = vsel %vm4518, %v4390, %v5030
    %v5159 = vsel %vm4519, %v4391, %v5031
    %v5160 = vsel %vm4520, %v4392, %v5032
    %v5161 = vsel %vm4521, %v4393, %v5033
    %v5162 = vsel %vm4522, %v4394, %v5034
    %v5163 = vsel %vm4523, %v4395, %v5035
    %v5164 = vsel %vm4524, %v4396, %v5036
    %v5165 = vsel %vm4525, %v4397, %v5037
    %v5166 = vsel %vm4526, %v4398, %v5038
    %v5167 = vsel %vm4527, %v4399, %v5039
    %v5168 = vsel %vm4528, %v4400, %v5040
    %v5169 = vsel %vm4529, %v4401, %v5041
    %v5170 = vsel %vm4530, %v4402, %v5042
    %v5171 = vsel %vm4531, %v4403, %v5043
    %v5172 = vsel %vm4532, %v4404, %v5044
    %v5173 = vsel %vm4533, %v4405, %v5045
    %v5174 = vsel %vm4534, %v4406, %v5046
    %v5175 = vsel %vm4535, %v4407, %v5047
    %v5176 = vsel %vm4536, %v4408, %v5048
    %v5177 = vsel %vm4537, %v4409, %v5049
    %v5178 = vsel %vm4538, %v4410, %v5050
    %v5179 = vsel %vm4539, %v4411, %v5051
    %v5180 = vsel %vm4540, %v4412, %v5052
    %v5181 = vsel %vm4541, %v4413, %v5053
    %v5182 = vsel %vm4542, %v4414, %v5054
    %v5183 = vsel %vm4543, %v4415, %v5055
    %v5184 = vsel %vm4544, %v4416, %v5056
    %v5185 = vsel %vm4545, %v4417, %v5057
    %v5186 = vsel %vm4546, %v4418, %v5058
    %v5187 = vsel %vm4547, %v4419, %v5059
    %v5188 = vsel %vm4548, %v4420, %v5060
    %v5189 = vsel %vm4549, %v4421, %v5061
    %v5190 = vsel %vm4550, %v4422, %v5062
    %v5191 = vsel %vm4551, %v4423, %v5063
    %v5192 = vsel %vm4552, %v4424, %v5064
    %v5193 = vsel %vm4553, %v4425, %v5065
    %v5194 = vsel %vm4554, %v4426, %v5066
    %v5195 = vsel %vm4555, %v4427, %v5067
    %v5196 = vsel %vm4556, %v4428, %v5068
    %v5197 = vsel %vm4557, %v4429, %v5069
    %v5198 = vsel %vm4558, %v4430, %v5070
    %v5199 = vsel %vm4559, %v4431, %v5071
    %v5200 = vsel %vm4560, %v4432, %v5072
    %v5201 = vsel %vm4561, %v4433, %v5073
    %v5202 = vsel %vm4562, %v4434, %v5074
    %v5203 = vsel %vm4563, %v4435, %v5075
    %v5204 = vsel %vm4564, %v4436, %v5076
    %v5205 = vsel %vm4565, %v4437, %v5077
    %v5206 = vsel %vm4566, %v4438, %v5078
    %v5207 = vsel %vm4567, %v4439, %v5079
    %v5208 = vsel %vm4568, %v4440, %v5080
    %v5209 = vsel %vm4569, %v4441, %v5081
    %v5210 = vsel %vm4570, %v4442, %v5082
    %v5211 = vsel %vm4571, %v4443, %v5083
    %v5212 = vsel %vm4572, %v4444, %v5084
    %v5213 = vsel %vm4573, %v4445, %v5085
    %v5214 = vsel %vm4574, %v4446, %v5086
    %v5215 = vsel %vm4575, %v4447, %v5087
    %v5216 = vsel %vm4576, %v4448, %v5088
    %v5217 = vsel %vm4577, %v4449, %v5089
    %v5218 = vsel %vm4578, %v4450, %v5090
    %v5219 = vsel %vm4579, %v4451, %v5091
    %v5220 = vsel %vm4580, %v4452, %v5092
    %v5221 = vsel %vm4581, %v4453, %v5093
    %v5222 = vsel %vm4582, %v4454, %v5094
    %v5223 = vsel %vm4583, %v4455, %v5095
    %v5224 = vsel %vm4584, %v4456, %v5096
    %v5225 = vsel %vm4585, %v4457, %v5097
    %v5226 = vsel %vm4586, %v4458, %v5098
    %v5227 = vsel %vm4587, %v4459, %v5099
    %v5228 = vsel %vm4588, %v4460, %v5100
    %v5229 = vpack.c.bf16 %v5103, %v5101
    %v5230 = vpack.c.bf16 %v5104, %v5102
    %v5231 = vpack.c.bf16 %v5107, %v5105
    %v5232 = vpack.c.bf16 %v5108, %v5106
    %v5233 = vpack.c.bf16 %v5111, %v5109
    %v5234 = vpack.c.bf16 %v5112, %v5110
    %v5235 = vpack.c.bf16 %v5115, %v5113
    %v5236 = vpack.c.bf16 %v5116, %v5114
    %v5237 = vpack.c.bf16 %v5119, %v5117
    %v5238 = vpack.c.bf16 %v5120, %v5118
    %v5239 = vpack.c.bf16 %v5123, %v5121
    %v5240 = vpack.c.bf16 %v5124, %v5122
    %v5241 = vpack.c.bf16 %v5127, %v5125
    %v5242 = vpack.c.bf16 %v5128, %v5126
    %v5243 = vpack.c.bf16 %v5131, %v5129
    %v5244 = vpack.c.bf16 %v5132, %v5130
    %v5245 = vpack.c.bf16 %v5135, %v5133
    %v5246 = vpack.c.bf16 %v5136, %v5134
    %v5247 = vpack.c.bf16 %v5139, %v5137
    %v5248 = vpack.c.bf16 %v5140, %v5138
    %v5249 = vpack.c.bf16 %v5143, %v5141
    %v5250 = vpack.c.bf16 %v5144, %v5142
    %v5251 = vpack.c.bf16 %v5147, %v5145
    %v5252 = vpack.c.bf16 %v5148, %v5146
    %v5253 = vpack.c.bf16 %v5151, %v5149
    %v5254 = vpack.c.bf16 %v5152, %v5150
    %v5255 = vpack.c.bf16 %v5155, %v5153
    %v5256 = vpack.c.bf16 %v5156, %v5154
    %v5257 = vpack.c.bf16 %v5159, %v5157
    %v5258 = vpack.c.bf16 %v5160, %v5158
    %v5259 = vpack.c.bf16 %v5163, %v5161
    %v5260 = vpack.c.bf16 %v5164, %v5162
    %v5261 = vpack.c.bf16 %v5167, %v5165
    %v5262 = vpack.c.bf16 %v5168, %v5166
    %v5263 = vpack.c.bf16 %v5171, %v5169
    %v5264 = vpack.c.bf16 %v5172, %v5170
    %v5265 = vpack.c.bf16 %v5175, %v5173
    %v5266 = vpack.c.bf16 %v5176, %v5174
    %v5267 = vpack.c.bf16 %v5179, %v5177
    %v5268 = vpack.c.bf16 %v5180, %v5178
    %v5269 = vpack.c.bf16 %v5183, %v5181
    %v5270 = vpack.c.bf16 %v5184, %v5182
    %v5271 = vpack.c.bf16 %v5187, %v5185
    %v5272 = vpack.c.bf16 %v5188, %v5186
    %v5273 = vpack.c.bf16 %v5191, %v5189
    %v5274 = vpack.c.bf16 %v5192, %v5190
    %v5275 = vpack.c.bf16 %v5195, %v5193
    %v5276 = vpack.c.bf16 %v5196, %v5194
    %v5277 = vpack.c.bf16 %v5199, %v5197
    %v5278 = vpack.c.bf16 %v5200, %v5198
    %v5279 = vpack.c.bf16 %v5203, %v5201
    %v5280 = vpack.c.bf16 %v5204, %v5202
    %v5281 = vpack.c.bf16 %v5207, %v5205
    %v5282 = vpack.c.bf16 %v5208, %v5206
    %v5283 = vpack.c.bf16 %v5211, %v5209
    %v5284 = vpack.c.bf16 %v5212, %v5210
    %v5285 = vpack.c.bf16 %v5215, %v5213
    %v5286 = vpack.c.bf16 %v5216, %v5214
    %v5287 = vpack.c.bf16 %v5219, %v5217
    %v5288 = vpack.c.bf16 %v5220, %v5218
    %v5289 = vpack.c.bf16 %v5223, %v5221
    %v5290 = vpack.c.bf16 %v5224, %v5222
    %v5291 = vpack.c.bf16 %v5227, %v5225
    %v5292 = vpack.c.bf16 %v5228, %v5226
    %v5293 = vunpack.c.l.bf16 %v5229
    %v5294 = vunpack.c.l.bf16 %v5230
    %v5295 = vunpack.c.h.bf16 %v5229
    %v5296 = vunpack.c.h.bf16 %v5230
    %v5297 = vunpack.c.l.bf16 %v5231
    %v5298 = vunpack.c.l.bf16 %v5232
    %v5299 = vunpack.c.h.bf16 %v5231
    %v5300 = vunpack.c.h.bf16 %v5232
    %v5301 = vunpack.c.l.bf16 %v5233
    %v5302 = vunpack.c.l.bf16 %v5234
    %v5303 = vunpack.c.h.bf16 %v5233
    %v5304 = vunpack.c.h.bf16 %v5234
    %v5305 = vunpack.c.l.bf16 %v5235
    %v5306 = vunpack.c.l.bf16 %v5236
    %v5307 = vunpack.c.h.bf16 %v5235
    %v5308 = vunpack.c.h.bf16 %v5236
    %v5309 = vunpack.c.l.bf16 %v5237
    %v5310 = vunpack.c.l.bf16 %v5238
    %v5311 = vunpack.c.h.bf16 %v5237
    %v5312 = vunpack.c.h.bf16 %v5238
    %v5313 = vunpack.c.l.bf16 %v5239
    %v5314 = vunpack.c.l.bf16 %v5240
    %v5315 = vunpack.c.h.bf16 %v5239
    %v5316 = vunpack.c.h.bf16 %v5240
    %v5317 = vunpack.c.l.bf16 %v5241
    %v5318 = vunpack.c.l.bf16 %v5242
    %v5319 = vunpack.c.h.bf16 %v5241
    %v5320 = vunpack.c.h.bf16 %v5242
    %v5321 = vunpack.c.l.bf16 %v5243
    %v5322 = vunpack.c.l.bf16 %v5244
    %v5323 = vunpack.c.h.bf16 %v5243
    %v5324 = vunpack.c.h.bf16 %v5244
    %v5325 = vunpack.c.l.bf16 %v5245
    %v5326 = vunpack.c.l.bf16 %v5246
    %v5327 = vunpack.c.h.bf16 %v5245
    %v5328 = vunpack.c.h.bf16 %v5246
    %v5329 = vunpack.c.l.bf16 %v5247
    %v5330 = vunpack.c.l.bf16 %v5248
    %v5331 = vunpack.c.h.bf16 %v5247
    %v5332 = vunpack.c.h.bf16 %v5248
    %v5333 = vunpack.c.l.bf16 %v5249
    %v5334 = vunpack.c.l.bf16 %v5250
    %v5335 = vunpack.c.h.bf16 %v5249
    %v5336 = vunpack.c.h.bf16 %v5250
    %v5337 = vunpack.c.l.bf16 %v5251
    %v5338 = vunpack.c.l.bf16 %v5252
    %v5339 = vunpack.c.h.bf16 %v5251
    %v5340 = vunpack.c.h.bf16 %v5252
    %v5341 = vunpack.c.l.bf16 %v5253
    %v5342 = vunpack.c.l.bf16 %v5254
    %v5343 = vunpack.c.h.bf16 %v5253
    %v5344 = vunpack.c.h.bf16 %v5254
    %v5345 = vunpack.c.l.bf16 %v5255
    %v5346 = vunpack.c.l.bf16 %v5256
    %v5347 = vunpack.c.h.bf16 %v5255
    %v5348 = vunpack.c.h.bf16 %v5256
    %v5349 = vunpack.c.l.bf16 %v5257
    %v5350 = vunpack.c.l.bf16 %v5258
    %v5351 = vunpack.c.h.bf16 %v5257
    %v5352 = vunpack.c.h.bf16 %v5258
    %v5353 = vunpack.c.l.bf16 %v5259
    %v5354 = vunpack.c.l.bf16 %v5260
    %v5355 = vunpack.c.h.bf16 %v5259
    %v5356 = vunpack.c.h.bf16 %v5260
    %v5357 = vunpack.c.l.bf16 %v5261
    %v5358 = vunpack.c.l.bf16 %v5262
    %v5359 = vunpack.c.h.bf16 %v5261
    %v5360 = vunpack.c.h.bf16 %v5262
    %v5361 = vunpack.c.l.bf16 %v5263
    %v5362 = vunpack.c.l.bf16 %v5264
    %v5363 = vunpack.c.h.bf16 %v5263
    %v5364 = vunpack.c.h.bf16 %v5264
    %v5365 = vunpack.c.l.bf16 %v5265
    %v5366 = vunpack.c.l.bf16 %v5266
    %v5367 = vunpack.c.h.bf16 %v5265
    %v5368 = vunpack.c.h.bf16 %v5266
    %v5369 = vunpack.c.l.bf16 %v5267
    %v5370 = vunpack.c.l.bf16 %v5268
    %v5371 = vunpack.c.h.bf16 %v5267
    %v5372 = vunpack.c.h.bf16 %v5268
    %v5373 = vunpack.c.l.bf16 %v5269
    %v5374 = vunpack.c.l.bf16 %v5270
    %v5375 = vunpack.c.h.bf16 %v5269
    %v5376 = vunpack.c.h.bf16 %v5270
    %v5377 = vunpack.c.l.bf16 %v5271
    %v5378 = vunpack.c.l.bf16 %v5272
    %v5379 = vunpack.c.h.bf16 %v5271
    %v5380 = vunpack.c.h.bf16 %v5272
    %v5381 = vunpack.c.l.bf16 %v5273
    %v5382 = vunpack.c.l.bf16 %v5274
    %v5383 = vunpack.c.h.bf16 %v5273
    %v5384 = vunpack.c.h.bf16 %v5274
    %v5385 = vunpack.c.l.bf16 %v5275
    %v5386 = vunpack.c.l.bf16 %v5276
    %v5387 = vunpack.c.h.bf16 %v5275
    %v5388 = vunpack.c.h.bf16 %v5276
    %v5389 = vunpack.c.l.bf16 %v5277
    %v5390 = vunpack.c.l.bf16 %v5278
    %v5391 = vunpack.c.h.bf16 %v5277
    %v5392 = vunpack.c.h.bf16 %v5278
    %v5393 = vunpack.c.l.bf16 %v5279
    %v5394 = vunpack.c.l.bf16 %v5280
    %v5395 = vunpack.c.h.bf16 %v5279
    %v5396 = vunpack.c.h.bf16 %v5280
    %v5397 = vunpack.c.l.bf16 %v5281
    %v5398 = vunpack.c.l.bf16 %v5282
    %v5399 = vunpack.c.h.bf16 %v5281
    %v5400 = vunpack.c.h.bf16 %v5282
    %v5401 = vunpack.c.l.bf16 %v5283
    %v5402 = vunpack.c.l.bf16 %v5284
    %v5403 = vunpack.c.h.bf16 %v5283
    %v5404 = vunpack.c.h.bf16 %v5284
    %v5405 = vunpack.c.l.bf16 %v5285
    %v5406 = vunpack.c.l.bf16 %v5286
    %v5407 = vunpack.c.h.bf16 %v5285
    %v5408 = vunpack.c.h.bf16 %v5286
    %v5409 = vunpack.c.l.bf16 %v5287
    %v5410 = vunpack.c.l.bf16 %v5288
    %v5411 = vunpack.c.h.bf16 %v5287
    %v5412 = vunpack.c.h.bf16 %v5288
    %v5413 = vunpack.c.l.bf16 %v5289
    %v5414 = vunpack.c.l.bf16 %v5290
    %v5415 = vunpack.c.h.bf16 %v5289
    %v5416 = vunpack.c.h.bf16 %v5290
    %v5417 = vunpack.c.l.bf16 %v5291
    %v5418 = vunpack.c.l.bf16 %v5292
    %v5419 = vunpack.c.h.bf16 %v5291
    %v5420 = vunpack.c.h.bf16 %v5292
    %5421 = vmatprep.subr.bf16.mxu0 %v5230
    %5422 = vmatpush1.bf16.msra.mxu0 %v5229
    %5423 = vmatprep.subr.bf16.mxu0 %v5232
    %5424 = vmatpush1.bf16.msra.mxu0 %v5231
    %5425 = vmatprep.subr.bf16.mxu0 %v5234
    %5426 = vmatpush1.bf16.msra.mxu0 %v5233
    %5427 = vmatprep.subr.bf16.mxu0 %v5236
    %5428 = vmatpush1.bf16.msra.mxu0 %v5235
    %5429 = vmatprep.subr.bf16.mxu0 %v5238
    %5430 = vmatpush1.bf16.msra.mxu0 %v5237
    %5431 = vmatprep.subr.bf16.mxu0 %v5240
    %5432 = vmatpush1.bf16.msra.mxu0 %v5239
    %5433 = vmatprep.subr.bf16.mxu0 %v5242
    %5434 = vmatpush1.bf16.msra.mxu0 %v5241
    %5435 = vmatprep.subr.bf16.mxu0 %v5244
    %5436 = vmatpush1.bf16.msra.mxu0 %v5243
    %5437 = vmatprep.subr.bf16.mxu0 %v5246
    %5438 = vmatpush1.bf16.msra.mxu0 %v5245
    %5439 = vmatprep.subr.bf16.mxu0 %v5248
    %5440 = vmatpush1.bf16.msra.mxu0 %v5247
    %5441 = vmatprep.subr.bf16.mxu0 %v5250
    %5442 = vmatpush1.bf16.msra.mxu0 %v5249
    %5443 = vmatprep.subr.bf16.mxu0 %v5252
    %5444 = vmatpush1.bf16.msra.mxu0 %v5251
    %5445 = vmatprep.subr.bf16.mxu0 %v5254
    %5446 = vmatpush1.bf16.msra.mxu0 %v5253
    %5447 = vmatprep.subr.bf16.mxu0 %v5256
    %5448 = vmatpush1.bf16.msra.mxu0 %v5255
    %5449 = vmatprep.subr.bf16.mxu0 %v5258
    %5450 = vmatpush1.bf16.msra.mxu0 %v5257
    %5451 = vmatprep.subr.bf16.mxu0 %v5260
    %5452 = vmatpush1.bf16.msra.mxu0 %v5259
    %5453 = vmatprep.mubr.bf16.mxu0 %v850
    %5454 = vmatmul.mubr.bf16.gmra.mrb[0].mxu0 %v849
    %v5455 = vpop.f32.mrb[0].mxu0
    %v5456 = vadd.f32 0.0, %v5455
    %v5457 = vpop.f32.mrb[0].mxu0
    %v5458 = vadd.f32 0.0, %v5457
    %v5459 = vpop.f32.mrb[0].mxu0
    %v5460 = vadd.f32 0.0, %v5459
    %v5461 = vpop.f32.mrb[0].mxu0
    %v5462 = vadd.f32 0.0, %v5461
    %5463 = vmatprep.mubr.bf16.mxu0 %v854
    %5464 = vmatmul.mubr.bf16.gmra.mrb[0].mxu0 %v853
    %v5465 = vpop.f32.mrb[0].mxu0
    %v5466 = vadd.f32 0.0, %v5465
    %v5467 = vpop.f32.mrb[0].mxu0
    %v5468 = vadd.f32 0.0, %v5467
    %v5469 = vpop.f32.mrb[0].mxu0
    %v5470 = vadd.f32 0.0, %v5469
    %v5471 = vpop.f32.mrb[0].mxu0
    %v5472 = vadd.f32 0.0, %v5471
    %5473 = vmatprep.mubr.bf16.mxu0 %v858
    %5474 = vmatmul.mubr.bf16.gmra.mrb[0].mxu0 %v857
    %v5475 = vpop.f32.mrb[0].mxu0
    %v5476 = vadd.f32 0.0, %v5475
    %v5477 = vpop.f32.mrb[0].mxu0
    %v5478 = vadd.f32 0.0, %v5477
    %v5479 = vpop.f32.mrb[0].mxu0
    %v5480 = vadd.f32 0.0, %v5479
    %v5481 = vpop.f32.mrb[0].mxu0
    %v5482 = vadd.f32 0.0, %v5481
    %5483 = vmatprep.mubr.bf16.mxu0 %v862
    %5484 = vmatmul.mubr.bf16.gmra.mrb[0].mxu0 %v861
    %v5485 = vpop.f32.mrb[0].mxu0
    %v5486 = vadd.f32 0.0, %v5485
    %v5487 = vpop.f32.mrb[0].mxu0
    %v5488 = vadd.f32 0.0, %v5487
    %v5489 = vpop.f32.mrb[0].mxu0
    %v5490 = vadd.f32 0.0, %v5489
    %v5491 = vpop.f32.mrb[0].mxu0
    %v5492 = vadd.f32 0.0, %v5491
    %5493 = vmatprep.mubr.bf16.mxu0 %v866
    %5494 = vmatmul.mubr.bf16.gmra.mrb[0].mxu0 %v865
    %v5495 = vpop.f32.mrb[0].mxu0
    %v5496 = vadd.f32 0.0, %v5495
    %v5497 = vpop.f32.mrb[0].mxu0
    %v5498 = vadd.f32 0.0, %v5497
    %v5499 = vpop.f32.mrb[0].mxu0
    %v5500 = vadd.f32 0.0, %v5499
    %v5501 = vpop.f32.mrb[0].mxu0
    %v5502 = vadd.f32 0.0, %v5501
    %5503 = vmatprep.mubr.bf16.mxu0 %v870
    %5504 = vmatmul.mubr.bf16.gmra.mrb[0].mxu0 %v869
    %v5505 = vpop.f32.mrb[0].mxu0
    %v5506 = vadd.f32 0.0, %v5505
    %v5507 = vpop.f32.mrb[0].mxu0
    %v5508 = vadd.f32 0.0, %v5507
    %v5509 = vpop.f32.mrb[0].mxu0
    %v5510 = vadd.f32 0.0, %v5509
    %v5511 = vpop.f32.mrb[0].mxu0
    %v5512 = vadd.f32 0.0, %v5511
    %5513 = vmatprep.mubr.bf16.mxu0 %v874
    %5514 = vmatmul.mubr.bf16.gmra.mrb[0].mxu0 %v873
    %v5515 = vpop.f32.mrb[0].mxu0
    %v5516 = vadd.f32 0.0, %v5515
    %v5517 = vpop.f32.mrb[0].mxu0
    %v5518 = vadd.f32 0.0, %v5517
    %v5519 = vpop.f32.mrb[0].mxu0
    %v5520 = vadd.f32 0.0, %v5519
    %v5521 = vpop.f32.mrb[0].mxu0
    %v5522 = vadd.f32 0.0, %v5521
    %5523 = vmatprep.mubr.bf16.mxu0 %v878
    %5524 = vmatmul.mubr.bf16.gmra.mrb[0].mxu0 %v877
    %v5525 = vpop.f32.mrb[0].mxu0
    %v5526 = vadd.f32 0.0, %v5525
    %v5527 = vpop.f32.mrb[0].mxu0
    %v5528 = vadd.f32 0.0, %v5527
    %v5529 = vpop.f32.mrb[0].mxu0
    %v5530 = vadd.f32 0.0, %v5529
    %v5531 = vpop.f32.mrb[0].mxu0
    %v5532 = vadd.f32 0.0, %v5531
    %5533 = vmatprep.mubr.bf16.mxu0 %v882
    %5534 = vmatmul.mubr.bf16.gmra.mrb[0].mxu0 %v881
    %v5535 = vpop.f32.mrb[0].mxu0
    %v5536 = vadd.f32 0.0, %v5535
    %v5537 = vpop.f32.mrb[0].mxu0
    %v5538 = vadd.f32 0.0, %v5537
    %v5539 = vpop.f32.mrb[0].mxu0
    %v5540 = vadd.f32 0.0, %v5539
    %v5541 = vpop.f32.mrb[0].mxu0
    %v5542 = vadd.f32 0.0, %v5541
    %5543 = vmatprep.mubr.bf16.mxu0 %v886
    %5544 = vmatmul.mubr.bf16.gmra.mrb[0].mxu0 %v885
    %v5545 = vpop.f32.mrb[0].mxu0
    %v5546 = vadd.f32 0.0, %v5545
    %v5547 = vpop.f32.mrb[0].mxu0
    %v5548 = vadd.f32 0.0, %v5547
    %v5549 = vpop.f32.mrb[0].mxu0
    %v5550 = vadd.f32 0.0, %v5549
    %v5551 = vpop.f32.mrb[0].mxu0
    %v5552 = vadd.f32 0.0, %v5551
    %5553 = vmatprep.mubr.bf16.mxu0 %v890
    %5554 = vmatmul.mubr.bf16.gmra.mrb[0].mxu0 %v889
    %v5555 = vpop.f32.mrb[0].mxu0
    %v5556 = vadd.f32 0.0, %v5555
    %v5557 = vpop.f32.mrb[0].mxu0
    %v5558 = vadd.f32 0.0, %v5557
    %v5559 = vpop.f32.mrb[0].mxu0
    %v5560 = vadd.f32 0.0, %v5559
    %v5561 = vpop.f32.mrb[0].mxu0
    %v5562 = vadd.f32 0.0, %v5561
    %5563 = vmatprep.mubr.bf16.mxu0 %v894
    %5564 = vmatmul.mubr.bf16.gmra.mrb[0].mxu0 %v893
    %v5565 = vpop.f32.mrb[0].mxu0
    %v5566 = vadd.f32 0.0, %v5565
    %v5567 = vpop.f32.mrb[0].mxu0
    %v5568 = vadd.f32 0.0, %v5567
    %v5569 = vpop.f32.mrb[0].mxu0
    %v5570 = vadd.f32 0.0, %v5569
    %v5571 = vpop.f32.mrb[0].mxu0
    %v5572 = vadd.f32 0.0, %v5571
    %5573 = vmatprep.mubr.bf16.mxu0 %v898
    %5574 = vmatmul.mubr.bf16.gmra.mrb[0].mxu0 %v897
    %v5575 = vpop.f32.mrb[0].mxu0
    %v5576 = vadd.f32 0.0, %v5575
    %v5577 = vpop.f32.mrb[0].mxu0
    %v5578 = vadd.f32 0.0, %v5577
    %v5579 = vpop.f32.mrb[0].mxu0
    %v5580 = vadd.f32 0.0, %v5579
    %v5581 = vpop.f32.mrb[0].mxu0
    %v5582 = vadd.f32 0.0, %v5581
    %5583 = vmatprep.mubr.bf16.mxu0 %v902
    %5584 = vmatmul.mubr.bf16.gmra.mrb[0].mxu0 %v901
    %v5585 = vpop.f32.mrb[0].mxu0
    %v5586 = vadd.f32 0.0, %v5585
    %v5587 = vpop.f32.mrb[0].mxu0
    %v5588 = vadd.f32 0.0, %v5587
    %v5589 = vpop.f32.mrb[0].mxu0
    %v5590 = vadd.f32 0.0, %v5589
    %v5591 = vpop.f32.mrb[0].mxu0
    %v5592 = vadd.f32 0.0, %v5591
    %5593 = vmatprep.mubr.bf16.mxu0 %v906
    %5594 = vmatmul.mubr.bf16.gmra.mrb[0].mxu0 %v905
    %v5595 = vpop.f32.mrb[0].mxu0
    %v5596 = vadd.f32 0.0, %v5595
    %v5597 = vpop.f32.mrb[0].mxu0
    %v5598 = vadd.f32 0.0, %v5597
    %v5599 = vpop.f32.mrb[0].mxu0
    %v5600 = vadd.f32 0.0, %v5599
    %v5601 = vpop.f32.mrb[0].mxu0
    %v5602 = vadd.f32 0.0, %v5601
    %5603 = vmatprep.mubr.bf16.mxu0 %v910
    %5604 = vmatmul.mubr.bf16.gmra.mrb[0].mxu0 %v909
    %v5605 = vpop.f32.mrb[0].mxu0
    %v5606 = vadd.f32 0.0, %v5605
    %v5607 = vpop.f32.mrb[0].mxu0
    %v5608 = vadd.f32 0.0, %v5607
    %v5609 = vpop.f32.mrb[0].mxu0
    %v5610 = vadd.f32 0.0, %v5609
    %v5611 = vpop.f32.mrb[0].mxu0
    %v5612 = vadd.f32 0.0, %v5611
    %5613 = vmatprep.mubr.bf16.mxu0 %v914
    %5614 = vmatmul.mubr.bf16.gmra.mrb[0].mxu0 %v913
    %v5615 = vpop.f32.mrb[0].mxu0
    %v5616 = vadd.f32 0.0, %v5615
    %v5617 = vpop.f32.mrb[0].mxu0
    %v5618 = vadd.f32 0.0, %v5617
    %v5619 = vpop.f32.mrb[0].mxu0
    %v5620 = vadd.f32 0.0, %v5619
    %v5621 = vpop.f32.mrb[0].mxu0
    %v5622 = vadd.f32 0.0, %v5621
    %5623 = vmatprep.mubr.bf16.mxu0 %v918
    %5624 = vmatmul.mubr.bf16.gmra.mrb[0].mxu0 %v917
    %v5625 = vpop.f32.mrb[0].mxu0
    %v5626 = vadd.f32 0.0, %v5625
    %v5627 = vpop.f32.mrb[0].mxu0
    %v5628 = vadd.f32 0.0, %v5627
    %v5629 = vpop.f32.mrb[0].mxu0
    %v5630 = vadd.f32 0.0, %v5629
    %v5631 = vpop.f32.mrb[0].mxu0
    %v5632 = vadd.f32 0.0, %v5631
    %5633 = vmatprep.mubr.bf16.mxu0 %v922
    %5634 = vmatmul.mubr.bf16.gmra.mrb[0].mxu0 %v921
    %v5635 = vpop.f32.mrb[0].mxu0
    %v5636 = vadd.f32 0.0, %v5635
    %v5637 = vpop.f32.mrb[0].mxu0
    %v5638 = vadd.f32 0.0, %v5637
    %v5639 = vpop.f32.mrb[0].mxu0
    %v5640 = vadd.f32 0.0, %v5639
    %v5641 = vpop.f32.mrb[0].mxu0
    %v5642 = vadd.f32 0.0, %v5641
    %5643 = vmatprep.mubr.bf16.mxu0 %v926
    %5644 = vmatmul.mubr.bf16.gmra.mrb[0].mxu0 %v925
    %v5645 = vpop.f32.mrb[0].mxu0
    %v5646 = vadd.f32 0.0, %v5645
    %v5647 = vpop.f32.mrb[0].mxu0
    %v5648 = vadd.f32 0.0, %v5647
    %v5649 = vpop.f32.mrb[0].mxu0
    %v5650 = vadd.f32 0.0, %v5649
    %v5651 = vpop.f32.mrb[0].mxu0
    %v5652 = vadd.f32 0.0, %v5651
    %5653 = vmatprep.mubr.bf16.mxu0 %v930
    %5654 = vmatmul.mubr.bf16.gmra.mrb[0].mxu0 %v929
    %v5655 = vpop.f32.mrb[0].mxu0
    %v5656 = vadd.f32 0.0, %v5655
    %v5657 = vpop.f32.mrb[0].mxu0
    %v5658 = vadd.f32 0.0, %v5657
    %v5659 = vpop.f32.mrb[0].mxu0
    %v5660 = vadd.f32 0.0, %v5659
    %v5661 = vpop.f32.mrb[0].mxu0
    %v5662 = vadd.f32 0.0, %v5661
    %5663 = vmatprep.mubr.bf16.mxu0 %v934
    %5664 = vmatmul.mubr.bf16.gmra.mrb[0].mxu0 %v933
    %v5665 = vpop.f32.mrb[0].mxu0
    %v5666 = vadd.f32 0.0, %v5665
    %v5667 = vpop.f32.mrb[0].mxu0
    %v5668 = vadd.f32 0.0, %v5667
    %v5669 = vpop.f32.mrb[0].mxu0
    %v5670 = vadd.f32 0.0, %v5669
    %v5671 = vpop.f32.mrb[0].mxu0
    %v5672 = vadd.f32 0.0, %v5671
    %5673 = vmatprep.mubr.bf16.mxu0 %v938
    %5674 = vmatmul.mubr.bf16.gmra.mrb[0].mxu0 %v937
    %v5675 = vpop.f32.mrb[0].mxu0
    %v5676 = vadd.f32 0.0, %v5675
    %v5677 = vpop.f32.mrb[0].mxu0
    %v5678 = vadd.f32 0.0, %v5677
    %v5679 = vpop.f32.mrb[0].mxu0
    %v5680 = vadd.f32 0.0, %v5679
    %v5681 = vpop.f32.mrb[0].mxu0
    %v5682 = vadd.f32 0.0, %v5681
    %5683 = vmatprep.mubr.bf16.mxu0 %v942
    %5684 = vmatmul.mubr.bf16.gmra.mrb[0].mxu0 %v941
    %v5685 = vpop.f32.mrb[0].mxu0
    %v5686 = vadd.f32 0.0, %v5685
    %v5687 = vpop.f32.mrb[0].mxu0
    %v5688 = vadd.f32 0.0, %v5687
    %v5689 = vpop.f32.mrb[0].mxu0
    %v5690 = vadd.f32 0.0, %v5689
    %v5691 = vpop.f32.mrb[0].mxu0
    %v5692 = vadd.f32 0.0, %v5691
    %5693 = vmatprep.mubr.bf16.mxu0 %v946
    %5694 = vmatmul.mubr.bf16.gmra.mrb[0].mxu0 %v945
    %v5695 = vpop.f32.mrb[0].mxu0
    %v5696 = vadd.f32 0.0, %v5695
    %v5697 = vpop.f32.mrb[0].mxu0
    %v5698 = vadd.f32 0.0, %v5697
    %v5699 = vpop.f32.mrb[0].mxu0
    %v5700 = vadd.f32 0.0, %v5699
    %v5701 = vpop.f32.mrb[0].mxu0
    %v5702 = vadd.f32 0.0, %v5701
    %5703 = vmatprep.mubr.bf16.mxu0 %v950
    %5704 = vmatmul.mubr.bf16.gmra.mrb[0].mxu0 %v949
    %v5705 = vpop.f32.mrb[0].mxu0
    %v5706 = vadd.f32 0.0, %v5705
    %v5707 = vpop.f32.mrb[0].mxu0
    %v5708 = vadd.f32 0.0, %v5707
    %v5709 = vpop.f32.mrb[0].mxu0
    %v5710 = vadd.f32 0.0, %v5709
    %v5711 = vpop.f32.mrb[0].mxu0
    %v5712 = vadd.f32 0.0, %v5711
    %5713 = vmatprep.mubr.bf16.mxu0 %v954
    %5714 = vmatmul.mubr.bf16.gmra.mrb[0].mxu0 %v953
    %v5715 = vpop.f32.mrb[0].mxu0
    %v5716 = vadd.f32 0.0, %v5715
    %v5717 = vpop.f32.mrb[0].mxu0
    %v5718 = vadd.f32 0.0, %v5717
    %v5719 = vpop.f32.mrb[0].mxu0
    %v5720 = vadd.f32 0.0, %v5719
    %v5721 = vpop.f32.mrb[0].mxu0
    %v5722 = vadd.f32 0.0, %v5721
    %5723 = vmatprep.mubr.bf16.mxu0 %v958
    %5724 = vmatmul.mubr.bf16.gmra.mrb[0].mxu0 %v957
    %v5725 = vpop.f32.mrb[0].mxu0
    %v5726 = vadd.f32 0.0, %v5725
    %v5727 = vpop.f32.mrb[0].mxu0
    %v5728 = vadd.f32 0.0, %v5727
    %v5729 = vpop.f32.mrb[0].mxu0
    %v5730 = vadd.f32 0.0, %v5729
    %v5731 = vpop.f32.mrb[0].mxu0
    %v5732 = vadd.f32 0.0, %v5731
    %5733 = vmatprep.mubr.bf16.mxu0 %v962
    %5734 = vmatmul.mubr.bf16.gmra.mrb[0].mxu0 %v961
    %v5735 = vpop.f32.mrb[0].mxu0
    %v5736 = vadd.f32 0.0, %v5735
    %v5737 = vpop.f32.mrb[0].mxu0
    %v5738 = vadd.f32 0.0, %v5737
    %v5739 = vpop.f32.mrb[0].mxu0
    %v5740 = vadd.f32 0.0, %v5739
    %v5741 = vpop.f32.mrb[0].mxu0
    %v5742 = vadd.f32 0.0, %v5741
    %5743 = vmatprep.mubr.bf16.mxu0 %v966
    %5744 = vmatmul.mubr.bf16.gmra.mrb[0].mxu0 %v965
    %v5745 = vpop.f32.mrb[0].mxu0
    %v5746 = vadd.f32 0.0, %v5745
    %v5747 = vpop.f32.mrb[0].mxu0
    %v5748 = vadd.f32 0.0, %v5747
    %v5749 = vpop.f32.mrb[0].mxu0
    %v5750 = vadd.f32 0.0, %v5749
    %v5751 = vpop.f32.mrb[0].mxu0
    %v5752 = vadd.f32 0.0, %v5751
    %5753 = vmatprep.mubr.bf16.mxu0 %v970
    %5754 = vmatmul.mubr.bf16.gmra.mrb[0].mxu0 %v969
    %v5755 = vpop.f32.mrb[0].mxu0
    %v5756 = vadd.f32 0.0, %v5755
    %v5757 = vpop.f32.mrb[0].mxu0
    %v5758 = vadd.f32 0.0, %v5757
    %v5759 = vpop.f32.mrb[0].mxu0
    %v5760 = vadd.f32 0.0, %v5759
    %v5761 = vpop.f32.mrb[0].mxu0
    %v5762 = vadd.f32 0.0, %v5761
    %5763 = vmatprep.mubr.bf16.mxu0 %v974
    %5764 = vmatmul.mubr.bf16.gmra.mrb[0].mxu0 %v973
    %v5765 = vpop.f32.mrb[0].mxu0
    %v5766 = vadd.f32 0.0, %v5765
    %v5767 = vpop.f32.mrb[0].mxu0
    %v5768 = vadd.f32 0.0, %v5767
    %v5769 = vpop.f32.mrb[0].mxu0
    %v5770 = vadd.f32 0.0, %v5769
    %v5771 = vpop.f32.mrb[0].mxu0
    %v5772 = vadd.f32 0.0, %v5771
    %5773 = vdwg.mxu0
    %5774 = vmatprep.subr.bf16.mxu0 %v5262
    %5775 = vmatpush1.bf16.msra.mxu0 %v5261
    %5776 = vmatprep.subr.bf16.mxu0 %v5264
    %5777 = vmatpush1.bf16.msra.mxu0 %v5263
    %5778 = vmatprep.subr.bf16.mxu0 %v5266
    %5779 = vmatpush1.bf16.msra.mxu0 %v5265
    %5780 = vmatprep.subr.bf16.mxu0 %v5268
    %5781 = vmatpush1.bf16.msra.mxu0 %v5267
    %5782 = vmatprep.subr.bf16.mxu0 %v5270
    %5783 = vmatpush1.bf16.msra.mxu0 %v5269
    %5784 = vmatprep.subr.bf16.mxu0 %v5272
    %5785 = vmatpush1.bf16.msra.mxu0 %v5271
    %5786 = vmatprep.subr.bf16.mxu0 %v5274
    %5787 = vmatpush1.bf16.msra.mxu0 %v5273
    %5788 = vmatprep.subr.bf16.mxu0 %v5276
    %5789 = vmatpush1.bf16.msra.mxu0 %v5275
    %5790 = vmatprep.subr.bf16.mxu0 %v5278
    %5791 = vmatpush1.bf16.msra.mxu0 %v5277
    %5792 = vmatprep.subr.bf16.mxu0 %v5280
    %5793 = vmatpush1.bf16.msra.mxu0 %v5279
    %5794 = vmatprep.subr.bf16.mxu0 %v5282
    %5795 = vmatpush1.bf16.msra.mxu0 %v5281
    %5796 = vmatprep.subr.bf16.mxu0 %v5284
    %5797 = vmatpush1.bf16.msra.mxu0 %v5283
    %5798 = vmatprep.subr.bf16.mxu0 %v5286
    %5799 = vmatpush1.bf16.msra.mxu0 %v5285
    %5800 = vmatprep.subr.bf16.mxu0 %v5288
    %5801 = vmatpush1.bf16.msra.mxu0 %v5287
    %5802 = vmatprep.subr.bf16.mxu0 %v5290
    %5803 = vmatpush1.bf16.msra.mxu0 %v5289
    %5804 = vmatprep.subr.bf16.mxu0 %v5292
    %5805 = vmatpush1.bf16.msra.mxu0 %v5291
    %5806 = vmatprep.mubr.bf16.mxu0 %v852
    %5807 = vmatmul.mubr.bf16.gmra.mrb[0].mxu0 %v851
    %v5808 = vpop.f32.mrb[0].mxu0
    %v5809 = vadd.f32 %v5456, %v5808
    %v5810 = vpop.f32.mrb[0].mxu0
    %v5811 = vadd.f32 %v5458, %v5810
    %v5812 = vpop.f32.mrb[0].mxu0
    %v5813 = vadd.f32 %v5460, %v5812
    %v5814 = vpop.f32.mrb[0].mxu0
    %v5815 = vadd.f32 %v5462, %v5814
    %5816 = vmatprep.mubr.bf16.mxu0 %v856
    %5817 = vmatmul.mubr.bf16.gmra.mrb[0].mxu0 %v855
    %v5818 = vpop.f32.mrb[0].mxu0
    %v5819 = vadd.f32 %v5466, %v5818
    %v5820 = vpop.f32.mrb[0].mxu0
    %v5821 = vadd.f32 %v5468, %v5820
    %v5822 = vpop.f32.mrb[0].mxu0
    %v5823 = vadd.f32 %v5470, %v5822
    %v5824 = vpop.f32.mrb[0].mxu0
    %v5825 = vadd.f32 %v5472, %v5824
    %5826 = vmatprep.mubr.bf16.mxu0 %v860
    %5827 = vmatmul.mubr.bf16.gmra.mrb[0].mxu0 %v859
    %v5828 = vpop.f32.mrb[0].mxu0
    %v5829 = vadd.f32 %v5476, %v5828
    %v5830 = vpop.f32.mrb[0].mxu0
    %v5831 = vadd.f32 %v5478, %v5830
    %v5832 = vpop.f32.mrb[0].mxu0
    %v5833 = vadd.f32 %v5480, %v5832
    %v5834 = vpop.f32.mrb[0].mxu0
    %v5835 = vadd.f32 %v5482, %v5834
    %5836 = vmatprep.mubr.bf16.mxu0 %v864
    %5837 = vmatmul.mubr.bf16.gmra.mrb[0].mxu0 %v863
    %v5838 = vpop.f32.mrb[0].mxu0
    %v5839 = vadd.f32 %v5486, %v5838
    %v5840 = vpop.f32.mrb[0].mxu0
    %v5841 = vadd.f32 %v5488, %v5840
    %v5842 = vpop.f32.mrb[0].mxu0
    %v5843 = vadd.f32 %v5490, %v5842
    %v5844 = vpop.f32.mrb[0].mxu0
    %v5845 = vadd.f32 %v5492, %v5844
    %5846 = vmatprep.mubr.bf16.mxu0 %v868
    %5847 = vmatmul.mubr.bf16.gmra.mrb[0].mxu0 %v867
    %v5848 = vpop.f32.mrb[0].mxu0
    %v5849 = vadd.f32 %v5496, %v5848
    %v5850 = vpop.f32.mrb[0].mxu0
    %v5851 = vadd.f32 %v5498, %v5850
    %v5852 = vpop.f32.mrb[0].mxu0
    %v5853 = vadd.f32 %v5500, %v5852
    %v5854 = vpop.f32.mrb[0].mxu0
    %v5855 = vadd.f32 %v5502, %v5854
    %5856 = vmatprep.mubr.bf16.mxu0 %v872
    %5857 = vmatmul.mubr.bf16.gmra.mrb[0].mxu0 %v871
    %v5858 = vpop.f32.mrb[0].mxu0
    %v5859 = vadd.f32 %v5506, %v5858
    %v5860 = vpop.f32.mrb[0].mxu0
    %v5861 = vadd.f32 %v5508, %v5860
    %v5862 = vpop.f32.mrb[0].mxu0
    %v5863 = vadd.f32 %v5510, %v5862
    %v5864 = vpop.f32.mrb[0].mxu0
    %v5865 = vadd.f32 %v5512, %v5864
    %5866 = vmatprep.mubr.bf16.mxu0 %v876
    %5867 = vmatmul.mubr.bf16.gmra.mrb[0].mxu0 %v875
    %v5868 = vpop.f32.mrb[0].mxu0
    %v5869 = vadd.f32 %v5516, %v5868
    %v5870 = vpop.f32.mrb[0].mxu0
    %v5871 = vadd.f32 %v5518, %v5870
    %v5872 = vpop.f32.mrb[0].mxu0
    %v5873 = vadd.f32 %v5520, %v5872
    %v5874 = vpop.f32.mrb[0].mxu0
    %v5875 = vadd.f32 %v5522, %v5874
    %5876 = vmatprep.mubr.bf16.mxu0 %v880
    %5877 = vmatmul.mubr.bf16.gmra.mrb[0].mxu0 %v879
    %v5878 = vpop.f32.mrb[0].mxu0
    %v5879 = vadd.f32 %v5526, %v5878
    %v5880 = vpop.f32.mrb[0].mxu0
    %v5881 = vadd.f32 %v5528, %v5880
    %v5882 = vpop.f32.mrb[0].mxu0
    %v5883 = vadd.f32 %v5530, %v5882
    %v5884 = vpop.f32.mrb[0].mxu0
    %v5885 = vadd.f32 %v5532, %v5884
    %5886 = vmatprep.mubr.bf16.mxu0 %v884
    %5887 = vmatmul.mubr.bf16.gmra.mrb[0].mxu0 %v883
    %v5888 = vpop.f32.mrb[0].mxu0
    %v5889 = vadd.f32 %v5536, %v5888
    %v5890 = vpop.f32.mrb[0].mxu0
    %v5891 = vadd.f32 %v5538, %v5890
    %v5892 = vpop.f32.mrb[0].mxu0
    %v5893 = vadd.f32 %v5540, %v5892
    %v5894 = vpop.f32.mrb[0].mxu0
    %v5895 = vadd.f32 %v5542, %v5894
    %5896 = vmatprep.mubr.bf16.mxu0 %v888
    %5897 = vmatmul.mubr.bf16.gmra.mrb[0].mxu0 %v887
    %v5898 = vpop.f32.mrb[0].mxu0
    %v5899 = vadd.f32 %v5546, %v5898
    %v5900 = vpop.f32.mrb[0].mxu0
    %v5901 = vadd.f32 %v5548, %v5900
    %v5902 = vpop.f32.mrb[0].mxu0
    %v5903 = vadd.f32 %v5550, %v5902
    %v5904 = vpop.f32.mrb[0].mxu0
    %v5905 = vadd.f32 %v5552, %v5904
    %5906 = vmatprep.mubr.bf16.mxu0 %v892
    %5907 = vmatmul.mubr.bf16.gmra.mrb[0].mxu0 %v891
    %v5908 = vpop.f32.mrb[0].mxu0
    %v5909 = vadd.f32 %v5556, %v5908
    %v5910 = vpop.f32.mrb[0].mxu0
    %v5911 = vadd.f32 %v5558, %v5910
    %v5912 = vpop.f32.mrb[0].mxu0
    %v5913 = vadd.f32 %v5560, %v5912
    %v5914 = vpop.f32.mrb[0].mxu0
    %v5915 = vadd.f32 %v5562, %v5914
    %5916 = vmatprep.mubr.bf16.mxu0 %v896
    %5917 = vmatmul.mubr.bf16.gmra.mrb[0].mxu0 %v895
    %v5918 = vpop.f32.mrb[0].mxu0
    %v5919 = vadd.f32 %v5566, %v5918
    %v5920 = vpop.f32.mrb[0].mxu0
    %v5921 = vadd.f32 %v5568, %v5920
    %v5922 = vpop.f32.mrb[0].mxu0
    %v5923 = vadd.f32 %v5570, %v5922
    %v5924 = vpop.f32.mrb[0].mxu0
    %v5925 = vadd.f32 %v5572, %v5924
    %5926 = vmatprep.mubr.bf16.mxu0 %v900
    %5927 = vmatmul.mubr.bf16.gmra.mrb[0].mxu0 %v899
    %v5928 = vpop.f32.mrb[0].mxu0
    %v5929 = vadd.f32 %v5576, %v5928
    %v5930 = vpop.f32.mrb[0].mxu0
    %v5931 = vadd.f32 %v5578, %v5930
    %v5932 = vpop.f32.mrb[0].mxu0
    %v5933 = vadd.f32 %v5580, %v5932
    %v5934 = vpop.f32.mrb[0].mxu0
    %v5935 = vadd.f32 %v5582, %v5934
    %5936 = vmatprep.mubr.bf16.mxu0 %v904
    %5937 = vmatmul.mubr.bf16.gmra.mrb[0].mxu0 %v903
    %v5938 = vpop.f32.mrb[0].mxu0
    %v5939 = vadd.f32 %v5586, %v5938
    %v5940 = vpop.f32.mrb[0].mxu0
    %v5941 = vadd.f32 %v5588, %v5940
    %v5942 = vpop.f32.mrb[0].mxu0
    %v5943 = vadd.f32 %v5590, %v5942
    %v5944 = vpop.f32.mrb[0].mxu0
    %v5945 = vadd.f32 %v5592, %v5944
    %5946 = vmatprep.mubr.bf16.mxu0 %v908
    %5947 = vmatmul.mubr.bf16.gmra.mrb[0].mxu0 %v907
    %v5948 = vpop.f32.mrb[0].mxu0
    %v5949 = vadd.f32 %v5596, %v5948
    %v5950 = vpop.f32.mrb[0].mxu0
    %v5951 = vadd.f32 %v5598, %v5950
    %v5952 = vpop.f32.mrb[0].mxu0
    %v5953 = vadd.f32 %v5600, %v5952
    %v5954 = vpop.f32.mrb[0].mxu0
    %v5955 = vadd.f32 %v5602, %v5954
    %5956 = vmatprep.mubr.bf16.mxu0 %v912
    %5957 = vmatmul.mubr.bf16.gmra.mrb[0].mxu0 %v911
    %v5958 = vpop.f32.mrb[0].mxu0
    %v5959 = vadd.f32 %v5606, %v5958
    %v5960 = vpop.f32.mrb[0].mxu0
    %v5961 = vadd.f32 %v5608, %v5960
    %v5962 = vpop.f32.mrb[0].mxu0
    %v5963 = vadd.f32 %v5610, %v5962
    %v5964 = vpop.f32.mrb[0].mxu0
    %v5965 = vadd.f32 %v5612, %v5964
    %5966 = vmatprep.mubr.bf16.mxu0 %v916
    %5967 = vmatmul.mubr.bf16.gmra.mrb[0].mxu0 %v915
    %v5968 = vpop.f32.mrb[0].mxu0
    %v5969 = vadd.f32 %v5616, %v5968
    %v5970 = vpop.f32.mrb[0].mxu0
    %v5971 = vadd.f32 %v5618, %v5970
    %v5972 = vpop.f32.mrb[0].mxu0
    %v5973 = vadd.f32 %v5620, %v5972
    %v5974 = vpop.f32.mrb[0].mxu0
    %v5975 = vadd.f32 %v5622, %v5974
    %5976 = vmatprep.mubr.bf16.mxu0 %v920
    %5977 = vmatmul.mubr.bf16.gmra.mrb[0].mxu0 %v919
    %v5978 = vpop.f32.mrb[0].mxu0
    %v5979 = vadd.f32 %v5626, %v5978
    %v5980 = vpop.f32.mrb[0].mxu0
    %v5981 = vadd.f32 %v5628, %v5980
    %v5982 = vpop.f32.mrb[0].mxu0
    %v5983 = vadd.f32 %v5630, %v5982
    %v5984 = vpop.f32.mrb[0].mxu0
    %v5985 = vadd.f32 %v5632, %v5984
    %5986 = vmatprep.mubr.bf16.mxu0 %v924
    %5987 = vmatmul.mubr.bf16.gmra.mrb[0].mxu0 %v923
    %v5988 = vpop.f32.mrb[0].mxu0
    %v5989 = vadd.f32 %v5636, %v5988
    %v5990 = vpop.f32.mrb[0].mxu0
    %v5991 = vadd.f32 %v5638, %v5990
    %v5992 = vpop.f32.mrb[0].mxu0
    %v5993 = vadd.f32 %v5640, %v5992
    %v5994 = vpop.f32.mrb[0].mxu0
    %v5995 = vadd.f32 %v5642, %v5994
    %5996 = vmatprep.mubr.bf16.mxu0 %v928
    %5997 = vmatmul.mubr.bf16.gmra.mrb[0].mxu0 %v927
    %v5998 = vpop.f32.mrb[0].mxu0
    %v5999 = vadd.f32 %v5646, %v5998
    %v6000 = vpop.f32.mrb[0].mxu0
    %v6001 = vadd.f32 %v5648, %v6000
    %v6002 = vpop.f32.mrb[0].mxu0
    %v6003 = vadd.f32 %v5650, %v6002
    %v6004 = vpop.f32.mrb[0].mxu0
    %v6005 = vadd.f32 %v5652, %v6004
    %6006 = vmatprep.mubr.bf16.mxu0 %v932
    %6007 = vmatmul.mubr.bf16.gmra.mrb[0].mxu0 %v931
    %v6008 = vpop.f32.mrb[0].mxu0
    %v6009 = vadd.f32 %v5656, %v6008
    %v6010 = vpop.f32.mrb[0].mxu0
    %v6011 = vadd.f32 %v5658, %v6010
    %v6012 = vpop.f32.mrb[0].mxu0
    %v6013 = vadd.f32 %v5660, %v6012
    %v6014 = vpop.f32.mrb[0].mxu0
    %v6015 = vadd.f32 %v5662, %v6014
    %6016 = vmatprep.mubr.bf16.mxu0 %v936
    %6017 = vmatmul.mubr.bf16.gmra.mrb[0].mxu0 %v935
    %v6018 = vpop.f32.mrb[0].mxu0
    %v6019 = vadd.f32 %v5666, %v6018
    %v6020 = vpop.f32.mrb[0].mxu0
    %v6021 = vadd.f32 %v5668, %v6020
    %v6022 = vpop.f32.mrb[0].mxu0
    %v6023 = vadd.f32 %v5670, %v6022
    %v6024 = vpop.f32.mrb[0].mxu0
    %v6025 = vadd.f32 %v5672, %v6024
    %6026 = vmatprep.mubr.bf16.mxu0 %v940
    %6027 = vmatmul.mubr.bf16.gmra.mrb[0].mxu0 %v939
    %v6028 = vpop.f32.mrb[0].mxu0
    %v6029 = vadd.f32 %v5676, %v6028
    %v6030 = vpop.f32.mrb[0].mxu0
    %v6031 = vadd.f32 %v5678, %v6030
    %v6032 = vpop.f32.mrb[0].mxu0
    %v6033 = vadd.f32 %v5680, %v6032
    %v6034 = vpop.f32.mrb[0].mxu0
    %v6035 = vadd.f32 %v5682, %v6034
    %6036 = vmatprep.mubr.bf16.mxu0 %v944
    %6037 = vmatmul.mubr.bf16.gmra.mrb[0].mxu0 %v943
    %v6038 = vpop.f32.mrb[0].mxu0
    %v6039 = vadd.f32 %v5686, %v6038
    %v6040 = vpop.f32.mrb[0].mxu0
    %v6041 = vadd.f32 %v5688, %v6040
    %v6042 = vpop.f32.mrb[0].mxu0
    %v6043 = vadd.f32 %v5690, %v6042
    %v6044 = vpop.f32.mrb[0].mxu0
    %v6045 = vadd.f32 %v5692, %v6044
    %6046 = vmatprep.mubr.bf16.mxu0 %v948
    %6047 = vmatmul.mubr.bf16.gmra.mrb[0].mxu0 %v947
    %v6048 = vpop.f32.mrb[0].mxu0
    %v6049 = vadd.f32 %v5696, %v6048
    %v6050 = vpop.f32.mrb[0].mxu0
    %v6051 = vadd.f32 %v5698, %v6050
    %v6052 = vpop.f32.mrb[0].mxu0
    %v6053 = vadd.f32 %v5700, %v6052
    %v6054 = vpop.f32.mrb[0].mxu0
    %v6055 = vadd.f32 %v5702, %v6054
    %6056 = vmatprep.mubr.bf16.mxu0 %v952
    %6057 = vmatmul.mubr.bf16.gmra.mrb[0].mxu0 %v951
    %v6058 = vpop.f32.mrb[0].mxu0
    %v6059 = vadd.f32 %v5706, %v6058
    %v6060 = vpop.f32.mrb[0].mxu0
    %v6061 = vadd.f32 %v5708, %v6060
    %v6062 = vpop.f32.mrb[0].mxu0
    %v6063 = vadd.f32 %v5710, %v6062
    %v6064 = vpop.f32.mrb[0].mxu0
    %v6065 = vadd.f32 %v5712, %v6064
    %6066 = vmatprep.mubr.bf16.mxu0 %v956
    %6067 = vmatmul.mubr.bf16.gmra.mrb[0].mxu0 %v955
    %v6068 = vpop.f32.mrb[0].mxu0
    %v6069 = vadd.f32 %v5716, %v6068
    %v6070 = vpop.f32.mrb[0].mxu0
    %v6071 = vadd.f32 %v5718, %v6070
    %v6072 = vpop.f32.mrb[0].mxu0
    %v6073 = vadd.f32 %v5720, %v6072
    %v6074 = vpop.f32.mrb[0].mxu0
    %v6075 = vadd.f32 %v5722, %v6074
    %6076 = vmatprep.mubr.bf16.mxu0 %v960
    %6077 = vmatmul.mubr.bf16.gmra.mrb[0].mxu0 %v959
    %v6078 = vpop.f32.mrb[0].mxu0
    %v6079 = vadd.f32 %v5726, %v6078
    %v6080 = vpop.f32.mrb[0].mxu0
    %v6081 = vadd.f32 %v5728, %v6080
    %v6082 = vpop.f32.mrb[0].mxu0
    %v6083 = vadd.f32 %v5730, %v6082
    %v6084 = vpop.f32.mrb[0].mxu0
    %v6085 = vadd.f32 %v5732, %v6084
    %6086 = vmatprep.mubr.bf16.mxu0 %v964
    %6087 = vmatmul.mubr.bf16.gmra.mrb[0].mxu0 %v963
    %v6088 = vpop.f32.mrb[0].mxu0
    %v6089 = vadd.f32 %v5736, %v6088
    %v6090 = vpop.f32.mrb[0].mxu0
    %v6091 = vadd.f32 %v5738, %v6090
    %v6092 = vpop.f32.mrb[0].mxu0
    %v6093 = vadd.f32 %v5740, %v6092
    %v6094 = vpop.f32.mrb[0].mxu0
    %v6095 = vadd.f32 %v5742, %v6094
    %6096 = vmatprep.mubr.bf16.mxu0 %v968
    %6097 = vmatmul.mubr.bf16.gmra.mrb[0].mxu0 %v967
    %v6098 = vpop.f32.mrb[0].mxu0
    %v6099 = vadd.f32 %v5746, %v6098
    %v6100 = vpop.f32.mrb[0].mxu0
    %v6101 = vadd.f32 %v5748, %v6100
    %v6102 = vpop.f32.mrb[0].mxu0
    %v6103 = vadd.f32 %v5750, %v6102
    %v6104 = vpop.f32.mrb[0].mxu0
    %v6105 = vadd.f32 %v5752, %v6104
    %6106 = vmatprep.mubr.bf16.mxu0 %v972
    %6107 = vmatmul.mubr.bf16.gmra.mrb[0].mxu0 %v971
    %v6108 = vpop.f32.mrb[0].mxu0
    %v6109 = vadd.f32 %v5756, %v6108
    %v6110 = vpop.f32.mrb[0].mxu0
    %v6111 = vadd.f32 %v5758, %v6110
    %v6112 = vpop.f32.mrb[0].mxu0
    %v6113 = vadd.f32 %v5760, %v6112
    %v6114 = vpop.f32.mrb[0].mxu0
    %v6115 = vadd.f32 %v5762, %v6114
    %6116 = vmatprep.mubr.bf16.mxu0 %v976
    %6117 = vmatmul.mubr.bf16.gmra.mrb[0].mxu0 %v975
    %v6118 = vpop.f32.mrb[0].mxu0
    %v6119 = vadd.f32 %v5766, %v6118
    %v6120 = vpop.f32.mrb[0].mxu0
    %v6121 = vadd.f32 %v5768, %v6120
    %v6122 = vpop.f32.mrb[0].mxu0
    %v6123 = vadd.f32 %v5770, %v6122
    %v6124 = vpop.f32.mrb[0].mxu0
    %v6125 = vadd.f32 %v5772, %v6124
    %6126 = vdwg.mxu0
    %v6127 = vpack.c.bf16 %v5813, %v5809
    %v6128 = vpack.c.bf16 %v5815, %v5811
    %v6129 = vpack.c.bf16 %v5823, %v5819
    %v6130 = vpack.c.bf16 %v5825, %v5821
    %v6131 = vpack.c.bf16 %v5833, %v5829
    %v6132 = vpack.c.bf16 %v5835, %v5831
    %v6133 = vpack.c.bf16 %v5843, %v5839
    %v6134 = vpack.c.bf16 %v5845, %v5841
    %v6135 = vpack.c.bf16 %v5853, %v5849
    %v6136 = vpack.c.bf16 %v5855, %v5851
    %v6137 = vpack.c.bf16 %v5863, %v5859
    %v6138 = vpack.c.bf16 %v5865, %v5861
    %v6139 = vpack.c.bf16 %v5873, %v5869
    %v6140 = vpack.c.bf16 %v5875, %v5871
    %v6141 = vpack.c.bf16 %v5883, %v5879
    %v6142 = vpack.c.bf16 %v5885, %v5881
    %v6143 = vpack.c.bf16 %v5893, %v5889
    %v6144 = vpack.c.bf16 %v5895, %v5891
    %v6145 = vpack.c.bf16 %v5903, %v5899
    %v6146 = vpack.c.bf16 %v5905, %v5901
    %v6147 = vpack.c.bf16 %v5913, %v5909
    %v6148 = vpack.c.bf16 %v5915, %v5911
    %v6149 = vpack.c.bf16 %v5923, %v5919
    %v6150 = vpack.c.bf16 %v5925, %v5921
    %v6151 = vpack.c.bf16 %v5933, %v5929
    %v6152 = vpack.c.bf16 %v5935, %v5931
    %v6153 = vpack.c.bf16 %v5943, %v5939
    %v6154 = vpack.c.bf16 %v5945, %v5941
    %v6155 = vpack.c.bf16 %v5953, %v5949
    %v6156 = vpack.c.bf16 %v5955, %v5951
    %v6157 = vpack.c.bf16 %v5963, %v5959
    %v6158 = vpack.c.bf16 %v5965, %v5961
    %v6159 = vpack.c.bf16 %v5973, %v5969
    %v6160 = vpack.c.bf16 %v5975, %v5971
    %v6161 = vpack.c.bf16 %v5983, %v5979
    %v6162 = vpack.c.bf16 %v5985, %v5981
    %v6163 = vpack.c.bf16 %v5993, %v5989
    %v6164 = vpack.c.bf16 %v5995, %v5991
    %v6165 = vpack.c.bf16 %v6003, %v5999
    %v6166 = vpack.c.bf16 %v6005, %v6001
    %v6167 = vpack.c.bf16 %v6013, %v6009
    %v6168 = vpack.c.bf16 %v6015, %v6011
    %v6169 = vpack.c.bf16 %v6023, %v6019
    %v6170 = vpack.c.bf16 %v6025, %v6021
    %v6171 = vpack.c.bf16 %v6033, %v6029
    %v6172 = vpack.c.bf16 %v6035, %v6031
    %v6173 = vpack.c.bf16 %v6043, %v6039
    %v6174 = vpack.c.bf16 %v6045, %v6041
    %v6175 = vpack.c.bf16 %v6053, %v6049
    %v6176 = vpack.c.bf16 %v6055, %v6051
    %v6177 = vpack.c.bf16 %v6063, %v6059
    %v6178 = vpack.c.bf16 %v6065, %v6061
    %v6179 = vpack.c.bf16 %v6073, %v6069
    %v6180 = vpack.c.bf16 %v6075, %v6071
    %v6181 = vpack.c.bf16 %v6083, %v6079
    %v6182 = vpack.c.bf16 %v6085, %v6081
    %v6183 = vpack.c.bf16 %v6093, %v6089
    %v6184 = vpack.c.bf16 %v6095, %v6091
    %v6185 = vpack.c.bf16 %v6103, %v6099
    %v6186 = vpack.c.bf16 %v6105, %v6101
    %v6187 = vpack.c.bf16 %v6113, %v6109
    %v6188 = vpack.c.bf16 %v6115, %v6111
    %v6189 = vpack.c.bf16 %v6123, %v6119
    %v6190 = vpack.c.bf16 %v6125, %v6121
    %6191 = vmatprep.subr.bf16.mxu0 %v2303
    %6192 = vmatpush1.bf16.msra.mxu0 %v2302
    %6193 = vmatprep.subr.bf16.mxu0 %v2305
    %6194 = vmatpush1.bf16.msra.mxu0 %v2304
    %6195 = vmatprep.subr.bf16.mxu0 %v2307
    %6196 = vmatpush1.bf16.msra.mxu0 %v2306
    %6197 = vmatprep.subr.bf16.mxu0 %v2309
    %6198 = vmatpush1.bf16.msra.mxu0 %v2308
    %6199 = vmatprep.subr.bf16.mxu0 %v2311
    %6200 = vmatpush1.bf16.msra.mxu0 %v2310
    %6201 = vmatprep.subr.bf16.mxu0 %v2313
    %6202 = vmatpush1.bf16.msra.mxu0 %v2312
    %6203 = vmatprep.subr.bf16.mxu0 %v2315
    %6204 = vmatpush1.bf16.msra.mxu0 %v2314
    %6205 = vmatprep.subr.bf16.mxu0 %v2317
    %6206 = vmatpush1.bf16.msra.mxu0 %v2316
    %6207 = vmatprep.subr.bf16.mxu0 %v2319
    %6208 = vmatpush1.bf16.msra.mxu0 %v2318
    %6209 = vmatprep.subr.bf16.mxu0 %v2321
    %6210 = vmatpush1.bf16.msra.mxu0 %v2320
    %6211 = vmatprep.subr.bf16.mxu0 %v2323
    %6212 = vmatpush1.bf16.msra.mxu0 %v2322
    %6213 = vmatprep.subr.bf16.mxu0 %v2325
    %6214 = vmatpush1.bf16.msra.mxu0 %v2324
    %6215 = vmatprep.subr.bf16.mxu0 %v2327
    %6216 = vmatpush1.bf16.msra.mxu0 %v2326
    %6217 = vmatprep.subr.bf16.mxu0 %v2329
    %6218 = vmatpush1.bf16.msra.mxu0 %v2328
    %6219 = vmatprep.subr.bf16.mxu0 %v2331
    %6220 = vmatpush1.bf16.msra.mxu0 %v2330
    %6221 = vmatprep.subr.bf16.mxu0 %v2333
    %6222 = vmatpush1.bf16.msra.mxu0 %v2332
    %6223 = vmatprep.mubr.bf16.mxu0 %v6128
    %6224 = vmatmul.mubr.bf16.gmra.mrb[0].mxu0 %v6127
    %v6225 = vpop.f32.mrb[0].mxu0
    %v6226 = vadd.f32 %v2199, %v6225
    %v6227 = vpop.f32.mrb[0].mxu0
    %v6228 = vadd.f32 %v2203, %v6227
    %v6229 = vpop.f32.mrb[0].mxu0
    %v6230 = vadd.f32 %v2199, %v6229
    %v6231 = vpop.f32.mrb[0].mxu0
    %v6232 = vadd.f32 %v2203, %v6231
    %6233 = vmatprep.mubr.bf16.mxu0 %v6130
    %6234 = vmatmul.mubr.bf16.gmra.mrb[0].mxu0 %v6129
    %v6235 = vpop.f32.mrb[0].mxu0
    %v6236 = vadd.f32 %v2199, %v6235
    %v6237 = vpop.f32.mrb[0].mxu0
    %v6238 = vadd.f32 %v2203, %v6237
    %v6239 = vpop.f32.mrb[0].mxu0
    %v6240 = vadd.f32 %v2199, %v6239
    %v6241 = vpop.f32.mrb[0].mxu0
    %v6242 = vadd.f32 %v2203, %v6241
    %6243 = vmatprep.mubr.bf16.mxu0 %v6132
    %6244 = vmatmul.mubr.bf16.gmra.mrb[0].mxu0 %v6131
    %v6245 = vpop.f32.mrb[0].mxu0
    %v6246 = vadd.f32 %v2199, %v6245
    %v6247 = vpop.f32.mrb[0].mxu0
    %v6248 = vadd.f32 %v2203, %v6247
    %v6249 = vpop.f32.mrb[0].mxu0
    %v6250 = vadd.f32 %v2199, %v6249
    %v6251 = vpop.f32.mrb[0].mxu0
    %v6252 = vadd.f32 %v2203, %v6251
    %6253 = vmatprep.mubr.bf16.mxu0 %v6134
    %6254 = vmatmul.mubr.bf16.gmra.mrb[0].mxu0 %v6133
    %v6255 = vpop.f32.mrb[0].mxu0
    %v6256 = vadd.f32 %v2199, %v6255
    %v6257 = vpop.f32.mrb[0].mxu0
    %v6258 = vadd.f32 %v2203, %v6257
    %v6259 = vpop.f32.mrb[0].mxu0
    %v6260 = vadd.f32 %v2199, %v6259
    %v6261 = vpop.f32.mrb[0].mxu0
    %v6262 = vadd.f32 %v2203, %v6261
    %6263 = vmatprep.mubr.bf16.mxu0 %v6136
    %6264 = vmatmul.mubr.bf16.gmra.mrb[0].mxu0 %v6135
    %v6265 = vpop.f32.mrb[0].mxu0
    %v6266 = vadd.f32 %v2199, %v6265
    %v6267 = vpop.f32.mrb[0].mxu0
    %v6268 = vadd.f32 %v2203, %v6267
    %v6269 = vpop.f32.mrb[0].mxu0
    %v6270 = vadd.f32 %v2199, %v6269
    %v6271 = vpop.f32.mrb[0].mxu0
    %v6272 = vadd.f32 %v2203, %v6271
    %6273 = vmatprep.mubr.bf16.mxu0 %v6138
    %6274 = vmatmul.mubr.bf16.gmra.mrb[0].mxu0 %v6137
    %v6275 = vpop.f32.mrb[0].mxu0
    %v6276 = vadd.f32 %v2199, %v6275
    %v6277 = vpop.f32.mrb[0].mxu0
    %v6278 = vadd.f32 %v2203, %v6277
    %v6279 = vpop.f32.mrb[0].mxu0
    %v6280 = vadd.f32 %v2199, %v6279
    %v6281 = vpop.f32.mrb[0].mxu0
    %v6282 = vadd.f32 %v2203, %v6281
    %6283 = vmatprep.mubr.bf16.mxu0 %v6140
    %6284 = vmatmul.mubr.bf16.gmra.mrb[0].mxu0 %v6139
    %v6285 = vpop.f32.mrb[0].mxu0
    %v6286 = vadd.f32 %v2199, %v6285
    %v6287 = vpop.f32.mrb[0].mxu0
    %v6288 = vadd.f32 %v2203, %v6287
    %v6289 = vpop.f32.mrb[0].mxu0
    %v6290 = vadd.f32 %v2199, %v6289
    %v6291 = vpop.f32.mrb[0].mxu0
    %v6292 = vadd.f32 %v2203, %v6291
    %6293 = vmatprep.mubr.bf16.mxu0 %v6142
    %6294 = vmatmul.mubr.bf16.gmra.mrb[0].mxu0 %v6141
    %v6295 = vpop.f32.mrb[0].mxu0
    %v6296 = vadd.f32 %v2199, %v6295
    %v6297 = vpop.f32.mrb[0].mxu0
    %v6298 = vadd.f32 %v2203, %v6297
    %v6299 = vpop.f32.mrb[0].mxu0
    %v6300 = vadd.f32 %v2199, %v6299
    %v6301 = vpop.f32.mrb[0].mxu0
    %v6302 = vadd.f32 %v2203, %v6301
    %6303 = vmatprep.mubr.bf16.mxu0 %v6144
    %6304 = vmatmul.mubr.bf16.gmra.mrb[0].mxu0 %v6143
    %v6305 = vpop.f32.mrb[0].mxu0
    %v6306 = vadd.f32 %v2199, %v6305
    %v6307 = vpop.f32.mrb[0].mxu0
    %v6308 = vadd.f32 %v2203, %v6307
    %v6309 = vpop.f32.mrb[0].mxu0
    %v6310 = vadd.f32 %v2199, %v6309
    %v6311 = vpop.f32.mrb[0].mxu0
    %v6312 = vadd.f32 %v2203, %v6311
    %6313 = vmatprep.mubr.bf16.mxu0 %v6146
    %6314 = vmatmul.mubr.bf16.gmra.mrb[0].mxu0 %v6145
    %v6315 = vpop.f32.mrb[0].mxu0
    %v6316 = vadd.f32 %v2199, %v6315
    %v6317 = vpop.f32.mrb[0].mxu0
    %v6318 = vadd.f32 %v2203, %v6317
    %v6319 = vpop.f32.mrb[0].mxu0
    %v6320 = vadd.f32 %v2199, %v6319
    %v6321 = vpop.f32.mrb[0].mxu0
    %v6322 = vadd.f32 %v2203, %v6321
    %6323 = vmatprep.mubr.bf16.mxu0 %v6148
    %6324 = vmatmul.mubr.bf16.gmra.mrb[0].mxu0 %v6147
    %v6325 = vpop.f32.mrb[0].mxu0
    %v6326 = vadd.f32 %v2199, %v6325
    %v6327 = vpop.f32.mrb[0].mxu0
    %v6328 = vadd.f32 %v2203, %v6327
    %v6329 = vpop.f32.mrb[0].mxu0
    %v6330 = vadd.f32 %v2199, %v6329
    %v6331 = vpop.f32.mrb[0].mxu0
    %v6332 = vadd.f32 %v2203, %v6331
    %6333 = vmatprep.mubr.bf16.mxu0 %v6150
    %6334 = vmatmul.mubr.bf16.gmra.mrb[0].mxu0 %v6149
    %v6335 = vpop.f32.mrb[0].mxu0
    %v6336 = vadd.f32 %v2199, %v6335
    %v6337 = vpop.f32.mrb[0].mxu0
    %v6338 = vadd.f32 %v2203, %v6337
    %v6339 = vpop.f32.mrb[0].mxu0
    %v6340 = vadd.f32 %v2199, %v6339
    %v6341 = vpop.f32.mrb[0].mxu0
    %v6342 = vadd.f32 %v2203, %v6341
    %6343 = vmatprep.mubr.bf16.mxu0 %v6152
    %6344 = vmatmul.mubr.bf16.gmra.mrb[0].mxu0 %v6151
    %v6345 = vpop.f32.mrb[0].mxu0
    %v6346 = vadd.f32 %v2199, %v6345
    %v6347 = vpop.f32.mrb[0].mxu0
    %v6348 = vadd.f32 %v2203, %v6347
    %v6349 = vpop.f32.mrb[0].mxu0
    %v6350 = vadd.f32 %v2199, %v6349
    %v6351 = vpop.f32.mrb[0].mxu0
    %v6352 = vadd.f32 %v2203, %v6351
    %6353 = vmatprep.mubr.bf16.mxu0 %v6154
    %6354 = vmatmul.mubr.bf16.gmra.mrb[0].mxu0 %v6153
    %v6355 = vpop.f32.mrb[0].mxu0
    %v6356 = vadd.f32 %v2199, %v6355
    %v6357 = vpop.f32.mrb[0].mxu0
    %v6358 = vadd.f32 %v2203, %v6357
    %v6359 = vpop.f32.mrb[0].mxu0
    %v6360 = vadd.f32 %v2199, %v6359
    %v6361 = vpop.f32.mrb[0].mxu0
    %v6362 = vadd.f32 %v2203, %v6361
    %6363 = vmatprep.mubr.bf16.mxu0 %v6156
    %6364 = vmatmul.mubr.bf16.gmra.mrb[0].mxu0 %v6155
    %v6365 = vpop.f32.mrb[0].mxu0
    %v6366 = vadd.f32 %v2199, %v6365
    %v6367 = vpop.f32.mrb[0].mxu0
    %v6368 = vadd.f32 %v2203, %v6367
    %v6369 = vpop.f32.mrb[0].mxu0
    %v6370 = vadd.f32 %v2199, %v6369
    %v6371 = vpop.f32.mrb[0].mxu0
    %v6372 = vadd.f32 %v2203, %v6371
    %6373 = vmatprep.mubr.bf16.mxu0 %v6158
    %6374 = vmatmul.mubr.bf16.gmra.mrb[0].mxu0 %v6157
    %v6375 = vpop.f32.mrb[0].mxu0
    %v6376 = vadd.f32 %v2199, %v6375
    %v6377 = vpop.f32.mrb[0].mxu0
    %v6378 = vadd.f32 %v2203, %v6377
    %v6379 = vpop.f32.mrb[0].mxu0
    %v6380 = vadd.f32 %v2199, %v6379
    %v6381 = vpop.f32.mrb[0].mxu0
    %v6382 = vadd.f32 %v2203, %v6381
    %6383 = vmatprep.mubr.bf16.mxu0 %v6160
    %6384 = vmatmul.mubr.bf16.gmra.mrb[0].mxu0 %v6159
    %v6385 = vpop.f32.mrb[0].mxu0
    %v6386 = vadd.f32 %v2199, %v6385
    %v6387 = vpop.f32.mrb[0].mxu0
    %v6388 = vadd.f32 %v2203, %v6387
    %v6389 = vpop.f32.mrb[0].mxu0
    %v6390 = vadd.f32 %v2199, %v6389
    %v6391 = vpop.f32.mrb[0].mxu0
    %v6392 = vadd.f32 %v2203, %v6391
    %6393 = vmatprep.mubr.bf16.mxu0 %v6162
    %6394 = vmatmul.mubr.bf16.gmra.mrb[0].mxu0 %v6161
    %v6395 = vpop.f32.mrb[0].mxu0
    %v6396 = vadd.f32 %v2199, %v6395
    %v6397 = vpop.f32.mrb[0].mxu0
    %v6398 = vadd.f32 %v2203, %v6397
    %v6399 = vpop.f32.mrb[0].mxu0
    %v6400 = vadd.f32 %v2199, %v6399
    %v6401 = vpop.f32.mrb[0].mxu0
    %v6402 = vadd.f32 %v2203, %v6401
    %6403 = vmatprep.mubr.bf16.mxu0 %v6164
    %6404 = vmatmul.mubr.bf16.gmra.mrb[0].mxu0 %v6163
    %v6405 = vpop.f32.mrb[0].mxu0
    %v6406 = vadd.f32 %v2199, %v6405
    %v6407 = vpop.f32.mrb[0].mxu0
    %v6408 = vadd.f32 %v2203, %v6407
    %v6409 = vpop.f32.mrb[0].mxu0
    %v6410 = vadd.f32 %v2199, %v6409
    %v6411 = vpop.f32.mrb[0].mxu0
    %v6412 = vadd.f32 %v2203, %v6411
    %6413 = vmatprep.mubr.bf16.mxu0 %v6166
    %6414 = vmatmul.mubr.bf16.gmra.mrb[0].mxu0 %v6165
    %v6415 = vpop.f32.mrb[0].mxu0
    %v6416 = vadd.f32 %v2199, %v6415
    %v6417 = vpop.f32.mrb[0].mxu0
    %v6418 = vadd.f32 %v2203, %v6417
    %v6419 = vpop.f32.mrb[0].mxu0
    %v6420 = vadd.f32 %v2199, %v6419
    %v6421 = vpop.f32.mrb[0].mxu0
    %v6422 = vadd.f32 %v2203, %v6421
    %6423 = vmatprep.mubr.bf16.mxu0 %v6168
    %6424 = vmatmul.mubr.bf16.gmra.mrb[0].mxu0 %v6167
    %v6425 = vpop.f32.mrb[0].mxu0
    %v6426 = vadd.f32 %v2199, %v6425
    %v6427 = vpop.f32.mrb[0].mxu0
    %v6428 = vadd.f32 %v2203, %v6427
    %v6429 = vpop.f32.mrb[0].mxu0
    %v6430 = vadd.f32 %v2199, %v6429
    %v6431 = vpop.f32.mrb[0].mxu0
    %v6432 = vadd.f32 %v2203, %v6431
    %6433 = vmatprep.mubr.bf16.mxu0 %v6170
    %6434 = vmatmul.mubr.bf16.gmra.mrb[0].mxu0 %v6169
    %v6435 = vpop.f32.mrb[0].mxu0
    %v6436 = vadd.f32 %v2199, %v6435
    %v6437 = vpop.f32.mrb[0].mxu0
    %v6438 = vadd.f32 %v2203, %v6437
    %v6439 = vpop.f32.mrb[0].mxu0
    %v6440 = vadd.f32 %v2199, %v6439
    %v6441 = vpop.f32.mrb[0].mxu0
    %v6442 = vadd.f32 %v2203, %v6441
    %6443 = vmatprep.mubr.bf16.mxu0 %v6172
    %6444 = vmatmul.mubr.bf16.gmra.mrb[0].mxu0 %v6171
    %v6445 = vpop.f32.mrb[0].mxu0
    %v6446 = vadd.f32 %v2199, %v6445
    %v6447 = vpop.f32.mrb[0].mxu0
    %v6448 = vadd.f32 %v2203, %v6447
    %v6449 = vpop.f32.mrb[0].mxu0
    %v6450 = vadd.f32 %v2199, %v6449
    %v6451 = vpop.f32.mrb[0].mxu0
    %v6452 = vadd.f32 %v2203, %v6451
    %6453 = vmatprep.mubr.bf16.mxu0 %v6174
    %6454 = vmatmul.mubr.bf16.gmra.mrb[0].mxu0 %v6173
    %v6455 = vpop.f32.mrb[0].mxu0
    %v6456 = vadd.f32 %v2199, %v6455
    %v6457 = vpop.f32.mrb[0].mxu0
    %v6458 = vadd.f32 %v2203, %v6457
    %v6459 = vpop.f32.mrb[0].mxu0
    %v6460 = vadd.f32 %v2199, %v6459
    %v6461 = vpop.f32.mrb[0].mxu0
    %v6462 = vadd.f32 %v2203, %v6461
    %6463 = vmatprep.mubr.bf16.mxu0 %v6176
    %6464 = vmatmul.mubr.bf16.gmra.mrb[0].mxu0 %v6175
    %v6465 = vpop.f32.mrb[0].mxu0
    %v6466 = vadd.f32 %v2199, %v6465
    %v6467 = vpop.f32.mrb[0].mxu0
    %v6468 = vadd.f32 %v2203, %v6467
    %v6469 = vpop.f32.mrb[0].mxu0
    %v6470 = vadd.f32 %v2199, %v6469
    %v6471 = vpop.f32.mrb[0].mxu0
    %v6472 = vadd.f32 %v2203, %v6471
    %6473 = vmatprep.mubr.bf16.mxu0 %v6178
    %6474 = vmatmul.mubr.bf16.gmra.mrb[0].mxu0 %v6177
    %v6475 = vpop.f32.mrb[0].mxu0
    %v6476 = vadd.f32 %v2199, %v6475
    %v6477 = vpop.f32.mrb[0].mxu0
    %v6478 = vadd.f32 %v2203, %v6477
    %v6479 = vpop.f32.mrb[0].mxu0
    %v6480 = vadd.f32 %v2199, %v6479
    %v6481 = vpop.f32.mrb[0].mxu0
    %v6482 = vadd.f32 %v2203, %v6481
    %6483 = vmatprep.mubr.bf16.mxu0 %v6180
    %6484 = vmatmul.mubr.bf16.gmra.mrb[0].mxu0 %v6179
    %v6485 = vpop.f32.mrb[0].mxu0
    %v6486 = vadd.f32 %v2199, %v6485
    %v6487 = vpop.f32.mrb[0].mxu0
    %v6488 = vadd.f32 %v2203, %v6487
    %v6489 = vpop.f32.mrb[0].mxu0
    %v6490 = vadd.f32 %v2199, %v6489
    %v6491 = vpop.f32.mrb[0].mxu0
    %v6492 = vadd.f32 %v2203, %v6491
    %6493 = vmatprep.mubr.bf16.mxu0 %v6182
    %6494 = vmatmul.mubr.bf16.gmra.mrb[0].mxu0 %v6181
    %v6495 = vpop.f32.mrb[0].mxu0
    %v6496 = vadd.f32 %v2199, %v6495
    %v6497 = vpop.f32.mrb[0].mxu0
    %v6498 = vadd.f32 %v2203, %v6497
    %v6499 = vpop.f32.mrb[0].mxu0
    %v6500 = vadd.f32 %v2199, %v6499
    %v6501 = vpop.f32.mrb[0].mxu0
    %v6502 = vadd.f32 %v2203, %v6501
    %6503 = vmatprep.mubr.bf16.mxu0 %v6184
    %6504 = vmatmul.mubr.bf16.gmra.mrb[0].mxu0 %v6183
    %v6505 = vpop.f32.mrb[0].mxu0
    %v6506 = vadd.f32 %v2199, %v6505
    %v6507 = vpop.f32.mrb[0].mxu0
    %v6508 = vadd.f32 %v2203, %v6507
    %v6509 = vpop.f32.mrb[0].mxu0
    %v6510 = vadd.f32 %v2199, %v6509
    %v6511 = vpop.f32.mrb[0].mxu0
    %v6512 = vadd.f32 %v2203, %v6511
    %6513 = vmatprep.mubr.bf16.mxu0 %v6186
    %6514 = vmatmul.mubr.bf16.gmra.mrb[0].mxu0 %v6185
    %v6515 = vpop.f32.mrb[0].mxu0
    %v6516 = vadd.f32 %v2199, %v6515
    %v6517 = vpop.f32.mrb[0].mxu0
    %v6518 = vadd.f32 %v2203, %v6517
    %v6519 = vpop.f32.mrb[0].mxu0
    %v6520 = vadd.f32 %v2199, %v6519
    %v6521 = vpop.f32.mrb[0].mxu0
    %v6522 = vadd.f32 %v2203, %v6521
    %6523 = vmatprep.mubr.bf16.mxu0 %v6188
    %6524 = vmatmul.mubr.bf16.gmra.mrb[0].mxu0 %v6187
    %v6525 = vpop.f32.mrb[0].mxu0
    %v6526 = vadd.f32 %v2199, %v6525
    %v6527 = vpop.f32.mrb[0].mxu0
    %v6528 = vadd.f32 %v2203, %v6527
    %v6529 = vpop.f32.mrb[0].mxu0
    %v6530 = vadd.f32 %v2199, %v6529
    %v6531 = vpop.f32.mrb[0].mxu0
    %v6532 = vadd.f32 %v2203, %v6531
    %6533 = vmatprep.mubr.bf16.mxu0 %v6190
    %6534 = vmatmul.mubr.bf16.gmra.mrb[0].mxu0 %v6189
    %v6535 = vpop.f32.mrb[0].mxu0
    %v6536 = vadd.f32 %v2199, %v6535
    %v6537 = vpop.f32.mrb[0].mxu0
    %v6538 = vadd.f32 %v2203, %v6537
    %v6539 = vpop.f32.mrb[0].mxu0
    %v6540 = vadd.f32 %v2199, %v6539
    %v6541 = vpop.f32.mrb[0].mxu0
    %v6542 = vadd.f32 %v2203, %v6541
    %6543 = vdwg.mxu0
    %v6544 = vmul.f32 %v5809, %v5293
    %v6545 = vmul.f32 %v5811, %v5294
    %v6546 = vmul.f32 %v5813, %v5295
    %v6547 = vmul.f32 %v5815, %v5296
    %v6548 = vmul.f32 %v5819, %v5297
    %v6549 = vmul.f32 %v5821, %v5298
    %v6550 = vmul.f32 %v5823, %v5299
    %v6551 = vmul.f32 %v5825, %v5300
    %v6552 = vmul.f32 %v5829, %v5301
    %v6553 = vmul.f32 %v5831, %v5302
    %v6554 = vmul.f32 %v5833, %v5303
    %v6555 = vmul.f32 %v5835, %v5304
    %v6556 = vmul.f32 %v5839, %v5305
    %v6557 = vmul.f32 %v5841, %v5306
    %v6558 = vmul.f32 %v5843, %v5307
    %v6559 = vmul.f32 %v5845, %v5308
    %v6560 = vmul.f32 %v5849, %v5309
    %v6561 = vmul.f32 %v5851, %v5310
    %v6562 = vmul.f32 %v5853, %v5311
    %v6563 = vmul.f32 %v5855, %v5312
    %v6564 = vmul.f32 %v5859, %v5313
    %v6565 = vmul.f32 %v5861, %v5314
    %v6566 = vmul.f32 %v5863, %v5315
    %v6567 = vmul.f32 %v5865, %v5316
    %v6568 = vmul.f32 %v5869, %v5317
    %v6569 = vmul.f32 %v5871, %v5318
    %v6570 = vmul.f32 %v5873, %v5319
    %v6571 = vmul.f32 %v5875, %v5320
    %v6572 = vmul.f32 %v5879, %v5321
    %v6573 = vmul.f32 %v5881, %v5322
    %v6574 = vmul.f32 %v5883, %v5323
    %v6575 = vmul.f32 %v5885, %v5324
    %v6576 = vmul.f32 %v5889, %v5325
    %v6577 = vmul.f32 %v5891, %v5326
    %v6578 = vmul.f32 %v5893, %v5327
    %v6579 = vmul.f32 %v5895, %v5328
    %v6580 = vmul.f32 %v5899, %v5329
    %v6581 = vmul.f32 %v5901, %v5330
    %v6582 = vmul.f32 %v5903, %v5331
    %v6583 = vmul.f32 %v5905, %v5332
    %v6584 = vmul.f32 %v5909, %v5333
    %v6585 = vmul.f32 %v5911, %v5334
    %v6586 = vmul.f32 %v5913, %v5335
    %v6587 = vmul.f32 %v5915, %v5336
    %v6588 = vmul.f32 %v5919, %v5337
    %v6589 = vmul.f32 %v5921, %v5338
    %v6590 = vmul.f32 %v5923, %v5339
    %v6591 = vmul.f32 %v5925, %v5340
    %v6592 = vmul.f32 %v5929, %v5341
    %v6593 = vmul.f32 %v5931, %v5342
    %v6594 = vmul.f32 %v5933, %v5343
    %v6595 = vmul.f32 %v5935, %v5344
    %v6596 = vmul.f32 %v5939, %v5345
    %v6597 = vmul.f32 %v5941, %v5346
    %v6598 = vmul.f32 %v5943, %v5347
    %v6599 = vmul.f32 %v5945, %v5348
    %v6600 = vmul.f32 %v5949, %v5349
    %v6601 = vmul.f32 %v5951, %v5350
    %v6602 = vmul.f32 %v5953, %v5351
    %v6603 = vmul.f32 %v5955, %v5352
    %v6604 = vmul.f32 %v5959, %v5353
    %v6605 = vmul.f32 %v5961, %v5354
    %v6606 = vmul.f32 %v5963, %v5355
    %v6607 = vmul.f32 %v5965, %v5356
    %v6608 = vmul.f32 %v5969, %v5357
    %v6609 = vmul.f32 %v5971, %v5358
    %v6610 = vmul.f32 %v5973, %v5359
    %v6611 = vmul.f32 %v5975, %v5360
    %v6612 = vmul.f32 %v5979, %v5361
    %v6613 = vmul.f32 %v5981, %v5362
    %v6614 = vmul.f32 %v5983, %v5363
    %v6615 = vmul.f32 %v5985, %v5364
    %v6616 = vmul.f32 %v5989, %v5365
    %v6617 = vmul.f32 %v5991, %v5366
    %v6618 = vmul.f32 %v5993, %v5367
    %v6619 = vmul.f32 %v5995, %v5368
    %v6620 = vmul.f32 %v5999, %v5369
    %v6621 = vmul.f32 %v6001, %v5370
    %v6622 = vmul.f32 %v6003, %v5371
    %v6623 = vmul.f32 %v6005, %v5372
    %v6624 = vmul.f32 %v6009, %v5373
    %v6625 = vmul.f32 %v6011, %v5374
    %v6626 = vmul.f32 %v6013, %v5375
    %v6627 = vmul.f32 %v6015, %v5376
    %v6628 = vmul.f32 %v6019, %v5377
    %v6629 = vmul.f32 %v6021, %v5378
    %v6630 = vmul.f32 %v6023, %v5379
    %v6631 = vmul.f32 %v6025, %v5380
    %v6632 = vmul.f32 %v6029, %v5381
    %v6633 = vmul.f32 %v6031, %v5382
    %v6634 = vmul.f32 %v6033, %v5383
    %v6635 = vmul.f32 %v6035, %v5384
    %v6636 = vmul.f32 %v6039, %v5385
    %v6637 = vmul.f32 %v6041, %v5386
    %v6638 = vmul.f32 %v6043, %v5387
    %v6639 = vmul.f32 %v6045, %v5388
    %v6640 = vmul.f32 %v6049, %v5389
    %v6641 = vmul.f32 %v6051, %v5390
    %v6642 = vmul.f32 %v6053, %v5391
    %v6643 = vmul.f32 %v6055, %v5392
    %v6644 = vmul.f32 %v6059, %v5393
    %v6645 = vmul.f32 %v6061, %v5394
    %v6646 = vmul.f32 %v6063, %v5395
    %v6647 = vmul.f32 %v6065, %v5396
    %v6648 = vmul.f32 %v6069, %v5397
    %v6649 = vmul.f32 %v6071, %v5398
    %v6650 = vmul.f32 %v6073, %v5399
    %v6651 = vmul.f32 %v6075, %v5400
    %v6652 = vmul.f32 %v6079, %v5401
    %v6653 = vmul.f32 %v6081, %v5402
    %v6654 = vmul.f32 %v6083, %v5403
    %v6655 = vmul.f32 %v6085, %v5404
    %v6656 = vmul.f32 %v6089, %v5405
    %v6657 = vmul.f32 %v6091, %v5406
    %v6658 = vmul.f32 %v6093, %v5407
    %v6659 = vmul.f32 %v6095, %v5408
    %v6660 = vmul.f32 %v6099, %v5409
    %v6661 = vmul.f32 %v6101, %v5410
    %v6662 = vmul.f32 %v6103, %v5411
    %v6663 = vmul.f32 %v6105, %v5412
    %v6664 = vmul.f32 %v6109, %v5413
    %v6665 = vmul.f32 %v6111, %v5414
    %v6666 = vmul.f32 %v6113, %v5415
    %v6667 = vmul.f32 %v6115, %v5416
    %v6668 = vmul.f32 %v6119, %v5417
    %v6669 = vmul.f32 %v6121, %v5418
    %v6670 = vmul.f32 %v6123, %v5419
    %v6671 = vmul.f32 %v6125, %v5420
    %v6672 = vpack.c.bf16 %v6546, %v6544
    %v6673 = vpack.c.bf16 %v6547, %v6545
    %v6674 = vpack.c.bf16 %v6550, %v6548
    %v6675 = vpack.c.bf16 %v6551, %v6549
    %v6676 = vpack.c.bf16 %v6554, %v6552
    %v6677 = vpack.c.bf16 %v6555, %v6553
    %v6678 = vpack.c.bf16 %v6558, %v6556
    %v6679 = vpack.c.bf16 %v6559, %v6557
    %v6680 = vpack.c.bf16 %v6562, %v6560
    %v6681 = vpack.c.bf16 %v6563, %v6561
    %v6682 = vpack.c.bf16 %v6566, %v6564
    %v6683 = vpack.c.bf16 %v6567, %v6565
    %v6684 = vpack.c.bf16 %v6570, %v6568
    %v6685 = vpack.c.bf16 %v6571, %v6569
    %v6686 = vpack.c.bf16 %v6574, %v6572
    %v6687 = vpack.c.bf16 %v6575, %v6573
    %v6688 = vpack.c.bf16 %v6578, %v6576
    %v6689 = vpack.c.bf16 %v6579, %v6577
    %v6690 = vpack.c.bf16 %v6582, %v6580
    %v6691 = vpack.c.bf16 %v6583, %v6581
    %v6692 = vpack.c.bf16 %v6586, %v6584
    %v6693 = vpack.c.bf16 %v6587, %v6585
    %v6694 = vpack.c.bf16 %v6590, %v6588
    %v6695 = vpack.c.bf16 %v6591, %v6589
    %v6696 = vpack.c.bf16 %v6594, %v6592
    %v6697 = vpack.c.bf16 %v6595, %v6593
    %v6698 = vpack.c.bf16 %v6598, %v6596
    %v6699 = vpack.c.bf16 %v6599, %v6597
    %v6700 = vpack.c.bf16 %v6602, %v6600
    %v6701 = vpack.c.bf16 %v6603, %v6601
    %v6702 = vpack.c.bf16 %v6606, %v6604
    %v6703 = vpack.c.bf16 %v6607, %v6605
    %v6704 = vpack.c.bf16 %v6610, %v6608
    %v6705 = vpack.c.bf16 %v6611, %v6609
    %v6706 = vpack.c.bf16 %v6614, %v6612
    %v6707 = vpack.c.bf16 %v6615, %v6613
    %v6708 = vpack.c.bf16 %v6618, %v6616
    %v6709 = vpack.c.bf16 %v6619, %v6617
    %v6710 = vpack.c.bf16 %v6622, %v6620
    %v6711 = vpack.c.bf16 %v6623, %v6621
    %v6712 = vpack.c.bf16 %v6626, %v6624
    %v6713 = vpack.c.bf16 %v6627, %v6625
    %v6714 = vpack.c.bf16 %v6630, %v6628
    %v6715 = vpack.c.bf16 %v6631, %v6629
    %v6716 = vpack.c.bf16 %v6634, %v6632
    %v6717 = vpack.c.bf16 %v6635, %v6633
    %v6718 = vpack.c.bf16 %v6638, %v6636
    %v6719 = vpack.c.bf16 %v6639, %v6637
    %v6720 = vpack.c.bf16 %v6642, %v6640
    %v6721 = vpack.c.bf16 %v6643, %v6641
    %v6722 = vpack.c.bf16 %v6646, %v6644
    %v6723 = vpack.c.bf16 %v6647, %v6645
    %v6724 = vpack.c.bf16 %v6650, %v6648
    %v6725 = vpack.c.bf16 %v6651, %v6649
    %v6726 = vpack.c.bf16 %v6654, %v6652
    %v6727 = vpack.c.bf16 %v6655, %v6653
    %v6728 = vpack.c.bf16 %v6658, %v6656
    %v6729 = vpack.c.bf16 %v6659, %v6657
    %v6730 = vpack.c.bf16 %v6662, %v6660
    %v6731 = vpack.c.bf16 %v6663, %v6661
    %v6732 = vpack.c.bf16 %v6666, %v6664
    %v6733 = vpack.c.bf16 %v6667, %v6665
    %v6734 = vpack.c.bf16 %v6670, %v6668
    %v6735 = vpack.c.bf16 %v6671, %v6669
    %6736 = vmatprep.subr.bf16.mxu0 %v6673
    %6737 = vmatpush1.bf16.msra.mxu0 %v6672
    %6738 = vmatprep.subr.bf16.mxu0 %v6675
    %6739 = vmatpush1.bf16.msra.mxu0 %v6674
    %6740 = vmatprep.subr.bf16.mxu0 %v6677
    %6741 = vmatpush1.bf16.msra.mxu0 %v6676
    %6742 = vmatprep.subr.bf16.mxu0 %v6679
    %6743 = vmatpush1.bf16.msra.mxu0 %v6678
    %6744 = vmatprep.subr.bf16.mxu0 %v6681
    %6745 = vmatpush1.bf16.msra.mxu0 %v6680
    %6746 = vmatprep.subr.bf16.mxu0 %v6683
    %6747 = vmatpush1.bf16.msra.mxu0 %v6682
    %6748 = vmatprep.subr.bf16.mxu0 %v6685
    %6749 = vmatpush1.bf16.msra.mxu0 %v6684
    %6750 = vmatprep.subr.bf16.mxu0 %v6687
    %6751 = vmatpush1.bf16.msra.mxu0 %v6686
    %6752 = vmatprep.subr.bf16.mxu0 %v6689
    %6753 = vmatpush1.bf16.msra.mxu0 %v6688
    %6754 = vmatprep.subr.bf16.mxu0 %v6691
    %6755 = vmatpush1.bf16.msra.mxu0 %v6690
    %6756 = vmatprep.subr.bf16.mxu0 %v6693
    %6757 = vmatpush1.bf16.msra.mxu0 %v6692
    %6758 = vmatprep.subr.bf16.mxu0 %v6695
    %6759 = vmatpush1.bf16.msra.mxu0 %v6694
    %6760 = vmatprep.subr.bf16.mxu0 %v6697
    %6761 = vmatpush1.bf16.msra.mxu0 %v6696
    %6762 = vmatprep.subr.bf16.mxu0 %v6699
    %6763 = vmatpush1.bf16.msra.mxu0 %v6698
    %6764 = vmatprep.subr.bf16.mxu0 %v6701
    %6765 = vmatpush1.bf16.msra.mxu0 %v6700
    %6766 = vmatprep.subr.bf16.mxu0 %v6703
    %6767 = vmatpush1.bf16.msra.mxu0 %v6702
    %6768 = vmatprep.mubr.bf16.mxu0 %v850
    %6769 = vmatmul.mubr.bf16.gmra.mrb[0].mxu0 %v849
    %v6770 = vpop.f32.mrb[0].mxu0
    %v6771 = vadd.f32 0.0, %v6770
    %v6772 = vpop.f32.mrb[0].mxu0
    %v6773 = vadd.f32 0.0, %v6772
    %v6774 = vpop.f32.mrb[0].mxu0
    %v6775 = vadd.f32 0.0, %v6774
    %v6776 = vpop.f32.mrb[0].mxu0
    %v6777 = vadd.f32 0.0, %v6776
    %6778 = vmatprep.mubr.bf16.mxu0 %v854
    %6779 = vmatmul.mubr.bf16.gmra.mrb[0].mxu0 %v853
    %v6780 = vpop.f32.mrb[0].mxu0
    %v6781 = vadd.f32 0.0, %v6780
    %v6782 = vpop.f32.mrb[0].mxu0
    %v6783 = vadd.f32 0.0, %v6782
    %v6784 = vpop.f32.mrb[0].mxu0
    %v6785 = vadd.f32 0.0, %v6784
    %v6786 = vpop.f32.mrb[0].mxu0
    %v6787 = vadd.f32 0.0, %v6786
    %6788 = vmatprep.mubr.bf16.mxu0 %v858
    %6789 = vmatmul.mubr.bf16.gmra.mrb[0].mxu0 %v857
    %v6790 = vpop.f32.mrb[0].mxu0
    %v6791 = vadd.f32 0.0, %v6790
    %v6792 = vpop.f32.mrb[0].mxu0
    %v6793 = vadd.f32 0.0, %v6792
    %v6794 = vpop.f32.mrb[0].mxu0
    %v6795 = vadd.f32 0.0, %v6794
    %v6796 = vpop.f32.mrb[0].mxu0
    %v6797 = vadd.f32 0.0, %v6796
    %6798 = vmatprep.mubr.bf16.mxu0 %v862
    %6799 = vmatmul.mubr.bf16.gmra.mrb[0].mxu0 %v861
    %v6800 = vpop.f32.mrb[0].mxu0
    %v6801 = vadd.f32 0.0, %v6800
    %v6802 = vpop.f32.mrb[0].mxu0
    %v6803 = vadd.f32 0.0, %v6802
    %v6804 = vpop.f32.mrb[0].mxu0
    %v6805 = vadd.f32 0.0, %v6804
    %v6806 = vpop.f32.mrb[0].mxu0
    %v6807 = vadd.f32 0.0, %v6806
    %6808 = vmatprep.mubr.bf16.mxu0 %v866
    %6809 = vmatmul.mubr.bf16.gmra.mrb[0].mxu0 %v865
    %v6810 = vpop.f32.mrb[0].mxu0
    %v6811 = vadd.f32 0.0, %v6810
    %v6812 = vpop.f32.mrb[0].mxu0
    %v6813 = vadd.f32 0.0, %v6812
    %v6814 = vpop.f32.mrb[0].mxu0
    %v6815 = vadd.f32 0.0, %v6814
    %v6816 = vpop.f32.mrb[0].mxu0
    %v6817 = vadd.f32 0.0, %v6816
    %6818 = vmatprep.mubr.bf16.mxu0 %v870
    %6819 = vmatmul.mubr.bf16.gmra.mrb[0].mxu0 %v869
    %v6820 = vpop.f32.mrb[0].mxu0
    %v6821 = vadd.f32 0.0, %v6820
    %v6822 = vpop.f32.mrb[0].mxu0
    %v6823 = vadd.f32 0.0, %v6822
    %v6824 = vpop.f32.mrb[0].mxu0
    %v6825 = vadd.f32 0.0, %v6824
    %v6826 = vpop.f32.mrb[0].mxu0
    %v6827 = vadd.f32 0.0, %v6826
    %6828 = vmatprep.mubr.bf16.mxu0 %v874
    %6829 = vmatmul.mubr.bf16.gmra.mrb[0].mxu0 %v873
    %v6830 = vpop.f32.mrb[0].mxu0
    %v6831 = vadd.f32 0.0, %v6830
    %v6832 = vpop.f32.mrb[0].mxu0
    %v6833 = vadd.f32 0.0, %v6832
    %v6834 = vpop.f32.mrb[0].mxu0
    %v6835 = vadd.f32 0.0, %v6834
    %v6836 = vpop.f32.mrb[0].mxu0
    %v6837 = vadd.f32 0.0, %v6836
    %6838 = vmatprep.mubr.bf16.mxu0 %v878
    %6839 = vmatmul.mubr.bf16.gmra.mrb[0].mxu0 %v877
    %v6840 = vpop.f32.mrb[0].mxu0
    %v6841 = vadd.f32 0.0, %v6840
    %v6842 = vpop.f32.mrb[0].mxu0
    %v6843 = vadd.f32 0.0, %v6842
    %v6844 = vpop.f32.mrb[0].mxu0
    %v6845 = vadd.f32 0.0, %v6844
    %v6846 = vpop.f32.mrb[0].mxu0
    %v6847 = vadd.f32 0.0, %v6846
    %6848 = vmatprep.mubr.bf16.mxu0 %v882
    %6849 = vmatmul.mubr.bf16.gmra.mrb[0].mxu0 %v881
    %v6850 = vpop.f32.mrb[0].mxu0
    %v6851 = vadd.f32 0.0, %v6850
    %v6852 = vpop.f32.mrb[0].mxu0
    %v6853 = vadd.f32 0.0, %v6852
    %v6854 = vpop.f32.mrb[0].mxu0
    %v6855 = vadd.f32 0.0, %v6854
    %v6856 = vpop.f32.mrb[0].mxu0
    %v6857 = vadd.f32 0.0, %v6856
    %6858 = vmatprep.mubr.bf16.mxu0 %v886
    %6859 = vmatmul.mubr.bf16.gmra.mrb[0].mxu0 %v885
    %v6860 = vpop.f32.mrb[0].mxu0
    %v6861 = vadd.f32 0.0, %v6860
    %v6862 = vpop.f32.mrb[0].mxu0
    %v6863 = vadd.f32 0.0, %v6862
    %v6864 = vpop.f32.mrb[0].mxu0
    %v6865 = vadd.f32 0.0, %v6864
    %v6866 = vpop.f32.mrb[0].mxu0
    %v6867 = vadd.f32 0.0, %v6866
    %6868 = vmatprep.mubr.bf16.mxu0 %v890
    %6869 = vmatmul.mubr.bf16.gmra.mrb[0].mxu0 %v889
    %v6870 = vpop.f32.mrb[0].mxu0
    %v6871 = vadd.f32 0.0, %v6870
    %v6872 = vpop.f32.mrb[0].mxu0
    %v6873 = vadd.f32 0.0, %v6872
    %v6874 = vpop.f32.mrb[0].mxu0
    %v6875 = vadd.f32 0.0, %v6874
    %v6876 = vpop.f32.mrb[0].mxu0
    %v6877 = vadd.f32 0.0, %v6876
    %6878 = vmatprep.mubr.bf16.mxu0 %v894
    %6879 = vmatmul.mubr.bf16.gmra.mrb[0].mxu0 %v893
    %v6880 = vpop.f32.mrb[0].mxu0
    %v6881 = vadd.f32 0.0, %v6880
    %v6882 = vpop.f32.mrb[0].mxu0
    %v6883 = vadd.f32 0.0, %v6882
    %v6884 = vpop.f32.mrb[0].mxu0
    %v6885 = vadd.f32 0.0, %v6884
    %v6886 = vpop.f32.mrb[0].mxu0
    %v6887 = vadd.f32 0.0, %v6886
    %6888 = vmatprep.mubr.bf16.mxu0 %v898
    %6889 = vmatmul.mubr.bf16.gmra.mrb[0].mxu0 %v897
    %v6890 = vpop.f32.mrb[0].mxu0
    %v6891 = vadd.f32 0.0, %v6890
    %v6892 = vpop.f32.mrb[0].mxu0
    %v6893 = vadd.f32 0.0, %v6892
    %v6894 = vpop.f32.mrb[0].mxu0
    %v6895 = vadd.f32 0.0, %v6894
    %v6896 = vpop.f32.mrb[0].mxu0
    %v6897 = vadd.f32 0.0, %v6896
    %6898 = vmatprep.mubr.bf16.mxu0 %v902
    %6899 = vmatmul.mubr.bf16.gmra.mrb[0].mxu0 %v901
    %v6900 = vpop.f32.mrb[0].mxu0
    %v6901 = vadd.f32 0.0, %v6900
    %v6902 = vpop.f32.mrb[0].mxu0
    %v6903 = vadd.f32 0.0, %v6902
    %v6904 = vpop.f32.mrb[0].mxu0
    %v6905 = vadd.f32 0.0, %v6904
    %v6906 = vpop.f32.mrb[0].mxu0
    %v6907 = vadd.f32 0.0, %v6906
    %6908 = vmatprep.mubr.bf16.mxu0 %v906
    %6909 = vmatmul.mubr.bf16.gmra.mrb[0].mxu0 %v905
    %v6910 = vpop.f32.mrb[0].mxu0
    %v6911 = vadd.f32 0.0, %v6910
    %v6912 = vpop.f32.mrb[0].mxu0
    %v6913 = vadd.f32 0.0, %v6912
    %v6914 = vpop.f32.mrb[0].mxu0
    %v6915 = vadd.f32 0.0, %v6914
    %v6916 = vpop.f32.mrb[0].mxu0
    %v6917 = vadd.f32 0.0, %v6916
    %6918 = vmatprep.mubr.bf16.mxu0 %v910
    %6919 = vmatmul.mubr.bf16.gmra.mrb[0].mxu0 %v909
    %v6920 = vpop.f32.mrb[0].mxu0
    %v6921 = vadd.f32 0.0, %v6920
    %v6922 = vpop.f32.mrb[0].mxu0
    %v6923 = vadd.f32 0.0, %v6922
    %v6924 = vpop.f32.mrb[0].mxu0
    %v6925 = vadd.f32 0.0, %v6924
    %v6926 = vpop.f32.mrb[0].mxu0
    %v6927 = vadd.f32 0.0, %v6926
    %6928 = vmatprep.mubr.bf16.mxu0 %v914
    %6929 = vmatmul.mubr.bf16.gmra.mrb[0].mxu0 %v913
    %v6930 = vpop.f32.mrb[0].mxu0
    %v6931 = vadd.f32 0.0, %v6930
    %v6932 = vpop.f32.mrb[0].mxu0
    %v6933 = vadd.f32 0.0, %v6932
    %v6934 = vpop.f32.mrb[0].mxu0
    %v6935 = vadd.f32 0.0, %v6934
    %v6936 = vpop.f32.mrb[0].mxu0
    %v6937 = vadd.f32 0.0, %v6936
    %6938 = vmatprep.mubr.bf16.mxu0 %v918
    %6939 = vmatmul.mubr.bf16.gmra.mrb[0].mxu0 %v917
    %v6940 = vpop.f32.mrb[0].mxu0
    %v6941 = vadd.f32 0.0, %v6940
    %v6942 = vpop.f32.mrb[0].mxu0
    %v6943 = vadd.f32 0.0, %v6942
    %v6944 = vpop.f32.mrb[0].mxu0
    %v6945 = vadd.f32 0.0, %v6944
    %v6946 = vpop.f32.mrb[0].mxu0
    %v6947 = vadd.f32 0.0, %v6946
    %6948 = vmatprep.mubr.bf16.mxu0 %v922
    %6949 = vmatmul.mubr.bf16.gmra.mrb[0].mxu0 %v921
    %v6950 = vpop.f32.mrb[0].mxu0
    %v6951 = vadd.f32 0.0, %v6950
    %v6952 = vpop.f32.mrb[0].mxu0
    %v6953 = vadd.f32 0.0, %v6952
    %v6954 = vpop.f32.mrb[0].mxu0
    %v6955 = vadd.f32 0.0, %v6954
    %v6956 = vpop.f32.mrb[0].mxu0
    %v6957 = vadd.f32 0.0, %v6956
    %6958 = vmatprep.mubr.bf16.mxu0 %v926
    %6959 = vmatmul.mubr.bf16.gmra.mrb[0].mxu0 %v925
    %v6960 = vpop.f32.mrb[0].mxu0
    %v6961 = vadd.f32 0.0, %v6960
    %v6962 = vpop.f32.mrb[0].mxu0
    %v6963 = vadd.f32 0.0, %v6962
    %v6964 = vpop.f32.mrb[0].mxu0
    %v6965 = vadd.f32 0.0, %v6964
    %v6966 = vpop.f32.mrb[0].mxu0
    %v6967 = vadd.f32 0.0, %v6966
    %6968 = vmatprep.mubr.bf16.mxu0 %v930
    %6969 = vmatmul.mubr.bf16.gmra.mrb[0].mxu0 %v929
    %v6970 = vpop.f32.mrb[0].mxu0
    %v6971 = vadd.f32 0.0, %v6970
    %v6972 = vpop.f32.mrb[0].mxu0
    %v6973 = vadd.f32 0.0, %v6972
    %v6974 = vpop.f32.mrb[0].mxu0
    %v6975 = vadd.f32 0.0, %v6974
    %v6976 = vpop.f32.mrb[0].mxu0
    %v6977 = vadd.f32 0.0, %v6976
    %6978 = vmatprep.mubr.bf16.mxu0 %v934
    %6979 = vmatmul.mubr.bf16.gmra.mrb[0].mxu0 %v933
    %v6980 = vpop.f32.mrb[0].mxu0
    %v6981 = vadd.f32 0.0, %v6980
    %v6982 = vpop.f32.mrb[0].mxu0
    %v6983 = vadd.f32 0.0, %v6982
    %v6984 = vpop.f32.mrb[0].mxu0
    %v6985 = vadd.f32 0.0, %v6984
    %v6986 = vpop.f32.mrb[0].mxu0
    %v6987 = vadd.f32 0.0, %v6986
    %6988 = vmatprep.mubr.bf16.mxu0 %v938
    %6989 = vmatmul.mubr.bf16.gmra.mrb[0].mxu0 %v937
    %v6990 = vpop.f32.mrb[0].mxu0
    %v6991 = vadd.f32 0.0, %v6990
    %v6992 = vpop.f32.mrb[0].mxu0
    %v6993 = vadd.f32 0.0, %v6992
    %v6994 = vpop.f32.mrb[0].mxu0
    %v6995 = vadd.f32 0.0, %v6994
    %v6996 = vpop.f32.mrb[0].mxu0
    %v6997 = vadd.f32 0.0, %v6996
    %6998 = vmatprep.mubr.bf16.mxu0 %v942
    %6999 = vmatmul.mubr.bf16.gmra.mrb[0].mxu0 %v941
    %v7000 = vpop.f32.mrb[0].mxu0
    %v7001 = vadd.f32 0.0, %v7000
    %v7002 = vpop.f32.mrb[0].mxu0
    %v7003 = vadd.f32 0.0, %v7002
    %v7004 = vpop.f32.mrb[0].mxu0
    %v7005 = vadd.f32 0.0, %v7004
    %v7006 = vpop.f32.mrb[0].mxu0
    %v7007 = vadd.f32 0.0, %v7006
    %7008 = vmatprep.mubr.bf16.mxu0 %v946
    %7009 = vmatmul.mubr.bf16.gmra.mrb[0].mxu0 %v945
    %v7010 = vpop.f32.mrb[0].mxu0
    %v7011 = vadd.f32 0.0, %v7010
    %v7012 = vpop.f32.mrb[0].mxu0
    %v7013 = vadd.f32 0.0, %v7012
    %v7014 = vpop.f32.mrb[0].mxu0
    %v7015 = vadd.f32 0.0, %v7014
    %v7016 = vpop.f32.mrb[0].mxu0
    %v7017 = vadd.f32 0.0, %v7016
    %7018 = vmatprep.mubr.bf16.mxu0 %v950
    %7019 = vmatmul.mubr.bf16.gmra.mrb[0].mxu0 %v949
    %v7020 = vpop.f32.mrb[0].mxu0
    %v7021 = vadd.f32 0.0, %v7020
    %v7022 = vpop.f32.mrb[0].mxu0
    %v7023 = vadd.f32 0.0, %v7022
    %v7024 = vpop.f32.mrb[0].mxu0
    %v7025 = vadd.f32 0.0, %v7024
    %v7026 = vpop.f32.mrb[0].mxu0
    %v7027 = vadd.f32 0.0, %v7026
    %7028 = vmatprep.mubr.bf16.mxu0 %v954
    %7029 = vmatmul.mubr.bf16.gmra.mrb[0].mxu0 %v953
    %v7030 = vpop.f32.mrb[0].mxu0
    %v7031 = vadd.f32 0.0, %v7030
    %v7032 = vpop.f32.mrb[0].mxu0
    %v7033 = vadd.f32 0.0, %v7032
    %v7034 = vpop.f32.mrb[0].mxu0
    %v7035 = vadd.f32 0.0, %v7034
    %v7036 = vpop.f32.mrb[0].mxu0
    %v7037 = vadd.f32 0.0, %v7036
    %7038 = vmatprep.mubr.bf16.mxu0 %v958
    %7039 = vmatmul.mubr.bf16.gmra.mrb[0].mxu0 %v957
    %v7040 = vpop.f32.mrb[0].mxu0
    %v7041 = vadd.f32 0.0, %v7040
    %v7042 = vpop.f32.mrb[0].mxu0
    %v7043 = vadd.f32 0.0, %v7042
    %v7044 = vpop.f32.mrb[0].mxu0
    %v7045 = vadd.f32 0.0, %v7044
    %v7046 = vpop.f32.mrb[0].mxu0
    %v7047 = vadd.f32 0.0, %v7046
    %7048 = vmatprep.mubr.bf16.mxu0 %v962
    %7049 = vmatmul.mubr.bf16.gmra.mrb[0].mxu0 %v961
    %v7050 = vpop.f32.mrb[0].mxu0
    %v7051 = vadd.f32 0.0, %v7050
    %v7052 = vpop.f32.mrb[0].mxu0
    %v7053 = vadd.f32 0.0, %v7052
    %v7054 = vpop.f32.mrb[0].mxu0
    %v7055 = vadd.f32 0.0, %v7054
    %v7056 = vpop.f32.mrb[0].mxu0
    %v7057 = vadd.f32 0.0, %v7056
    %7058 = vmatprep.mubr.bf16.mxu0 %v966
    %7059 = vmatmul.mubr.bf16.gmra.mrb[0].mxu0 %v965
    %v7060 = vpop.f32.mrb[0].mxu0
    %v7061 = vadd.f32 0.0, %v7060
    %v7062 = vpop.f32.mrb[0].mxu0
    %v7063 = vadd.f32 0.0, %v7062
    %v7064 = vpop.f32.mrb[0].mxu0
    %v7065 = vadd.f32 0.0, %v7064
    %v7066 = vpop.f32.mrb[0].mxu0
    %v7067 = vadd.f32 0.0, %v7066
    %7068 = vmatprep.mubr.bf16.mxu0 %v970
    %7069 = vmatmul.mubr.bf16.gmra.mrb[0].mxu0 %v969
    %v7070 = vpop.f32.mrb[0].mxu0
    %v7071 = vadd.f32 0.0, %v7070
    %v7072 = vpop.f32.mrb[0].mxu0
    %v7073 = vadd.f32 0.0, %v7072
    %v7074 = vpop.f32.mrb[0].mxu0
    %v7075 = vadd.f32 0.0, %v7074
    %v7076 = vpop.f32.mrb[0].mxu0
    %v7077 = vadd.f32 0.0, %v7076
    %7078 = vmatprep.mubr.bf16.mxu0 %v974
    %7079 = vmatmul.mubr.bf16.gmra.mrb[0].mxu0 %v973
    %v7080 = vpop.f32.mrb[0].mxu0
    %v7081 = vadd.f32 0.0, %v7080
    %v7082 = vpop.f32.mrb[0].mxu0
    %v7083 = vadd.f32 0.0, %v7082
    %v7084 = vpop.f32.mrb[0].mxu0
    %v7085 = vadd.f32 0.0, %v7084
    %v7086 = vpop.f32.mrb[0].mxu0
    %v7087 = vadd.f32 0.0, %v7086
    %7088 = vdwg.mxu0
    %7089 = vmatprep.subr.bf16.mxu0 %v6705
    %7090 = vmatpush1.bf16.msra.mxu0 %v6704
    %7091 = vmatprep.subr.bf16.mxu0 %v6707
    %7092 = vmatpush1.bf16.msra.mxu0 %v6706
    %7093 = vmatprep.subr.bf16.mxu0 %v6709
    %7094 = vmatpush1.bf16.msra.mxu0 %v6708
    %7095 = vmatprep.subr.bf16.mxu0 %v6711
    %7096 = vmatpush1.bf16.msra.mxu0 %v6710
    %7097 = vmatprep.subr.bf16.mxu0 %v6713
    %7098 = vmatpush1.bf16.msra.mxu0 %v6712
    %7099 = vmatprep.subr.bf16.mxu0 %v6715
    %7100 = vmatpush1.bf16.msra.mxu0 %v6714
    %7101 = vmatprep.subr.bf16.mxu0 %v6717
    %7102 = vmatpush1.bf16.msra.mxu0 %v6716
    %7103 = vmatprep.subr.bf16.mxu0 %v6719
    %7104 = vmatpush1.bf16.msra.mxu0 %v6718
    %7105 = vmatprep.subr.bf16.mxu0 %v6721
    %7106 = vmatpush1.bf16.msra.mxu0 %v6720
    %7107 = vmatprep.subr.bf16.mxu0 %v6723
    %7108 = vmatpush1.bf16.msra.mxu0 %v6722
    %7109 = vmatprep.subr.bf16.mxu0 %v6725
    %7110 = vmatpush1.bf16.msra.mxu0 %v6724
    %7111 = vmatprep.subr.bf16.mxu0 %v6727
    %7112 = vmatpush1.bf16.msra.mxu0 %v6726
    %7113 = vmatprep.subr.bf16.mxu0 %v6729
    %7114 = vmatpush1.bf16.msra.mxu0 %v6728
    %7115 = vmatprep.subr.bf16.mxu0 %v6731
    %7116 = vmatpush1.bf16.msra.mxu0 %v6730
    %7117 = vmatprep.subr.bf16.mxu0 %v6733
    %7118 = vmatpush1.bf16.msra.mxu0 %v6732
    %7119 = vmatprep.subr.bf16.mxu0 %v6735
    %7120 = vmatpush1.bf16.msra.mxu0 %v6734
    %7121 = vmatprep.mubr.bf16.mxu0 %v852
    %7122 = vmatmul.mubr.bf16.gmra.mrb[0].mxu0 %v851
    %v7123 = vpop.f32.mrb[0].mxu0
    %v7124 = vadd.f32 %v6771, %v7123
    %v7125 = vpop.f32.mrb[0].mxu0
    %v7126 = vadd.f32 %v6773, %v7125
    %v7127 = vpop.f32.mrb[0].mxu0
    %v7128 = vadd.f32 %v6775, %v7127
    %v7129 = vpop.f32.mrb[0].mxu0
    %v7130 = vadd.f32 %v6777, %v7129
    %7131 = vmatprep.mubr.bf16.mxu0 %v856
    %7132 = vmatmul.mubr.bf16.gmra.mrb[0].mxu0 %v855
    %v7133 = vpop.f32.mrb[0].mxu0
    %v7134 = vadd.f32 %v6781, %v7133
    %v7135 = vpop.f32.mrb[0].mxu0
    %v7136 = vadd.f32 %v6783, %v7135
    %v7137 = vpop.f32.mrb[0].mxu0
    %v7138 = vadd.f32 %v6785, %v7137
    %v7139 = vpop.f32.mrb[0].mxu0
    %v7140 = vadd.f32 %v6787, %v7139
    %7141 = vmatprep.mubr.bf16.mxu0 %v860
    %7142 = vmatmul.mubr.bf16.gmra.mrb[0].mxu0 %v859
    %v7143 = vpop.f32.mrb[0].mxu0
    %v7144 = vadd.f32 %v6791, %v7143
    %v7145 = vpop.f32.mrb[0].mxu0
    %v7146 = vadd.f32 %v6793, %v7145
    %v7147 = vpop.f32.mrb[0].mxu0
    %v7148 = vadd.f32 %v6795, %v7147
    %v7149 = vpop.f32.mrb[0].mxu0
    %v7150 = vadd.f32 %v6797, %v7149
    %7151 = vmatprep.mubr.bf16.mxu0 %v864
    %7152 = vmatmul.mubr.bf16.gmra.mrb[0].mxu0 %v863
    %v7153 = vpop.f32.mrb[0].mxu0
    %v7154 = vadd.f32 %v6801, %v7153
    %v7155 = vpop.f32.mrb[0].mxu0
    %v7156 = vadd.f32 %v6803, %v7155
    %v7157 = vpop.f32.mrb[0].mxu0
    %v7158 = vadd.f32 %v6805, %v7157
    %v7159 = vpop.f32.mrb[0].mxu0
    %v7160 = vadd.f32 %v6807, %v7159
    %7161 = vmatprep.mubr.bf16.mxu0 %v868
    %7162 = vmatmul.mubr.bf16.gmra.mrb[0].mxu0 %v867
    %v7163 = vpop.f32.mrb[0].mxu0
    %v7164 = vadd.f32 %v6811, %v7163
    %v7165 = vpop.f32.mrb[0].mxu0
    %v7166 = vadd.f32 %v6813, %v7165
    %v7167 = vpop.f32.mrb[0].mxu0
    %v7168 = vadd.f32 %v6815, %v7167
    %v7169 = vpop.f32.mrb[0].mxu0
    %v7170 = vadd.f32 %v6817, %v7169
    %7171 = vmatprep.mubr.bf16.mxu0 %v872
    %7172 = vmatmul.mubr.bf16.gmra.mrb[0].mxu0 %v871
    %v7173 = vpop.f32.mrb[0].mxu0
    %v7174 = vadd.f32 %v6821, %v7173
    %v7175 = vpop.f32.mrb[0].mxu0
    %v7176 = vadd.f32 %v6823, %v7175
    %v7177 = vpop.f32.mrb[0].mxu0
    %v7178 = vadd.f32 %v6825, %v7177
    %v7179 = vpop.f32.mrb[0].mxu0
    %v7180 = vadd.f32 %v6827, %v7179
    %7181 = vmatprep.mubr.bf16.mxu0 %v876
    %7182 = vmatmul.mubr.bf16.gmra.mrb[0].mxu0 %v875
    %v7183 = vpop.f32.mrb[0].mxu0
    %v7184 = vadd.f32 %v6831, %v7183
    %v7185 = vpop.f32.mrb[0].mxu0
    %v7186 = vadd.f32 %v6833, %v7185
    %v7187 = vpop.f32.mrb[0].mxu0
    %v7188 = vadd.f32 %v6835, %v7187
    %v7189 = vpop.f32.mrb[0].mxu0
    %v7190 = vadd.f32 %v6837, %v7189
    %7191 = vmatprep.mubr.bf16.mxu0 %v880
    %7192 = vmatmul.mubr.bf16.gmra.mrb[0].mxu0 %v879
    %v7193 = vpop.f32.mrb[0].mxu0
    %v7194 = vadd.f32 %v6841, %v7193
    %v7195 = vpop.f32.mrb[0].mxu0
    %v7196 = vadd.f32 %v6843, %v7195
    %v7197 = vpop.f32.mrb[0].mxu0
    %v7198 = vadd.f32 %v6845, %v7197
    %v7199 = vpop.f32.mrb[0].mxu0
    %v7200 = vadd.f32 %v6847, %v7199
    %7201 = vmatprep.mubr.bf16.mxu0 %v884
    %7202 = vmatmul.mubr.bf16.gmra.mrb[0].mxu0 %v883
    %v7203 = vpop.f32.mrb[0].mxu0
    %v7204 = vadd.f32 %v6851, %v7203
    %v7205 = vpop.f32.mrb[0].mxu0
    %v7206 = vadd.f32 %v6853, %v7205
    %v7207 = vpop.f32.mrb[0].mxu0
    %v7208 = vadd.f32 %v6855, %v7207
    %v7209 = vpop.f32.mrb[0].mxu0
    %v7210 = vadd.f32 %v6857, %v7209
    %7211 = vmatprep.mubr.bf16.mxu0 %v888
    %7212 = vmatmul.mubr.bf16.gmra.mrb[0].mxu0 %v887
    %v7213 = vpop.f32.mrb[0].mxu0
    %v7214 = vadd.f32 %v6861, %v7213
    %v7215 = vpop.f32.mrb[0].mxu0
    %v7216 = vadd.f32 %v6863, %v7215
    %v7217 = vpop.f32.mrb[0].mxu0
    %v7218 = vadd.f32 %v6865, %v7217
    %v7219 = vpop.f32.mrb[0].mxu0
    %v7220 = vadd.f32 %v6867, %v7219
    %7221 = vmatprep.mubr.bf16.mxu0 %v892
    %7222 = vmatmul.mubr.bf16.gmra.mrb[0].mxu0 %v891
    %v7223 = vpop.f32.mrb[0].mxu0
    %v7224 = vadd.f32 %v6871, %v7223
    %v7225 = vpop.f32.mrb[0].mxu0
    %v7226 = vadd.f32 %v6873, %v7225
    %v7227 = vpop.f32.mrb[0].mxu0
    %v7228 = vadd.f32 %v6875, %v7227
    %v7229 = vpop.f32.mrb[0].mxu0
    %v7230 = vadd.f32 %v6877, %v7229
    %7231 = vmatprep.mubr.bf16.mxu0 %v896
    %7232 = vmatmul.mubr.bf16.gmra.mrb[0].mxu0 %v895
    %v7233 = vpop.f32.mrb[0].mxu0
    %v7234 = vadd.f32 %v6881, %v7233
    %v7235 = vpop.f32.mrb[0].mxu0
    %v7236 = vadd.f32 %v6883, %v7235
    %v7237 = vpop.f32.mrb[0].mxu0
    %v7238 = vadd.f32 %v6885, %v7237
    %v7239 = vpop.f32.mrb[0].mxu0
    %v7240 = vadd.f32 %v6887, %v7239
    %7241 = vmatprep.mubr.bf16.mxu0 %v900
    %7242 = vmatmul.mubr.bf16.gmra.mrb[0].mxu0 %v899
    %v7243 = vpop.f32.mrb[0].mxu0
    %v7244 = vadd.f32 %v6891, %v7243
    %v7245 = vpop.f32.mrb[0].mxu0
    %v7246 = vadd.f32 %v6893, %v7245
    %v7247 = vpop.f32.mrb[0].mxu0
    %v7248 = vadd.f32 %v6895, %v7247
    %v7249 = vpop.f32.mrb[0].mxu0
    %v7250 = vadd.f32 %v6897, %v7249
    %7251 = vmatprep.mubr.bf16.mxu0 %v904
    %7252 = vmatmul.mubr.bf16.gmra.mrb[0].mxu0 %v903
    %v7253 = vpop.f32.mrb[0].mxu0
    %v7254 = vadd.f32 %v6901, %v7253
    %v7255 = vpop.f32.mrb[0].mxu0
    %v7256 = vadd.f32 %v6903, %v7255
    %v7257 = vpop.f32.mrb[0].mxu0
    %v7258 = vadd.f32 %v6905, %v7257
    %v7259 = vpop.f32.mrb[0].mxu0
    %v7260 = vadd.f32 %v6907, %v7259
    %7261 = vmatprep.mubr.bf16.mxu0 %v908
    %7262 = vmatmul.mubr.bf16.gmra.mrb[0].mxu0 %v907
    %v7263 = vpop.f32.mrb[0].mxu0
    %v7264 = vadd.f32 %v6911, %v7263
    %v7265 = vpop.f32.mrb[0].mxu0
    %v7266 = vadd.f32 %v6913, %v7265
    %v7267 = vpop.f32.mrb[0].mxu0
    %v7268 = vadd.f32 %v6915, %v7267
    %v7269 = vpop.f32.mrb[0].mxu0
    %v7270 = vadd.f32 %v6917, %v7269
    %7271 = vmatprep.mubr.bf16.mxu0 %v912
    %7272 = vmatmul.mubr.bf16.gmra.mrb[0].mxu0 %v911
    %v7273 = vpop.f32.mrb[0].mxu0
    %v7274 = vadd.f32 %v6921, %v7273
    %v7275 = vpop.f32.mrb[0].mxu0
    %v7276 = vadd.f32 %v6923, %v7275
    %v7277 = vpop.f32.mrb[0].mxu0
    %v7278 = vadd.f32 %v6925, %v7277
    %v7279 = vpop.f32.mrb[0].mxu0
    %v7280 = vadd.f32 %v6927, %v7279
    %7281 = vmatprep.mubr.bf16.mxu0 %v916
    %7282 = vmatmul.mubr.bf16.gmra.mrb[0].mxu0 %v915
    %v7283 = vpop.f32.mrb[0].mxu0
    %v7284 = vadd.f32 %v6931, %v7283
    %v7285 = vpop.f32.mrb[0].mxu0
    %v7286 = vadd.f32 %v6933, %v7285
    %v7287 = vpop.f32.mrb[0].mxu0
    %v7288 = vadd.f32 %v6935, %v7287
    %v7289 = vpop.f32.mrb[0].mxu0
    %v7290 = vadd.f32 %v6937, %v7289
    %7291 = vmatprep.mubr.bf16.mxu0 %v920
    %7292 = vmatmul.mubr.bf16.gmra.mrb[0].mxu0 %v919
    %v7293 = vpop.f32.mrb[0].mxu0
    %v7294 = vadd.f32 %v6941, %v7293
    %v7295 = vpop.f32.mrb[0].mxu0
    %v7296 = vadd.f32 %v6943, %v7295
    %v7297 = vpop.f32.mrb[0].mxu0
    %v7298 = vadd.f32 %v6945, %v7297
    %v7299 = vpop.f32.mrb[0].mxu0
    %v7300 = vadd.f32 %v6947, %v7299
    %7301 = vmatprep.mubr.bf16.mxu0 %v924
    %7302 = vmatmul.mubr.bf16.gmra.mrb[0].mxu0 %v923
    %v7303 = vpop.f32.mrb[0].mxu0
    %v7304 = vadd.f32 %v6951, %v7303
    %v7305 = vpop.f32.mrb[0].mxu0
    %v7306 = vadd.f32 %v6953, %v7305
    %v7307 = vpop.f32.mrb[0].mxu0
    %v7308 = vadd.f32 %v6955, %v7307
    %v7309 = vpop.f32.mrb[0].mxu0
    %v7310 = vadd.f32 %v6957, %v7309
    %7311 = vmatprep.mubr.bf16.mxu0 %v928
    %7312 = vmatmul.mubr.bf16.gmra.mrb[0].mxu0 %v927
    %v7313 = vpop.f32.mrb[0].mxu0
    %v7314 = vadd.f32 %v6961, %v7313
    %v7315 = vpop.f32.mrb[0].mxu0
    %v7316 = vadd.f32 %v6963, %v7315
    %v7317 = vpop.f32.mrb[0].mxu0
    %v7318 = vadd.f32 %v6965, %v7317
    %v7319 = vpop.f32.mrb[0].mxu0
    %v7320 = vadd.f32 %v6967, %v7319
    %7321 = vmatprep.mubr.bf16.mxu0 %v932
    %7322 = vmatmul.mubr.bf16.gmra.mrb[0].mxu0 %v931
    %v7323 = vpop.f32.mrb[0].mxu0
    %v7324 = vadd.f32 %v6971, %v7323
    %v7325 = vpop.f32.mrb[0].mxu0
    %v7326 = vadd.f32 %v6973, %v7325
    %v7327 = vpop.f32.mrb[0].mxu0
    %v7328 = vadd.f32 %v6975, %v7327
    %v7329 = vpop.f32.mrb[0].mxu0
    %v7330 = vadd.f32 %v6977, %v7329
    %7331 = vmatprep.mubr.bf16.mxu0 %v936
    %7332 = vmatmul.mubr.bf16.gmra.mrb[0].mxu0 %v935
    %v7333 = vpop.f32.mrb[0].mxu0
    %v7334 = vadd.f32 %v6981, %v7333
    %v7335 = vpop.f32.mrb[0].mxu0
    %v7336 = vadd.f32 %v6983, %v7335
    %v7337 = vpop.f32.mrb[0].mxu0
    %v7338 = vadd.f32 %v6985, %v7337
    %v7339 = vpop.f32.mrb[0].mxu0
    %v7340 = vadd.f32 %v6987, %v7339
    %7341 = vmatprep.mubr.bf16.mxu0 %v940
    %7342 = vmatmul.mubr.bf16.gmra.mrb[0].mxu0 %v939
    %v7343 = vpop.f32.mrb[0].mxu0
    %v7344 = vadd.f32 %v6991, %v7343
    %v7345 = vpop.f32.mrb[0].mxu0
    %v7346 = vadd.f32 %v6993, %v7345
    %v7347 = vpop.f32.mrb[0].mxu0
    %v7348 = vadd.f32 %v6995, %v7347
    %v7349 = vpop.f32.mrb[0].mxu0
    %v7350 = vadd.f32 %v6997, %v7349
    %7351 = vmatprep.mubr.bf16.mxu0 %v944
    %7352 = vmatmul.mubr.bf16.gmra.mrb[0].mxu0 %v943
    %v7353 = vpop.f32.mrb[0].mxu0
    %v7354 = vadd.f32 %v7001, %v7353
    %v7355 = vpop.f32.mrb[0].mxu0
    %v7356 = vadd.f32 %v7003, %v7355
    %v7357 = vpop.f32.mrb[0].mxu0
    %v7358 = vadd.f32 %v7005, %v7357
    %v7359 = vpop.f32.mrb[0].mxu0
    %v7360 = vadd.f32 %v7007, %v7359
    %7361 = vmatprep.mubr.bf16.mxu0 %v948
    %7362 = vmatmul.mubr.bf16.gmra.mrb[0].mxu0 %v947
    %v7363 = vpop.f32.mrb[0].mxu0
    %v7364 = vadd.f32 %v7011, %v7363
    %v7365 = vpop.f32.mrb[0].mxu0
    %v7366 = vadd.f32 %v7013, %v7365
    %v7367 = vpop.f32.mrb[0].mxu0
    %v7368 = vadd.f32 %v7015, %v7367
    %v7369 = vpop.f32.mrb[0].mxu0
    %v7370 = vadd.f32 %v7017, %v7369
    %7371 = vmatprep.mubr.bf16.mxu0 %v952
    %7372 = vmatmul.mubr.bf16.gmra.mrb[0].mxu0 %v951
    %v7373 = vpop.f32.mrb[0].mxu0
    %v7374 = vadd.f32 %v7021, %v7373
    %v7375 = vpop.f32.mrb[0].mxu0
    %v7376 = vadd.f32 %v7023, %v7375
    %v7377 = vpop.f32.mrb[0].mxu0
    %v7378 = vadd.f32 %v7025, %v7377
    %v7379 = vpop.f32.mrb[0].mxu0
    %v7380 = vadd.f32 %v7027, %v7379
    %7381 = vmatprep.mubr.bf16.mxu0 %v956
    %7382 = vmatmul.mubr.bf16.gmra.mrb[0].mxu0 %v955
    %v7383 = vpop.f32.mrb[0].mxu0
    %v7384 = vadd.f32 %v7031, %v7383
    %v7385 = vpop.f32.mrb[0].mxu0
    %v7386 = vadd.f32 %v7033, %v7385
    %v7387 = vpop.f32.mrb[0].mxu0
    %v7388 = vadd.f32 %v7035, %v7387
    %v7389 = vpop.f32.mrb[0].mxu0
    %v7390 = vadd.f32 %v7037, %v7389
    %7391 = vmatprep.mubr.bf16.mxu0 %v960
    %7392 = vmatmul.mubr.bf16.gmra.mrb[0].mxu0 %v959
    %v7393 = vpop.f32.mrb[0].mxu0
    %v7394 = vadd.f32 %v7041, %v7393
    %v7395 = vpop.f32.mrb[0].mxu0
    %v7396 = vadd.f32 %v7043, %v7395
    %v7397 = vpop.f32.mrb[0].mxu0
    %v7398 = vadd.f32 %v7045, %v7397
    %v7399 = vpop.f32.mrb[0].mxu0
    %v7400 = vadd.f32 %v7047, %v7399
    %7401 = vmatprep.mubr.bf16.mxu0 %v964
    %7402 = vmatmul.mubr.bf16.gmra.mrb[0].mxu0 %v963
    %v7403 = vpop.f32.mrb[0].mxu0
    %v7404 = vadd.f32 %v7051, %v7403
    %v7405 = vpop.f32.mrb[0].mxu0
    %v7406 = vadd.f32 %v7053, %v7405
    %v7407 = vpop.f32.mrb[0].mxu0
    %v7408 = vadd.f32 %v7055, %v7407
    %v7409 = vpop.f32.mrb[0].mxu0
    %v7410 = vadd.f32 %v7057, %v7409
    %7411 = vmatprep.mubr.bf16.mxu0 %v968
    %7412 = vmatmul.mubr.bf16.gmra.mrb[0].mxu0 %v967
    %v7413 = vpop.f32.mrb[0].mxu0
    %v7414 = vadd.f32 %v7061, %v7413
    %v7415 = vpop.f32.mrb[0].mxu0
    %v7416 = vadd.f32 %v7063, %v7415
    %v7417 = vpop.f32.mrb[0].mxu0
    %v7418 = vadd.f32 %v7065, %v7417
    %v7419 = vpop.f32.mrb[0].mxu0
    %v7420 = vadd.f32 %v7067, %v7419
    %7421 = vmatprep.mubr.bf16.mxu0 %v972
    %7422 = vmatmul.mubr.bf16.gmra.mrb[0].mxu0 %v971
    %v7423 = vpop.f32.mrb[0].mxu0
    %v7424 = vadd.f32 %v7071, %v7423
    %v7425 = vpop.f32.mrb[0].mxu0
    %v7426 = vadd.f32 %v7073, %v7425
    %v7427 = vpop.f32.mrb[0].mxu0
    %v7428 = vadd.f32 %v7075, %v7427
    %v7429 = vpop.f32.mrb[0].mxu0
    %v7430 = vadd.f32 %v7077, %v7429
    %7431 = vmatprep.mubr.bf16.mxu0 %v976
    %7432 = vmatmul.mubr.bf16.gmra.mrb[0].mxu0 %v975
    %v7433 = vpop.f32.mrb[0].mxu0
    %v7434 = vadd.f32 %v7081, %v7433
    %v7435 = vpop.f32.mrb[0].mxu0
    %v7436 = vadd.f32 %v7083, %v7435
    %v7437 = vpop.f32.mrb[0].mxu0
    %v7438 = vadd.f32 %v7085, %v7437
    %v7439 = vpop.f32.mrb[0].mxu0
    %v7440 = vadd.f32 %v7087, %v7439
    %7441 = vdwg.mxu0
    %v7442 = vpack.c.bf16 %v7128, %v7124
    %v7443 = vpack.c.bf16 %v7130, %v7126
    %v7444 = vpack.c.bf16 %v7138, %v7134
    %v7445 = vpack.c.bf16 %v7140, %v7136
    %v7446 = vpack.c.bf16 %v7148, %v7144
    %v7447 = vpack.c.bf16 %v7150, %v7146
    %v7448 = vpack.c.bf16 %v7158, %v7154
    %v7449 = vpack.c.bf16 %v7160, %v7156
    %v7450 = vpack.c.bf16 %v7168, %v7164
    %v7451 = vpack.c.bf16 %v7170, %v7166
    %v7452 = vpack.c.bf16 %v7178, %v7174
    %v7453 = vpack.c.bf16 %v7180, %v7176
    %v7454 = vpack.c.bf16 %v7188, %v7184
    %v7455 = vpack.c.bf16 %v7190, %v7186
    %v7456 = vpack.c.bf16 %v7198, %v7194
    %v7457 = vpack.c.bf16 %v7200, %v7196
    %v7458 = vpack.c.bf16 %v7208, %v7204
    %v7459 = vpack.c.bf16 %v7210, %v7206
    %v7460 = vpack.c.bf16 %v7218, %v7214
    %v7461 = vpack.c.bf16 %v7220, %v7216
    %v7462 = vpack.c.bf16 %v7228, %v7224
    %v7463 = vpack.c.bf16 %v7230, %v7226
    %v7464 = vpack.c.bf16 %v7238, %v7234
    %v7465 = vpack.c.bf16 %v7240, %v7236
    %v7466 = vpack.c.bf16 %v7248, %v7244
    %v7467 = vpack.c.bf16 %v7250, %v7246
    %v7468 = vpack.c.bf16 %v7258, %v7254
    %v7469 = vpack.c.bf16 %v7260, %v7256
    %v7470 = vpack.c.bf16 %v7268, %v7264
    %v7471 = vpack.c.bf16 %v7270, %v7266
    %v7472 = vpack.c.bf16 %v7278, %v7274
    %v7473 = vpack.c.bf16 %v7280, %v7276
    %v7474 = vpack.c.bf16 %v7288, %v7284
    %v7475 = vpack.c.bf16 %v7290, %v7286
    %v7476 = vpack.c.bf16 %v7298, %v7294
    %v7477 = vpack.c.bf16 %v7300, %v7296
    %v7478 = vpack.c.bf16 %v7308, %v7304
    %v7479 = vpack.c.bf16 %v7310, %v7306
    %v7480 = vpack.c.bf16 %v7318, %v7314
    %v7481 = vpack.c.bf16 %v7320, %v7316
    %v7482 = vpack.c.bf16 %v7328, %v7324
    %v7483 = vpack.c.bf16 %v7330, %v7326
    %v7484 = vpack.c.bf16 %v7338, %v7334
    %v7485 = vpack.c.bf16 %v7340, %v7336
    %v7486 = vpack.c.bf16 %v7348, %v7344
    %v7487 = vpack.c.bf16 %v7350, %v7346
    %v7488 = vpack.c.bf16 %v7358, %v7354
    %v7489 = vpack.c.bf16 %v7360, %v7356
    %v7490 = vpack.c.bf16 %v7368, %v7364
    %v7491 = vpack.c.bf16 %v7370, %v7366
    %v7492 = vpack.c.bf16 %v7378, %v7374
    %v7493 = vpack.c.bf16 %v7380, %v7376
    %v7494 = vpack.c.bf16 %v7388, %v7384
    %v7495 = vpack.c.bf16 %v7390, %v7386
    %v7496 = vpack.c.bf16 %v7398, %v7394
    %v7497 = vpack.c.bf16 %v7400, %v7396
    %v7498 = vpack.c.bf16 %v7408, %v7404
    %v7499 = vpack.c.bf16 %v7410, %v7406
    %v7500 = vpack.c.bf16 %v7418, %v7414
    %v7501 = vpack.c.bf16 %v7420, %v7416
    %v7502 = vpack.c.bf16 %v7428, %v7424
    %v7503 = vpack.c.bf16 %v7430, %v7426
    %v7504 = vpack.c.bf16 %v7438, %v7434
    %v7505 = vpack.c.bf16 %v7440, %v7436
    %7506 = vmatprep.subr.bf16.mxu0 %v3778
    %7507 = vmatpush1.bf16.msra.mxu0 %v3777
    %7508 = vmatprep.subr.bf16.mxu0 %v3780
    %7509 = vmatpush1.bf16.msra.mxu0 %v3779
    %7510 = vmatprep.subr.bf16.mxu0 %v3782
    %7511 = vmatpush1.bf16.msra.mxu0 %v3781
    %7512 = vmatprep.subr.bf16.mxu0 %v3784
    %7513 = vmatpush1.bf16.msra.mxu0 %v3783
    %7514 = vmatprep.subr.bf16.mxu0 %v3786
    %7515 = vmatpush1.bf16.msra.mxu0 %v3785
    %7516 = vmatprep.subr.bf16.mxu0 %v3788
    %7517 = vmatpush1.bf16.msra.mxu0 %v3787
    %7518 = vmatprep.subr.bf16.mxu0 %v3790
    %7519 = vmatpush1.bf16.msra.mxu0 %v3789
    %7520 = vmatprep.subr.bf16.mxu0 %v3792
    %7521 = vmatpush1.bf16.msra.mxu0 %v3791
    %7522 = vmatprep.subr.bf16.mxu0 %v3794
    %7523 = vmatpush1.bf16.msra.mxu0 %v3793
    %7524 = vmatprep.subr.bf16.mxu0 %v3796
    %7525 = vmatpush1.bf16.msra.mxu0 %v3795
    %7526 = vmatprep.subr.bf16.mxu0 %v3798
    %7527 = vmatpush1.bf16.msra.mxu0 %v3797
    %7528 = vmatprep.subr.bf16.mxu0 %v3800
    %7529 = vmatpush1.bf16.msra.mxu0 %v3799
    %7530 = vmatprep.subr.bf16.mxu0 %v3802
    %7531 = vmatpush1.bf16.msra.mxu0 %v3801
    %7532 = vmatprep.subr.bf16.mxu0 %v3804
    %7533 = vmatpush1.bf16.msra.mxu0 %v3803
    %7534 = vmatprep.subr.bf16.mxu0 %v3806
    %7535 = vmatpush1.bf16.msra.mxu0 %v3805
    %7536 = vmatprep.subr.bf16.mxu0 %v3808
    %7537 = vmatpush1.bf16.msra.mxu0 %v3807
    %7538 = vmatprep.mubr.bf16.mxu0 %v7443
    %7539 = vmatmul.mubr.bf16.gmra.mrb[0].mxu0 %v7442
    %v7540 = vpop.f32.mrb[0].mxu0
    %v7541 = vadd.f32 0.0, %v7540
    %v7542 = vpop.f32.mrb[0].mxu0
    %v7543 = vadd.f32 0.0, %v7542
    %v7544 = vpop.f32.mrb[0].mxu0
    %v7545 = vadd.f32 0.0, %v7544
    %v7546 = vpop.f32.mrb[0].mxu0
    %v7547 = vadd.f32 0.0, %v7546
    %7548 = vmatprep.mubr.bf16.mxu0 %v7445
    %7549 = vmatmul.mubr.bf16.gmra.mrb[0].mxu0 %v7444
    %v7550 = vpop.f32.mrb[0].mxu0
    %v7551 = vadd.f32 0.0, %v7550
    %v7552 = vpop.f32.mrb[0].mxu0
    %v7553 = vadd.f32 0.0, %v7552
    %v7554 = vpop.f32.mrb[0].mxu0
    %v7555 = vadd.f32 0.0, %v7554
    %v7556 = vpop.f32.mrb[0].mxu0
    %v7557 = vadd.f32 0.0, %v7556
    %7558 = vmatprep.mubr.bf16.mxu0 %v7447
    %7559 = vmatmul.mubr.bf16.gmra.mrb[0].mxu0 %v7446
    %v7560 = vpop.f32.mrb[0].mxu0
    %v7561 = vadd.f32 0.0, %v7560
    %v7562 = vpop.f32.mrb[0].mxu0
    %v7563 = vadd.f32 0.0, %v7562
    %v7564 = vpop.f32.mrb[0].mxu0
    %v7565 = vadd.f32 0.0, %v7564
    %v7566 = vpop.f32.mrb[0].mxu0
    %v7567 = vadd.f32 0.0, %v7566
    %7568 = vmatprep.mubr.bf16.mxu0 %v7449
    %7569 = vmatmul.mubr.bf16.gmra.mrb[0].mxu0 %v7448
    %v7570 = vpop.f32.mrb[0].mxu0
    %v7571 = vadd.f32 0.0, %v7570
    %v7572 = vpop.f32.mrb[0].mxu0
    %v7573 = vadd.f32 0.0, %v7572
    %v7574 = vpop.f32.mrb[0].mxu0
    %v7575 = vadd.f32 0.0, %v7574
    %v7576 = vpop.f32.mrb[0].mxu0
    %v7577 = vadd.f32 0.0, %v7576
    %7578 = vmatprep.mubr.bf16.mxu0 %v7451
    %7579 = vmatmul.mubr.bf16.gmra.mrb[0].mxu0 %v7450
    %v7580 = vpop.f32.mrb[0].mxu0
    %v7581 = vadd.f32 0.0, %v7580
    %v7582 = vpop.f32.mrb[0].mxu0
    %v7583 = vadd.f32 0.0, %v7582
    %v7584 = vpop.f32.mrb[0].mxu0
    %v7585 = vadd.f32 0.0, %v7584
    %v7586 = vpop.f32.mrb[0].mxu0
    %v7587 = vadd.f32 0.0, %v7586
    %7588 = vmatprep.mubr.bf16.mxu0 %v7453
    %7589 = vmatmul.mubr.bf16.gmra.mrb[0].mxu0 %v7452
    %v7590 = vpop.f32.mrb[0].mxu0
    %v7591 = vadd.f32 0.0, %v7590
    %v7592 = vpop.f32.mrb[0].mxu0
    %v7593 = vadd.f32 0.0, %v7592
    %v7594 = vpop.f32.mrb[0].mxu0
    %v7595 = vadd.f32 0.0, %v7594
    %v7596 = vpop.f32.mrb[0].mxu0
    %v7597 = vadd.f32 0.0, %v7596
    %7598 = vmatprep.mubr.bf16.mxu0 %v7455
    %7599 = vmatmul.mubr.bf16.gmra.mrb[0].mxu0 %v7454
    %v7600 = vpop.f32.mrb[0].mxu0
    %v7601 = vadd.f32 0.0, %v7600
    %v7602 = vpop.f32.mrb[0].mxu0
    %v7603 = vadd.f32 0.0, %v7602
    %v7604 = vpop.f32.mrb[0].mxu0
    %v7605 = vadd.f32 0.0, %v7604
    %v7606 = vpop.f32.mrb[0].mxu0
    %v7607 = vadd.f32 0.0, %v7606
    %7608 = vmatprep.mubr.bf16.mxu0 %v7457
    %7609 = vmatmul.mubr.bf16.gmra.mrb[0].mxu0 %v7456
    %v7610 = vpop.f32.mrb[0].mxu0
    %v7611 = vadd.f32 0.0, %v7610
    %v7612 = vpop.f32.mrb[0].mxu0
    %v7613 = vadd.f32 0.0, %v7612
    %v7614 = vpop.f32.mrb[0].mxu0
    %v7615 = vadd.f32 0.0, %v7614
    %v7616 = vpop.f32.mrb[0].mxu0
    %v7617 = vadd.f32 0.0, %v7616
    %7618 = vmatprep.mubr.bf16.mxu0 %v7459
    %7619 = vmatmul.mubr.bf16.gmra.mrb[0].mxu0 %v7458
    %v7620 = vpop.f32.mrb[0].mxu0
    %v7621 = vadd.f32 0.0, %v7620
    %v7622 = vpop.f32.mrb[0].mxu0
    %v7623 = vadd.f32 0.0, %v7622
    %v7624 = vpop.f32.mrb[0].mxu0
    %v7625 = vadd.f32 0.0, %v7624
    %v7626 = vpop.f32.mrb[0].mxu0
    %v7627 = vadd.f32 0.0, %v7626
    %7628 = vmatprep.mubr.bf16.mxu0 %v7461
    %7629 = vmatmul.mubr.bf16.gmra.mrb[0].mxu0 %v7460
    %v7630 = vpop.f32.mrb[0].mxu0
    %v7631 = vadd.f32 0.0, %v7630
    %v7632 = vpop.f32.mrb[0].mxu0
    %v7633 = vadd.f32 0.0, %v7632
    %v7634 = vpop.f32.mrb[0].mxu0
    %v7635 = vadd.f32 0.0, %v7634
    %v7636 = vpop.f32.mrb[0].mxu0
    %v7637 = vadd.f32 0.0, %v7636
    %7638 = vmatprep.mubr.bf16.mxu0 %v7463
    %7639 = vmatmul.mubr.bf16.gmra.mrb[0].mxu0 %v7462
    %v7640 = vpop.f32.mrb[0].mxu0
    %v7641 = vadd.f32 0.0, %v7640
    %v7642 = vpop.f32.mrb[0].mxu0
    %v7643 = vadd.f32 0.0, %v7642
    %v7644 = vpop.f32.mrb[0].mxu0
    %v7645 = vadd.f32 0.0, %v7644
    %v7646 = vpop.f32.mrb[0].mxu0
    %v7647 = vadd.f32 0.0, %v7646
    %7648 = vmatprep.mubr.bf16.mxu0 %v7465
    %7649 = vmatmul.mubr.bf16.gmra.mrb[0].mxu0 %v7464
    %v7650 = vpop.f32.mrb[0].mxu0
    %v7651 = vadd.f32 0.0, %v7650
    %v7652 = vpop.f32.mrb[0].mxu0
    %v7653 = vadd.f32 0.0, %v7652
    %v7654 = vpop.f32.mrb[0].mxu0
    %v7655 = vadd.f32 0.0, %v7654
    %v7656 = vpop.f32.mrb[0].mxu0
    %v7657 = vadd.f32 0.0, %v7656
    %7658 = vmatprep.mubr.bf16.mxu0 %v7467
    %7659 = vmatmul.mubr.bf16.gmra.mrb[0].mxu0 %v7466
    %v7660 = vpop.f32.mrb[0].mxu0
    %v7661 = vadd.f32 0.0, %v7660
    %v7662 = vpop.f32.mrb[0].mxu0
    %v7663 = vadd.f32 0.0, %v7662
    %v7664 = vpop.f32.mrb[0].mxu0
    %v7665 = vadd.f32 0.0, %v7664
    %v7666 = vpop.f32.mrb[0].mxu0
    %v7667 = vadd.f32 0.0, %v7666
    %7668 = vmatprep.mubr.bf16.mxu0 %v7469
    %7669 = vmatmul.mubr.bf16.gmra.mrb[0].mxu0 %v7468
    %v7670 = vpop.f32.mrb[0].mxu0
    %v7671 = vadd.f32 0.0, %v7670
    %v7672 = vpop.f32.mrb[0].mxu0
    %v7673 = vadd.f32 0.0, %v7672
    %v7674 = vpop.f32.mrb[0].mxu0
    %v7675 = vadd.f32 0.0, %v7674
    %v7676 = vpop.f32.mrb[0].mxu0
    %v7677 = vadd.f32 0.0, %v7676
    %7678 = vmatprep.mubr.bf16.mxu0 %v7471
    %7679 = vmatmul.mubr.bf16.gmra.mrb[0].mxu0 %v7470
    %v7680 = vpop.f32.mrb[0].mxu0
    %v7681 = vadd.f32 0.0, %v7680
    %v7682 = vpop.f32.mrb[0].mxu0
    %v7683 = vadd.f32 0.0, %v7682
    %v7684 = vpop.f32.mrb[0].mxu0
    %v7685 = vadd.f32 0.0, %v7684
    %v7686 = vpop.f32.mrb[0].mxu0
    %v7687 = vadd.f32 0.0, %v7686
    %7688 = vmatprep.mubr.bf16.mxu0 %v7473
    %7689 = vmatmul.mubr.bf16.gmra.mrb[0].mxu0 %v7472
    %v7690 = vpop.f32.mrb[0].mxu0
    %v7691 = vadd.f32 0.0, %v7690
    %v7692 = vpop.f32.mrb[0].mxu0
    %v7693 = vadd.f32 0.0, %v7692
    %v7694 = vpop.f32.mrb[0].mxu0
    %v7695 = vadd.f32 0.0, %v7694
    %v7696 = vpop.f32.mrb[0].mxu0
    %v7697 = vadd.f32 0.0, %v7696
    %7698 = vmatprep.mubr.bf16.mxu0 %v7475
    %7699 = vmatmul.mubr.bf16.gmra.mrb[0].mxu0 %v7474
    %v7700 = vpop.f32.mrb[0].mxu0
    %v7701 = vadd.f32 0.0, %v7700
    %v7702 = vpop.f32.mrb[0].mxu0
    %v7703 = vadd.f32 0.0, %v7702
    %v7704 = vpop.f32.mrb[0].mxu0
    %v7705 = vadd.f32 0.0, %v7704
    %v7706 = vpop.f32.mrb[0].mxu0
    %v7707 = vadd.f32 0.0, %v7706
    %7708 = vmatprep.mubr.bf16.mxu0 %v7477
    %7709 = vmatmul.mubr.bf16.gmra.mrb[0].mxu0 %v7476
    %v7710 = vpop.f32.mrb[0].mxu0
    %v7711 = vadd.f32 0.0, %v7710
    %v7712 = vpop.f32.mrb[0].mxu0
    %v7713 = vadd.f32 0.0, %v7712
    %v7714 = vpop.f32.mrb[0].mxu0
    %v7715 = vadd.f32 0.0, %v7714
    %v7716 = vpop.f32.mrb[0].mxu0
    %v7717 = vadd.f32 0.0, %v7716
    %7718 = vmatprep.mubr.bf16.mxu0 %v7479
    %7719 = vmatmul.mubr.bf16.gmra.mrb[0].mxu0 %v7478
    %v7720 = vpop.f32.mrb[0].mxu0
    %v7721 = vadd.f32 0.0, %v7720
    %v7722 = vpop.f32.mrb[0].mxu0
    %v7723 = vadd.f32 0.0, %v7722
    %v7724 = vpop.f32.mrb[0].mxu0
    %v7725 = vadd.f32 0.0, %v7724
    %v7726 = vpop.f32.mrb[0].mxu0
    %v7727 = vadd.f32 0.0, %v7726
    %7728 = vmatprep.mubr.bf16.mxu0 %v7481
    %7729 = vmatmul.mubr.bf16.gmra.mrb[0].mxu0 %v7480
    %v7730 = vpop.f32.mrb[0].mxu0
    %v7731 = vadd.f32 0.0, %v7730
    %v7732 = vpop.f32.mrb[0].mxu0
    %v7733 = vadd.f32 0.0, %v7732
    %v7734 = vpop.f32.mrb[0].mxu0
    %v7735 = vadd.f32 0.0, %v7734
    %v7736 = vpop.f32.mrb[0].mxu0
    %v7737 = vadd.f32 0.0, %v7736
    %7738 = vmatprep.mubr.bf16.mxu0 %v7483
    %7739 = vmatmul.mubr.bf16.gmra.mrb[0].mxu0 %v7482
    %v7740 = vpop.f32.mrb[0].mxu0
    %v7741 = vadd.f32 0.0, %v7740
    %v7742 = vpop.f32.mrb[0].mxu0
    %v7743 = vadd.f32 0.0, %v7742
    %v7744 = vpop.f32.mrb[0].mxu0
    %v7745 = vadd.f32 0.0, %v7744
    %v7746 = vpop.f32.mrb[0].mxu0
    %v7747 = vadd.f32 0.0, %v7746
    %7748 = vmatprep.mubr.bf16.mxu0 %v7485
    %7749 = vmatmul.mubr.bf16.gmra.mrb[0].mxu0 %v7484
    %v7750 = vpop.f32.mrb[0].mxu0
    %v7751 = vadd.f32 0.0, %v7750
    %v7752 = vpop.f32.mrb[0].mxu0
    %v7753 = vadd.f32 0.0, %v7752
    %v7754 = vpop.f32.mrb[0].mxu0
    %v7755 = vadd.f32 0.0, %v7754
    %v7756 = vpop.f32.mrb[0].mxu0
    %v7757 = vadd.f32 0.0, %v7756
    %7758 = vmatprep.mubr.bf16.mxu0 %v7487
    %7759 = vmatmul.mubr.bf16.gmra.mrb[0].mxu0 %v7486
    %v7760 = vpop.f32.mrb[0].mxu0
    %v7761 = vadd.f32 0.0, %v7760
    %v7762 = vpop.f32.mrb[0].mxu0
    %v7763 = vadd.f32 0.0, %v7762
    %v7764 = vpop.f32.mrb[0].mxu0
    %v7765 = vadd.f32 0.0, %v7764
    %v7766 = vpop.f32.mrb[0].mxu0
    %v7767 = vadd.f32 0.0, %v7766
    %7768 = vmatprep.mubr.bf16.mxu0 %v7489
    %7769 = vmatmul.mubr.bf16.gmra.mrb[0].mxu0 %v7488
    %v7770 = vpop.f32.mrb[0].mxu0
    %v7771 = vadd.f32 0.0, %v7770
    %v7772 = vpop.f32.mrb[0].mxu0
    %v7773 = vadd.f32 0.0, %v7772
    %v7774 = vpop.f32.mrb[0].mxu0
    %v7775 = vadd.f32 0.0, %v7774
    %v7776 = vpop.f32.mrb[0].mxu0
    %v7777 = vadd.f32 0.0, %v7776
    %7778 = vmatprep.mubr.bf16.mxu0 %v7491
    %7779 = vmatmul.mubr.bf16.gmra.mrb[0].mxu0 %v7490
    %v7780 = vpop.f32.mrb[0].mxu0
    %v7781 = vadd.f32 0.0, %v7780
    %v7782 = vpop.f32.mrb[0].mxu0
    %v7783 = vadd.f32 0.0, %v7782
    %v7784 = vpop.f32.mrb[0].mxu0
    %v7785 = vadd.f32 0.0, %v7784
    %v7786 = vpop.f32.mrb[0].mxu0
    %v7787 = vadd.f32 0.0, %v7786
    %7788 = vmatprep.mubr.bf16.mxu0 %v7493
    %7789 = vmatmul.mubr.bf16.gmra.mrb[0].mxu0 %v7492
    %v7790 = vpop.f32.mrb[0].mxu0
    %v7791 = vadd.f32 0.0, %v7790
    %v7792 = vpop.f32.mrb[0].mxu0
    %v7793 = vadd.f32 0.0, %v7792
    %v7794 = vpop.f32.mrb[0].mxu0
    %v7795 = vadd.f32 0.0, %v7794
    %v7796 = vpop.f32.mrb[0].mxu0
    %v7797 = vadd.f32 0.0, %v7796
    %7798 = vmatprep.mubr.bf16.mxu0 %v7495
    %7799 = vmatmul.mubr.bf16.gmra.mrb[0].mxu0 %v7494
    %v7800 = vpop.f32.mrb[0].mxu0
    %v7801 = vadd.f32 0.0, %v7800
    %v7802 = vpop.f32.mrb[0].mxu0
    %v7803 = vadd.f32 0.0, %v7802
    %v7804 = vpop.f32.mrb[0].mxu0
    %v7805 = vadd.f32 0.0, %v7804
    %v7806 = vpop.f32.mrb[0].mxu0
    %v7807 = vadd.f32 0.0, %v7806
    %7808 = vmatprep.mubr.bf16.mxu0 %v7497
    %7809 = vmatmul.mubr.bf16.gmra.mrb[0].mxu0 %v7496
    %v7810 = vpop.f32.mrb[0].mxu0
    %v7811 = vadd.f32 0.0, %v7810
    %v7812 = vpop.f32.mrb[0].mxu0
    %v7813 = vadd.f32 0.0, %v7812
    %v7814 = vpop.f32.mrb[0].mxu0
    %v7815 = vadd.f32 0.0, %v7814
    %v7816 = vpop.f32.mrb[0].mxu0
    %v7817 = vadd.f32 0.0, %v7816
    %7818 = vmatprep.mubr.bf16.mxu0 %v7499
    %7819 = vmatmul.mubr.bf16.gmra.mrb[0].mxu0 %v7498
    %v7820 = vpop.f32.mrb[0].mxu0
    %v7821 = vadd.f32 0.0, %v7820
    %v7822 = vpop.f32.mrb[0].mxu0
    %v7823 = vadd.f32 0.0, %v7822
    %v7824 = vpop.f32.mrb[0].mxu0
    %v7825 = vadd.f32 0.0, %v7824
    %v7826 = vpop.f32.mrb[0].mxu0
    %v7827 = vadd.f32 0.0, %v7826
    %7828 = vmatprep.mubr.bf16.mxu0 %v7501
    %7829 = vmatmul.mubr.bf16.gmra.mrb[0].mxu0 %v7500
    %v7830 = vpop.f32.mrb[0].mxu0
    %v7831 = vadd.f32 0.0, %v7830
    %v7832 = vpop.f32.mrb[0].mxu0
    %v7833 = vadd.f32 0.0, %v7832
    %v7834 = vpop.f32.mrb[0].mxu0
    %v7835 = vadd.f32 0.0, %v7834
    %v7836 = vpop.f32.mrb[0].mxu0
    %v7837 = vadd.f32 0.0, %v7836
    %7838 = vmatprep.mubr.bf16.mxu0 %v7503
    %7839 = vmatmul.mubr.bf16.gmra.mrb[0].mxu0 %v7502
    %v7840 = vpop.f32.mrb[0].mxu0
    %v7841 = vadd.f32 0.0, %v7840
    %v7842 = vpop.f32.mrb[0].mxu0
    %v7843 = vadd.f32 0.0, %v7842
    %v7844 = vpop.f32.mrb[0].mxu0
    %v7845 = vadd.f32 0.0, %v7844
    %v7846 = vpop.f32.mrb[0].mxu0
    %v7847 = vadd.f32 0.0, %v7846
    %7848 = vmatprep.mubr.bf16.mxu0 %v7505
    %7849 = vmatmul.mubr.bf16.gmra.mrb[0].mxu0 %v7504
    %v7850 = vpop.f32.mrb[0].mxu0
    %v7851 = vadd.f32 0.0, %v7850
    %v7852 = vpop.f32.mrb[0].mxu0
    %v7853 = vadd.f32 0.0, %v7852
    %v7854 = vpop.f32.mrb[0].mxu0
    %v7855 = vadd.f32 0.0, %v7854
    %v7856 = vpop.f32.mrb[0].mxu0
    %v7857 = vadd.f32 0.0, %v7856
    %7858 = vdwg.mxu0
    %v7859 = vadd.f32 %v6226, %v7541
    %v7860 = vadd.f32 %v6228, %v7543
    %v7861 = vadd.f32 %v6230, %v7545
    %v7862 = vadd.f32 %v6232, %v7547
    %v7863 = vadd.f32 %v6236, %v7551
    %v7864 = vadd.f32 %v6238, %v7553
    %v7865 = vadd.f32 %v6240, %v7555
    %v7866 = vadd.f32 %v6242, %v7557
    %v7867 = vadd.f32 %v6246, %v7561
    %v7868 = vadd.f32 %v6248, %v7563
    %v7869 = vadd.f32 %v6250, %v7565
    %v7870 = vadd.f32 %v6252, %v7567
    %v7871 = vadd.f32 %v6256, %v7571
    %v7872 = vadd.f32 %v6258, %v7573
    %v7873 = vadd.f32 %v6260, %v7575
    %v7874 = vadd.f32 %v6262, %v7577
    %v7875 = vadd.f32 %v6266, %v7581
    %v7876 = vadd.f32 %v6268, %v7583
    %v7877 = vadd.f32 %v6270, %v7585
    %v7878 = vadd.f32 %v6272, %v7587
    %v7879 = vadd.f32 %v6276, %v7591
    %v7880 = vadd.f32 %v6278, %v7593
    %v7881 = vadd.f32 %v6280, %v7595
    %v7882 = vadd.f32 %v6282, %v7597
    %v7883 = vadd.f32 %v6286, %v7601
    %v7884 = vadd.f32 %v6288, %v7603
    %v7885 = vadd.f32 %v6290, %v7605
    %v7886 = vadd.f32 %v6292, %v7607
    %v7887 = vadd.f32 %v6296, %v7611
    %v7888 = vadd.f32 %v6298, %v7613
    %v7889 = vadd.f32 %v6300, %v7615
    %v7890 = vadd.f32 %v6302, %v7617
    %v7891 = vadd.f32 %v6306, %v7621
    %v7892 = vadd.f32 %v6308, %v7623
    %v7893 = vadd.f32 %v6310, %v7625
    %v7894 = vadd.f32 %v6312, %v7627
    %v7895 = vadd.f32 %v6316, %v7631
    %v7896 = vadd.f32 %v6318, %v7633
    %v7897 = vadd.f32 %v6320, %v7635
    %v7898 = vadd.f32 %v6322, %v7637
    %v7899 = vadd.f32 %v6326, %v7641
    %v7900 = vadd.f32 %v6328, %v7643
    %v7901 = vadd.f32 %v6330, %v7645
    %v7902 = vadd.f32 %v6332, %v7647
    %v7903 = vadd.f32 %v6336, %v7651
    %v7904 = vadd.f32 %v6338, %v7653
    %v7905 = vadd.f32 %v6340, %v7655
    %v7906 = vadd.f32 %v6342, %v7657
    %v7907 = vadd.f32 %v6346, %v7661
    %v7908 = vadd.f32 %v6348, %v7663
    %v7909 = vadd.f32 %v6350, %v7665
    %v7910 = vadd.f32 %v6352, %v7667
    %v7911 = vadd.f32 %v6356, %v7671
    %v7912 = vadd.f32 %v6358, %v7673
    %v7913 = vadd.f32 %v6360, %v7675
    %v7914 = vadd.f32 %v6362, %v7677
    %v7915 = vadd.f32 %v6366, %v7681
    %v7916 = vadd.f32 %v6368, %v7683
    %v7917 = vadd.f32 %v6370, %v7685
    %v7918 = vadd.f32 %v6372, %v7687
    %v7919 = vadd.f32 %v6376, %v7691
    %v7920 = vadd.f32 %v6378, %v7693
    %v7921 = vadd.f32 %v6380, %v7695
    %v7922 = vadd.f32 %v6382, %v7697
    %v7923 = vadd.f32 %v6386, %v7701
    %v7924 = vadd.f32 %v6388, %v7703
    %v7925 = vadd.f32 %v6390, %v7705
    %v7926 = vadd.f32 %v6392, %v7707
    %v7927 = vadd.f32 %v6396, %v7711
    %v7928 = vadd.f32 %v6398, %v7713
    %v7929 = vadd.f32 %v6400, %v7715
    %v7930 = vadd.f32 %v6402, %v7717
    %v7931 = vadd.f32 %v6406, %v7721
    %v7932 = vadd.f32 %v6408, %v7723
    %v7933 = vadd.f32 %v6410, %v7725
    %v7934 = vadd.f32 %v6412, %v7727
    %v7935 = vadd.f32 %v6416, %v7731
    %v7936 = vadd.f32 %v6418, %v7733
    %v7937 = vadd.f32 %v6420, %v7735
    %v7938 = vadd.f32 %v6422, %v7737
    %v7939 = vadd.f32 %v6426, %v7741
    %v7940 = vadd.f32 %v6428, %v7743
    %v7941 = vadd.f32 %v6430, %v7745
    %v7942 = vadd.f32 %v6432, %v7747
    %v7943 = vadd.f32 %v6436, %v7751
    %v7944 = vadd.f32 %v6438, %v7753
    %v7945 = vadd.f32 %v6440, %v7755
    %v7946 = vadd.f32 %v6442, %v7757
    %v7947 = vadd.f32 %v6446, %v7761
    %v7948 = vadd.f32 %v6448, %v7763
    %v7949 = vadd.f32 %v6450, %v7765
    %v7950 = vadd.f32 %v6452, %v7767
    %v7951 = vadd.f32 %v6456, %v7771
    %v7952 = vadd.f32 %v6458, %v7773
    %v7953 = vadd.f32 %v6460, %v7775
    %v7954 = vadd.f32 %v6462, %v7777
    %v7955 = vadd.f32 %v6466, %v7781
    %v7956 = vadd.f32 %v6468, %v7783
    %v7957 = vadd.f32 %v6470, %v7785
    %v7958 = vadd.f32 %v6472, %v7787
    %v7959 = vadd.f32 %v6476, %v7791
    %v7960 = vadd.f32 %v6478, %v7793
    %v7961 = vadd.f32 %v6480, %v7795
    %v7962 = vadd.f32 %v6482, %v7797
    %v7963 = vadd.f32 %v6486, %v7801
    %v7964 = vadd.f32 %v6488, %v7803
    %v7965 = vadd.f32 %v6490, %v7805
    %v7966 = vadd.f32 %v6492, %v7807
    %v7967 = vadd.f32 %v6496, %v7811
    %v7968 = vadd.f32 %v6498, %v7813
    %v7969 = vadd.f32 %v6500, %v7815
    %v7970 = vadd.f32 %v6502, %v7817
    %v7971 = vadd.f32 %v6506, %v7821
    %v7972 = vadd.f32 %v6508, %v7823
    %v7973 = vadd.f32 %v6510, %v7825
    %v7974 = vadd.f32 %v6512, %v7827
    %v7975 = vadd.f32 %v6516, %v7831
    %v7976 = vadd.f32 %v6518, %v7833
    %v7977 = vadd.f32 %v6520, %v7835
    %v7978 = vadd.f32 %v6522, %v7837
    %v7979 = vadd.f32 %v6526, %v7841
    %v7980 = vadd.f32 %v6528, %v7843
    %v7981 = vadd.f32 %v6530, %v7845
    %v7982 = vadd.f32 %v6532, %v7847
    %v7983 = vadd.f32 %v6536, %v7851
    %v7984 = vadd.f32 %v6538, %v7853
    %v7985 = vadd.f32 %v6540, %v7855
    %v7986 = vadd.f32 %v6542, %v7857
    %v7987 = vadd.f32 %v7859, %v4326
    %v7988 = vadd.f32 %v7860, %v4330
    %v7989 = vadd.f32 %v7861, %v4326
    %v7990 = vadd.f32 %v7862, %v4330
    %v7991 = vadd.f32 %v7863, %v4326
    %v7992 = vadd.f32 %v7864, %v4330
    %v7993 = vadd.f32 %v7865, %v4326
    %v7994 = vadd.f32 %v7866, %v4330
    %v7995 = vadd.f32 %v7867, %v4326
    %v7996 = vadd.f32 %v7868, %v4330
    %v7997 = vadd.f32 %v7869, %v4326
    %v7998 = vadd.f32 %v7870, %v4330
    %v7999 = vadd.f32 %v7871, %v4326
    %v8000 = vadd.f32 %v7872, %v4330
    %v8001 = vadd.f32 %v7873, %v4326
    %v8002 = vadd.f32 %v7874, %v4330
    %v8003 = vadd.f32 %v7875, %v4326
    %v8004 = vadd.f32 %v7876, %v4330
    %v8005 = vadd.f32 %v7877, %v4326
    %v8006 = vadd.f32 %v7878, %v4330
    %v8007 = vadd.f32 %v7879, %v4326
    %v8008 = vadd.f32 %v7880, %v4330
    %v8009 = vadd.f32 %v7881, %v4326
    %v8010 = vadd.f32 %v7882, %v4330
    %v8011 = vadd.f32 %v7883, %v4326
    %v8012 = vadd.f32 %v7884, %v4330
    %v8013 = vadd.f32 %v7885, %v4326
    %v8014 = vadd.f32 %v7886, %v4330
    %v8015 = vadd.f32 %v7887, %v4326
    %v8016 = vadd.f32 %v7888, %v4330
    %v8017 = vadd.f32 %v7889, %v4326
    %v8018 = vadd.f32 %v7890, %v4330
    %v8019 = vadd.f32 %v7891, %v4326
    %v8020 = vadd.f32 %v7892, %v4330
    %v8021 = vadd.f32 %v7893, %v4326
    %v8022 = vadd.f32 %v7894, %v4330
    %v8023 = vadd.f32 %v7895, %v4326
    %v8024 = vadd.f32 %v7896, %v4330
    %v8025 = vadd.f32 %v7897, %v4326
    %v8026 = vadd.f32 %v7898, %v4330
    %v8027 = vadd.f32 %v7899, %v4326
    %v8028 = vadd.f32 %v7900, %v4330
    %v8029 = vadd.f32 %v7901, %v4326
    %v8030 = vadd.f32 %v7902, %v4330
    %v8031 = vadd.f32 %v7903, %v4326
    %v8032 = vadd.f32 %v7904, %v4330
    %v8033 = vadd.f32 %v7905, %v4326
    %v8034 = vadd.f32 %v7906, %v4330
    %v8035 = vadd.f32 %v7907, %v4326
    %v8036 = vadd.f32 %v7908, %v4330
    %v8037 = vadd.f32 %v7909, %v4326
    %v8038 = vadd.f32 %v7910, %v4330
    %v8039 = vadd.f32 %v7911, %v4326
    %v8040 = vadd.f32 %v7912, %v4330
    %v8041 = vadd.f32 %v7913, %v4326
    %v8042 = vadd.f32 %v7914, %v4330
    %v8043 = vadd.f32 %v7915, %v4326
    %v8044 = vadd.f32 %v7916, %v4330
    %v8045 = vadd.f32 %v7917, %v4326
    %v8046 = vadd.f32 %v7918, %v4330
    %v8047 = vadd.f32 %v7919, %v4326
    %v8048 = vadd.f32 %v7920, %v4330
    %v8049 = vadd.f32 %v7921, %v4326
    %v8050 = vadd.f32 %v7922, %v4330
    %v8051 = vadd.f32 %v7923, %v4326
    %v8052 = vadd.f32 %v7924, %v4330
    %v8053 = vadd.f32 %v7925, %v4326
    %v8054 = vadd.f32 %v7926, %v4330
    %v8055 = vadd.f32 %v7927, %v4326
    %v8056 = vadd.f32 %v7928, %v4330
    %v8057 = vadd.f32 %v7929, %v4326
    %v8058 = vadd.f32 %v7930, %v4330
    %v8059 = vadd.f32 %v7931, %v4326
    %v8060 = vadd.f32 %v7932, %v4330
    %v8061 = vadd.f32 %v7933, %v4326
    %v8062 = vadd.f32 %v7934, %v4330
    %v8063 = vadd.f32 %v7935, %v4326
    %v8064 = vadd.f32 %v7936, %v4330
    %v8065 = vadd.f32 %v7937, %v4326
    %v8066 = vadd.f32 %v7938, %v4330
    %v8067 = vadd.f32 %v7939, %v4326
    %v8068 = vadd.f32 %v7940, %v4330
    %v8069 = vadd.f32 %v7941, %v4326
    %v8070 = vadd.f32 %v7942, %v4330
    %v8071 = vadd.f32 %v7943, %v4326
    %v8072 = vadd.f32 %v7944, %v4330
    %v8073 = vadd.f32 %v7945, %v4326
    %v8074 = vadd.f32 %v7946, %v4330
    %v8075 = vadd.f32 %v7947, %v4326
    %v8076 = vadd.f32 %v7948, %v4330
    %v8077 = vadd.f32 %v7949, %v4326
    %v8078 = vadd.f32 %v7950, %v4330
    %v8079 = vadd.f32 %v7951, %v4326
    %v8080 = vadd.f32 %v7952, %v4330
    %v8081 = vadd.f32 %v7953, %v4326
    %v8082 = vadd.f32 %v7954, %v4330
    %v8083 = vadd.f32 %v7955, %v4326
    %v8084 = vadd.f32 %v7956, %v4330
    %v8085 = vadd.f32 %v7957, %v4326
    %v8086 = vadd.f32 %v7958, %v4330
    %v8087 = vadd.f32 %v7959, %v4326
    %v8088 = vadd.f32 %v7960, %v4330
    %v8089 = vadd.f32 %v7961, %v4326
    %v8090 = vadd.f32 %v7962, %v4330
    %v8091 = vadd.f32 %v7963, %v4326
    %v8092 = vadd.f32 %v7964, %v4330
    %v8093 = vadd.f32 %v7965, %v4326
    %v8094 = vadd.f32 %v7966, %v4330
    %v8095 = vadd.f32 %v7967, %v4326
    %v8096 = vadd.f32 %v7968, %v4330
    %v8097 = vadd.f32 %v7969, %v4326
    %v8098 = vadd.f32 %v7970, %v4330
    %v8099 = vadd.f32 %v7971, %v4326
    %v8100 = vadd.f32 %v7972, %v4330
    %v8101 = vadd.f32 %v7973, %v4326
    %v8102 = vadd.f32 %v7974, %v4330
    %v8103 = vadd.f32 %v7975, %v4326
    %v8104 = vadd.f32 %v7976, %v4330
    %v8105 = vadd.f32 %v7977, %v4326
    %v8106 = vadd.f32 %v7978, %v4330
    %v8107 = vadd.f32 %v7979, %v4326
    %v8108 = vadd.f32 %v7980, %v4330
    %v8109 = vadd.f32 %v7981, %v4326
    %v8110 = vadd.f32 %v7982, %v4330
    %v8111 = vadd.f32 %v7983, %v4326
    %v8112 = vadd.f32 %v7984, %v4330
    %v8113 = vadd.f32 %v7985, %v4326
    %v8114 = vadd.f32 %v7986, %v4330
    %vm8115 = vcmp.gt.f32.partialorder %v7987, 0.0
    %vm8116 = vcmp.gt.f32.partialorder %v7988, 0.0
    %vm8117 = vcmp.gt.f32.partialorder %v7989, 0.0
    %vm8118 = vcmp.gt.f32.partialorder %v7990, 0.0
    %vm8119 = vcmp.gt.f32.partialorder %v7991, 0.0
    %vm8120 = vcmp.gt.f32.partialorder %v7992, 0.0
    %vm8121 = vcmp.gt.f32.partialorder %v7993, 0.0
    %vm8122 = vcmp.gt.f32.partialorder %v7994, 0.0
    %vm8123 = vcmp.gt.f32.partialorder %v7995, 0.0
    %vm8124 = vcmp.gt.f32.partialorder %v7996, 0.0
    %vm8125 = vcmp.gt.f32.partialorder %v7997, 0.0
    %vm8126 = vcmp.gt.f32.partialorder %v7998, 0.0
    %vm8127 = vcmp.gt.f32.partialorder %v7999, 0.0
    %vm8128 = vcmp.gt.f32.partialorder %v8000, 0.0
    %vm8129 = vcmp.gt.f32.partialorder %v8001, 0.0
    %vm8130 = vcmp.gt.f32.partialorder %v8002, 0.0
    %vm8131 = vcmp.gt.f32.partialorder %v8003, 0.0
    %vm8132 = vcmp.gt.f32.partialorder %v8004, 0.0
    %vm8133 = vcmp.gt.f32.partialorder %v8005, 0.0
    %vm8134 = vcmp.gt.f32.partialorder %v8006, 0.0
    %vm8135 = vcmp.gt.f32.partialorder %v8007, 0.0
    %vm8136 = vcmp.gt.f32.partialorder %v8008, 0.0
    %vm8137 = vcmp.gt.f32.partialorder %v8009, 0.0
    %vm8138 = vcmp.gt.f32.partialorder %v8010, 0.0
    %vm8139 = vcmp.gt.f32.partialorder %v8011, 0.0
    %vm8140 = vcmp.gt.f32.partialorder %v8012, 0.0
    %vm8141 = vcmp.gt.f32.partialorder %v8013, 0.0
    %vm8142 = vcmp.gt.f32.partialorder %v8014, 0.0
    %vm8143 = vcmp.gt.f32.partialorder %v8015, 0.0
    %vm8144 = vcmp.gt.f32.partialorder %v8016, 0.0
    %vm8145 = vcmp.gt.f32.partialorder %v8017, 0.0
    %vm8146 = vcmp.gt.f32.partialorder %v8018, 0.0
    %vm8147 = vcmp.gt.f32.partialorder %v8019, 0.0
    %vm8148 = vcmp.gt.f32.partialorder %v8020, 0.0
    %vm8149 = vcmp.gt.f32.partialorder %v8021, 0.0
    %vm8150 = vcmp.gt.f32.partialorder %v8022, 0.0
    %vm8151 = vcmp.gt.f32.partialorder %v8023, 0.0
    %vm8152 = vcmp.gt.f32.partialorder %v8024, 0.0
    %vm8153 = vcmp.gt.f32.partialorder %v8025, 0.0
    %vm8154 = vcmp.gt.f32.partialorder %v8026, 0.0
    %vm8155 = vcmp.gt.f32.partialorder %v8027, 0.0
    %vm8156 = vcmp.gt.f32.partialorder %v8028, 0.0
    %vm8157 = vcmp.gt.f32.partialorder %v8029, 0.0
    %vm8158 = vcmp.gt.f32.partialorder %v8030, 0.0
    %vm8159 = vcmp.gt.f32.partialorder %v8031, 0.0
    %vm8160 = vcmp.gt.f32.partialorder %v8032, 0.0
    %vm8161 = vcmp.gt.f32.partialorder %v8033, 0.0
    %vm8162 = vcmp.gt.f32.partialorder %v8034, 0.0
    %vm8163 = vcmp.gt.f32.partialorder %v8035, 0.0
    %vm8164 = vcmp.gt.f32.partialorder %v8036, 0.0
    %vm8165 = vcmp.gt.f32.partialorder %v8037, 0.0
    %vm8166 = vcmp.gt.f32.partialorder %v8038, 0.0
    %vm8167 = vcmp.gt.f32.partialorder %v8039, 0.0
    %vm8168 = vcmp.gt.f32.partialorder %v8040, 0.0
    %vm8169 = vcmp.gt.f32.partialorder %v8041, 0.0
    %vm8170 = vcmp.gt.f32.partialorder %v8042, 0.0
    %vm8171 = vcmp.gt.f32.partialorder %v8043, 0.0
    %vm8172 = vcmp.gt.f32.partialorder %v8044, 0.0
    %vm8173 = vcmp.gt.f32.partialorder %v8045, 0.0
    %vm8174 = vcmp.gt.f32.partialorder %v8046, 0.0
    %vm8175 = vcmp.gt.f32.partialorder %v8047, 0.0
    %vm8176 = vcmp.gt.f32.partialorder %v8048, 0.0
    %vm8177 = vcmp.gt.f32.partialorder %v8049, 0.0
    %vm8178 = vcmp.gt.f32.partialorder %v8050, 0.0
    %vm8179 = vcmp.gt.f32.partialorder %v8051, 0.0
    %vm8180 = vcmp.gt.f32.partialorder %v8052, 0.0
    %vm8181 = vcmp.gt.f32.partialorder %v8053, 0.0
    %vm8182 = vcmp.gt.f32.partialorder %v8054, 0.0
    %vm8183 = vcmp.gt.f32.partialorder %v8055, 0.0
    %vm8184 = vcmp.gt.f32.partialorder %v8056, 0.0
    %vm8185 = vcmp.gt.f32.partialorder %v8057, 0.0
    %vm8186 = vcmp.gt.f32.partialorder %v8058, 0.0
    %vm8187 = vcmp.gt.f32.partialorder %v8059, 0.0
    %vm8188 = vcmp.gt.f32.partialorder %v8060, 0.0
    %vm8189 = vcmp.gt.f32.partialorder %v8061, 0.0
    %vm8190 = vcmp.gt.f32.partialorder %v8062, 0.0
    %vm8191 = vcmp.gt.f32.partialorder %v8063, 0.0
    %vm8192 = vcmp.gt.f32.partialorder %v8064, 0.0
    %vm8193 = vcmp.gt.f32.partialorder %v8065, 0.0
    %vm8194 = vcmp.gt.f32.partialorder %v8066, 0.0
    %vm8195 = vcmp.gt.f32.partialorder %v8067, 0.0
    %vm8196 = vcmp.gt.f32.partialorder %v8068, 0.0
    %vm8197 = vcmp.gt.f32.partialorder %v8069, 0.0
    %vm8198 = vcmp.gt.f32.partialorder %v8070, 0.0
    %vm8199 = vcmp.gt.f32.partialorder %v8071, 0.0
    %vm8200 = vcmp.gt.f32.partialorder %v8072, 0.0
    %vm8201 = vcmp.gt.f32.partialorder %v8073, 0.0
    %vm8202 = vcmp.gt.f32.partialorder %v8074, 0.0
    %vm8203 = vcmp.gt.f32.partialorder %v8075, 0.0
    %vm8204 = vcmp.gt.f32.partialorder %v8076, 0.0
    %vm8205 = vcmp.gt.f32.partialorder %v8077, 0.0
    %vm8206 = vcmp.gt.f32.partialorder %v8078, 0.0
    %vm8207 = vcmp.gt.f32.partialorder %v8079, 0.0
    %vm8208 = vcmp.gt.f32.partialorder %v8080, 0.0
    %vm8209 = vcmp.gt.f32.partialorder %v8081, 0.0
    %vm8210 = vcmp.gt.f32.partialorder %v8082, 0.0
    %vm8211 = vcmp.gt.f32.partialorder %v8083, 0.0
    %vm8212 = vcmp.gt.f32.partialorder %v8084, 0.0
    %vm8213 = vcmp.gt.f32.partialorder %v8085, 0.0
    %vm8214 = vcmp.gt.f32.partialorder %v8086, 0.0
    %vm8215 = vcmp.gt.f32.partialorder %v8087, 0.0
    %vm8216 = vcmp.gt.f32.partialorder %v8088, 0.0
    %vm8217 = vcmp.gt.f32.partialorder %v8089, 0.0
    %vm8218 = vcmp.gt.f32.partialorder %v8090, 0.0
    %vm8219 = vcmp.gt.f32.partialorder %v8091, 0.0
    %vm8220 = vcmp.gt.f32.partialorder %v8092, 0.0
    %vm8221 = vcmp.gt.f32.partialorder %v8093, 0.0
    %vm8222 = vcmp.gt.f32.partialorder %v8094, 0.0
    %vm8223 = vcmp.gt.f32.partialorder %v8095, 0.0
    %vm8224 = vcmp.gt.f32.partialorder %v8096, 0.0
    %vm8225 = vcmp.gt.f32.partialorder %v8097, 0.0
    %vm8226 = vcmp.gt.f32.partialorder %v8098, 0.0
    %vm8227 = vcmp.gt.f32.partialorder %v8099, 0.0
    %vm8228 = vcmp.gt.f32.partialorder %v8100, 0.0
    %vm8229 = vcmp.gt.f32.partialorder %v8101, 0.0
    %vm8230 = vcmp.gt.f32.partialorder %v8102, 0.0
    %vm8231 = vcmp.gt.f32.partialorder %v8103, 0.0
    %vm8232 = vcmp.gt.f32.partialorder %v8104, 0.0
    %vm8233 = vcmp.gt.f32.partialorder %v8105, 0.0
    %vm8234 = vcmp.gt.f32.partialorder %v8106, 0.0
    %vm8235 = vcmp.gt.f32.partialorder %v8107, 0.0
    %vm8236 = vcmp.gt.f32.partialorder %v8108, 0.0
    %vm8237 = vcmp.gt.f32.partialorder %v8109, 0.0
    %vm8238 = vcmp.gt.f32.partialorder %v8110, 0.0
    %vm8239 = vcmp.gt.f32.partialorder %v8111, 0.0
    %vm8240 = vcmp.gt.f32.partialorder %v8112, 0.0
    %vm8241 = vcmp.gt.f32.partialorder %v8113, 0.0
    %vm8242 = vcmp.gt.f32.partialorder %v8114, 0.0
    %v8243 = vmin.f32 %v7987, 0.0
    %v8244 = vmin.f32 %v7988, 0.0
    %v8245 = vmin.f32 %v7989, 0.0
    %v8246 = vmin.f32 %v7990, 0.0
    %v8247 = vmin.f32 %v7991, 0.0
    %v8248 = vmin.f32 %v7992, 0.0
    %v8249 = vmin.f32 %v7993, 0.0
    %v8250 = vmin.f32 %v7994, 0.0
    %v8251 = vmin.f32 %v7995, 0.0
    %v8252 = vmin.f32 %v7996, 0.0
    %v8253 = vmin.f32 %v7997, 0.0
    %v8254 = vmin.f32 %v7998, 0.0
    %v8255 = vmin.f32 %v7999, 0.0
    %v8256 = vmin.f32 %v8000, 0.0
    %v8257 = vmin.f32 %v8001, 0.0
    %v8258 = vmin.f32 %v8002, 0.0
    %v8259 = vmin.f32 %v8003, 0.0
    %v8260 = vmin.f32 %v8004, 0.0
    %v8261 = vmin.f32 %v8005, 0.0
    %v8262 = vmin.f32 %v8006, 0.0
    %v8263 = vmin.f32 %v8007, 0.0
    %v8264 = vmin.f32 %v8008, 0.0
    %v8265 = vmin.f32 %v8009, 0.0
    %v8266 = vmin.f32 %v8010, 0.0
    %v8267 = vmin.f32 %v8011, 0.0
    %v8268 = vmin.f32 %v8012, 0.0
    %v8269 = vmin.f32 %v8013, 0.0
    %v8270 = vmin.f32 %v8014, 0.0
    %v8271 = vmin.f32 %v8015, 0.0
    %v8272 = vmin.f32 %v8016, 0.0
    %v8273 = vmin.f32 %v8017, 0.0
    %v8274 = vmin.f32 %v8018, 0.0
    %v8275 = vmin.f32 %v8019, 0.0
    %v8276 = vmin.f32 %v8020, 0.0
    %v8277 = vmin.f32 %v8021, 0.0
    %v8278 = vmin.f32 %v8022, 0.0
    %v8279 = vmin.f32 %v8023, 0.0
    %v8280 = vmin.f32 %v8024, 0.0
    %v8281 = vmin.f32 %v8025, 0.0
    %v8282 = vmin.f32 %v8026, 0.0
    %v8283 = vmin.f32 %v8027, 0.0
    %v8284 = vmin.f32 %v8028, 0.0
    %v8285 = vmin.f32 %v8029, 0.0
    %v8286 = vmin.f32 %v8030, 0.0
    %v8287 = vmin.f32 %v8031, 0.0
    %v8288 = vmin.f32 %v8032, 0.0
    %v8289 = vmin.f32 %v8033, 0.0
    %v8290 = vmin.f32 %v8034, 0.0
    %v8291 = vmin.f32 %v8035, 0.0
    %v8292 = vmin.f32 %v8036, 0.0
    %v8293 = vmin.f32 %v8037, 0.0
    %v8294 = vmin.f32 %v8038, 0.0
    %v8295 = vmin.f32 %v8039, 0.0
    %v8296 = vmin.f32 %v8040, 0.0
    %v8297 = vmin.f32 %v8041, 0.0
    %v8298 = vmin.f32 %v8042, 0.0
    %v8299 = vmin.f32 %v8043, 0.0
    %v8300 = vmin.f32 %v8044, 0.0
    %v8301 = vmin.f32 %v8045, 0.0
    %v8302 = vmin.f32 %v8046, 0.0
    %v8303 = vmin.f32 %v8047, 0.0
    %v8304 = vmin.f32 %v8048, 0.0
    %v8305 = vmin.f32 %v8049, 0.0
    %v8306 = vmin.f32 %v8050, 0.0
    %v8307 = vmin.f32 %v8051, 0.0
    %v8308 = vmin.f32 %v8052, 0.0
    %v8309 = vmin.f32 %v8053, 0.0
    %v8310 = vmin.f32 %v8054, 0.0
    %v8311 = vmin.f32 %v8055, 0.0
    %v8312 = vmin.f32 %v8056, 0.0
    %v8313 = vmin.f32 %v8057, 0.0
    %v8314 = vmin.f32 %v8058, 0.0
    %v8315 = vmin.f32 %v8059, 0.0
    %v8316 = vmin.f32 %v8060, 0.0
    %v8317 = vmin.f32 %v8061, 0.0
    %v8318 = vmin.f32 %v8062, 0.0
    %v8319 = vmin.f32 %v8063, 0.0
    %v8320 = vmin.f32 %v8064, 0.0
    %v8321 = vmin.f32 %v8065, 0.0
    %v8322 = vmin.f32 %v8066, 0.0
    %v8323 = vmin.f32 %v8067, 0.0
    %v8324 = vmin.f32 %v8068, 0.0
    %v8325 = vmin.f32 %v8069, 0.0
    %v8326 = vmin.f32 %v8070, 0.0
    %v8327 = vmin.f32 %v8071, 0.0
    %v8328 = vmin.f32 %v8072, 0.0
    %v8329 = vmin.f32 %v8073, 0.0
    %v8330 = vmin.f32 %v8074, 0.0
    %v8331 = vmin.f32 %v8075, 0.0
    %v8332 = vmin.f32 %v8076, 0.0
    %v8333 = vmin.f32 %v8077, 0.0
    %v8334 = vmin.f32 %v8078, 0.0
    %v8335 = vmin.f32 %v8079, 0.0
    %v8336 = vmin.f32 %v8080, 0.0
    %v8337 = vmin.f32 %v8081, 0.0
    %v8338 = vmin.f32 %v8082, 0.0
    %v8339 = vmin.f32 %v8083, 0.0
    %v8340 = vmin.f32 %v8084, 0.0
    %v8341 = vmin.f32 %v8085, 0.0
    %v8342 = vmin.f32 %v8086, 0.0
    %v8343 = vmin.f32 %v8087, 0.0
    %v8344 = vmin.f32 %v8088, 0.0
    %v8345 = vmin.f32 %v8089, 0.0
    %v8346 = vmin.f32 %v8090, 0.0
    %v8347 = vmin.f32 %v8091, 0.0
    %v8348 = vmin.f32 %v8092, 0.0
    %v8349 = vmin.f32 %v8093, 0.0
    %v8350 = vmin.f32 %v8094, 0.0
    %v8351 = vmin.f32 %v8095, 0.0
    %v8352 = vmin.f32 %v8096, 0.0
    %v8353 = vmin.f32 %v8097, 0.0
    %v8354 = vmin.f32 %v8098, 0.0
    %v8355 = vmin.f32 %v8099, 0.0
    %v8356 = vmin.f32 %v8100, 0.0
    %v8357 = vmin.f32 %v8101, 0.0
    %v8358 = vmin.f32 %v8102, 0.0
    %v8359 = vmin.f32 %v8103, 0.0
    %v8360 = vmin.f32 %v8104, 0.0
    %v8361 = vmin.f32 %v8105, 0.0
    %v8362 = vmin.f32 %v8106, 0.0
    %v8363 = vmin.f32 %v8107, 0.0
    %v8364 = vmin.f32 %v8108, 0.0
    %v8365 = vmin.f32 %v8109, 0.0
    %v8366 = vmin.f32 %v8110, 0.0
    %v8367 = vmin.f32 %v8111, 0.0
    %v8368 = vmin.f32 %v8112, 0.0
    %v8369 = vmin.f32 %v8113, 0.0
    %v8370 = vmin.f32 %v8114, 0.0
    %v8371 = vmul.f32 %v8243, 1.442695
    %v8372 = vpow.pop %v8371
    %v8373 = vmul.f32 %v8244, 1.442695
    %v8374 = vpow.pop %v8373
    %v8375 = vmul.f32 %v8245, 1.442695
    %v8376 = vpow.pop %v8375
    %v8377 = vmul.f32 %v8246, 1.442695
    %v8378 = vpow.pop %v8377
    %v8379 = vmul.f32 %v8247, 1.442695
    %v8380 = vpow.pop %v8379
    %v8381 = vmul.f32 %v8248, 1.442695
    %v8382 = vpow.pop %v8381
    %v8383 = vmul.f32 %v8249, 1.442695
    %v8384 = vpow.pop %v8383
    %v8385 = vmul.f32 %v8250, 1.442695
    %v8386 = vpow.pop %v8385
    %v8387 = vmul.f32 %v8251, 1.442695
    %v8388 = vpow.pop %v8387
    %v8389 = vmul.f32 %v8252, 1.442695
    %v8390 = vpow.pop %v8389
    %v8391 = vmul.f32 %v8253, 1.442695
    %v8392 = vpow.pop %v8391
    %v8393 = vmul.f32 %v8254, 1.442695
    %v8394 = vpow.pop %v8393
    %v8395 = vmul.f32 %v8255, 1.442695
    %v8396 = vpow.pop %v8395
    %v8397 = vmul.f32 %v8256, 1.442695
    %v8398 = vpow.pop %v8397
    %v8399 = vmul.f32 %v8257, 1.442695
    %v8400 = vpow.pop %v8399
    %v8401 = vmul.f32 %v8258, 1.442695
    %v8402 = vpow.pop %v8401
    %v8403 = vmul.f32 %v8259, 1.442695
    %v8404 = vpow.pop %v8403
    %v8405 = vmul.f32 %v8260, 1.442695
    %v8406 = vpow.pop %v8405
    %v8407 = vmul.f32 %v8261, 1.442695
    %v8408 = vpow.pop %v8407
    %v8409 = vmul.f32 %v8262, 1.442695
    %v8410 = vpow.pop %v8409
    %v8411 = vmul.f32 %v8263, 1.442695
    %v8412 = vpow.pop %v8411
    %v8413 = vmul.f32 %v8264, 1.442695
    %v8414 = vpow.pop %v8413
    %v8415 = vmul.f32 %v8265, 1.442695
    %v8416 = vpow.pop %v8415
    %v8417 = vmul.f32 %v8266, 1.442695
    %v8418 = vpow.pop %v8417
    %v8419 = vmul.f32 %v8267, 1.442695
    %v8420 = vpow.pop %v8419
    %v8421 = vmul.f32 %v8268, 1.442695
    %v8422 = vpow.pop %v8421
    %v8423 = vmul.f32 %v8269, 1.442695
    %v8424 = vpow.pop %v8423
    %v8425 = vmul.f32 %v8270, 1.442695
    %v8426 = vpow.pop %v8425
    %v8427 = vmul.f32 %v8271, 1.442695
    %v8428 = vpow.pop %v8427
    %v8429 = vmul.f32 %v8272, 1.442695
    %v8430 = vpow.pop %v8429
    %v8431 = vmul.f32 %v8273, 1.442695
    %v8432 = vpow.pop %v8431
    %v8433 = vmul.f32 %v8274, 1.442695
    %v8434 = vpow.pop %v8433
    %v8435 = vmul.f32 %v8275, 1.442695
    %v8436 = vpow.pop %v8435
    %v8437 = vmul.f32 %v8276, 1.442695
    %v8438 = vpow.pop %v8437
    %v8439 = vmul.f32 %v8277, 1.442695
    %v8440 = vpow.pop %v8439
    %v8441 = vmul.f32 %v8278, 1.442695
    %v8442 = vpow.pop %v8441
    %v8443 = vmul.f32 %v8279, 1.442695
    %v8444 = vpow.pop %v8443
    %v8445 = vmul.f32 %v8280, 1.442695
    %v8446 = vpow.pop %v8445
    %v8447 = vmul.f32 %v8281, 1.442695
    %v8448 = vpow.pop %v8447
    %v8449 = vmul.f32 %v8282, 1.442695
    %v8450 = vpow.pop %v8449
    %v8451 = vmul.f32 %v8283, 1.442695
    %v8452 = vpow.pop %v8451
    %v8453 = vmul.f32 %v8284, 1.442695
    %v8454 = vpow.pop %v8453
    %v8455 = vmul.f32 %v8285, 1.442695
    %v8456 = vpow.pop %v8455
    %v8457 = vmul.f32 %v8286, 1.442695
    %v8458 = vpow.pop %v8457
    %v8459 = vmul.f32 %v8287, 1.442695
    %v8460 = vpow.pop %v8459
    %v8461 = vmul.f32 %v8288, 1.442695
    %v8462 = vpow.pop %v8461
    %v8463 = vmul.f32 %v8289, 1.442695
    %v8464 = vpow.pop %v8463
    %v8465 = vmul.f32 %v8290, 1.442695
    %v8466 = vpow.pop %v8465
    %v8467 = vmul.f32 %v8291, 1.442695
    %v8468 = vpow.pop %v8467
    %v8469 = vmul.f32 %v8292, 1.442695
    %v8470 = vpow.pop %v8469
    %v8471 = vmul.f32 %v8293, 1.442695
    %v8472 = vpow.pop %v8471
    %v8473 = vmul.f32 %v8294, 1.442695
    %v8474 = vpow.pop %v8473
    %v8475 = vmul.f32 %v8295, 1.442695
    %v8476 = vpow.pop %v8475
    %v8477 = vmul.f32 %v8296, 1.442695
    %v8478 = vpow.pop %v8477
    %v8479 = vmul.f32 %v8297, 1.442695
    %v8480 = vpow.pop %v8479
    %v8481 = vmul.f32 %v8298, 1.442695
    %v8482 = vpow.pop %v8481
    %v8483 = vmul.f32 %v8299, 1.442695
    %v8484 = vpow.pop %v8483
    %v8485 = vmul.f32 %v8300, 1.442695
    %v8486 = vpow.pop %v8485
    %v8487 = vmul.f32 %v8301, 1.442695
    %v8488 = vpow.pop %v8487
    %v8489 = vmul.f32 %v8302, 1.442695
    %v8490 = vpow.pop %v8489
    %v8491 = vmul.f32 %v8303, 1.442695
    %v8492 = vpow.pop %v8491
    %v8493 = vmul.f32 %v8304, 1.442695
    %v8494 = vpow.pop %v8493
    %v8495 = vmul.f32 %v8305, 1.442695
    %v8496 = vpow.pop %v8495
    %v8497 = vmul.f32 %v8306, 1.442695
    %v8498 = vpow.pop %v8497
    %v8499 = vmul.f32 %v8307, 1.442695
    %v8500 = vpow.pop %v8499
    %v8501 = vmul.f32 %v8308, 1.442695
    %v8502 = vpow.pop %v8501
    %v8503 = vmul.f32 %v8309, 1.442695
    %v8504 = vpow.pop %v8503
    %v8505 = vmul.f32 %v8310, 1.442695
    %v8506 = vpow.pop %v8505
    %v8507 = vmul.f32 %v8311, 1.442695
    %v8508 = vpow.pop %v8507
    %v8509 = vmul.f32 %v8312, 1.442695
    %v8510 = vpow.pop %v8509
    %v8511 = vmul.f32 %v8313, 1.442695
    %v8512 = vpow.pop %v8511
    %v8513 = vmul.f32 %v8314, 1.442695
    %v8514 = vpow.pop %v8513
    %v8515 = vmul.f32 %v8315, 1.442695
    %v8516 = vpow.pop %v8515
    %v8517 = vmul.f32 %v8316, 1.442695
    %v8518 = vpow.pop %v8517
    %v8519 = vmul.f32 %v8317, 1.442695
    %v8520 = vpow.pop %v8519
    %v8521 = vmul.f32 %v8318, 1.442695
    %v8522 = vpow.pop %v8521
    %v8523 = vmul.f32 %v8319, 1.442695
    %v8524 = vpow.pop %v8523
    %v8525 = vmul.f32 %v8320, 1.442695
    %v8526 = vpow.pop %v8525
    %v8527 = vmul.f32 %v8321, 1.442695
    %v8528 = vpow.pop %v8527
    %v8529 = vmul.f32 %v8322, 1.442695
    %v8530 = vpow.pop %v8529
    %v8531 = vmul.f32 %v8323, 1.442695
    %v8532 = vpow.pop %v8531
    %v8533 = vmul.f32 %v8324, 1.442695
    %v8534 = vpow.pop %v8533
    %v8535 = vmul.f32 %v8325, 1.442695
    %v8536 = vpow.pop %v8535
    %v8537 = vmul.f32 %v8326, 1.442695
    %v8538 = vpow.pop %v8537
    %v8539 = vmul.f32 %v8327, 1.442695
    %v8540 = vpow.pop %v8539
    %v8541 = vmul.f32 %v8328, 1.442695
    %v8542 = vpow.pop %v8541
    %v8543 = vmul.f32 %v8329, 1.442695
    %v8544 = vpow.pop %v8543
    %v8545 = vmul.f32 %v8330, 1.442695
    %v8546 = vpow.pop %v8545
    %v8547 = vmul.f32 %v8331, 1.442695
    %v8548 = vpow.pop %v8547
    %v8549 = vmul.f32 %v8332, 1.442695
    %v8550 = vpow.pop %v8549
    %v8551 = vmul.f32 %v8333, 1.442695
    %v8552 = vpow.pop %v8551
    %v8553 = vmul.f32 %v8334, 1.442695
    %v8554 = vpow.pop %v8553
    %v8555 = vmul.f32 %v8335, 1.442695
    %v8556 = vpow.pop %v8555
    %v8557 = vmul.f32 %v8336, 1.442695
    %v8558 = vpow.pop %v8557
    %v8559 = vmul.f32 %v8337, 1.442695
    %v8560 = vpow.pop %v8559
    %v8561 = vmul.f32 %v8338, 1.442695
    %v8562 = vpow.pop %v8561
    %v8563 = vmul.f32 %v8339, 1.442695
    %v8564 = vpow.pop %v8563
    %v8565 = vmul.f32 %v8340, 1.442695
    %v8566 = vpow.pop %v8565
    %v8567 = vmul.f32 %v8341, 1.442695
    %v8568 = vpow.pop %v8567
    %v8569 = vmul.f32 %v8342, 1.442695
    %v8570 = vpow.pop %v8569
    %v8571 = vmul.f32 %v8343, 1.442695
    %v8572 = vpow.pop %v8571
    %v8573 = vmul.f32 %v8344, 1.442695
    %v8574 = vpow.pop %v8573
    %v8575 = vmul.f32 %v8345, 1.442695
    %v8576 = vpow.pop %v8575
    %v8577 = vmul.f32 %v8346, 1.442695
    %v8578 = vpow.pop %v8577
    %v8579 = vmul.f32 %v8347, 1.442695
    %v8580 = vpow.pop %v8579
    %v8581 = vmul.f32 %v8348, 1.442695
    %v8582 = vpow.pop %v8581
    %v8583 = vmul.f32 %v8349, 1.442695
    %v8584 = vpow.pop %v8583
    %v8585 = vmul.f32 %v8350, 1.442695
    %v8586 = vpow.pop %v8585
    %v8587 = vmul.f32 %v8351, 1.442695
    %v8588 = vpow.pop %v8587
    %v8589 = vmul.f32 %v8352, 1.442695
    %v8590 = vpow.pop %v8589
    %v8591 = vmul.f32 %v8353, 1.442695
    %v8592 = vpow.pop %v8591
    %v8593 = vmul.f32 %v8354, 1.442695
    %v8594 = vpow.pop %v8593
    %v8595 = vmul.f32 %v8355, 1.442695
    %v8596 = vpow.pop %v8595
    %v8597 = vmul.f32 %v8356, 1.442695
    %v8598 = vpow.pop %v8597
    %v8599 = vmul.f32 %v8357, 1.442695
    %v8600 = vpow.pop %v8599
    %v8601 = vmul.f32 %v8358, 1.442695
    %v8602 = vpow.pop %v8601
    %v8603 = vmul.f32 %v8359, 1.442695
    %v8604 = vpow.pop %v8603
    %v8605 = vmul.f32 %v8360, 1.442695
    %v8606 = vpow.pop %v8605
    %v8607 = vmul.f32 %v8361, 1.442695
    %v8608 = vpow.pop %v8607
    %v8609 = vmul.f32 %v8362, 1.442695
    %v8610 = vpow.pop %v8609
    %v8611 = vmul.f32 %v8363, 1.442695
    %v8612 = vpow.pop %v8611
    %v8613 = vmul.f32 %v8364, 1.442695
    %v8614 = vpow.pop %v8613
    %v8615 = vmul.f32 %v8365, 1.442695
    %v8616 = vpow.pop %v8615
    %v8617 = vmul.f32 %v8366, 1.442695
    %v8618 = vpow.pop %v8617
    %v8619 = vmul.f32 %v8367, 1.442695
    %v8620 = vpow.pop %v8619
    %v8621 = vmul.f32 %v8368, 1.442695
    %v8622 = vpow.pop %v8621
    %v8623 = vmul.f32 %v8369, 1.442695
    %v8624 = vpow.pop %v8623
    %v8625 = vmul.f32 %v8370, 1.442695
    %v8626 = vpow.pop %v8625
    %v8627 = vsub.f32 %v8372, 1.0
    %v8628 = vsub.f32 %v8374, 1.0
    %v8629 = vsub.f32 %v8376, 1.0
    %v8630 = vsub.f32 %v8378, 1.0
    %v8631 = vsub.f32 %v8380, 1.0
    %v8632 = vsub.f32 %v8382, 1.0
    %v8633 = vsub.f32 %v8384, 1.0
    %v8634 = vsub.f32 %v8386, 1.0
    %v8635 = vsub.f32 %v8388, 1.0
    %v8636 = vsub.f32 %v8390, 1.0
    %v8637 = vsub.f32 %v8392, 1.0
    %v8638 = vsub.f32 %v8394, 1.0
    %v8639 = vsub.f32 %v8396, 1.0
    %v8640 = vsub.f32 %v8398, 1.0
    %v8641 = vsub.f32 %v8400, 1.0
    %v8642 = vsub.f32 %v8402, 1.0
    %v8643 = vsub.f32 %v8404, 1.0
    %v8644 = vsub.f32 %v8406, 1.0
    %v8645 = vsub.f32 %v8408, 1.0
    %v8646 = vsub.f32 %v8410, 1.0
    %v8647 = vsub.f32 %v8412, 1.0
    %v8648 = vsub.f32 %v8414, 1.0
    %v8649 = vsub.f32 %v8416, 1.0
    %v8650 = vsub.f32 %v8418, 1.0
    %v8651 = vsub.f32 %v8420, 1.0
    %v8652 = vsub.f32 %v8422, 1.0
    %v8653 = vsub.f32 %v8424, 1.0
    %v8654 = vsub.f32 %v8426, 1.0
    %v8655 = vsub.f32 %v8428, 1.0
    %v8656 = vsub.f32 %v8430, 1.0
    %v8657 = vsub.f32 %v8432, 1.0
    %v8658 = vsub.f32 %v8434, 1.0
    %v8659 = vsub.f32 %v8436, 1.0
    %v8660 = vsub.f32 %v8438, 1.0
    %v8661 = vsub.f32 %v8440, 1.0
    %v8662 = vsub.f32 %v8442, 1.0
    %v8663 = vsub.f32 %v8444, 1.0
    %v8664 = vsub.f32 %v8446, 1.0
    %v8665 = vsub.f32 %v8448, 1.0
    %v8666 = vsub.f32 %v8450, 1.0
    %v8667 = vsub.f32 %v8452, 1.0
    %v8668 = vsub.f32 %v8454, 1.0
    %v8669 = vsub.f32 %v8456, 1.0
    %v8670 = vsub.f32 %v8458, 1.0
    %v8671 = vsub.f32 %v8460, 1.0
    %v8672 = vsub.f32 %v8462, 1.0
    %v8673 = vsub.f32 %v8464, 1.0
    %v8674 = vsub.f32 %v8466, 1.0
    %v8675 = vsub.f32 %v8468, 1.0
    %v8676 = vsub.f32 %v8470, 1.0
    %v8677 = vsub.f32 %v8472, 1.0
    %v8678 = vsub.f32 %v8474, 1.0
    %v8679 = vsub.f32 %v8476, 1.0
    %v8680 = vsub.f32 %v8478, 1.0
    %v8681 = vsub.f32 %v8480, 1.0
    %v8682 = vsub.f32 %v8482, 1.0
    %v8683 = vsub.f32 %v8484, 1.0
    %v8684 = vsub.f32 %v8486, 1.0
    %v8685 = vsub.f32 %v8488, 1.0
    %v8686 = vsub.f32 %v8490, 1.0
    %v8687 = vsub.f32 %v8492, 1.0
    %v8688 = vsub.f32 %v8494, 1.0
    %v8689 = vsub.f32 %v8496, 1.0
    %v8690 = vsub.f32 %v8498, 1.0
    %v8691 = vsub.f32 %v8500, 1.0
    %v8692 = vsub.f32 %v8502, 1.0
    %v8693 = vsub.f32 %v8504, 1.0
    %v8694 = vsub.f32 %v8506, 1.0
    %v8695 = vsub.f32 %v8508, 1.0
    %v8696 = vsub.f32 %v8510, 1.0
    %v8697 = vsub.f32 %v8512, 1.0
    %v8698 = vsub.f32 %v8514, 1.0
    %v8699 = vsub.f32 %v8516, 1.0
    %v8700 = vsub.f32 %v8518, 1.0
    %v8701 = vsub.f32 %v8520, 1.0
    %v8702 = vsub.f32 %v8522, 1.0
    %v8703 = vsub.f32 %v8524, 1.0
    %v8704 = vsub.f32 %v8526, 1.0
    %v8705 = vsub.f32 %v8528, 1.0
    %v8706 = vsub.f32 %v8530, 1.0
    %v8707 = vsub.f32 %v8532, 1.0
    %v8708 = vsub.f32 %v8534, 1.0
    %v8709 = vsub.f32 %v8536, 1.0
    %v8710 = vsub.f32 %v8538, 1.0
    %v8711 = vsub.f32 %v8540, 1.0
    %v8712 = vsub.f32 %v8542, 1.0
    %v8713 = vsub.f32 %v8544, 1.0
    %v8714 = vsub.f32 %v8546, 1.0
    %v8715 = vsub.f32 %v8548, 1.0
    %v8716 = vsub.f32 %v8550, 1.0
    %v8717 = vsub.f32 %v8552, 1.0
    %v8718 = vsub.f32 %v8554, 1.0
    %v8719 = vsub.f32 %v8556, 1.0
    %v8720 = vsub.f32 %v8558, 1.0
    %v8721 = vsub.f32 %v8560, 1.0
    %v8722 = vsub.f32 %v8562, 1.0
    %v8723 = vsub.f32 %v8564, 1.0
    %v8724 = vsub.f32 %v8566, 1.0
    %v8725 = vsub.f32 %v8568, 1.0
    %v8726 = vsub.f32 %v8570, 1.0
    %v8727 = vsub.f32 %v8572, 1.0
    %v8728 = vsub.f32 %v8574, 1.0
    %v8729 = vsub.f32 %v8576, 1.0
    %v8730 = vsub.f32 %v8578, 1.0
    %v8731 = vsub.f32 %v8580, 1.0
    %v8732 = vsub.f32 %v8582, 1.0
    %v8733 = vsub.f32 %v8584, 1.0
    %v8734 = vsub.f32 %v8586, 1.0
    %v8735 = vsub.f32 %v8588, 1.0
    %v8736 = vsub.f32 %v8590, 1.0
    %v8737 = vsub.f32 %v8592, 1.0
    %v8738 = vsub.f32 %v8594, 1.0
    %v8739 = vsub.f32 %v8596, 1.0
    %v8740 = vsub.f32 %v8598, 1.0
    %v8741 = vsub.f32 %v8600, 1.0
    %v8742 = vsub.f32 %v8602, 1.0
    %v8743 = vsub.f32 %v8604, 1.0
    %v8744 = vsub.f32 %v8606, 1.0
    %v8745 = vsub.f32 %v8608, 1.0
    %v8746 = vsub.f32 %v8610, 1.0
    %v8747 = vsub.f32 %v8612, 1.0
    %v8748 = vsub.f32 %v8614, 1.0
    %v8749 = vsub.f32 %v8616, 1.0
    %v8750 = vsub.f32 %v8618, 1.0
    %v8751 = vsub.f32 %v8620, 1.0
    %v8752 = vsub.f32 %v8622, 1.0
    %v8753 = vsub.f32 %v8624, 1.0
    %v8754 = vsub.f32 %v8626, 1.0
    %v8755 = vsel %vm8115, %v7987, %v8627
    %v8756 = vsel %vm8116, %v7988, %v8628
    %v8757 = vsel %vm8117, %v7989, %v8629
    %v8758 = vsel %vm8118, %v7990, %v8630
    %v8759 = vsel %vm8119, %v7991, %v8631
    %v8760 = vsel %vm8120, %v7992, %v8632
    %v8761 = vsel %vm8121, %v7993, %v8633
    %v8762 = vsel %vm8122, %v7994, %v8634
    %v8763 = vsel %vm8123, %v7995, %v8635
    %v8764 = vsel %vm8124, %v7996, %v8636
    %v8765 = vsel %vm8125, %v7997, %v8637
    %v8766 = vsel %vm8126, %v7998, %v8638
    %v8767 = vsel %vm8127, %v7999, %v8639
    %v8768 = vsel %vm8128, %v8000, %v8640
    %v8769 = vsel %vm8129, %v8001, %v8641
    %v8770 = vsel %vm8130, %v8002, %v8642
    %v8771 = vsel %vm8131, %v8003, %v8643
    %v8772 = vsel %vm8132, %v8004, %v8644
    %v8773 = vsel %vm8133, %v8005, %v8645
    %v8774 = vsel %vm8134, %v8006, %v8646
    %v8775 = vsel %vm8135, %v8007, %v8647
    %v8776 = vsel %vm8136, %v8008, %v8648
    %v8777 = vsel %vm8137, %v8009, %v8649
    %v8778 = vsel %vm8138, %v8010, %v8650
    %v8779 = vsel %vm8139, %v8011, %v8651
    %v8780 = vsel %vm8140, %v8012, %v8652
    %v8781 = vsel %vm8141, %v8013, %v8653
    %v8782 = vsel %vm8142, %v8014, %v8654
    %v8783 = vsel %vm8143, %v8015, %v8655
    %v8784 = vsel %vm8144, %v8016, %v8656
    %v8785 = vsel %vm8145, %v8017, %v8657
    %v8786 = vsel %vm8146, %v8018, %v8658
    %v8787 = vsel %vm8147, %v8019, %v8659
    %v8788 = vsel %vm8148, %v8020, %v8660
    %v8789 = vsel %vm8149, %v8021, %v8661
    %v8790 = vsel %vm8150, %v8022, %v8662
    %v8791 = vsel %vm8151, %v8023, %v8663
    %v8792 = vsel %vm8152, %v8024, %v8664
    %v8793 = vsel %vm8153, %v8025, %v8665
    %v8794 = vsel %vm8154, %v8026, %v8666
    %v8795 = vsel %vm8155, %v8027, %v8667
    %v8796 = vsel %vm8156, %v8028, %v8668
    %v8797 = vsel %vm8157, %v8029, %v8669
    %v8798 = vsel %vm8158, %v8030, %v8670
    %v8799 = vsel %vm8159, %v8031, %v8671
    %v8800 = vsel %vm8160, %v8032, %v8672
    %v8801 = vsel %vm8161, %v8033, %v8673
    %v8802 = vsel %vm8162, %v8034, %v8674
    %v8803 = vsel %vm8163, %v8035, %v8675
    %v8804 = vsel %vm8164, %v8036, %v8676
    %v8805 = vsel %vm8165, %v8037, %v8677
    %v8806 = vsel %vm8166, %v8038, %v8678
    %v8807 = vsel %vm8167, %v8039, %v8679
    %v8808 = vsel %vm8168, %v8040, %v8680
    %v8809 = vsel %vm8169, %v8041, %v8681
    %v8810 = vsel %vm8170, %v8042, %v8682
    %v8811 = vsel %vm8171, %v8043, %v8683
    %v8812 = vsel %vm8172, %v8044, %v8684
    %v8813 = vsel %vm8173, %v8045, %v8685
    %v8814 = vsel %vm8174, %v8046, %v8686
    %v8815 = vsel %vm8175, %v8047, %v8687
    %v8816 = vsel %vm8176, %v8048, %v8688
    %v8817 = vsel %vm8177, %v8049, %v8689
    %v8818 = vsel %vm8178, %v8050, %v8690
    %v8819 = vsel %vm8179, %v8051, %v8691
    %v8820 = vsel %vm8180, %v8052, %v8692
    %v8821 = vsel %vm8181, %v8053, %v8693
    %v8822 = vsel %vm8182, %v8054, %v8694
    %v8823 = vsel %vm8183, %v8055, %v8695
    %v8824 = vsel %vm8184, %v8056, %v8696
    %v8825 = vsel %vm8185, %v8057, %v8697
    %v8826 = vsel %vm8186, %v8058, %v8698
    %v8827 = vsel %vm8187, %v8059, %v8699
    %v8828 = vsel %vm8188, %v8060, %v8700
    %v8829 = vsel %vm8189, %v8061, %v8701
    %v8830 = vsel %vm8190, %v8062, %v8702
    %v8831 = vsel %vm8191, %v8063, %v8703
    %v8832 = vsel %vm8192, %v8064, %v8704
    %v8833 = vsel %vm8193, %v8065, %v8705
    %v8834 = vsel %vm8194, %v8066, %v8706
    %v8835 = vsel %vm8195, %v8067, %v8707
    %v8836 = vsel %vm8196, %v8068, %v8708
    %v8837 = vsel %vm8197, %v8069, %v8709
    %v8838 = vsel %vm8198, %v8070, %v8710
    %v8839 = vsel %vm8199, %v8071, %v8711
    %v8840 = vsel %vm8200, %v8072, %v8712
    %v8841 = vsel %vm8201, %v8073, %v8713
    %v8842 = vsel %vm8202, %v8074, %v8714
    %v8843 = vsel %vm8203, %v8075, %v8715
    %v8844 = vsel %vm8204, %v8076, %v8716
    %v8845 = vsel %vm8205, %v8077, %v8717
    %v8846 = vsel %vm8206, %v8078, %v8718
    %v8847 = vsel %vm8207, %v8079, %v8719
    %v8848 = vsel %vm8208, %v8080, %v8720
    %v8849 = vsel %vm8209, %v8081, %v8721
    %v8850 = vsel %vm8210, %v8082, %v8722
    %v8851 = vsel %vm8211, %v8083, %v8723
    %v8852 = vsel %vm8212, %v8084, %v8724
    %v8853 = vsel %vm8213, %v8085, %v8725
    %v8854 = vsel %vm8214, %v8086, %v8726
    %v8855 = vsel %vm8215, %v8087, %v8727
    %v8856 = vsel %vm8216, %v8088, %v8728
    %v8857 = vsel %vm8217, %v8089, %v8729
    %v8858 = vsel %vm8218, %v8090, %v8730
    %v8859 = vsel %vm8219, %v8091, %v8731
    %v8860 = vsel %vm8220, %v8092, %v8732
    %v8861 = vsel %vm8221, %v8093, %v8733
    %v8862 = vsel %vm8222, %v8094, %v8734
    %v8863 = vsel %vm8223, %v8095, %v8735
    %v8864 = vsel %vm8224, %v8096, %v8736
    %v8865 = vsel %vm8225, %v8097, %v8737
    %v8866 = vsel %vm8226, %v8098, %v8738
    %v8867 = vsel %vm8227, %v8099, %v8739
    %v8868 = vsel %vm8228, %v8100, %v8740
    %v8869 = vsel %vm8229, %v8101, %v8741
    %v8870 = vsel %vm8230, %v8102, %v8742
    %v8871 = vsel %vm8231, %v8103, %v8743
    %v8872 = vsel %vm8232, %v8104, %v8744
    %v8873 = vsel %vm8233, %v8105, %v8745
    %v8874 = vsel %vm8234, %v8106, %v8746
    %v8875 = vsel %vm8235, %v8107, %v8747
    %v8876 = vsel %vm8236, %v8108, %v8748
    %v8877 = vsel %vm8237, %v8109, %v8749
    %v8878 = vsel %vm8238, %v8110, %v8750
    %v8879 = vsel %vm8239, %v8111, %v8751
    %v8880 = vsel %vm8240, %v8112, %v8752
    %v8881 = vsel %vm8241, %v8113, %v8753
    %v8882 = vsel %vm8242, %v8114, %v8754
    %v8883 = vmul.f32 %v8755, 0.4
    %v8884 = vmul.f32 %v8756, 0.4
    %v8885 = vmul.f32 %v8757, 0.4
    %v8886 = vmul.f32 %v8758, 0.4
    %v8887 = vmul.f32 %v8759, 0.4
    %v8888 = vmul.f32 %v8760, 0.4
    %v8889 = vmul.f32 %v8761, 0.4
    %v8890 = vmul.f32 %v8762, 0.4
    %v8891 = vmul.f32 %v8763, 0.4
    %v8892 = vmul.f32 %v8764, 0.4
    %v8893 = vmul.f32 %v8765, 0.4
    %v8894 = vmul.f32 %v8766, 0.4
    %v8895 = vmul.f32 %v8767, 0.4
    %v8896 = vmul.f32 %v8768, 0.4
    %v8897 = vmul.f32 %v8769, 0.4
    %v8898 = vmul.f32 %v8770, 0.4
    %v8899 = vmul.f32 %v8771, 0.4
    %v8900 = vmul.f32 %v8772, 0.4
    %v8901 = vmul.f32 %v8773, 0.4
    %v8902 = vmul.f32 %v8774, 0.4
    %v8903 = vmul.f32 %v8775, 0.4
    %v8904 = vmul.f32 %v8776, 0.4
    %v8905 = vmul.f32 %v8777, 0.4
    %v8906 = vmul.f32 %v8778, 0.4
    %v8907 = vmul.f32 %v8779, 0.4
    %v8908 = vmul.f32 %v8780, 0.4
    %v8909 = vmul.f32 %v8781, 0.4
    %v8910 = vmul.f32 %v8782, 0.4
    %v8911 = vmul.f32 %v8783, 0.4
    %v8912 = vmul.f32 %v8784, 0.4
    %v8913 = vmul.f32 %v8785, 0.4
    %v8914 = vmul.f32 %v8786, 0.4
    %v8915 = vmul.f32 %v8787, 0.4
    %v8916 = vmul.f32 %v8788, 0.4
    %v8917 = vmul.f32 %v8789, 0.4
    %v8918 = vmul.f32 %v8790, 0.4
    %v8919 = vmul.f32 %v8791, 0.4
    %v8920 = vmul.f32 %v8792, 0.4
    %v8921 = vmul.f32 %v8793, 0.4
    %v8922 = vmul.f32 %v8794, 0.4
    %v8923 = vmul.f32 %v8795, 0.4
    %v8924 = vmul.f32 %v8796, 0.4
    %v8925 = vmul.f32 %v8797, 0.4
    %v8926 = vmul.f32 %v8798, 0.4
    %v8927 = vmul.f32 %v8799, 0.4
    %v8928 = vmul.f32 %v8800, 0.4
    %v8929 = vmul.f32 %v8801, 0.4
    %v8930 = vmul.f32 %v8802, 0.4
    %v8931 = vmul.f32 %v8803, 0.4
    %v8932 = vmul.f32 %v8804, 0.4
    %v8933 = vmul.f32 %v8805, 0.4
    %v8934 = vmul.f32 %v8806, 0.4
    %v8935 = vmul.f32 %v8807, 0.4
    %v8936 = vmul.f32 %v8808, 0.4
    %v8937 = vmul.f32 %v8809, 0.4
    %v8938 = vmul.f32 %v8810, 0.4
    %v8939 = vmul.f32 %v8811, 0.4
    %v8940 = vmul.f32 %v8812, 0.4
    %v8941 = vmul.f32 %v8813, 0.4
    %v8942 = vmul.f32 %v8814, 0.4
    %v8943 = vmul.f32 %v8815, 0.4
    %v8944 = vmul.f32 %v8816, 0.4
    %v8945 = vmul.f32 %v8817, 0.4
    %v8946 = vmul.f32 %v8818, 0.4
    %v8947 = vmul.f32 %v8819, 0.4
    %v8948 = vmul.f32 %v8820, 0.4
    %v8949 = vmul.f32 %v8821, 0.4
    %v8950 = vmul.f32 %v8822, 0.4
    %v8951 = vmul.f32 %v8823, 0.4
    %v8952 = vmul.f32 %v8824, 0.4
    %v8953 = vmul.f32 %v8825, 0.4
    %v8954 = vmul.f32 %v8826, 0.4
    %v8955 = vmul.f32 %v8827, 0.4
    %v8956 = vmul.f32 %v8828, 0.4
    %v8957 = vmul.f32 %v8829, 0.4
    %v8958 = vmul.f32 %v8830, 0.4
    %v8959 = vmul.f32 %v8831, 0.4
    %v8960 = vmul.f32 %v8832, 0.4
    %v8961 = vmul.f32 %v8833, 0.4
    %v8962 = vmul.f32 %v8834, 0.4
    %v8963 = vmul.f32 %v8835, 0.4
    %v8964 = vmul.f32 %v8836, 0.4
    %v8965 = vmul.f32 %v8837, 0.4
    %v8966 = vmul.f32 %v8838, 0.4
    %v8967 = vmul.f32 %v8839, 0.4
    %v8968 = vmul.f32 %v8840, 0.4
    %v8969 = vmul.f32 %v8841, 0.4
    %v8970 = vmul.f32 %v8842, 0.4
    %v8971 = vmul.f32 %v8843, 0.4
    %v8972 = vmul.f32 %v8844, 0.4
    %v8973 = vmul.f32 %v8845, 0.4
    %v8974 = vmul.f32 %v8846, 0.4
    %v8975 = vmul.f32 %v8847, 0.4
    %v8976 = vmul.f32 %v8848, 0.4
    %v8977 = vmul.f32 %v8849, 0.4
    %v8978 = vmul.f32 %v8850, 0.4
    %v8979 = vmul.f32 %v8851, 0.4
    %v8980 = vmul.f32 %v8852, 0.4
    %v8981 = vmul.f32 %v8853, 0.4
    %v8982 = vmul.f32 %v8854, 0.4
    %v8983 = vmul.f32 %v8855, 0.4
    %v8984 = vmul.f32 %v8856, 0.4
    %v8985 = vmul.f32 %v8857, 0.4
    %v8986 = vmul.f32 %v8858, 0.4
    %v8987 = vmul.f32 %v8859, 0.4
    %v8988 = vmul.f32 %v8860, 0.4
    %v8989 = vmul.f32 %v8861, 0.4
    %v8990 = vmul.f32 %v8862, 0.4
    %v8991 = vmul.f32 %v8863, 0.4
    %v8992 = vmul.f32 %v8864, 0.4
    %v8993 = vmul.f32 %v8865, 0.4
    %v8994 = vmul.f32 %v8866, 0.4
    %v8995 = vmul.f32 %v8867, 0.4
    %v8996 = vmul.f32 %v8868, 0.4
    %v8997 = vmul.f32 %v8869, 0.4
    %v8998 = vmul.f32 %v8870, 0.4
    %v8999 = vmul.f32 %v8871, 0.4
    %v9000 = vmul.f32 %v8872, 0.4
    %v9001 = vmul.f32 %v8873, 0.4
    %v9002 = vmul.f32 %v8874, 0.4
    %v9003 = vmul.f32 %v8875, 0.4
    %v9004 = vmul.f32 %v8876, 0.4
    %v9005 = vmul.f32 %v8877, 0.4
    %v9006 = vmul.f32 %v8878, 0.4
    %v9007 = vmul.f32 %v8879, 0.4
    %v9008 = vmul.f32 %v8880, 0.4
    %v9009 = vmul.f32 %v8881, 0.4
    %v9010 = vmul.f32 %v8882, 0.4
    %v9011 = vadd.f32 %v4333, %v8883
    %v9012 = vadd.f32 %v4334, %v8884
    %v9013 = vadd.f32 %v4335, %v8885
    %v9014 = vadd.f32 %v4336, %v8886
    %v9015 = vadd.f32 %v4337, %v8887
    %v9016 = vadd.f32 %v4338, %v8888
    %v9017 = vadd.f32 %v4339, %v8889
    %v9018 = vadd.f32 %v4340, %v8890
    %v9019 = vadd.f32 %v4341, %v8891
    %v9020 = vadd.f32 %v4342, %v8892
    %v9021 = vadd.f32 %v4343, %v8893
    %v9022 = vadd.f32 %v4344, %v8894
    %v9023 = vadd.f32 %v4345, %v8895
    %v9024 = vadd.f32 %v4346, %v8896
    %v9025 = vadd.f32 %v4347, %v8897
    %v9026 = vadd.f32 %v4348, %v8898
    %v9027 = vadd.f32 %v4349, %v8899
    %v9028 = vadd.f32 %v4350, %v8900
    %v9029 = vadd.f32 %v4351, %v8901
    %v9030 = vadd.f32 %v4352, %v8902
    %v9031 = vadd.f32 %v4353, %v8903
    %v9032 = vadd.f32 %v4354, %v8904
    %v9033 = vadd.f32 %v4355, %v8905
    %v9034 = vadd.f32 %v4356, %v8906
    %v9035 = vadd.f32 %v4357, %v8907
    %v9036 = vadd.f32 %v4358, %v8908
    %v9037 = vadd.f32 %v4359, %v8909
    %v9038 = vadd.f32 %v4360, %v8910
    %v9039 = vadd.f32 %v4361, %v8911
    %v9040 = vadd.f32 %v4362, %v8912
    %v9041 = vadd.f32 %v4363, %v8913
    %v9042 = vadd.f32 %v4364, %v8914
    %v9043 = vadd.f32 %v4365, %v8915
    %v9044 = vadd.f32 %v4366, %v8916
    %v9045 = vadd.f32 %v4367, %v8917
    %v9046 = vadd.f32 %v4368, %v8918
    %v9047 = vadd.f32 %v4369, %v8919
    %v9048 = vadd.f32 %v4370, %v8920
    %v9049 = vadd.f32 %v4371, %v8921
    %v9050 = vadd.f32 %v4372, %v8922
    %v9051 = vadd.f32 %v4373, %v8923
    %v9052 = vadd.f32 %v4374, %v8924
    %v9053 = vadd.f32 %v4375, %v8925
    %v9054 = vadd.f32 %v4376, %v8926
    %v9055 = vadd.f32 %v4377, %v8927
    %v9056 = vadd.f32 %v4378, %v8928
    %v9057 = vadd.f32 %v4379, %v8929
    %v9058 = vadd.f32 %v4380, %v8930
    %v9059 = vadd.f32 %v4381, %v8931
    %v9060 = vadd.f32 %v4382, %v8932
    %v9061 = vadd.f32 %v4383, %v8933
    %v9062 = vadd.f32 %v4384, %v8934
    %v9063 = vadd.f32 %v4385, %v8935
    %v9064 = vadd.f32 %v4386, %v8936
    %v9065 = vadd.f32 %v4387, %v8937
    %v9066 = vadd.f32 %v4388, %v8938
    %v9067 = vadd.f32 %v4389, %v8939
    %v9068 = vadd.f32 %v4390, %v8940
    %v9069 = vadd.f32 %v4391, %v8941
    %v9070 = vadd.f32 %v4392, %v8942
    %v9071 = vadd.f32 %v4393, %v8943
    %v9072 = vadd.f32 %v4394, %v8944
    %v9073 = vadd.f32 %v4395, %v8945
    %v9074 = vadd.f32 %v4396, %v8946
    %v9075 = vadd.f32 %v4397, %v8947
    %v9076 = vadd.f32 %v4398, %v8948
    %v9077 = vadd.f32 %v4399, %v8949
    %v9078 = vadd.f32 %v4400, %v8950
    %v9079 = vadd.f32 %v4401, %v8951
    %v9080 = vadd.f32 %v4402, %v8952
    %v9081 = vadd.f32 %v4403, %v8953
    %v9082 = vadd.f32 %v4404, %v8954
    %v9083 = vadd.f32 %v4405, %v8955
    %v9084 = vadd.f32 %v4406, %v8956
    %v9085 = vadd.f32 %v4407, %v8957
    %v9086 = vadd.f32 %v4408, %v8958
    %v9087 = vadd.f32 %v4409, %v8959
    %v9088 = vadd.f32 %v4410, %v8960
    %v9089 = vadd.f32 %v4411, %v8961
    %v9090 = vadd.f32 %v4412, %v8962
    %v9091 = vadd.f32 %v4413, %v8963
    %v9092 = vadd.f32 %v4414, %v8964
    %v9093 = vadd.f32 %v4415, %v8965
    %v9094 = vadd.f32 %v4416, %v8966
    %v9095 = vadd.f32 %v4417, %v8967
    %v9096 = vadd.f32 %v4418, %v8968
    %v9097 = vadd.f32 %v4419, %v8969
    %v9098 = vadd.f32 %v4420, %v8970
    %v9099 = vadd.f32 %v4421, %v8971
    %v9100 = vadd.f32 %v4422, %v8972
    %v9101 = vadd.f32 %v4423, %v8973
    %v9102 = vadd.f32 %v4424, %v8974
    %v9103 = vadd.f32 %v4425, %v8975
    %v9104 = vadd.f32 %v4426, %v8976
    %v9105 = vadd.f32 %v4427, %v8977
    %v9106 = vadd.f32 %v4428, %v8978
    %v9107 = vadd.f32 %v4429, %v8979
    %v9108 = vadd.f32 %v4430, %v8980
    %v9109 = vadd.f32 %v4431, %v8981
    %v9110 = vadd.f32 %v4432, %v8982
    %v9111 = vadd.f32 %v4433, %v8983
    %v9112 = vadd.f32 %v4434, %v8984
    %v9113 = vadd.f32 %v4435, %v8985
    %v9114 = vadd.f32 %v4436, %v8986
    %v9115 = vadd.f32 %v4437, %v8987
    %v9116 = vadd.f32 %v4438, %v8988
    %v9117 = vadd.f32 %v4439, %v8989
    %v9118 = vadd.f32 %v4440, %v8990
    %v9119 = vadd.f32 %v4441, %v8991
    %v9120 = vadd.f32 %v4442, %v8992
    %v9121 = vadd.f32 %v4443, %v8993
    %v9122 = vadd.f32 %v4444, %v8994
    %v9123 = vadd.f32 %v4445, %v8995
    %v9124 = vadd.f32 %v4446, %v8996
    %v9125 = vadd.f32 %v4447, %v8997
    %v9126 = vadd.f32 %v4448, %v8998
    %v9127 = vadd.f32 %v4449, %v8999
    %v9128 = vadd.f32 %v4450, %v9000
    %v9129 = vadd.f32 %v4451, %v9001
    %v9130 = vadd.f32 %v4452, %v9002
    %v9131 = vadd.f32 %v4453, %v9003
    %v9132 = vadd.f32 %v4454, %v9004
    %v9133 = vadd.f32 %v4455, %v9005
    %v9134 = vadd.f32 %v4456, %v9006
    %v9135 = vadd.f32 %v4457, %v9007
    %v9136 = vadd.f32 %v4458, %v9008
    %v9137 = vadd.f32 %v4459, %v9009
    %v9138 = vadd.f32 %v4460, %v9010
    %v9139 = vmul.f32 %v9011, %v9011
    %v9140 = vmul.f32 %v9012, %v9012
    %v9141 = vmul.f32 %v9013, %v9013
    %v9142 = vmul.f32 %v9014, %v9014
    %v9143 = vmul.f32 %v9015, %v9015
    %v9144 = vmul.f32 %v9016, %v9016
    %v9145 = vmul.f32 %v9017, %v9017
    %v9146 = vmul.f32 %v9018, %v9018
    %v9147 = vmul.f32 %v9019, %v9019
    %v9148 = vmul.f32 %v9020, %v9020
    %v9149 = vmul.f32 %v9021, %v9021
    %v9150 = vmul.f32 %v9022, %v9022
    %v9151 = vmul.f32 %v9023, %v9023
    %v9152 = vmul.f32 %v9024, %v9024
    %v9153 = vmul.f32 %v9025, %v9025
    %v9154 = vmul.f32 %v9026, %v9026
    %v9155 = vmul.f32 %v9027, %v9027
    %v9156 = vmul.f32 %v9028, %v9028
    %v9157 = vmul.f32 %v9029, %v9029
    %v9158 = vmul.f32 %v9030, %v9030
    %v9159 = vmul.f32 %v9031, %v9031
    %v9160 = vmul.f32 %v9032, %v9032
    %v9161 = vmul.f32 %v9033, %v9033
    %v9162 = vmul.f32 %v9034, %v9034
    %v9163 = vmul.f32 %v9035, %v9035
    %v9164 = vmul.f32 %v9036, %v9036
    %v9165 = vmul.f32 %v9037, %v9037
    %v9166 = vmul.f32 %v9038, %v9038
    %v9167 = vmul.f32 %v9039, %v9039
    %v9168 = vmul.f32 %v9040, %v9040
    %v9169 = vmul.f32 %v9041, %v9041
    %v9170 = vmul.f32 %v9042, %v9042
    %v9171 = vmul.f32 %v9043, %v9043
    %v9172 = vmul.f32 %v9044, %v9044
    %v9173 = vmul.f32 %v9045, %v9045
    %v9174 = vmul.f32 %v9046, %v9046
    %v9175 = vmul.f32 %v9047, %v9047
    %v9176 = vmul.f32 %v9048, %v9048
    %v9177 = vmul.f32 %v9049, %v9049
    %v9178 = vmul.f32 %v9050, %v9050
    %v9179 = vmul.f32 %v9051, %v9051
    %v9180 = vmul.f32 %v9052, %v9052
    %v9181 = vmul.f32 %v9053, %v9053
    %v9182 = vmul.f32 %v9054, %v9054
    %v9183 = vmul.f32 %v9055, %v9055
    %v9184 = vmul.f32 %v9056, %v9056
    %v9185 = vmul.f32 %v9057, %v9057
    %v9186 = vmul.f32 %v9058, %v9058
    %v9187 = vmul.f32 %v9059, %v9059
    %v9188 = vmul.f32 %v9060, %v9060
    %v9189 = vmul.f32 %v9061, %v9061
    %v9190 = vmul.f32 %v9062, %v9062
    %v9191 = vmul.f32 %v9063, %v9063
    %v9192 = vmul.f32 %v9064, %v9064
    %v9193 = vmul.f32 %v9065, %v9065
    %v9194 = vmul.f32 %v9066, %v9066
    %v9195 = vmul.f32 %v9067, %v9067
    %v9196 = vmul.f32 %v9068, %v9068
    %v9197 = vmul.f32 %v9069, %v9069
    %v9198 = vmul.f32 %v9070, %v9070
    %v9199 = vmul.f32 %v9071, %v9071
    %v9200 = vmul.f32 %v9072, %v9072
    %v9201 = vmul.f32 %v9073, %v9073
    %v9202 = vmul.f32 %v9074, %v9074
    %v9203 = vmul.f32 %v9075, %v9075
    %v9204 = vmul.f32 %v9076, %v9076
    %v9205 = vmul.f32 %v9077, %v9077
    %v9206 = vmul.f32 %v9078, %v9078
    %v9207 = vmul.f32 %v9079, %v9079
    %v9208 = vmul.f32 %v9080, %v9080
    %v9209 = vmul.f32 %v9081, %v9081
    %v9210 = vmul.f32 %v9082, %v9082
    %v9211 = vmul.f32 %v9083, %v9083
    %v9212 = vmul.f32 %v9084, %v9084
    %v9213 = vmul.f32 %v9085, %v9085
    %v9214 = vmul.f32 %v9086, %v9086
    %v9215 = vmul.f32 %v9087, %v9087
    %v9216 = vmul.f32 %v9088, %v9088
    %v9217 = vmul.f32 %v9089, %v9089
    %v9218 = vmul.f32 %v9090, %v9090
    %v9219 = vmul.f32 %v9091, %v9091
    %v9220 = vmul.f32 %v9092, %v9092
    %v9221 = vmul.f32 %v9093, %v9093
    %v9222 = vmul.f32 %v9094, %v9094
    %v9223 = vmul.f32 %v9095, %v9095
    %v9224 = vmul.f32 %v9096, %v9096
    %v9225 = vmul.f32 %v9097, %v9097
    %v9226 = vmul.f32 %v9098, %v9098
    %v9227 = vmul.f32 %v9099, %v9099
    %v9228 = vmul.f32 %v9100, %v9100
    %v9229 = vmul.f32 %v9101, %v9101
    %v9230 = vmul.f32 %v9102, %v9102
    %v9231 = vmul.f32 %v9103, %v9103
    %v9232 = vmul.f32 %v9104, %v9104
    %v9233 = vmul.f32 %v9105, %v9105
    %v9234 = vmul.f32 %v9106, %v9106
    %v9235 = vmul.f32 %v9107, %v9107
    %v9236 = vmul.f32 %v9108, %v9108
    %v9237 = vmul.f32 %v9109, %v9109
    %v9238 = vmul.f32 %v9110, %v9110
    %v9239 = vmul.f32 %v9111, %v9111
    %v9240 = vmul.f32 %v9112, %v9112
    %v9241 = vmul.f32 %v9113, %v9113
    %v9242 = vmul.f32 %v9114, %v9114
    %v9243 = vmul.f32 %v9115, %v9115
    %v9244 = vmul.f32 %v9116, %v9116
    %v9245 = vmul.f32 %v9117, %v9117
    %v9246 = vmul.f32 %v9118, %v9118
    %v9247 = vmul.f32 %v9119, %v9119
    %v9248 = vmul.f32 %v9120, %v9120
    %v9249 = vmul.f32 %v9121, %v9121
    %v9250 = vmul.f32 %v9122, %v9122
    %v9251 = vmul.f32 %v9123, %v9123
    %v9252 = vmul.f32 %v9124, %v9124
    %v9253 = vmul.f32 %v9125, %v9125
    %v9254 = vmul.f32 %v9126, %v9126
    %v9255 = vmul.f32 %v9127, %v9127
    %v9256 = vmul.f32 %v9128, %v9128
    %v9257 = vmul.f32 %v9129, %v9129
    %v9258 = vmul.f32 %v9130, %v9130
    %v9259 = vmul.f32 %v9131, %v9131
    %v9260 = vmul.f32 %v9132, %v9132
    %v9261 = vmul.f32 %v9133, %v9133
    %v9262 = vmul.f32 %v9134, %v9134
    %v9263 = vmul.f32 %v9135, %v9135
    %v9264 = vmul.f32 %v9136, %v9136
    %v9265 = vmul.f32 %v9137, %v9137
    %v9266 = vmul.f32 %v9138, %v9138
    %v9267 = vadd.f32 %v9139, %v9140
    %9268 = vadd.xlane.f32.xlu0 %v9267
    %v9269 = vpop.xlane.xlu0 %9268
    %v9270 = vadd.f32 %v9141, %v9142
    %9271 = vadd.xlane.f32.xlu0 %v9270
    %v9272 = vpop.xlane.xlu0 %9271
    %v9273 = vadd.f32 %v9143, %v9144
    %9274 = vadd.xlane.f32.xlu0 %v9273
    %v9275 = vpop.xlane.xlu0 %9274
    %v9276 = vadd.f32 %v9145, %v9146
    %9277 = vadd.xlane.f32.xlu0 %v9276
    %v9278 = vpop.xlane.xlu0 %9277
    %v9279 = vadd.f32 %v9147, %v9148
    %9280 = vadd.xlane.f32.xlu0 %v9279
    %v9281 = vpop.xlane.xlu0 %9280
    %v9282 = vadd.f32 %v9149, %v9150
    %9283 = vadd.xlane.f32.xlu0 %v9282
    %v9284 = vpop.xlane.xlu0 %9283
    %v9285 = vadd.f32 %v9151, %v9152
    %9286 = vadd.xlane.f32.xlu0 %v9285
    %v9287 = vpop.xlane.xlu0 %9286
    %v9288 = vadd.f32 %v9153, %v9154
    %9289 = vadd.xlane.f32.xlu0 %v9288
    %v9290 = vpop.xlane.xlu0 %9289
    %v9291 = vadd.f32 %v9155, %v9156
    %9292 = vadd.xlane.f32.xlu0 %v9291
    %v9293 = vpop.xlane.xlu0 %9292
    %v9294 = vadd.f32 %v9157, %v9158
    %9295 = vadd.xlane.f32.xlu0 %v9294
    %v9296 = vpop.xlane.xlu0 %9295
    %v9297 = vadd.f32 %v9159, %v9160
    %9298 = vadd.xlane.f32.xlu0 %v9297
    %v9299 = vpop.xlane.xlu0 %9298
    %v9300 = vadd.f32 %v9161, %v9162
    %9301 = vadd.xlane.f32.xlu0 %v9300
    %v9302 = vpop.xlane.xlu0 %9301
    %v9303 = vadd.f32 %v9163, %v9164
    %9304 = vadd.xlane.f32.xlu0 %v9303
    %v9305 = vpop.xlane.xlu0 %9304
    %v9306 = vadd.f32 %v9165, %v9166
    %9307 = vadd.xlane.f32.xlu0 %v9306
    %v9308 = vpop.xlane.xlu0 %9307
    %v9309 = vadd.f32 %v9167, %v9168
    %9310 = vadd.xlane.f32.xlu0 %v9309
    %v9311 = vpop.xlane.xlu0 %9310
    %v9312 = vadd.f32 %v9169, %v9170
    %9313 = vadd.xlane.f32.xlu0 %v9312
    %v9314 = vpop.xlane.xlu0 %9313
    %v9315 = vadd.f32 %v9171, %v9172
    %9316 = vadd.xlane.f32.xlu0 %v9315
    %v9317 = vpop.xlane.xlu0 %9316
    %v9318 = vadd.f32 %v9173, %v9174
    %9319 = vadd.xlane.f32.xlu0 %v9318
    %v9320 = vpop.xlane.xlu0 %9319
    %v9321 = vadd.f32 %v9175, %v9176
    %9322 = vadd.xlane.f32.xlu0 %v9321
    %v9323 = vpop.xlane.xlu0 %9322
    %v9324 = vadd.f32 %v9177, %v9178
    %9325 = vadd.xlane.f32.xlu0 %v9324
    %v9326 = vpop.xlane.xlu0 %9325
    %v9327 = vadd.f32 %v9179, %v9180
    %9328 = vadd.xlane.f32.xlu0 %v9327
    %v9329 = vpop.xlane.xlu0 %9328
    %v9330 = vadd.f32 %v9181, %v9182
    %9331 = vadd.xlane.f32.xlu0 %v9330
    %v9332 = vpop.xlane.xlu0 %9331
    %v9333 = vadd.f32 %v9183, %v9184
    %9334 = vadd.xlane.f32.xlu0 %v9333
    %v9335 = vpop.xlane.xlu0 %9334
    %v9336 = vadd.f32 %v9185, %v9186
    %9337 = vadd.xlane.f32.xlu0 %v9336
    %v9338 = vpop.xlane.xlu0 %9337
    %v9339 = vadd.f32 %v9187, %v9188
    %9340 = vadd.xlane.f32.xlu0 %v9339
    %v9341 = vpop.xlane.xlu0 %9340
    %v9342 = vadd.f32 %v9189, %v9190
    %9343 = vadd.xlane.f32.xlu0 %v9342
    %v9344 = vpop.xlane.xlu0 %9343
    %v9345 = vadd.f32 %v9191, %v9192
    %9346 = vadd.xlane.f32.xlu0 %v9345
    %v9347 = vpop.xlane.xlu0 %9346
    %v9348 = vadd.f32 %v9193, %v9194
    %9349 = vadd.xlane.f32.xlu0 %v9348
    %v9350 = vpop.xlane.xlu0 %9349
    %v9351 = vadd.f32 %v9195, %v9196
    %9352 = vadd.xlane.f32.xlu0 %v9351
    %v9353 = vpop.xlane.xlu0 %9352
    %v9354 = vadd.f32 %v9197, %v9198
    %9355 = vadd.xlane.f32.xlu0 %v9354
    %v9356 = vpop.xlane.xlu0 %9355
    %v9357 = vadd.f32 %v9199, %v9200
    %9358 = vadd.xlane.f32.xlu0 %v9357
    %v9359 = vpop.xlane.xlu0 %9358
    %v9360 = vadd.f32 %v9201, %v9202
    %9361 = vadd.xlane.f32.xlu0 %v9360
    %v9362 = vpop.xlane.xlu0 %9361
    %v9363 = vadd.f32 %v9203, %v9204
    %9364 = vadd.xlane.f32.xlu0 %v9363
    %v9365 = vpop.xlane.xlu0 %9364
    %v9366 = vadd.f32 %v9205, %v9206
    %9367 = vadd.xlane.f32.xlu0 %v9366
    %v9368 = vpop.xlane.xlu0 %9367
    %v9369 = vadd.f32 %v9207, %v9208
    %9370 = vadd.xlane.f32.xlu0 %v9369
    %v9371 = vpop.xlane.xlu0 %9370
    %v9372 = vadd.f32 %v9209, %v9210
    %9373 = vadd.xlane.f32.xlu0 %v9372
    %v9374 = vpop.xlane.xlu0 %9373
    %v9375 = vadd.f32 %v9211, %v9212
    %9376 = vadd.xlane.f32.xlu0 %v9375
    %v9377 = vpop.xlane.xlu0 %9376
    %v9378 = vadd.f32 %v9213, %v9214
    %9379 = vadd.xlane.f32.xlu0 %v9378
    %v9380 = vpop.xlane.xlu0 %9379
    %v9381 = vadd.f32 %v9215, %v9216
    %9382 = vadd.xlane.f32.xlu0 %v9381
    %v9383 = vpop.xlane.xlu0 %9382
    %v9384 = vadd.f32 %v9217, %v9218
    %9385 = vadd.xlane.f32.xlu0 %v9384
    %v9386 = vpop.xlane.xlu0 %9385
    %v9387 = vadd.f32 %v9219, %v9220
    %9388 = vadd.xlane.f32.xlu0 %v9387
    %v9389 = vpop.xlane.xlu0 %9388
    %v9390 = vadd.f32 %v9221, %v9222
    %9391 = vadd.xlane.f32.xlu0 %v9390
    %v9392 = vpop.xlane.xlu0 %9391
    %v9393 = vadd.f32 %v9223, %v9224
    %9394 = vadd.xlane.f32.xlu0 %v9393
    %v9395 = vpop.xlane.xlu0 %9394
    %v9396 = vadd.f32 %v9225, %v9226
    %9397 = vadd.xlane.f32.xlu0 %v9396
    %v9398 = vpop.xlane.xlu0 %9397
    %v9399 = vadd.f32 %v9227, %v9228
    %9400 = vadd.xlane.f32.xlu0 %v9399
    %v9401 = vpop.xlane.xlu0 %9400
    %v9402 = vadd.f32 %v9229, %v9230
    %9403 = vadd.xlane.f32.xlu0 %v9402
    %v9404 = vpop.xlane.xlu0 %9403
    %v9405 = vadd.f32 %v9231, %v9232
    %9406 = vadd.xlane.f32.xlu0 %v9405
    %v9407 = vpop.xlane.xlu0 %9406
    %v9408 = vadd.f32 %v9233, %v9234
    %9409 = vadd.xlane.f32.xlu0 %v9408
    %v9410 = vpop.xlane.xlu0 %9409
    %v9411 = vadd.f32 %v9235, %v9236
    %9412 = vadd.xlane.f32.xlu0 %v9411
    %v9413 = vpop.xlane.xlu0 %9412
    %v9414 = vadd.f32 %v9237, %v9238
    %9415 = vadd.xlane.f32.xlu0 %v9414
    %v9416 = vpop.xlane.xlu0 %9415
    %v9417 = vadd.f32 %v9239, %v9240
    %9418 = vadd.xlane.f32.xlu0 %v9417
    %v9419 = vpop.xlane.xlu0 %9418
    %v9420 = vadd.f32 %v9241, %v9242
    %9421 = vadd.xlane.f32.xlu0 %v9420
    %v9422 = vpop.xlane.xlu0 %9421
    %v9423 = vadd.f32 %v9243, %v9244
    %9424 = vadd.xlane.f32.xlu0 %v9423
    %v9425 = vpop.xlane.xlu0 %9424
    %v9426 = vadd.f32 %v9245, %v9246
    %9427 = vadd.xlane.f32.xlu0 %v9426
    %v9428 = vpop.xlane.xlu0 %9427
    %v9429 = vadd.f32 %v9247, %v9248
    %9430 = vadd.xlane.f32.xlu0 %v9429
    %v9431 = vpop.xlane.xlu0 %9430
    %v9432 = vadd.f32 %v9249, %v9250
    %9433 = vadd.xlane.f32.xlu0 %v9432
    %v9434 = vpop.xlane.xlu0 %9433
    %v9435 = vadd.f32 %v9251, %v9252
    %9436 = vadd.xlane.f32.xlu0 %v9435
    %v9437 = vpop.xlane.xlu0 %9436
    %v9438 = vadd.f32 %v9253, %v9254
    %9439 = vadd.xlane.f32.xlu0 %v9438
    %v9440 = vpop.xlane.xlu0 %9439
    %v9441 = vadd.f32 %v9255, %v9256
    %9442 = vadd.xlane.f32.xlu0 %v9441
    %v9443 = vpop.xlane.xlu0 %9442
    %v9444 = vadd.f32 %v9257, %v9258
    %9445 = vadd.xlane.f32.xlu0 %v9444
    %v9446 = vpop.xlane.xlu0 %9445
    %v9447 = vadd.f32 %v9259, %v9260
    %9448 = vadd.xlane.f32.xlu0 %v9447
    %v9449 = vpop.xlane.xlu0 %9448
    %v9450 = vadd.f32 %v9261, %v9262
    %9451 = vadd.xlane.f32.xlu0 %v9450
    %v9452 = vpop.xlane.xlu0 %9451
    %v9453 = vadd.f32 %v9263, %v9264
    %9454 = vadd.xlane.f32.xlu0 %v9453
    %v9455 = vpop.xlane.xlu0 %9454
    %v9456 = vadd.f32 %v9265, %v9266
    %9457 = vadd.xlane.f32.xlu0 %v9456
    %v9458 = vpop.xlane.xlu0 %9457
    %v9459 = vmax.f32 %v9269, 1e-24
    %v9460 = vmax.f32 %v9272, 1e-24
    %v9461 = vmax.f32 %v9275, 1e-24
    %v9462 = vmax.f32 %v9278, 1e-24
    %v9463 = vmax.f32 %v9281, 1e-24
    %v9464 = vmax.f32 %v9284, 1e-24
    %v9465 = vmax.f32 %v9287, 1e-24
    %v9466 = vmax.f32 %v9290, 1e-24
    %v9467 = vmax.f32 %v9293, 1e-24
    %v9468 = vmax.f32 %v9296, 1e-24
    %v9469 = vmax.f32 %v9299, 1e-24
    %v9470 = vmax.f32 %v9302, 1e-24
    %v9471 = vmax.f32 %v9305, 1e-24
    %v9472 = vmax.f32 %v9308, 1e-24
    %v9473 = vmax.f32 %v9311, 1e-24
    %v9474 = vmax.f32 %v9314, 1e-24
    %v9475 = vmax.f32 %v9317, 1e-24
    %v9476 = vmax.f32 %v9320, 1e-24
    %v9477 = vmax.f32 %v9323, 1e-24
    %v9478 = vmax.f32 %v9326, 1e-24
    %v9479 = vmax.f32 %v9329, 1e-24
    %v9480 = vmax.f32 %v9332, 1e-24
    %v9481 = vmax.f32 %v9335, 1e-24
    %v9482 = vmax.f32 %v9338, 1e-24
    %v9483 = vmax.f32 %v9341, 1e-24
    %v9484 = vmax.f32 %v9344, 1e-24
    %v9485 = vmax.f32 %v9347, 1e-24
    %v9486 = vmax.f32 %v9350, 1e-24
    %v9487 = vmax.f32 %v9353, 1e-24
    %v9488 = vmax.f32 %v9356, 1e-24
    %v9489 = vmax.f32 %v9359, 1e-24
    %v9490 = vmax.f32 %v9362, 1e-24
    %v9491 = vmax.f32 %v9365, 1e-24
    %v9492 = vmax.f32 %v9368, 1e-24
    %v9493 = vmax.f32 %v9371, 1e-24
    %v9494 = vmax.f32 %v9374, 1e-24
    %v9495 = vmax.f32 %v9377, 1e-24
    %v9496 = vmax.f32 %v9380, 1e-24
    %v9497 = vmax.f32 %v9383, 1e-24
    %v9498 = vmax.f32 %v9386, 1e-24
    %v9499 = vmax.f32 %v9389, 1e-24
    %v9500 = vmax.f32 %v9392, 1e-24
    %v9501 = vmax.f32 %v9395, 1e-24
    %v9502 = vmax.f32 %v9398, 1e-24
    %v9503 = vmax.f32 %v9401, 1e-24
    %v9504 = vmax.f32 %v9404, 1e-24
    %v9505 = vmax.f32 %v9407, 1e-24
    %v9506 = vmax.f32 %v9410, 1e-24
    %v9507 = vmax.f32 %v9413, 1e-24
    %v9508 = vmax.f32 %v9416, 1e-24
    %v9509 = vmax.f32 %v9419, 1e-24
    %v9510 = vmax.f32 %v9422, 1e-24
    %v9511 = vmax.f32 %v9425, 1e-24
    %v9512 = vmax.f32 %v9428, 1e-24
    %v9513 = vmax.f32 %v9431, 1e-24
    %v9514 = vmax.f32 %v9434, 1e-24
    %v9515 = vmax.f32 %v9437, 1e-24
    %v9516 = vmax.f32 %v9440, 1e-24
    %v9517 = vmax.f32 %v9443, 1e-24
    %v9518 = vmax.f32 %v9446, 1e-24
    %v9519 = vmax.f32 %v9449, 1e-24
    %v9520 = vmax.f32 %v9452, 1e-24
    %v9521 = vmax.f32 %v9455, 1e-24
    %v9522 = vmax.f32 %v9458, 1e-24
    %v9523 = vrsqrt.pop %v9459
    %v9524 = vrsqrt.pop %v9460
    %v9525 = vrsqrt.pop %v9461
    %v9526 = vrsqrt.pop %v9462
    %v9527 = vrsqrt.pop %v9463
    %v9528 = vrsqrt.pop %v9464
    %v9529 = vrsqrt.pop %v9465
    %v9530 = vrsqrt.pop %v9466
    %v9531 = vrsqrt.pop %v9467
    %v9532 = vrsqrt.pop %v9468
    %v9533 = vrsqrt.pop %v9469
    %v9534 = vrsqrt.pop %v9470
    %v9535 = vrsqrt.pop %v9471
    %v9536 = vrsqrt.pop %v9472
    %v9537 = vrsqrt.pop %v9473
    %v9538 = vrsqrt.pop %v9474
    %v9539 = vrsqrt.pop %v9475
    %v9540 = vrsqrt.pop %v9476
    %v9541 = vrsqrt.pop %v9477
    %v9542 = vrsqrt.pop %v9478
    %v9543 = vrsqrt.pop %v9479
    %v9544 = vrsqrt.pop %v9480
    %v9545 = vrsqrt.pop %v9481
    %v9546 = vrsqrt.pop %v9482
    %v9547 = vrsqrt.pop %v9483
    %v9548 = vrsqrt.pop %v9484
    %v9549 = vrsqrt.pop %v9485
    %v9550 = vrsqrt.pop %v9486
    %v9551 = vrsqrt.pop %v9487
    %v9552 = vrsqrt.pop %v9488
    %v9553 = vrsqrt.pop %v9489
    %v9554 = vrsqrt.pop %v9490
    %v9555 = vrsqrt.pop %v9491
    %v9556 = vrsqrt.pop %v9492
    %v9557 = vrsqrt.pop %v9493
    %v9558 = vrsqrt.pop %v9494
    %v9559 = vrsqrt.pop %v9495
    %v9560 = vrsqrt.pop %v9496
    %v9561 = vrsqrt.pop %v9497
    %v9562 = vrsqrt.pop %v9498
    %v9563 = vrsqrt.pop %v9499
    %v9564 = vrsqrt.pop %v9500
    %v9565 = vrsqrt.pop %v9501
    %v9566 = vrsqrt.pop %v9502
    %v9567 = vrsqrt.pop %v9503
    %v9568 = vrsqrt.pop %v9504
    %v9569 = vrsqrt.pop %v9505
    %v9570 = vrsqrt.pop %v9506
    %v9571 = vrsqrt.pop %v9507
    %v9572 = vrsqrt.pop %v9508
    %v9573 = vrsqrt.pop %v9509
    %v9574 = vrsqrt.pop %v9510
    %v9575 = vrsqrt.pop %v9511
    %v9576 = vrsqrt.pop %v9512
    %v9577 = vrsqrt.pop %v9513
    %v9578 = vrsqrt.pop %v9514
    %v9579 = vrsqrt.pop %v9515
    %v9580 = vrsqrt.pop %v9516
    %v9581 = vrsqrt.pop %v9517
    %v9582 = vrsqrt.pop %v9518
    %v9583 = vrsqrt.pop %v9519
    %v9584 = vrsqrt.pop %v9520
    %v9585 = vrsqrt.pop %v9521
    %v9586 = vrsqrt.pop %v9522
    %v9587 = vmul.f32 %v9011, %v9523
    %v9588 = vmul.f32 %v9012, %v9523
    %v9589 = vmul.f32 %v9013, %v9524
    %v9590 = vmul.f32 %v9014, %v9524
    %v9591 = vmul.f32 %v9015, %v9525
    %v9592 = vmul.f32 %v9016, %v9525
    %v9593 = vmul.f32 %v9017, %v9526
    %v9594 = vmul.f32 %v9018, %v9526
    %v9595 = vmul.f32 %v9019, %v9527
    %v9596 = vmul.f32 %v9020, %v9527
    %v9597 = vmul.f32 %v9021, %v9528
    %v9598 = vmul.f32 %v9022, %v9528
    %v9599 = vmul.f32 %v9023, %v9529
    %v9600 = vmul.f32 %v9024, %v9529
    %v9601 = vmul.f32 %v9025, %v9530
    %v9602 = vmul.f32 %v9026, %v9530
    %v9603 = vmul.f32 %v9027, %v9531
    %v9604 = vmul.f32 %v9028, %v9531
    %v9605 = vmul.f32 %v9029, %v9532
    %v9606 = vmul.f32 %v9030, %v9532
    %v9607 = vmul.f32 %v9031, %v9533
    %v9608 = vmul.f32 %v9032, %v9533
    %v9609 = vmul.f32 %v9033, %v9534
    %v9610 = vmul.f32 %v9034, %v9534
    %v9611 = vmul.f32 %v9035, %v9535
    %v9612 = vmul.f32 %v9036, %v9535
    %v9613 = vmul.f32 %v9037, %v9536
    %v9614 = vmul.f32 %v9038, %v9536
    %v9615 = vmul.f32 %v9039, %v9537
    %v9616 = vmul.f32 %v9040, %v9537
    %v9617 = vmul.f32 %v9041, %v9538
    %v9618 = vmul.f32 %v9042, %v9538
    %v9619 = vmul.f32 %v9043, %v9539
    %v9620 = vmul.f32 %v9044, %v9539
    %v9621 = vmul.f32 %v9045, %v9540
    %v9622 = vmul.f32 %v9046, %v9540
    %v9623 = vmul.f32 %v9047, %v9541
    %v9624 = vmul.f32 %v9048, %v9541
    %v9625 = vmul.f32 %v9049, %v9542
    %v9626 = vmul.f32 %v9050, %v9542
    %v9627 = vmul.f32 %v9051, %v9543
    %v9628 = vmul.f32 %v9052, %v9543
    %v9629 = vmul.f32 %v9053, %v9544
    %v9630 = vmul.f32 %v9054, %v9544
    %v9631 = vmul.f32 %v9055, %v9545
    %v9632 = vmul.f32 %v9056, %v9545
    %v9633 = vmul.f32 %v9057, %v9546
    %v9634 = vmul.f32 %v9058, %v9546
    %v9635 = vmul.f32 %v9059, %v9547
    %v9636 = vmul.f32 %v9060, %v9547
    %v9637 = vmul.f32 %v9061, %v9548
    %v9638 = vmul.f32 %v9062, %v9548
    %v9639 = vmul.f32 %v9063, %v9549
    %v9640 = vmul.f32 %v9064, %v9549
    %v9641 = vmul.f32 %v9065, %v9550
    %v9642 = vmul.f32 %v9066, %v9550
    %v9643 = vmul.f32 %v9067, %v9551
    %v9644 = vmul.f32 %v9068, %v9551
    %v9645 = vmul.f32 %v9069, %v9552
    %v9646 = vmul.f32 %v9070, %v9552
    %v9647 = vmul.f32 %v9071, %v9553
    %v9648 = vmul.f32 %v9072, %v9553
    %v9649 = vmul.f32 %v9073, %v9554
    %v9650 = vmul.f32 %v9074, %v9554
    %v9651 = vmul.f32 %v9075, %v9555
    %v9652 = vmul.f32 %v9076, %v9555
    %v9653 = vmul.f32 %v9077, %v9556
    %v9654 = vmul.f32 %v9078, %v9556
    %v9655 = vmul.f32 %v9079, %v9557
    %v9656 = vmul.f32 %v9080, %v9557
    %v9657 = vmul.f32 %v9081, %v9558
    %v9658 = vmul.f32 %v9082, %v9558
    %v9659 = vmul.f32 %v9083, %v9559
    %v9660 = vmul.f32 %v9084, %v9559
    %v9661 = vmul.f32 %v9085, %v9560
    %v9662 = vmul.f32 %v9086, %v9560
    %v9663 = vmul.f32 %v9087, %v9561
    %v9664 = vmul.f32 %v9088, %v9561
    %v9665 = vmul.f32 %v9089, %v9562
    %v9666 = vmul.f32 %v9090, %v9562
    %v9667 = vmul.f32 %v9091, %v9563
    %v9668 = vmul.f32 %v9092, %v9563
    %v9669 = vmul.f32 %v9093, %v9564
    %v9670 = vmul.f32 %v9094, %v9564
    %v9671 = vmul.f32 %v9095, %v9565
    %v9672 = vmul.f32 %v9096, %v9565
    %v9673 = vmul.f32 %v9097, %v9566
    %v9674 = vmul.f32 %v9098, %v9566
    %v9675 = vmul.f32 %v9099, %v9567
    %v9676 = vmul.f32 %v9100, %v9567
    %v9677 = vmul.f32 %v9101, %v9568
    %v9678 = vmul.f32 %v9102, %v9568
    %v9679 = vmul.f32 %v9103, %v9569
    %v9680 = vmul.f32 %v9104, %v9569
    %v9681 = vmul.f32 %v9105, %v9570
    %v9682 = vmul.f32 %v9106, %v9570
    %v9683 = vmul.f32 %v9107, %v9571
    %v9684 = vmul.f32 %v9108, %v9571
    %v9685 = vmul.f32 %v9109, %v9572
    %v9686 = vmul.f32 %v9110, %v9572
    %v9687 = vmul.f32 %v9111, %v9573
    %v9688 = vmul.f32 %v9112, %v9573
    %v9689 = vmul.f32 %v9113, %v9574
    %v9690 = vmul.f32 %v9114, %v9574
    %v9691 = vmul.f32 %v9115, %v9575
    %v9692 = vmul.f32 %v9116, %v9575
    %v9693 = vmul.f32 %v9117, %v9576
    %v9694 = vmul.f32 %v9118, %v9576
    %v9695 = vmul.f32 %v9119, %v9577
    %v9696 = vmul.f32 %v9120, %v9577
    %v9697 = vmul.f32 %v9121, %v9578
    %v9698 = vmul.f32 %v9122, %v9578
    %v9699 = vmul.f32 %v9123, %v9579
    %v9700 = vmul.f32 %v9124, %v9579
    %v9701 = vmul.f32 %v9125, %v9580
    %v9702 = vmul.f32 %v9126, %v9580
    %v9703 = vmul.f32 %v9127, %v9581
    %v9704 = vmul.f32 %v9128, %v9581
    %v9705 = vmul.f32 %v9129, %v9582
    %v9706 = vmul.f32 %v9130, %v9582
    %v9707 = vmul.f32 %v9131, %v9583
    %v9708 = vmul.f32 %v9132, %v9583
    %v9709 = vmul.f32 %v9133, %v9584
    %v9710 = vmul.f32 %v9134, %v9584
    %v9711 = vmul.f32 %v9135, %v9585
    %v9712 = vmul.f32 %v9136, %v9585
    %v9713 = vmul.f32 %v9137, %v9586
    %v9714 = vmul.f32 %v9138, %v9586
    %9715 = vst [vmem:[#allocation10] sm:$0xff] %v9587
    %9716 = vst [vmem:[#allocation10 + $0x8] sm:$0xff] %v9588
    %9717 = vst [vmem:[#allocation10 + $0x10] sm:$0xff] %v9589
    %9718 = vst [vmem:[#allocation10 + $0x18] sm:$0xff] %v9590
    %9719 = vst [vmem:[#allocation10 + $0x20] sm:$0xff] %v9591
    %9720 = vst [vmem:[#allocation10 + $0x28] sm:$0xff] %v9592
    %9721 = vst [vmem:[#allocation10 + $0x30] sm:$0xff] %v9593
    %9722 = vst [vmem:[#allocation10 + $0x38] sm:$0xff] %v9594
    %9723 = vst [vmem:[#allocation10 + $0x40] sm:$0xff] %v9595
    %9724 = vst [vmem:[#allocation10 + $0x48] sm:$0xff] %v9596
    %9725 = vst [vmem:[#allocation10 + $0x50] sm:$0xff] %v9597
    %9726 = vst [vmem:[#allocation10 + $0x58] sm:$0xff] %v9598
    %9727 = vst [vmem:[#allocation10 + $0x60] sm:$0xff] %v9599
    %9728 = vst [vmem:[#allocation10 + $0x68] sm:$0xff] %v9600
    %9729 = vst [vmem:[#allocation10 + $0x70] sm:$0xff] %v9601
    %9730 = vst [vmem:[#allocation10 + $0x78] sm:$0xff] %v9602
    %9731 = vst [vmem:[#allocation10 + $0x80] sm:$0xff] %v9603
    %9732 = vst [vmem:[#allocation10 + $0x88] sm:$0xff] %v9604
    %9733 = vst [vmem:[#allocation10 + $0x90] sm:$0xff] %v9605
    %9734 = vst [vmem:[#allocation10 + $0x98] sm:$0xff] %v9606
    %9735 = vst [vmem:[#allocation10 + $0xa0] sm:$0xff] %v9607
    %9736 = vst [vmem:[#allocation10 + $0xa8] sm:$0xff] %v9608
    %9737 = vst [vmem:[#allocation10 + $0xb0] sm:$0xff] %v9609
    %9738 = vst [vmem:[#allocation10 + $0xb8] sm:$0xff] %v9610
    %9739 = vst [vmem:[#allocation10 + $0xc0] sm:$0xff] %v9611
    %9740 = vst [vmem:[#allocation10 + $0xc8] sm:$0xff] %v9612
    %9741 = vst [vmem:[#allocation10 + $0xd0] sm:$0xff] %v9613
    %9742 = vst [vmem:[#allocation10 + $0xd8] sm:$0xff] %v9614
    %9743 = vst [vmem:[#allocation10 + $0xe0] sm:$0xff] %v9615
    %9744 = vst [vmem:[#allocation10 + $0xe8] sm:$0xff] %v9616
    %9745 = vst [vmem:[#allocation10 + $0xf0] sm:$0xff] %v9617
    %9746 = vst [vmem:[#allocation10 + $0xf8] sm:$0xff] %v9618
    %9747 = vst [vmem:[#allocation10 + $0x100] sm:$0xff] %v9619
    %9748 = vst [vmem:[#allocation10 + $0x108] sm:$0xff] %v9620
    %9749 = vst [vmem:[#allocation10 + $0x110] sm:$0xff] %v9621
    %9750 = vst [vmem:[#allocation10 + $0x118] sm:$0xff] %v9622
    %9751 = vst [vmem:[#allocation10 + $0x120] sm:$0xff] %v9623
    %9752 = vst [vmem:[#allocation10 + $0x128] sm:$0xff] %v9624
    %9753 = vst [vmem:[#allocation10 + $0x130] sm:$0xff] %v9625
    %9754 = vst [vmem:[#allocation10 + $0x138] sm:$0xff] %v9626
    %9755 = vst [vmem:[#allocation10 + $0x140] sm:$0xff] %v9627
    %9756 = vst [vmem:[#allocation10 + $0x148] sm:$0xff] %v9628
    %9757 = vst [vmem:[#allocation10 + $0x150] sm:$0xff] %v9629
    %9758 = vst [vmem:[#allocation10 + $0x158] sm:$0xff] %v9630
    %9759 = vst [vmem:[#allocation10 + $0x160] sm:$0xff] %v9631
    %9760 = vst [vmem:[#allocation10 + $0x168] sm:$0xff] %v9632
    %9761 = vst [vmem:[#allocation10 + $0x170] sm:$0xff] %v9633
    %9762 = vst [vmem:[#allocation10 + $0x178] sm:$0xff] %v9634
    %9763 = vst [vmem:[#allocation10 + $0x180] sm:$0xff] %v9635
    %9764 = vst [vmem:[#allocation10 + $0x188] sm:$0xff] %v9636
    %9765 = vst [vmem:[#allocation10 + $0x190] sm:$0xff] %v9637
    %9766 = vst [vmem:[#allocation10 + $0x198] sm:$0xff] %v9638
    %9767 = vst [vmem:[#allocation10 + $0x1a0] sm:$0xff] %v9639
    %9768 = vst [vmem:[#allocation10 + $0x1a8] sm:$0xff] %v9640
    %9769 = vst [vmem:[#allocation10 + $0x1b0] sm:$0xff] %v9641
    %9770 = vst [vmem:[#allocation10 + $0x1b8] sm:$0xff] %v9642
    %9771 = vst [vmem:[#allocation10 + $0x1c0] sm:$0xff] %v9643
    %9772 = vst [vmem:[#allocation10 + $0x1c8] sm:$0xff] %v9644
    %9773 = vst [vmem:[#allocation10 + $0x1d0] sm:$0xff] %v9645
    %9774 = vst [vmem:[#allocation10 + $0x1d8] sm:$0xff] %v9646
    %9775 = vst [vmem:[#allocation10 + $0x1e0] sm:$0xff] %v9647
    %9776 = vst [vmem:[#allocation10 + $0x1e8] sm:$0xff] %v9648
    %9777 = vst [vmem:[#allocation10 + $0x1f0] sm:$0xff] %v9649
    %9778 = vst [vmem:[#allocation10 + $0x1f8] sm:$0xff] %v9650
    %9779 = vst [vmem:[#allocation10 + $0x200] sm:$0xff] %v9651
    %9780 = vst [vmem:[#allocation10 + $0x208] sm:$0xff] %v9652
    %9781 = vst [vmem:[#allocation10 + $0x210] sm:$0xff] %v9653
    %9782 = vst [vmem:[#allocation10 + $0x218] sm:$0xff] %v9654
    %9783 = vst [vmem:[#allocation10 + $0x220] sm:$0xff] %v9655
    %9784 = vst [vmem:[#allocation10 + $0x228] sm:$0xff] %v9656
    %9785 = vst [vmem:[#allocation10 + $0x230] sm:$0xff] %v9657
    %9786 = vst [vmem:[#allocation10 + $0x238] sm:$0xff] %v9658
    %9787 = vst [vmem:[#allocation10 + $0x240] sm:$0xff] %v9659
    %9788 = vst [vmem:[#allocation10 + $0x248] sm:$0xff] %v9660
    %9789 = vst [vmem:[#allocation10 + $0x250] sm:$0xff] %v9661
    %9790 = vst [vmem:[#allocation10 + $0x258] sm:$0xff] %v9662
    %9791 = vst [vmem:[#allocation10 + $0x260] sm:$0xff] %v9663
    %9792 = vst [vmem:[#allocation10 + $0x268] sm:$0xff] %v9664
    %9793 = vst [vmem:[#allocation10 + $0x270] sm:$0xff] %v9665
    %9794 = vst [vmem:[#allocation10 + $0x278] sm:$0xff] %v9666
    %9795 = vst [vmem:[#allocation10 + $0x280] sm:$0xff] %v9667
    %9796 = vst [vmem:[#allocation10 + $0x288] sm:$0xff] %v9668
    %9797 = vst [vmem:[#allocation10 + $0x290] sm:$0xff] %v9669
    %9798 = vst [vmem:[#allocation10 + $0x298] sm:$0xff] %v9670
    %9799 = vst [vmem:[#allocation10 + $0x2a0] sm:$0xff] %v9671
    %9800 = vst [vmem:[#allocation10 + $0x2a8] sm:$0xff] %v9672
    %9801 = vst [vmem:[#allocation10 + $0x2b0] sm:$0xff] %v9673
    %9802 = vst [vmem:[#allocation10 + $0x2b8] sm:$0xff] %v9674
    %9803 = vst [vmem:[#allocation10 + $0x2c0] sm:$0xff] %v9675
    %9804 = vst [vmem:[#allocation10 + $0x2c8] sm:$0xff] %v9676
    %9805 = vst [vmem:[#allocation10 + $0x2d0] sm:$0xff] %v9677
    %9806 = vst [vmem:[#allocation10 + $0x2d8] sm:$0xff] %v9678
    %9807 = vst [vmem:[#allocation10 + $0x2e0] sm:$0xff] %v9679
    %9808 = vst [vmem:[#allocation10 + $0x2e8] sm:$0xff] %v9680
    %9809 = vst [vmem:[#allocation10 + $0x2f0] sm:$0xff] %v9681
    %9810 = vst [vmem:[#allocation10 + $0x2f8] sm:$0xff] %v9682
    %9811 = vst [vmem:[#allocation10 + $0x300] sm:$0xff] %v9683
    %9812 = vst [vmem:[#allocation10 + $0x308] sm:$0xff] %v9684
    %9813 = vst [vmem:[#allocation10 + $0x310] sm:$0xff] %v9685
    %9814 = vst [vmem:[#allocation10 + $0x318] sm:$0xff] %v9686
    %9815 = vst [vmem:[#allocation10 + $0x320] sm:$0xff] %v9687
    %9816 = vst [vmem:[#allocation10 + $0x328] sm:$0xff] %v9688
    %9817 = vst [vmem:[#allocation10 + $0x330] sm:$0xff] %v9689
    %9818 = vst [vmem:[#allocation10 + $0x338] sm:$0xff] %v9690
    %9819 = vst [vmem:[#allocation10 + $0x340] sm:$0xff] %v9691
    %9820 = vst [vmem:[#allocation10 + $0x348] sm:$0xff] %v9692
    %9821 = vst [vmem:[#allocation10 + $0x350] sm:$0xff] %v9693
    %9822 = vst [vmem:[#allocation10 + $0x358] sm:$0xff] %v9694
    %9823 = vst [vmem:[#allocation10 + $0x360] sm:$0xff] %v9695
    %9824 = vst [vmem:[#allocation10 + $0x368] sm:$0xff] %v9696
    %9825 = vst [vmem:[#allocation10 + $0x370] sm:$0xff] %v9697
    %9826 = vst [vmem:[#allocation10 + $0x378] sm:$0xff] %v9698
    %9827 = vst [vmem:[#allocation10 + $0x380] sm:$0xff] %v9699
    %9828 = vst [vmem:[#allocation10 + $0x388] sm:$0xff] %v9700
    %9829 = vst [vmem:[#allocation10 + $0x390] sm:$0xff] %v9701
    %9830 = vst [vmem:[#allocation10 + $0x398] sm:$0xff] %v9702
    %9831 = vst [vmem:[#allocation10 + $0x3a0] sm:$0xff] %v9703
    %9832 = vst [vmem:[#allocation10 + $0x3a8] sm:$0xff] %v9704
    %9833 = vst [vmem:[#allocation10 + $0x3b0] sm:$0xff] %v9705
    %9834 = vst [vmem:[#allocation10 + $0x3b8] sm:$0xff] %v9706
    %9835 = vst [vmem:[#allocation10 + $0x3c0] sm:$0xff] %v9707
    %9836 = vst [vmem:[#allocation10 + $0x3c8] sm:$0xff] %v9708
    %9837 = vst [vmem:[#allocation10 + $0x3d0] sm:$0xff] %v9709
    %9838 = vst [vmem:[#allocation10 + $0x3d8] sm:$0xff] %v9710
    %9839 = vst [vmem:[#allocation10 + $0x3e0] sm:$0xff] %v9711
    %9840 = vst [vmem:[#allocation10 + $0x3e8] sm:$0xff] %v9712
    %9841 = vst [vmem:[#allocation10 + $0x3f0] sm:$0xff] %v9713
    %9842 = vst [vmem:[#allocation10 + $0x3f8] sm:$0xff] %v9714
    // Predicated region
    $region42: #{tpu_custom_call.1} parent=1 // pred_check
      _
    $region43: #{tpu_custom_call.1} parent=1 // pred_check_branch
      %9844 = sbr.rel (0) target = $region45
    $region44: #{tpu_custom_call.1} parent=1 // pred_region
      %s9846 = ssub.s32 16384, 16384
      %9847 = vsyncadd [#allocation4], %s9846
      %s9848 = sshll.u32 [#allocation10], 4
      %s9849 = int_to_ptr.vmem [resolvable:$true] %s9848
      %9854 = dma.vmem_to_hbm [thread:$0]  %s9849, 16384, %s6, [#allocation4], 256, 256, 16
    $region45: #{tpu_custom_call.1} parent=1 // pred_fallthru
      _
    // Predicated region
    $region46: #{tpu_custom_call.1} parent=1 // pred_check
      _
    $region47: #{tpu_custom_call.1} parent=1 // pred_check_branch
      %9856 = sbr.rel (0) target = $region49
    $region48: #{tpu_custom_call.1} parent=1 // pred_region
      %9857 = dma.done [#allocation4], 16384
    $region49: #{tpu_custom_call.1} parent=1 // pred_fallthru
      _
    %9858 = vsyncpa [#allocation3], 1
    %9859 = vsyncpa [#allocation6], 1
    %9860 = vsyncpa [#allocation9], 1
    %9861 = vsyncpa [#allocation4], 1

</llo_original>
